<compile_context>
chip_gen: v7x
topology: tpu7x:2x2x1
jax: 0.10.0
libtpu: 0.0.40
codegen_flags: <defaults>
</compile_context>

<pallas_src>
import functools

import jax
import jax.numpy as jnp
from jax import lax
from jax.experimental import pallas as pl
from jax.experimental.pallas import tpu as pltpu

D_IN, H1, H2, D_OUT = 10, 1024, 2048, 3


# ---------------------------------------------------------------------------
# Kernels
# ---------------------------------------------------------------------------
def mlp_fused_kernel(x_ref, w1_ref, b1_ref, w2_ref, b2_ref, w3t_ref, b3_ref, o_ref):
    """Whole network in one grid step (S == 1). Final bias fused in-kernel."""
    h1 = jnp.dot(x_ref[...], w1_ref[...], preferred_element_type=jnp.float32)
    h1 = jnp.maximum(h1 + b1_ref[...], 0.0).astype(w2_ref.dtype)
    h2 = jnp.dot(h1, w2_ref[...], preferred_element_type=jnp.float32)
    h2 = jnp.maximum(h2 + b2_ref[...], 0.0).astype(w3t_ref.dtype)
    # w3 is stored transposed (D_OUT, H2): contract last dims -> (B, D_OUT).
    out = lax.dot_general(h2, w3t_ref[...], (((1,), (1,)), ((), ())),
                          preferred_element_type=jnp.float32)
    o_ref[...] = (out + b3_ref[...]).astype(o_ref.dtype)


def mlp_split_kernel(x_ref, w1_ref, b1_ref, w2_ref, b2_ref, w3t_ref, o_ref):
    """Per-core slice of layer-2's output features (S > 1, v7x dual-TC).
    Layer-1 (B,10)@(10,1024) is negligible and recomputed per slice; the
    per-slice layer-3 partials are reduced (and b3 added) in the wrapper."""
    h1 = jnp.dot(x_ref[...], w1_ref[...], preferred_element_type=jnp.float32)
    h1 = jnp.maximum(h1 + b1_ref[...], 0.0).astype(w2_ref.dtype)
    h2 = jnp.dot(h1, w2_ref[...], preferred_element_type=jnp.float32)
    h2 = jnp.maximum(h2 + b2_ref[...], 0.0).astype(w3t_ref.dtype)
    part = lax.dot_general(h2, w3t_ref[...], (((1,), (1,)), ((), ())),
                           preferred_element_type=jnp.float32)
    o_ref[...] = part[None].astype(o_ref.dtype)


# ---------------------------------------------------------------------------
# Parameter handling
# ---------------------------------------------------------------------------
def init_params(key):
    """Deterministic init mimicking torch.nn.Linear's U(-1/sqrt(fan_in), 1/sqrt(fan_in)).
    Weights stored as (in_features, out_features); biases as (1, out_features)."""
    dims = [(D_IN, H1), (H1, H2), (H2, D_OUT)]
    params = []
    for i, (fan_in, fan_out) in enumerate(dims):
        kw, kb = jax.random.split(jax.random.fold_in(key, i))
        bound = 1.0 / jnp.sqrt(float(fan_in))
        w = jax.random.uniform(kw, (fan_in, fan_out), jnp.float32, -bound, bound)
        b = jax.random.uniform(kb, (1, fan_out), jnp.float32, -bound, bound)
        params += [w, b]
    return tuple(params)


def prepare_params(params, compute_dtype=jnp.bfloat16):
    """ONE-TIME conversion (call once, outside the forward path):
      * cast weights to `compute_dtype` (bf16 halves the dominant HBM stream),
      * transpose w3 to lane-dense (D_OUT, H2),
      * biases stay f32 (applied to the f32 accumulator).
    Pass compute_dtype=jnp.float32 if bit-level parity with the torch f32
    module is required (kernel is DMA-bound either way)."""
    w1, b1, w2, b2, w3, b3 = params
    return (w1.astype(compute_dtype), b1,
            w2.astype(compute_dtype), b2,
            jnp.transpose(w3).astype(compute_dtype), b3)


def _default_num_splits():
    """2 on dual-TensorCore chips (v7x) so each core streams half of w2;
    1 on single-TC chips (v5e/v6e).  NOTE: trace-time device query — under
    AOT / multi-platform compilation pass `num_splits` explicitly instead."""
    try:
        kind = jax.devices()[0].device_kind.lower()
    except Exception:
        return 1
    return 2 if ("v7" in kind or "7x" in kind) else 1


# ---------------------------------------------------------------------------
# Forward
# ---------------------------------------------------------------------------
def custom_cache_options_forward(x, prepared_params, num_splits=None):
    w1, b1, w2, b2, w3t, b3 = prepared_params
    B, d_in = x.shape
    h1 = w1.shape[1]
    h2 = w2.shape[1]
    d_out = w3t.shape[0]
    wdt = w1.dtype

    S = _default_num_splits() if num_splits is None else int(num_splits)
    if S < 1 or h2 % S != 0:
        S = 1
    tn = h2 // S

    xc = x.astype(wdt)

    flops = 2 * B * (d_in * h1 + h1 * h2 + h2 * d_out)
    bytes_accessed = int(
        xc.size * xc.dtype.itemsize
        + sum(int(a.size) * a.dtype.itemsize for a in prepared_params)
        + B * d_out * 4
    )
    cost = pl.CostEstimate(flops=flops, transcendentals=0,
                           bytes_accessed=bytes_accessed)

    if S == 1:
        # Fully fused: one dispatch, (B, D_OUT) output, bias added in-kernel.
        return pl.pallas_call(
            mlp_fused_kernel,
            out_shape=jax.ShapeDtypeStruct((B, d_out), jnp.float32),
            grid=(1,),
            in_specs=[
                pl.BlockSpec((B, d_in), lambda i: (0, 0)),      # x
                pl.BlockSpec((d_in, h1), lambda i: (0, 0)),     # w1
                pl.BlockSpec((1, h1), lambda i: (0, 0)),        # b1 (f32)
                pl.BlockSpec((h1, h2), lambda i: (0, 0)),       # w2
                pl.BlockSpec((1, h2), lambda i: (0, 0)),        # b2 (f32)
                pl.BlockSpec((d_out, h2), lambda i: (0, 0)),    # w3^T (lane-dense)
                pl.BlockSpec((1, d_out), lambda i: (0, 0)),     # b3 (f32)
            ],
            out_specs=pl.BlockSpec((B, d_out), lambda i: (0, 0)),
            compiler_params=pltpu.CompilerParams(
                dimension_semantics=("arbitrary",),
                vmem_limit_bytes=24 << 20,
            ),
            cost_estimate=cost,
        )(xc, w1, b1, w2, b2, w3t, b3)

    # S > 1 (v7x): core-shard the layer-2 output features across TensorCores.
    core_parallel = getattr(pltpu, "CORE_PARALLEL", "parallel")
    partial = pl.pallas_call(
        mlp_split_kernel,
        out_shape=jax.ShapeDtypeStruct((S, B, d_out), jnp.float32),
        grid=(S,),
        in_specs=[
            pl.BlockSpec((B, d_in), lambda i: (0, 0)),      # x        (resident)
            pl.BlockSpec((d_in, h1), lambda i: (0, 0)),     # w1       (resident)
            pl.BlockSpec((1, h1), lambda i: (0, 0)),        # b1 (f32, resident)
            pl.BlockSpec((h1, tn), lambda i: (0, i)),       # w2 tile  (N-split)
            pl.BlockSpec((1, tn), lambda i: (0, i)),        # b2 tile  (f32)
            pl.BlockSpec((d_out, tn), lambda i: (0, i)),    # w3^T tile (K-split)
        ],
        out_specs=pl.BlockSpec((1, B, d_out), lambda i: (i, 0, 0)),
        compiler_params=pltpu.CompilerParams(
            dimension_semantics=(core_parallel,),
            vmem_limit_bytes=24 << 20,
        ),
        cost_estimate=cost,
    )(xc, w1, b1, w2, b2, w3t)
    # Tiny (S, B, 3) reduction + final bias (only on the dual-TC path).
    return jnp.sum(partial, axis=0) + b3


# ---------------------------------------------------------------------------
# References
# ---------------------------------------------------------------------------
def reference_forward_bf16(x, params):
    """Mirrors the kernel numerics: bf16 operands, f32 accumulation, f32 biases."""
    w1, b1, w2, b2, w3, b3 = params
    xb = x.astype(jnp.bfloat16)
    h1 = jnp.dot(xb, w1.astype(jnp.bfloat16), preferred_element_type=jnp.float32)
    h1 = jnp.maximum(h1 + b1, 0.0).astype(jnp.bfloat16)
    h2 = jnp.dot(h1, w2.astype(jnp.bfloat16), preferred_element_type=jnp.float32)
    h2 = jnp.maximum(h2 + b2, 0.0).astype(jnp.bfloat16)
    return jnp.dot(h2, w3.astype(jnp.bfloat16), preferred_element_type=jnp.float32) + b3


def reference_forward_f32(x, params):
    w1, b1, w2, b2, w3, b3 = params
    h1 = jnp.maximum(x @ w1 + b1, 0.0)
    h2 = jnp.maximum(h1 @ w2 + b2, 0.0)
    return h2 @ w3 + b3


if __name__ == "__main__":
    key = jax.random.PRNGKey(0)
    kx, kp = jax.random.split(key)

    B = 8  # small batch; input features = 10 per the module definition
    x = jax.random.normal(kx, (B, D_IN), dtype=jnp.float32)
    params = init_params(kp)

    # One-time prep (cast + transpose) — hoisted out of the forward path.
    prepared = jax.block_until_ready(prepare_params(params))

    S = _default_num_splits()  # resolved once, outside jit (AOT-safe)
    fwd = jax.jit(functools.partial(custom_cache_options_forward, num_splits=S))

    out = jax.block_until_ready(fwd(x, prepared))
    assert out.shape == (B, D_OUT), out.shape

    # Exact-numerics check against a JAX reference using the same bf16 compute.
    ref_bf16 = reference_forward_bf16(x, params)
    assert jnp.allclose(out, ref_bf16, atol=1e-2, rtol=1e-2), "mismatch vs bf16 reference"

    # Sanity check against the full-f32 reference (loose tolerance for bf16 weights).
    ref_f32 = reference_forward_f32(x, params)
    assert jnp.allclose(out, ref_f32, atol=1e-1, rtol=1e-1), "mismatch vs f32 reference"

    print("KERNEL_OK")
</pallas_src>

<mosaic_0001>
module attributes {stable_mosaic.version = 11 : i64} {
  func.func @mlp_fused_kernel(%arg0: i32, %arg1: memref<8x10xbf16, #tpu.memory_space<vmem>>, %arg2: memref<10x1024xbf16, #tpu.memory_space<vmem>>, %arg3: memref<1x1024xf32, #tpu.memory_space<vmem>>, %arg4: memref<1024x2048xbf16, #tpu.memory_space<vmem>>, %arg5: memref<1x2048xf32, #tpu.memory_space<vmem>>, %arg6: memref<3x2048xbf16, #tpu.memory_space<vmem>>, %arg7: memref<1x3xf32, #tpu.memory_space<vmem>>, %arg8: memref<8x3xf32, #tpu.memory_space<vmem>>) attributes {dimension_semantics = [#tpu.dimension_semantics<arbitrary>], iteration_bounds = array<i64: 1>, scalar_prefetch = 0 : i64, scratch_operands = 0 : i64, tpu.core_type = #tpu.core_type<tc>, window_params = [{pipeline_mode = #tpu.pipeline_mode<synchronous>, transform_indices = @transform_0, window_bounds = array<i64: 8, 10>}, {pipeline_mode = #tpu.pipeline_mode<synchronous>, transform_indices = @transform_1, window_bounds = array<i64: 10, 1024>}, {pipeline_mode = #tpu.pipeline_mode<synchronous>, transform_indices = @transform_2, window_bounds = array<i64: 1, 1024>}, {pipeline_mode = #tpu.pipeline_mode<synchronous>, transform_indices = @transform_3, window_bounds = array<i64: 1024, 2048>}, {pipeline_mode = #tpu.pipeline_mode<synchronous>, transform_indices = @transform_4, window_bounds = array<i64: 1, 2048>}, {pipeline_mode = #tpu.pipeline_mode<synchronous>, transform_indices = @transform_5, window_bounds = array<i64: 3, 2048>}, {pipeline_mode = #tpu.pipeline_mode<synchronous>, transform_indices = @transform_6, window_bounds = array<i64: 1, 3>}, {pipeline_mode = #tpu.pipeline_mode<synchronous>, transform_indices = @transform_7, window_bounds = array<i64: 8, 3>}]} {
    %c0 = arith.constant 0 : index
    %c0_0 = arith.constant 0 : index
    %0 = vector.load %arg1[%c0, %c0_0] : memref<8x10xbf16, #tpu.memory_space<vmem>>, vector<8x10xbf16>
    %c0_1 = arith.constant 0 : index
    %c0_2 = arith.constant 0 : index
    %1 = vector.load %arg2[%c0_1, %c0_2] : memref<10x1024xbf16, #tpu.memory_space<vmem>>, vector<10x1024xbf16>
    %cst = arith.constant dense<0.000000e+00> : vector<8x1024xf32>
    %2 = tpu.matmul %0, %1, %cst {dimension_numbers = #tpu.dot_dimension_numbers<[1], [0], [0], [1], [0, 0, 1, 1], [], []>} : vector<8x10xbf16>, vector<10x1024xbf16>, vector<8x1024xf32> -> vector<8x1024xf32>
    %c0_3 = arith.constant 0 : index
    %c0_4 = arith.constant 0 : index
    %3 = vector.load %arg3[%c0_3, %c0_4] : memref<1x1024xf32, #tpu.memory_space<vmem>>, vector<1x1024xf32>
    %4 = vector.broadcast %3 : vector<1x1024xf32> to vector<8x1024xf32>
    %5 = arith.addf %2, %4 : vector<8x1024xf32>
    %cst_5 = arith.constant 0.000000e+00 : f32
    %6 = vector.broadcast %cst_5 : f32 to vector<8x1024xf32>
    %7 = arith.maximumf %5, %6 : vector<8x1024xf32>
    %8 = arith.truncf %7 : vector<8x1024xf32> to vector<8x1024xbf16>
    %c0_6 = arith.constant 0 : index
    %c0_7 = arith.constant 0 : index
    %9 = vector.load %arg4[%c0_6, %c0_7] : memref<1024x2048xbf16, #tpu.memory_space<vmem>>, vector<1024x2048xbf16>
    %cst_8 = arith.constant dense<0.000000e+00> : vector<8x2048xf32>
    %10 = tpu.matmul %8, %9, %cst_8 {dimension_numbers = #tpu.dot_dimension_numbers<[1], [0], [0], [1], [0, 0, 1, 1], [], []>} : vector<8x1024xbf16>, vector<1024x2048xbf16>, vector<8x2048xf32> -> vector<8x2048xf32>
    %c0_9 = arith.constant 0 : index
    %c0_10 = arith.constant 0 : index
    %11 = vector.load %arg5[%c0_9, %c0_10] : memref<1x2048xf32, #tpu.memory_space<vmem>>, vector<1x2048xf32>
    %12 = vector.broadcast %11 : vector<1x2048xf32> to vector<8x2048xf32>
    %13 = arith.addf %10, %12 : vector<8x2048xf32>
    %cst_11 = arith.constant 0.000000e+00 : f32
    %14 = vector.broadcast %cst_11 : f32 to vector<8x2048xf32>
    %15 = arith.maximumf %13, %14 : vector<8x2048xf32>
    %16 = arith.truncf %15 : vector<8x2048xf32> to vector<8x2048xbf16>
    %c0_12 = arith.constant 0 : index
    %c0_13 = arith.constant 0 : index
    %17 = vector.load %arg6[%c0_12, %c0_13] : memref<3x2048xbf16, #tpu.memory_space<vmem>>, vector<3x2048xbf16>
    %cst_14 = arith.constant dense<0.000000e+00> : vector<8x3xf32>
    %18 = tpu.matmul %16, %17, %cst_14 {dimension_numbers = #tpu.dot_dimension_numbers<[1], [1], [0], [0], [0, 0, 1, 0], [], []>} : vector<8x2048xbf16>, vector<3x2048xbf16>, vector<8x3xf32> -> vector<8x3xf32>
    %c0_15 = arith.constant 0 : index
    %c0_16 = arith.constant 0 : index
    %19 = vector.load %arg7[%c0_15, %c0_16] : memref<1x3xf32, #tpu.memory_space<vmem>>, vector<1x3xf32>
    %20 = vector.broadcast %19 : vector<1x3xf32> to vector<8x3xf32>
    %21 = arith.addf %18, %20 : vector<8x3xf32>
    %c0_17 = arith.constant 0 : index
    %c0_18 = arith.constant 0 : index
    %22 = vector.load %arg8[%c0_17, %c0_18] : memref<8x3xf32, #tpu.memory_space<vmem>>, vector<8x3xf32>
    tpu.vector_store %arg8[%c0_17, %c0_18], %21 {strides = array<i32>} : memref<8x3xf32, #tpu.memory_space<vmem>>, vector<8x3xf32>,
    return
  }
  func.func @transform_0(%arg0: i32) -> (i32, i32) {
    %c0_i32 = arith.constant 0 : i32
    %c0_i32_0 = arith.constant 0 : i32
    %c0_i32_1 = arith.constant 0 : i32
    return %c0_i32, %c0_i32_0 : i32, i32
  }
  func.func @transform_1(%arg0: i32) -> (i32, i32) {
    %c0_i32 = arith.constant 0 : i32
    %c0_i32_0 = arith.constant 0 : i32
    %c0_i32_1 = arith.constant 0 : i32
    return %c0_i32, %c0_i32_0 : i32, i32
  }
  func.func @transform_2(%arg0: i32) -> (i32, i32) {
    %c0_i32 = arith.constant 0 : i32
    %c0_i32_0 = arith.constant 0 : i32
    %c0_i32_1 = arith.constant 0 : i32
    return %c0_i32, %c0_i32_0 : i32, i32
  }
  func.func @transform_3(%arg0: i32) -> (i32, i32) {
    %c0_i32 = arith.constant 0 : i32
    %c0_i32_0 = arith.constant 0 : i32
    %c0_i32_1 = arith.constant 0 : i32
    return %c0_i32, %c0_i32_0 : i32, i32
  }
  func.func @transform_4(%arg0: i32) -> (i32, i32) {
    %c0_i32 = arith.constant 0 : i32
    %c0_i32_0 = arith.constant 0 : i32
    %c0_i32_1 = arith.constant 0 : i32
    return %c0_i32, %c0_i32_0 : i32, i32
  }
  func.func @transform_5(%arg0: i32) -> (i32, i32) {
    %c0_i32 = arith.constant 0 : i32
    %c0_i32_0 = arith.constant 0 : i32
    %c0_i32_1 = arith.constant 0 : i32
    return %c0_i32, %c0_i32_0 : i32, i32
  }
  func.func @transform_6(%arg0: i32) -> (i32, i32) {
    %c0_i32 = arith.constant 0 : i32
    %c0_i32_0 = arith.constant 0 : i32
    %c0_i32_1 = arith.constant 0 : i32
    return %c0_i32, %c0_i32_0 : i32, i32
  }
  func.func @transform_7(%arg0: i32) -> (i32, i32) {
    %c0_i32 = arith.constant 0 : i32
    %c0_i32_0 = arith.constant 0 : i32
    %c0_i32_1 = arith.constant 0 : i32
    return %c0_i32, %c0_i32_0 : i32, i32
  }
}

</mosaic_0001>

<llo_original>
// kernel: custom_cache_options_forward.1
$region0: #{custom_cache_options_forward.1}
  #allocation0 [shape = 'u32[]', space=smem, size = 0x4, offset = 0x4, fixed_abs, tag = 'smem constant byte address 0x4 - core index']
  #allocation1 [shape = 'u32[144,128]{1,0:T(1,128)}', space=vmem, size = 0x12000, scoped, tag = 'internal scratch']
  %s0 = inlined_call_operand.vmem [shape: bf16[8,10], index: 0, kind: input, shape index: {}]
  %s1 = inlined_call_operand.hbm [shape: bf16[10,1024], index: 1, kind: input, shape index: {}]
  %s2 = inlined_call_operand.hbm [shape: f32[1,1024], index: 2, kind: input, shape index: {}]
  %s3 = inlined_call_operand.hbm [shape: bf16[1024,2048], index: 3, kind: input, shape index: {}]
  %s4 = inlined_call_operand.hbm [shape: f32[1,2048], index: 4, kind: input, shape index: {}]
  %s5 = inlined_call_operand.hbm [shape: bf16[3,2048], index: 5, kind: input, shape index: {}]
  %s6 = inlined_call_operand.hbm [shape: f32[1,3], index: 6, kind: input, shape index: {}]
  %s7 = inlined_call_operand.vmem [shape: f32[8,3], index: 7, kind: output, shape index: {}]
  %s8 = sld [smem:[#allocation0]]
  $region62: #{custom_cache_options_forward.1} parent=0
    _
  %s10 = ssub.s32 1, %s8
  %s11 = scalar_select 0, %s10, %s8
  $region1: #{custom_cache_options_forward.1} parent=0
    #allocation2 [shape = 'u8[32768]{0}', space=vmem, size = 0x8000, scoped, tag = 'input window, operand 1, single buffered']
    #allocation3 [shape = 's32[1]{0}', space=sflag, size = 0x4, scoped, tag = 'scoped memory for custom_cache_options_forward.1']
    #allocation4 [shape = 'u8[4096]{0}', space=vmem, size = 0x1000, scoped, tag = 'input window, operand 2, single buffered']
    #allocation5 [shape = 's32[1]{0}', space=sflag, size = 0x4, scoped, tag = 'scoped memory for custom_cache_options_forward.1']
    #allocation6 [shape = 'u8[4194304]{0}', space=vmem, size = 0x400000, scoped, tag = 'input window, operand 3, single buffered']
    #allocation7 [shape = 'u8[8192]{0}', space=vmem, size = 0x2000, scoped, tag = 'input window, operand 4, single buffered']
    #allocation8 [shape = 's32[1]{0}', space=sflag, size = 0x4, scoped, tag = 'scoped memory for custom_cache_options_forward.1']
    #allocation9 [shape = 'u8[16384]{0}', space=vmem, size = 0x4000, scoped, tag = 'input window, operand 5, single buffered']
    #allocation10 [shape = 'u8[512]{0}', space=vmem, size = 0x400, scoped, tag = 'input window, operand 6, single buffered']
    #allocation11 [shape = 's32[1]{0}', space=sflag, size = 0x4, scoped, tag = 'scoped memory for custom_cache_options_forward.1']
    %12 = vsyncpa [#allocation3], 0
    %13 = vsyncpa [#allocation5], 0
    %14 = vsyncpa [#allocation8], 0
    %15 = vsyncpa [#allocation11], 0
    // Predicated region
    $region2: #{custom_cache_options_forward.1} parent=1 // pred_check
      _
    $region3: #{custom_cache_options_forward.1} parent=1 // pred_check_branch
      %17 = sbr.rel (0) target = $region5
    $region4: #{custom_cache_options_forward.1} parent=1 // pred_region
      _
    $region5: #{custom_cache_options_forward.1} parent=1 // pred_fallthru
      _
    // Predicated region
    $region6: #{custom_cache_options_forward.1} parent=1 // pred_check
      _
    $region7: #{custom_cache_options_forward.1} parent=1 // pred_check_branch
      %19 = sbr.rel (0) target = $region9
    $region8: #{custom_cache_options_forward.1} parent=1 // pred_region
      %s21 = ssub.s32 1024, 1024
      %22 = vsyncadd [#allocation3], %s21
      %s23 = sshll.u32 [#allocation2], 4
      %s24 = int_to_ptr.vmem [resolvable:$true] %s23
      %29 = dma.hbm_to_vmem [thread:$0]  %s1, 1024, %s24, [#allocation3], 512, 512, 32
    $region9: #{custom_cache_options_forward.1} parent=1 // pred_fallthru
      _
    // Predicated region
    $region10: #{custom_cache_options_forward.1} parent=1 // pred_check
      _
    $region11: #{custom_cache_options_forward.1} parent=1 // pred_check_branch
      %31 = sbr.rel (0) target = $region13
    $region12: #{custom_cache_options_forward.1} parent=1 // pred_region
      %s33 = ssub.s32 128, 128
      %34 = vsyncadd [#allocation5], %s33
      %s36 = sshll.u32 [#allocation4], 4
      %s37 = int_to_ptr.vmem [resolvable:$true] %s36
      %39 = dma.hbm_to_vmem [thread:$0]  %s2, 128, %s37, [#allocation5]
    $region13: #{custom_cache_options_forward.1} parent=1 // pred_fallthru
      _
    // Predicated region
    $region14: #{custom_cache_options_forward.1} parent=1 // pred_check
      _
    $region15: #{custom_cache_options_forward.1} parent=1 // pred_check_branch
      %41 = sbr.rel (0) target = $region17
    $region16: #{custom_cache_options_forward.1} parent=1 // pred_region
      %s43 = ssub.s32 131072, 131072
      %44 = vsyncadd [#allocation5], %s43
      %s45 = sshll.u32 [#allocation6], 4
      %s46 = int_to_ptr.vmem [resolvable:$true] %s45
      %51 = dma.hbm_to_vmem [thread:$0]  %s3, 131072, %s46, [#allocation5], 1024, 1024, 64
    $region17: #{custom_cache_options_forward.1} parent=1 // pred_fallthru
      _
    // Predicated region
    $region18: #{custom_cache_options_forward.1} parent=1 // pred_check
      _
    $region19: #{custom_cache_options_forward.1} parent=1 // pred_check_branch
      %53 = sbr.rel (0) target = $region21
    $region20: #{custom_cache_options_forward.1} parent=1 // pred_region
      %s55 = ssub.s32 256, 256
      %56 = vsyncadd [#allocation8], %s55
      %s58 = sshll.u32 [#allocation7], 4
      %s59 = int_to_ptr.vmem [resolvable:$true] %s58
      %61 = dma.hbm_to_vmem [thread:$0]  %s4, 256, %s59, [#allocation8]
    $region21: #{custom_cache_options_forward.1} parent=1 // pred_fallthru
      _
    // Predicated region
    $region22: #{custom_cache_options_forward.1} parent=1 // pred_check
      _
    $region23: #{custom_cache_options_forward.1} parent=1 // pred_check_branch
      %63 = sbr.rel (0) target = $region25
    $region24: #{custom_cache_options_forward.1} parent=1 // pred_region
      %s65 = ssub.s32 512, 512
      %66 = vsyncadd [#allocation8], %s65
      %s68 = sshll.u32 [#allocation9], 4
      %s69 = int_to_ptr.vmem [resolvable:$true] %s68
      %71 = dma.hbm_to_vmem [thread:$0]  %s5, 512, %s69, [#allocation8]
    $region25: #{custom_cache_options_forward.1} parent=1 // pred_fallthru
      _
    // Predicated region
    $region26: #{custom_cache_options_forward.1} parent=1 // pred_check
      _
    $region27: #{custom_cache_options_forward.1} parent=1 // pred_check_branch
      %73 = sbr.rel (0) target = $region29
    $region28: #{custom_cache_options_forward.1} parent=1 // pred_region
      %s75 = ssub.s32 16, 16
      %76 = vsyncadd [#allocation11], %s75
      %s78 = sshll.u32 [#allocation10], 4
      %s79 = int_to_ptr.vmem [resolvable:$true] %s78
      %81 = dma.hbm_to_vmem [thread:$0]  %s6, 16, %s79, [#allocation11]
    $region29: #{custom_cache_options_forward.1} parent=1 // pred_fallthru
      _
    // Predicated region
    $region30: #{custom_cache_options_forward.1} parent=1 // pred_check
      _
    $region31: #{custom_cache_options_forward.1} parent=1 // pred_check_branch
      %83 = sbr.rel (0) target = $region33
    $region32: #{custom_cache_options_forward.1} parent=1 // pred_region
      %84 = dma.done [#allocation3], 1024
    $region33: #{custom_cache_options_forward.1} parent=1 // pred_fallthru
      _
    // Predicated region
    $region34: #{custom_cache_options_forward.1} parent=1 // pred_check
      _
    $region35: #{custom_cache_options_forward.1} parent=1 // pred_check_branch
      %86 = sbr.rel (0) target = $region37
    $region36: #{custom_cache_options_forward.1} parent=1 // pred_region
      %87 = dma.done [#allocation5], 128
    $region37: #{custom_cache_options_forward.1} parent=1 // pred_fallthru
      _
    // Predicated region
    $region38: #{custom_cache_options_forward.1} parent=1 // pred_check
      _
    $region39: #{custom_cache_options_forward.1} parent=1 // pred_check_branch
      %89 = sbr.rel (0) target = $region41
    $region40: #{custom_cache_options_forward.1} parent=1 // pred_region
      %90 = dma.done [#allocation5], 131072
    $region41: #{custom_cache_options_forward.1} parent=1 // pred_fallthru
      _
    // Predicated region
    $region42: #{custom_cache_options_forward.1} parent=1 // pred_check
      _
    $region43: #{custom_cache_options_forward.1} parent=1 // pred_check_branch
      %92 = sbr.rel (0) target = $region45
    $region44: #{custom_cache_options_forward.1} parent=1 // pred_region
      %93 = dma.done [#allocation8], 256
    $region45: #{custom_cache_options_forward.1} parent=1 // pred_fallthru
      _
    // Predicated region
    $region46: #{custom_cache_options_forward.1} parent=1 // pred_check
      _
    $region47: #{custom_cache_options_forward.1} parent=1 // pred_check_branch
      %95 = sbr.rel (0) target = $region49
    $region48: #{custom_cache_options_forward.1} parent=1 // pred_region
      %96 = dma.done [#allocation8], 512
    $region49: #{custom_cache_options_forward.1} parent=1 // pred_fallthru
      _
    // Predicated region
    $region50: #{custom_cache_options_forward.1} parent=1 // pred_check
      _
    $region51: #{custom_cache_options_forward.1} parent=1 // pred_check_branch
      %98 = sbr.rel (0) target = $region53
    $region52: #{custom_cache_options_forward.1} parent=1 // pred_region
      %99 = dma.done [#allocation11], 16
    $region53: #{custom_cache_options_forward.1} parent=1 // pred_fallthru
      _
    %v101 = vld [vmem:[%s0] sm:$0xf]
    %v102 = vld [vmem:[#allocation2] sm:$0xff]
    %v103 = vld [vmem:[#allocation2 + $0x8] sm:$0xff]
    %v104 = vld [vmem:[#allocation2 + $0x10] sm:$0xff]
    %v105 = vld [vmem:[#allocation2 + $0x18] sm:$0xff]
    %v106 = vld [vmem:[#allocation2 + $0x20] sm:$0x11]
    %v107 = vld [vmem:[#allocation2 + $0x28] sm:$0x11]
    %v108 = vld [vmem:[#allocation2 + $0x30] sm:$0x11]
    %v109 = vld [vmem:[#allocation2 + $0x38] sm:$0x11]
    %v110 = vld [vmem:[#allocation4] sm:$0xff]
    %v112 = vlaneseq
    %v113 = vshrl.u32 %v112, 7
    %v114 = vsub.s32 0, %v113
    %v115 = vrot.slane %v110, %v114
    %v116 = vlaneseq
    %v117 = vshrl.u32 %v116, 7
    %v118 = vsub.s32 1, %v117
    %v119 = vrot.slane %v110, %v118
    %v120 = vlaneseq
    %v121 = vshrl.u32 %v120, 7
    %v122 = vsub.s32 2, %v121
    %v123 = vrot.slane %v110, %v122
    %v124 = vlaneseq
    %v125 = vshrl.u32 %v124, 7
    %v126 = vsub.s32 3, %v125
    %v127 = vrot.slane %v110, %v126
    %v128 = vlaneseq
    %v129 = vshrl.u32 %v128, 7
    %v130 = vsub.s32 4, %v129
    %v131 = vrot.slane %v110, %v130
    %v132 = vlaneseq
    %v133 = vshrl.u32 %v132, 7
    %v134 = vsub.s32 5, %v133
    %v135 = vrot.slane %v110, %v134
    %v136 = vlaneseq
    %v137 = vshrl.u32 %v136, 7
    %v138 = vsub.s32 6, %v137
    %v139 = vrot.slane %v110, %v138
    %v140 = vlaneseq
    %v141 = vshrl.u32 %v140, 7
    %v142 = vsub.s32 7, %v141
    %v143 = vrot.slane %v110, %v142
    %v160 = vunpack.c.l.b16 %v102
    %v161 = vunpack.c.h.b16 %v102
    %v162 = vunpack.c.l.b16 %v103
    %v163 = vunpack.c.h.b16 %v103
    %v164 = vunpack.c.l.b16 %v104
    %v165 = vunpack.c.h.b16 %v104
    %v166 = vunpack.c.l.b16 %v105
    %v167 = vunpack.c.h.b16 %v105
    %v168 = vunpack.c.l.b16 %v106
    %v169 = vunpack.c.h.b16 %v106
    %v170 = vunpack.c.l.b16 %v107
    %v171 = vunpack.c.h.b16 %v107
    %v172 = vunpack.c.l.b16 %v108
    %v173 = vunpack.c.h.b16 %v108
    %v174 = vunpack.c.l.b16 %v109
    %v175 = vunpack.c.h.b16 %v109
    %v176 = vpack.c.b16 %v168, %v160
    %v177 = vpack.c.b16 %v169, %v161
    %v178 = vpack.c.b16 %v170, %v162
    %v179 = vpack.c.b16 %v171, %v163
    %v180 = vpack.c.b16 %v172, %v164
    %v181 = vpack.c.b16 %v173, %v165
    %v182 = vpack.c.b16 %v174, %v166
    %v183 = vpack.c.b16 %v175, %v167
    %vm184 = vcmask 80896
    %v186 = vsel %vm184, %v101, 0
    %vm188 = vcmask 1044480
    %v190 = vsel %vm188, %v176, 0
    %v193 = vsel %vm188, %v177, 0
    %v196 = vsel %vm188, %v178, 0
    %v199 = vsel %vm188, %v179, 0
    %v202 = vsel %vm188, %v180, 0
    %v205 = vsel %vm188, %v181, 0
    %v208 = vsel %vm188, %v182, 0
    %v211 = vsel %vm188, %v183, 0
    %213 = vmatprep.subr.bf16.mxu0 %v193
    %214 = vmatpush1.bf16.msra.mxu0 %v190
    %215 = vmatprep.subr.bf16.mxu0 0
    %216 = vmatpush1.bf16.msra.mxu0 0
    %217 = vmatprep.subr.bf16.mxu0 0
    %218 = vmatpush1.bf16.msra.mxu0 0
    %219 = vmatprep.subr.bf16.mxu0 0
    %220 = vmatpush1.bf16.msra.mxu0 0
    %221 = vmatprep.subr.bf16.mxu0 0
    %222 = vmatpush1.bf16.msra.mxu0 0
    %223 = vmatprep.subr.bf16.mxu0 0
    %224 = vmatpush1.bf16.msra.mxu0 0
    %225 = vmatprep.subr.bf16.mxu0 0
    %226 = vmatpush1.bf16.msra.mxu0 0
    %227 = vmatprep.subr.bf16.mxu0 0
    %228 = vmatpush1.bf16.msra.mxu0 0
    %229 = vmatprep.subr.bf16.mxu0 0
    %230 = vmatpush1.bf16.msra.mxu0 0
    %231 = vmatprep.subr.bf16.mxu0 0
    %232 = vmatpush1.bf16.msra.mxu0 0
    %233 = vmatprep.subr.bf16.mxu0 0
    %234 = vmatpush1.bf16.msra.mxu0 0
    %235 = vmatprep.subr.bf16.mxu0 0
    %236 = vmatpush1.bf16.msra.mxu0 0
    %237 = vmatprep.subr.bf16.mxu0 0
    %238 = vmatpush1.bf16.msra.mxu0 0
    %239 = vmatprep.subr.bf16.mxu0 0
    %240 = vmatpush1.bf16.msra.mxu0 0
    %241 = vmatprep.subr.bf16.mxu0 0
    %242 = vmatpush1.bf16.msra.mxu0 0
    %243 = vmatprep.subr.bf16.mxu0 0
    %244 = vmatpush1.bf16.msra.mxu0 0
    %245 = vmatprep.mubr.bf16.mxu0 0
    %246 = vmatmul.mubr.bf16.gmra.mrb[0].mxu0 %v186
    %v247 = vpop.f32.mrb[0].mxu0
    %v248 = vadd.f32 %v115, %v247
    %v249 = vpop.f32.mrb[0].mxu0
    %v250 = vadd.f32 %v119, %v249
    %v251 = vpop.f32.mrb[0].mxu0
    %v252 = vpop.f32.mrb[0].mxu0
    %253 = vdwg.mxu0
    %254 = vmatprep.subr.bf16.mxu0 %v199
    %255 = vmatpush1.bf16.msra.mxu0 %v196
    %256 = vmatprep.subr.bf16.mxu0 0
    %257 = vmatpush1.bf16.msra.mxu0 0
    %258 = vmatprep.subr.bf16.mxu0 0
    %259 = vmatpush1.bf16.msra.mxu0 0
    %260 = vmatprep.subr.bf16.mxu0 0
    %261 = vmatpush1.bf16.msra.mxu0 0
    %262 = vmatprep.subr.bf16.mxu0 0
    %263 = vmatpush1.bf16.msra.mxu0 0
    %264 = vmatprep.subr.bf16.mxu0 0
    %265 = vmatpush1.bf16.msra.mxu0 0
    %266 = vmatprep.subr.bf16.mxu0 0
    %267 = vmatpush1.bf16.msra.mxu0 0
    %268 = vmatprep.subr.bf16.mxu0 0
    %269 = vmatpush1.bf16.msra.mxu0 0
    %270 = vmatprep.subr.bf16.mxu0 0
    %271 = vmatpush1.bf16.msra.mxu0 0
    %272 = vmatprep.subr.bf16.mxu0 0
    %273 = vmatpush1.bf16.msra.mxu0 0
    %274 = vmatprep.subr.bf16.mxu0 0
    %275 = vmatpush1.bf16.msra.mxu0 0
    %276 = vmatprep.subr.bf16.mxu0 0
    %277 = vmatpush1.bf16.msra.mxu0 0
    %278 = vmatprep.subr.bf16.mxu0 0
    %279 = vmatpush1.bf16.msra.mxu0 0
    %280 = vmatprep.subr.bf16.mxu0 0
    %281 = vmatpush1.bf16.msra.mxu0 0
    %282 = vmatprep.subr.bf16.mxu0 0
    %283 = vmatpush1.bf16.msra.mxu0 0
    %284 = vmatprep.subr.bf16.mxu0 0
    %285 = vmatpush1.bf16.msra.mxu0 0
    %286 = vmatprep.mubr.bf16.mxu0 0
    %287 = vmatmul.mubr.bf16.gmra.mrb[0].mxu0 %v186
    %v288 = vpop.f32.mrb[0].mxu0
    %v289 = vadd.f32 %v123, %v288
    %v290 = vpop.f32.mrb[0].mxu0
    %v291 = vadd.f32 %v127, %v290
    %v292 = vpop.f32.mrb[0].mxu0
    %v293 = vpop.f32.mrb[0].mxu0
    %294 = vdwg.mxu0
    %295 = vmatprep.subr.bf16.mxu0 %v205
    %296 = vmatpush1.bf16.msra.mxu0 %v202
    %297 = vmatprep.subr.bf16.mxu0 0
    %298 = vmatpush1.bf16.msra.mxu0 0
    %299 = vmatprep.subr.bf16.mxu0 0
    %300 = vmatpush1.bf16.msra.mxu0 0
    %301 = vmatprep.subr.bf16.mxu0 0
    %302 = vmatpush1.bf16.msra.mxu0 0
    %303 = vmatprep.subr.bf16.mxu0 0
    %304 = vmatpush1.bf16.msra.mxu0 0
    %305 = vmatprep.subr.bf16.mxu0 0
    %306 = vmatpush1.bf16.msra.mxu0 0
    %307 = vmatprep.subr.bf16.mxu0 0
    %308 = vmatpush1.bf16.msra.mxu0 0
    %309 = vmatprep.subr.bf16.mxu0 0
    %310 = vmatpush1.bf16.msra.mxu0 0
    %311 = vmatprep.subr.bf16.mxu0 0
    %312 = vmatpush1.bf16.msra.mxu0 0
    %313 = vmatprep.subr.bf16.mxu0 0
    %314 = vmatpush1.bf16.msra.mxu0 0
    %315 = vmatprep.subr.bf16.mxu0 0
    %316 = vmatpush1.bf16.msra.mxu0 0
    %317 = vmatprep.subr.bf16.mxu0 0
    %318 = vmatpush1.bf16.msra.mxu0 0
    %319 = vmatprep.subr.bf16.mxu0 0
    %320 = vmatpush1.bf16.msra.mxu0 0
    %321 = vmatprep.subr.bf16.mxu0 0
    %322 = vmatpush1.bf16.msra.mxu0 0
    %323 = vmatprep.subr.bf16.mxu0 0
    %324 = vmatpush1.bf16.msra.mxu0 0
    %325 = vmatprep.subr.bf16.mxu0 0
    %326 = vmatpush1.bf16.msra.mxu0 0
    %327 = vmatprep.mubr.bf16.mxu0 0
    %328 = vmatmul.mubr.bf16.gmra.mrb[0].mxu0 %v186
    %v329 = vpop.f32.mrb[0].mxu0
    %v330 = vadd.f32 %v131, %v329
    %v331 = vpop.f32.mrb[0].mxu0
    %v332 = vadd.f32 %v135, %v331
    %v333 = vpop.f32.mrb[0].mxu0
    %v334 = vpop.f32.mrb[0].mxu0
    %335 = vdwg.mxu0
    %336 = vmatprep.subr.bf16.mxu0 %v211
    %337 = vmatpush1.bf16.msra.mxu0 %v208
    %338 = vmatprep.subr.bf16.mxu0 0
    %339 = vmatpush1.bf16.msra.mxu0 0
    %340 = vmatprep.subr.bf16.mxu0 0
    %341 = vmatpush1.bf16.msra.mxu0 0
    %342 = vmatprep.subr.bf16.mxu0 0
    %343 = vmatpush1.bf16.msra.mxu0 0
    %344 = vmatprep.subr.bf16.mxu0 0
    %345 = vmatpush1.bf16.msra.mxu0 0
    %346 = vmatprep.subr.bf16.mxu0 0
    %347 = vmatpush1.bf16.msra.mxu0 0
    %348 = vmatprep.subr.bf16.mxu0 0
    %349 = vmatpush1.bf16.msra.mxu0 0
    %350 = vmatprep.subr.bf16.mxu0 0
    %351 = vmatpush1.bf16.msra.mxu0 0
    %352 = vmatprep.subr.bf16.mxu0 0
    %353 = vmatpush1.bf16.msra.mxu0 0
    %354 = vmatprep.subr.bf16.mxu0 0
    %355 = vmatpush1.bf16.msra.mxu0 0
    %356 = vmatprep.subr.bf16.mxu0 0
    %357 = vmatpush1.bf16.msra.mxu0 0
    %358 = vmatprep.subr.bf16.mxu0 0
    %359 = vmatpush1.bf16.msra.mxu0 0
    %360 = vmatprep.subr.bf16.mxu0 0
    %361 = vmatpush1.bf16.msra.mxu0 0
    %362 = vmatprep.subr.bf16.mxu0 0
    %363 = vmatpush1.bf16.msra.mxu0 0
    %364 = vmatprep.subr.bf16.mxu0 0
    %365 = vmatpush1.bf16.msra.mxu0 0
    %366 = vmatprep.subr.bf16.mxu0 0
    %367 = vmatpush1.bf16.msra.mxu0 0
    %368 = vmatprep.mubr.bf16.mxu0 0
    %369 = vmatmul.mubr.bf16.gmra.mrb[0].mxu0 %v186
    %v370 = vpop.f32.mrb[0].mxu0
    %v371 = vadd.f32 %v139, %v370
    %v372 = vpop.f32.mrb[0].mxu0
    %v373 = vadd.f32 %v143, %v372
    %v374 = vpop.f32.mrb[0].mxu0
    %v375 = vpop.f32.mrb[0].mxu0
    %376 = vdwg.mxu0
    %v377 = vmax.f32 %v248, 0.0
    %v378 = vmax.f32 %v250, 0.0
    %v379 = vmax.f32 %v289, 0.0
    %v380 = vmax.f32 %v291, 0.0
    %v381 = vmax.f32 %v330, 0.0
    %v382 = vmax.f32 %v332, 0.0
    %v383 = vmax.f32 %v371, 0.0
    %v384 = vmax.f32 %v373, 0.0
    %v385 = vpack.c.bf16 %v377, %v377
    %v386 = vpack.c.bf16 %v378, %v378
    %v387 = vpack.c.bf16 %v379, %v379
    %v388 = vpack.c.bf16 %v380, %v380
    %v389 = vpack.c.bf16 %v381, %v381
    %v390 = vpack.c.bf16 %v382, %v382
    %v391 = vpack.c.bf16 %v383, %v383
    %v392 = vpack.c.bf16 %v384, %v384
    %v393 = vld [vmem:[#allocation6] sm:$0xff]
    %v394 = vld [vmem:[#allocation6 + $0x8] sm:$0xff]
    %v395 = vld [vmem:[#allocation6 + $0x10] sm:$0xff]
    %v396 = vld [vmem:[#allocation6 + $0x18] sm:$0xff]
    %v397 = vld [vmem:[#allocation6 + $0x20] sm:$0xff]
    %v398 = vld [vmem:[#allocation6 + $0x28] sm:$0xff]
    %v399 = vld [vmem:[#allocation6 + $0x30] sm:$0xff]
    %v400 = vld [vmem:[#allocation6 + $0x38] sm:$0xff]
    %v401 = vld [vmem:[#allocation6 + $0x40] sm:$0xff]
    %v402 = vld [vmem:[#allocation6 + $0x48] sm:$0xff]
    %v403 = vld [vmem:[#allocation6 + $0x50] sm:$0xff]
    %v404 = vld [vmem:[#allocation6 + $0x58] sm:$0xff]
    %v405 = vld [vmem:[#allocation6 + $0x60] sm:$0xff]
    %v406 = vld [vmem:[#allocation6 + $0x68] sm:$0xff]
    %v407 = vld [vmem:[#allocation6 + $0x70] sm:$0xff]
    %v408 = vld [vmem:[#allocation6 + $0x78] sm:$0xff]
    %v409 = vld [vmem:[#allocation6 + $0x80] sm:$0xff]
    %v410 = vld [vmem:[#allocation6 + $0x88] sm:$0xff]
    %v411 = vld [vmem:[#allocation6 + $0x90] sm:$0xff]
    %v412 = vld [vmem:[#allocation6 + $0x98] sm:$0xff]
    %v413 = vld [vmem:[#allocation6 + $0xa0] sm:$0xff]
    %v414 = vld [vmem:[#allocation6 + $0xa8] sm:$0xff]
    %v415 = vld [vmem:[#allocation6 + $0xb0] sm:$0xff]
    %v416 = vld [vmem:[#allocation6 + $0xb8] sm:$0xff]
    %v417 = vld [vmem:[#allocation6 + $0xc0] sm:$0xff]
    %v418 = vld [vmem:[#allocation6 + $0xc8] sm:$0xff]
    %v419 = vld [vmem:[#allocation6 + $0xd0] sm:$0xff]
    %v420 = vld [vmem:[#allocation6 + $0xd8] sm:$0xff]
    %v421 = vld [vmem:[#allocation6 + $0xe0] sm:$0xff]
    %v422 = vld [vmem:[#allocation6 + $0xe8] sm:$0xff]
    %v423 = vld [vmem:[#allocation6 + $0xf0] sm:$0xff]
    %v424 = vld [vmem:[#allocation6 + $0xf8] sm:$0xff]
    %v425 = vld [vmem:[#allocation6 + $0x100] sm:$0xff]
    %v426 = vld [vmem:[#allocation6 + $0x108] sm:$0xff]
    %v427 = vld [vmem:[#allocation6 + $0x110] sm:$0xff]
    %v428 = vld [vmem:[#allocation6 + $0x118] sm:$0xff]
    %v429 = vld [vmem:[#allocation6 + $0x120] sm:$0xff]
    %v430 = vld [vmem:[#allocation6 + $0x128] sm:$0xff]
    %v431 = vld [vmem:[#allocation6 + $0x130] sm:$0xff]
    %v432 = vld [vmem:[#allocation6 + $0x138] sm:$0xff]
    %v433 = vld [vmem:[#allocation6 + $0x140] sm:$0xff]
    %v434 = vld [vmem:[#allocation6 + $0x148] sm:$0xff]
    %v435 = vld [vmem:[#allocation6 + $0x150] sm:$0xff]
    %v436 = vld [vmem:[#allocation6 + $0x158] sm:$0xff]
    %v437 = vld [vmem:[#allocation6 + $0x160] sm:$0xff]
    %v438 = vld [vmem:[#allocation6 + $0x168] sm:$0xff]
    %v439 = vld [vmem:[#allocation6 + $0x170] sm:$0xff]
    %v440 = vld [vmem:[#allocation6 + $0x178] sm:$0xff]
    %v441 = vld [vmem:[#allocation6 + $0x180] sm:$0xff]
    %v442 = vld [vmem:[#allocation6 + $0x188] sm:$0xff]
    %v443 = vld [vmem:[#allocation6 + $0x190] sm:$0xff]
    %v444 = vld [vmem:[#allocation6 + $0x198] sm:$0xff]
    %v445 = vld [vmem:[#allocation6 + $0x1a0] sm:$0xff]
    %v446 = vld [vmem:[#allocation6 + $0x1a8] sm:$0xff]
    %v447 = vld [vmem:[#allocation6 + $0x1b0] sm:$0xff]
    %v448 = vld [vmem:[#allocation6 + $0x1b8] sm:$0xff]
    %v449 = vld [vmem:[#allocation6 + $0x1c0] sm:$0xff]
    %v450 = vld [vmem:[#allocation6 + $0x1c8] sm:$0xff]
    %v451 = vld [vmem:[#allocation6 + $0x1d0] sm:$0xff]
    %v452 = vld [vmem:[#allocation6 + $0x1d8] sm:$0xff]
    %v453 = vld [vmem:[#allocation6 + $0x1e0] sm:$0xff]
    %v454 = vld [vmem:[#allocation6 + $0x1e8] sm:$0xff]
    %v455 = vld [vmem:[#allocation6 + $0x1f0] sm:$0xff]
    %v456 = vld [vmem:[#allocation6 + $0x1f8] sm:$0xff]
    %v457 = vld [vmem:[#allocation6 + $0x200] sm:$0xff]
    %v458 = vld [vmem:[#allocation6 + $0x208] sm:$0xff]
    %v459 = vld [vmem:[#allocation6 + $0x210] sm:$0xff]
    %v460 = vld [vmem:[#allocation6 + $0x218] sm:$0xff]
    %v461 = vld [vmem:[#allocation6 + $0x220] sm:$0xff]
    %v462 = vld [vmem:[#allocation6 + $0x228] sm:$0xff]
    %v463 = vld [vmem:[#allocation6 + $0x230] sm:$0xff]
    %v464 = vld [vmem:[#allocation6 + $0x238] sm:$0xff]
    %v465 = vld [vmem:[#allocation6 + $0x240] sm:$0xff]
    %v466 = vld [vmem:[#allocation6 + $0x248] sm:$0xff]
    %v467 = vld [vmem:[#allocation6 + $0x250] sm:$0xff]
    %v468 = vld [vmem:[#allocation6 + $0x258] sm:$0xff]
    %v469 = vld [vmem:[#allocation6 + $0x260] sm:$0xff]
    %v470 = vld [vmem:[#allocation6 + $0x268] sm:$0xff]
    %v471 = vld [vmem:[#allocation6 + $0x270] sm:$0xff]
    %v472 = vld [vmem:[#allocation6 + $0x278] sm:$0xff]
    %v473 = vld [vmem:[#allocation6 + $0x280] sm:$0xff]
    %v474 = vld [vmem:[#allocation6 + $0x288] sm:$0xff]
    %v475 = vld [vmem:[#allocation6 + $0x290] sm:$0xff]
    %v476 = vld [vmem:[#allocation6 + $0x298] sm:$0xff]
    %v477 = vld [vmem:[#allocation6 + $0x2a0] sm:$0xff]
    %v478 = vld [vmem:[#allocation6 + $0x2a8] sm:$0xff]
    %v479 = vld [vmem:[#allocation6 + $0x2b0] sm:$0xff]
    %v480 = vld [vmem:[#allocation6 + $0x2b8] sm:$0xff]
    %v481 = vld [vmem:[#allocation6 + $0x2c0] sm:$0xff]
    %v482 = vld [vmem:[#allocation6 + $0x2c8] sm:$0xff]
    %v483 = vld [vmem:[#allocation6 + $0x2d0] sm:$0xff]
    %v484 = vld [vmem:[#allocation6 + $0x2d8] sm:$0xff]
    %v485 = vld [vmem:[#allocation6 + $0x2e0] sm:$0xff]
    %v486 = vld [vmem:[#allocation6 + $0x2e8] sm:$0xff]
    %v487 = vld [vmem:[#allocation6 + $0x2f0] sm:$0xff]
    %v488 = vld [vmem:[#allocation6 + $0x2f8] sm:$0xff]
    %v489 = vld [vmem:[#allocation6 + $0x300] sm:$0xff]
    %v490 = vld [vmem:[#allocation6 + $0x308] sm:$0xff]
    %v491 = vld [vmem:[#allocation6 + $0x310] sm:$0xff]
    %v492 = vld [vmem:[#allocation6 + $0x318] sm:$0xff]
    %v493 = vld [vmem:[#allocation6 + $0x320] sm:$0xff]
    %v494 = vld [vmem:[#allocation6 + $0x328] sm:$0xff]
    %v495 = vld [vmem:[#allocation6 + $0x330] sm:$0xff]
    %v496 = vld [vmem:[#allocation6 + $0x338] sm:$0xff]
    %v497 = vld [vmem:[#allocation6 + $0x340] sm:$0xff]
    %v498 = vld [vmem:[#allocation6 + $0x348] sm:$0xff]
    %v499 = vld [vmem:[#allocation6 + $0x350] sm:$0xff]
    %v500 = vld [vmem:[#allocation6 + $0x358] sm:$0xff]
    %v501 = vld [vmem:[#allocation6 + $0x360] sm:$0xff]
    %v502 = vld [vmem:[#allocation6 + $0x368] sm:$0xff]
    %v503 = vld [vmem:[#allocation6 + $0x370] sm:$0xff]
    %v504 = vld [vmem:[#allocation6 + $0x378] sm:$0xff]
    %v505 = vld [vmem:[#allocation6 + $0x380] sm:$0xff]
    %v506 = vld [vmem:[#allocation6 + $0x388] sm:$0xff]
    %v507 = vld [vmem:[#allocation6 + $0x390] sm:$0xff]
    %v508 = vld [vmem:[#allocation6 + $0x398] sm:$0xff]
    %v509 = vld [vmem:[#allocation6 + $0x3a0] sm:$0xff]
    %v510 = vld [vmem:[#allocation6 + $0x3a8] sm:$0xff]
    %v511 = vld [vmem:[#allocation6 + $0x3b0] sm:$0xff]
    %v512 = vld [vmem:[#allocation6 + $0x3b8] sm:$0xff]
    %v513 = vld [vmem:[#allocation6 + $0x3c0] sm:$0xff]
    %v514 = vld [vmem:[#allocation6 + $0x3c8] sm:$0xff]
    %v515 = vld [vmem:[#allocation6 + $0x3d0] sm:$0xff]
    %v516 = vld [vmem:[#allocation6 + $0x3d8] sm:$0xff]
    %v517 = vld [vmem:[#allocation6 + $0x3e0] sm:$0xff]
    %v518 = vld [vmem:[#allocation6 + $0x3e8] sm:$0xff]
    %v519 = vld [vmem:[#allocation6 + $0x3f0] sm:$0xff]
    %v520 = vld [vmem:[#allocation6 + $0x3f8] sm:$0xff]
    %v521 = vld [vmem:[#allocation6 + $0x400] sm:$0xff]
    %v522 = vld [vmem:[#allocation6 + $0x408] sm:$0xff]
    %v523 = vld [vmem:[#allocation6 + $0x410] sm:$0xff]
    %v524 = vld [vmem:[#allocation6 + $0x418] sm:$0xff]
    %v525 = vld [vmem:[#allocation6 + $0x420] sm:$0xff]
    %v526 = vld [vmem:[#allocation6 + $0x428] sm:$0xff]
    %v527 = vld [vmem:[#allocation6 + $0x430] sm:$0xff]
    %v528 = vld [vmem:[#allocation6 + $0x438] sm:$0xff]
    %v529 = vld [vmem:[#allocation6 + $0x440] sm:$0xff]
    %v530 = vld [vmem:[#allocation6 + $0x448] sm:$0xff]
    %v531 = vld [vmem:[#allocation6 + $0x450] sm:$0xff]
    %v532 = vld [vmem:[#allocation6 + $0x458] sm:$0xff]
    %v533 = vld [vmem:[#allocation6 + $0x460] sm:$0xff]
    %v534 = vld [vmem:[#allocation6 + $0x468] sm:$0xff]
    %v535 = vld [vmem:[#allocation6 + $0x470] sm:$0xff]
    %v536 = vld [vmem:[#allocation6 + $0x478] sm:$0xff]
    %v537 = vld [vmem:[#allocation6 + $0x480] sm:$0xff]
    %v538 = vld [vmem:[#allocation6 + $0x488] sm:$0xff]
    %v539 = vld [vmem:[#allocation6 + $0x490] sm:$0xff]
    %v540 = vld [vmem:[#allocation6 + $0x498] sm:$0xff]
    %v541 = vld [vmem:[#allocation6 + $0x4a0] sm:$0xff]
    %v542 = vld [vmem:[#allocation6 + $0x4a8] sm:$0xff]
    %v543 = vld [vmem:[#allocation6 + $0x4b0] sm:$0xff]
    %v544 = vld [vmem:[#allocation6 + $0x4b8] sm:$0xff]
    %v545 = vld [vmem:[#allocation6 + $0x4c0] sm:$0xff]
    %v546 = vld [vmem:[#allocation6 + $0x4c8] sm:$0xff]
    %v547 = vld [vmem:[#allocation6 + $0x4d0] sm:$0xff]
    %v548 = vld [vmem:[#allocation6 + $0x4d8] sm:$0xff]
    %v549 = vld [vmem:[#allocation6 + $0x4e0] sm:$0xff]
    %v550 = vld [vmem:[#allocation6 + $0x4e8] sm:$0xff]
    %v551 = vld [vmem:[#allocation6 + $0x4f0] sm:$0xff]
    %v552 = vld [vmem:[#allocation6 + $0x4f8] sm:$0xff]
    %v553 = vld [vmem:[#allocation6 + $0x500] sm:$0xff]
    %v554 = vld [vmem:[#allocation6 + $0x508] sm:$0xff]
    %v555 = vld [vmem:[#allocation6 + $0x510] sm:$0xff]
    %v556 = vld [vmem:[#allocation6 + $0x518] sm:$0xff]
    %v557 = vld [vmem:[#allocation6 + $0x520] sm:$0xff]
    %v558 = vld [vmem:[#allocation6 + $0x528] sm:$0xff]
    %v559 = vld [vmem:[#allocation6 + $0x530] sm:$0xff]
    %v560 = vld [vmem:[#allocation6 + $0x538] sm:$0xff]
    %v561 = vld [vmem:[#allocation6 + $0x540] sm:$0xff]
    %v562 = vld [vmem:[#allocation6 + $0x548] sm:$0xff]
    %v563 = vld [vmem:[#allocation6 + $0x550] sm:$0xff]
    %v564 = vld [vmem:[#allocation6 + $0x558] sm:$0xff]
    %v565 = vld [vmem:[#allocation6 + $0x560] sm:$0xff]
    %v566 = vld [vmem:[#allocation6 + $0x568] sm:$0xff]
    %v567 = vld [vmem:[#allocation6 + $0x570] sm:$0xff]
    %v568 = vld [vmem:[#allocation6 + $0x578] sm:$0xff]
    %v569 = vld [vmem:[#allocation6 + $0x580] sm:$0xff]
    %v570 = vld [vmem:[#allocation6 + $0x588] sm:$0xff]
    %v571 = vld [vmem:[#allocation6 + $0x590] sm:$0xff]
    %v572 = vld [vmem:[#allocation6 + $0x598] sm:$0xff]
    %v573 = vld [vmem:[#allocation6 + $0x5a0] sm:$0xff]
    %v574 = vld [vmem:[#allocation6 + $0x5a8] sm:$0xff]
    %v575 = vld [vmem:[#allocation6 + $0x5b0] sm:$0xff]
    %v576 = vld [vmem:[#allocation6 + $0x5b8] sm:$0xff]
    %v577 = vld [vmem:[#allocation6 + $0x5c0] sm:$0xff]
    %v578 = vld [vmem:[#allocation6 + $0x5c8] sm:$0xff]
    %v579 = vld [vmem:[#allocation6 + $0x5d0] sm:$0xff]
    %v580 = vld [vmem:[#allocation6 + $0x5d8] sm:$0xff]
    %v581 = vld [vmem:[#allocation6 + $0x5e0] sm:$0xff]
    %v582 = vld [vmem:[#allocation6 + $0x5e8] sm:$0xff]
    %v583 = vld [vmem:[#allocation6 + $0x5f0] sm:$0xff]
    %v584 = vld [vmem:[#allocation6 + $0x5f8] sm:$0xff]
    %v585 = vld [vmem:[#allocation6 + $0x600] sm:$0xff]
    %v586 = vld [vmem:[#allocation6 + $0x608] sm:$0xff]
    %v587 = vld [vmem:[#allocation6 + $0x610] sm:$0xff]
    %v588 = vld [vmem:[#allocation6 + $0x618] sm:$0xff]
    %v589 = vld [vmem:[#allocation6 + $0x620] sm:$0xff]
    %v590 = vld [vmem:[#allocation6 + $0x628] sm:$0xff]
    %v591 = vld [vmem:[#allocation6 + $0x630] sm:$0xff]
    %v592 = vld [vmem:[#allocation6 + $0x638] sm:$0xff]
    %v593 = vld [vmem:[#allocation6 + $0x640] sm:$0xff]
    %v594 = vld [vmem:[#allocation6 + $0x648] sm:$0xff]
    %v595 = vld [vmem:[#allocation6 + $0x650] sm:$0xff]
    %v596 = vld [vmem:[#allocation6 + $0x658] sm:$0xff]
    %v597 = vld [vmem:[#allocation6 + $0x660] sm:$0xff]
    %v598 = vld [vmem:[#allocation6 + $0x668] sm:$0xff]
    %v599 = vld [vmem:[#allocation6 + $0x670] sm:$0xff]
    %v600 = vld [vmem:[#allocation6 + $0x678] sm:$0xff]
    %v601 = vld [vmem:[#allocation6 + $0x680] sm:$0xff]
    %v602 = vld [vmem:[#allocation6 + $0x688] sm:$0xff]
    %v603 = vld [vmem:[#allocation6 + $0x690] sm:$0xff]
    %v604 = vld [vmem:[#allocation6 + $0x698] sm:$0xff]
    %v605 = vld [vmem:[#allocation6 + $0x6a0] sm:$0xff]
    %v606 = vld [vmem:[#allocation6 + $0x6a8] sm:$0xff]
    %v607 = vld [vmem:[#allocation6 + $0x6b0] sm:$0xff]
    %v608 = vld [vmem:[#allocation6 + $0x6b8] sm:$0xff]
    %v609 = vld [vmem:[#allocation6 + $0x6c0] sm:$0xff]
    %v610 = vld [vmem:[#allocation6 + $0x6c8] sm:$0xff]
    %v611 = vld [vmem:[#allocation6 + $0x6d0] sm:$0xff]
    %v612 = vld [vmem:[#allocation6 + $0x6d8] sm:$0xff]
    %v613 = vld [vmem:[#allocation6 + $0x6e0] sm:$0xff]
    %v614 = vld [vmem:[#allocation6 + $0x6e8] sm:$0xff]
    %v615 = vld [vmem:[#allocation6 + $0x6f0] sm:$0xff]
    %v616 = vld [vmem:[#allocation6 + $0x6f8] sm:$0xff]
    %v617 = vld [vmem:[#allocation6 + $0x700] sm:$0xff]
    %v618 = vld [vmem:[#allocation6 + $0x708] sm:$0xff]
    %v619 = vld [vmem:[#allocation6 + $0x710] sm:$0xff]
    %v620 = vld [vmem:[#allocation6 + $0x718] sm:$0xff]
    %v621 = vld [vmem:[#allocation6 + $0x720] sm:$0xff]
    %v622 = vld [vmem:[#allocation6 + $0x728] sm:$0xff]
    %v623 = vld [vmem:[#allocation6 + $0x730] sm:$0xff]
    %v624 = vld [vmem:[#allocation6 + $0x738] sm:$0xff]
    %v625 = vld [vmem:[#allocation6 + $0x740] sm:$0xff]
    %v626 = vld [vmem:[#allocation6 + $0x748] sm:$0xff]
    %v627 = vld [vmem:[#allocation6 + $0x750] sm:$0xff]
    %v628 = vld [vmem:[#allocation6 + $0x758] sm:$0xff]
    %v629 = vld [vmem:[#allocation6 + $0x760] sm:$0xff]
    %v630 = vld [vmem:[#allocation6 + $0x768] sm:$0xff]
    %v631 = vld [vmem:[#allocation6 + $0x770] sm:$0xff]
    %v632 = vld [vmem:[#allocation6 + $0x778] sm:$0xff]
    %v633 = vld [vmem:[#allocation6 + $0x780] sm:$0xff]
    %v634 = vld [vmem:[#allocation6 + $0x788] sm:$0xff]
    %v635 = vld [vmem:[#allocation6 + $0x790] sm:$0xff]
    %v636 = vld [vmem:[#allocation6 + $0x798] sm:$0xff]
    %v637 = vld [vmem:[#allocation6 + $0x7a0] sm:$0xff]
    %v638 = vld [vmem:[#allocation6 + $0x7a8] sm:$0xff]
    %v639 = vld [vmem:[#allocation6 + $0x7b0] sm:$0xff]
    %v640 = vld [vmem:[#allocation6 + $0x7b8] sm:$0xff]
    %v641 = vld [vmem:[#allocation6 + $0x7c0] sm:$0xff]
    %v642 = vld [vmem:[#allocation6 + $0x7c8] sm:$0xff]
    %v643 = vld [vmem:[#allocation6 + $0x7d0] sm:$0xff]
    %v644 = vld [vmem:[#allocation6 + $0x7d8] sm:$0xff]
    %v645 = vld [vmem:[#allocation6 + $0x7e0] sm:$0xff]
    %v646 = vld [vmem:[#allocation6 + $0x7e8] sm:$0xff]
    %v647 = vld [vmem:[#allocation6 + $0x7f0] sm:$0xff]
    %v648 = vld [vmem:[#allocation6 + $0x7f8] sm:$0xff]
    %v649 = vld [vmem:[#allocation6 + $0x800] sm:$0xff]
    %v650 = vld [vmem:[#allocation6 + $0x808] sm:$0xff]
    %v651 = vld [vmem:[#allocation6 + $0x810] sm:$0xff]
    %v652 = vld [vmem:[#allocation6 + $0x818] sm:$0xff]
    %v653 = vld [vmem:[#allocation6 + $0x820] sm:$0xff]
    %v654 = vld [vmem:[#allocation6 + $0x828] sm:$0xff]
    %v655 = vld [vmem:[#allocation6 + $0x830] sm:$0xff]
    %v656 = vld [vmem:[#allocation6 + $0x838] sm:$0xff]
    %v657 = vld [vmem:[#allocation6 + $0x840] sm:$0xff]
    %v658 = vld [vmem:[#allocation6 + $0x848] sm:$0xff]
    %v659 = vld [vmem:[#allocation6 + $0x850] sm:$0xff]
    %v660 = vld [vmem:[#allocation6 + $0x858] sm:$0xff]
    %v661 = vld [vmem:[#allocation6 + $0x860] sm:$0xff]
    %v662 = vld [vmem:[#allocation6 + $0x868] sm:$0xff]
    %v663 = vld [vmem:[#allocation6 + $0x870] sm:$0xff]
    %v664 = vld [vmem:[#allocation6 + $0x878] sm:$0xff]
    %v665 = vld [vmem:[#allocation6 + $0x880] sm:$0xff]
    %v666 = vld [vmem:[#allocation6 + $0x888] sm:$0xff]
    %v667 = vld [vmem:[#allocation6 + $0x890] sm:$0xff]
    %v668 = vld [vmem:[#allocation6 + $0x898] sm:$0xff]
    %v669 = vld [vmem:[#allocation6 + $0x8a0] sm:$0xff]
    %v670 = vld [vmem:[#allocation6 + $0x8a8] sm:$0xff]
    %v671 = vld [vmem:[#allocation6 + $0x8b0] sm:$0xff]
    %v672 = vld [vmem:[#allocation6 + $0x8b8] sm:$0xff]
    %v673 = vld [vmem:[#allocation6 + $0x8c0] sm:$0xff]
    %v674 = vld [vmem:[#allocation6 + $0x8c8] sm:$0xff]
    %v675 = vld [vmem:[#allocation6 + $0x8d0] sm:$0xff]
    %v676 = vld [vmem:[#allocation6 + $0x8d8] sm:$0xff]
    %v677 = vld [vmem:[#allocation6 + $0x8e0] sm:$0xff]
    %v678 = vld [vmem:[#allocation6 + $0x8e8] sm:$0xff]
    %v679 = vld [vmem:[#allocation6 + $0x8f0] sm:$0xff]
    %v680 = vld [vmem:[#allocation6 + $0x8f8] sm:$0xff]
    %v681 = vld [vmem:[#allocation6 + $0x900] sm:$0xff]
    %v682 = vld [vmem:[#allocation6 + $0x908] sm:$0xff]
    %v683 = vld [vmem:[#allocation6 + $0x910] sm:$0xff]
    %v684 = vld [vmem:[#allocation6 + $0x918] sm:$0xff]
    %v685 = vld [vmem:[#allocation6 + $0x920] sm:$0xff]
    %v686 = vld [vmem:[#allocation6 + $0x928] sm:$0xff]
    %v687 = vld [vmem:[#allocation6 + $0x930] sm:$0xff]
    %v688 = vld [vmem:[#allocation6 + $0x938] sm:$0xff]
    %v689 = vld [vmem:[#allocation6 + $0x940] sm:$0xff]
    %v690 = vld [vmem:[#allocation6 + $0x948] sm:$0xff]
    %v691 = vld [vmem:[#allocation6 + $0x950] sm:$0xff]
    %v692 = vld [vmem:[#allocation6 + $0x958] sm:$0xff]
    %v693 = vld [vmem:[#allocation6 + $0x960] sm:$0xff]
    %v694 = vld [vmem:[#allocation6 + $0x968] sm:$0xff]
    %v695 = vld [vmem:[#allocation6 + $0x970] sm:$0xff]
    %v696 = vld [vmem:[#allocation6 + $0x978] sm:$0xff]
    %v697 = vld [vmem:[#allocation6 + $0x980] sm:$0xff]
    %v698 = vld [vmem:[#allocation6 + $0x988] sm:$0xff]
    %v699 = vld [vmem:[#allocation6 + $0x990] sm:$0xff]
    %v700 = vld [vmem:[#allocation6 + $0x998] sm:$0xff]
    %v701 = vld [vmem:[#allocation6 + $0x9a0] sm:$0xff]
    %v702 = vld [vmem:[#allocation6 + $0x9a8] sm:$0xff]
    %v703 = vld [vmem:[#allocation6 + $0x9b0] sm:$0xff]
    %v704 = vld [vmem:[#allocation6 + $0x9b8] sm:$0xff]
    %v705 = vld [vmem:[#allocation6 + $0x9c0] sm:$0xff]
    %v706 = vld [vmem:[#allocation6 + $0x9c8] sm:$0xff]
    %v707 = vld [vmem:[#allocation6 + $0x9d0] sm:$0xff]
    %v708 = vld [vmem:[#allocation6 + $0x9d8] sm:$0xff]
    %v709 = vld [vmem:[#allocation6 + $0x9e0] sm:$0xff]
    %v710 = vld [vmem:[#allocation6 + $0x9e8] sm:$0xff]
    %v711 = vld [vmem:[#allocation6 + $0x9f0] sm:$0xff]
    %v712 = vld [vmem:[#allocation6 + $0x9f8] sm:$0xff]
    %v713 = vld [vmem:[#allocation6 + $0xa00] sm:$0xff]
    %v714 = vld [vmem:[#allocation6 + $0xa08] sm:$0xff]
    %v715 = vld [vmem:[#allocation6 + $0xa10] sm:$0xff]
    %v716 = vld [vmem:[#allocation6 + $0xa18] sm:$0xff]
    %v717 = vld [vmem:[#allocation6 + $0xa20] sm:$0xff]
    %v718 = vld [vmem:[#allocation6 + $0xa28] sm:$0xff]
    %v719 = vld [vmem:[#allocation6 + $0xa30] sm:$0xff]
    %v720 = vld [vmem:[#allocation6 + $0xa38] sm:$0xff]
    %v721 = vld [vmem:[#allocation6 + $0xa40] sm:$0xff]
    %v722 = vld [vmem:[#allocation6 + $0xa48] sm:$0xff]
    %v723 = vld [vmem:[#allocation6 + $0xa50] sm:$0xff]
    %v724 = vld [vmem:[#allocation6 + $0xa58] sm:$0xff]
    %v725 = vld [vmem:[#allocation6 + $0xa60] sm:$0xff]
    %v726 = vld [vmem:[#allocation6 + $0xa68] sm:$0xff]
    %v727 = vld [vmem:[#allocation6 + $0xa70] sm:$0xff]
    %v728 = vld [vmem:[#allocation6 + $0xa78] sm:$0xff]
    %v729 = vld [vmem:[#allocation6 + $0xa80] sm:$0xff]
    %v730 = vld [vmem:[#allocation6 + $0xa88] sm:$0xff]
    %v731 = vld [vmem:[#allocation6 + $0xa90] sm:$0xff]
    %v732 = vld [vmem:[#allocation6 + $0xa98] sm:$0xff]
    %v733 = vld [vmem:[#allocation6 + $0xaa0] sm:$0xff]
    %v734 = vld [vmem:[#allocation6 + $0xaa8] sm:$0xff]
    %v735 = vld [vmem:[#allocation6 + $0xab0] sm:$0xff]
    %v736 = vld [vmem:[#allocation6 + $0xab8] sm:$0xff]
    %v737 = vld [vmem:[#allocation6 + $0xac0] sm:$0xff]
    %v738 = vld [vmem:[#allocation6 + $0xac8] sm:$0xff]
    %v739 = vld [vmem:[#allocation6 + $0xad0] sm:$0xff]
    %v740 = vld [vmem:[#allocation6 + $0xad8] sm:$0xff]
    %v741 = vld [vmem:[#allocation6 + $0xae0] sm:$0xff]
    %v742 = vld [vmem:[#allocation6 + $0xae8] sm:$0xff]
    %v743 = vld [vmem:[#allocation6 + $0xaf0] sm:$0xff]
    %v744 = vld [vmem:[#allocation6 + $0xaf8] sm:$0xff]
    %v745 = vld [vmem:[#allocation6 + $0xb00] sm:$0xff]
    %v746 = vld [vmem:[#allocation6 + $0xb08] sm:$0xff]
    %v747 = vld [vmem:[#allocation6 + $0xb10] sm:$0xff]
    %v748 = vld [vmem:[#allocation6 + $0xb18] sm:$0xff]
    %v749 = vld [vmem:[#allocation6 + $0xb20] sm:$0xff]
    %v750 = vld [vmem:[#allocation6 + $0xb28] sm:$0xff]
    %v751 = vld [vmem:[#allocation6 + $0xb30] sm:$0xff]
    %v752 = vld [vmem:[#allocation6 + $0xb38] sm:$0xff]
    %v753 = vld [vmem:[#allocation6 + $0xb40] sm:$0xff]
    %v754 = vld [vmem:[#allocation6 + $0xb48] sm:$0xff]
    %v755 = vld [vmem:[#allocation6 + $0xb50] sm:$0xff]
    %v756 = vld [vmem:[#allocation6 + $0xb58] sm:$0xff]
    %v757 = vld [vmem:[#allocation6 + $0xb60] sm:$0xff]
    %v758 = vld [vmem:[#allocation6 + $0xb68] sm:$0xff]
    %v759 = vld [vmem:[#allocation6 + $0xb70] sm:$0xff]
    %v760 = vld [vmem:[#allocation6 + $0xb78] sm:$0xff]
    %v761 = vld [vmem:[#allocation6 + $0xb80] sm:$0xff]
    %v762 = vld [vmem:[#allocation6 + $0xb88] sm:$0xff]
    %v763 = vld [vmem:[#allocation6 + $0xb90] sm:$0xff]
    %v764 = vld [vmem:[#allocation6 + $0xb98] sm:$0xff]
    %v765 = vld [vmem:[#allocation6 + $0xba0] sm:$0xff]
    %v766 = vld [vmem:[#allocation6 + $0xba8] sm:$0xff]
    %v767 = vld [vmem:[#allocation6 + $0xbb0] sm:$0xff]
    %v768 = vld [vmem:[#allocation6 + $0xbb8] sm:$0xff]
    %v769 = vld [vmem:[#allocation6 + $0xbc0] sm:$0xff]
    %v770 = vld [vmem:[#allocation6 + $0xbc8] sm:$0xff]
    %v771 = vld [vmem:[#allocation6 + $0xbd0] sm:$0xff]
    %v772 = vld [vmem:[#allocation6 + $0xbd8] sm:$0xff]
    %v773 = vld [vmem:[#allocation6 + $0xbe0] sm:$0xff]
    %v774 = vld [vmem:[#allocation6 + $0xbe8] sm:$0xff]
    %v775 = vld [vmem:[#allocation6 + $0xbf0] sm:$0xff]
    %v776 = vld [vmem:[#allocation6 + $0xbf8] sm:$0xff]
    %v777 = vld [vmem:[#allocation6 + $0xc00] sm:$0xff]
    %v778 = vld [vmem:[#allocation6 + $0xc08] sm:$0xff]
    %v779 = vld [vmem:[#allocation6 + $0xc10] sm:$0xff]
    %v780 = vld [vmem:[#allocation6 + $0xc18] sm:$0xff]
    %v781 = vld [vmem:[#allocation6 + $0xc20] sm:$0xff]
    %v782 = vld [vmem:[#allocation6 + $0xc28] sm:$0xff]
    %v783 = vld [vmem:[#allocation6 + $0xc30] sm:$0xff]
    %v784 = vld [vmem:[#allocation6 + $0xc38] sm:$0xff]
    %v785 = vld [vmem:[#allocation6 + $0xc40] sm:$0xff]
    %v786 = vld [vmem:[#allocation6 + $0xc48] sm:$0xff]
    %v787 = vld [vmem:[#allocation6 + $0xc50] sm:$0xff]
    %v788 = vld [vmem:[#allocation6 + $0xc58] sm:$0xff]
    %v789 = vld [vmem:[#allocation6 + $0xc60] sm:$0xff]
    %v790 = vld [vmem:[#allocation6 + $0xc68] sm:$0xff]
    %v791 = vld [vmem:[#allocation6 + $0xc70] sm:$0xff]
    %v792 = vld [vmem:[#allocation6 + $0xc78] sm:$0xff]
    %v793 = vld [vmem:[#allocation6 + $0xc80] sm:$0xff]
    %v794 = vld [vmem:[#allocation6 + $0xc88] sm:$0xff]
    %v795 = vld [vmem:[#allocation6 + $0xc90] sm:$0xff]
    %v796 = vld [vmem:[#allocation6 + $0xc98] sm:$0xff]
    %v797 = vld [vmem:[#allocation6 + $0xca0] sm:$0xff]
    %v798 = vld [vmem:[#allocation6 + $0xca8] sm:$0xff]
    %v799 = vld [vmem:[#allocation6 + $0xcb0] sm:$0xff]
    %v800 = vld [vmem:[#allocation6 + $0xcb8] sm:$0xff]
    %v801 = vld [vmem:[#allocation6 + $0xcc0] sm:$0xff]
    %v802 = vld [vmem:[#allocation6 + $0xcc8] sm:$0xff]
    %v803 = vld [vmem:[#allocation6 + $0xcd0] sm:$0xff]
    %v804 = vld [vmem:[#allocation6 + $0xcd8] sm:$0xff]
    %v805 = vld [vmem:[#allocation6 + $0xce0] sm:$0xff]
    %v806 = vld [vmem:[#allocation6 + $0xce8] sm:$0xff]
    %v807 = vld [vmem:[#allocation6 + $0xcf0] sm:$0xff]
    %v808 = vld [vmem:[#allocation6 + $0xcf8] sm:$0xff]
    %v809 = vld [vmem:[#allocation6 + $0xd00] sm:$0xff]
    %v810 = vld [vmem:[#allocation6 + $0xd08] sm:$0xff]
    %v811 = vld [vmem:[#allocation6 + $0xd10] sm:$0xff]
    %v812 = vld [vmem:[#allocation6 + $0xd18] sm:$0xff]
    %v813 = vld [vmem:[#allocation6 + $0xd20] sm:$0xff]
    %v814 = vld [vmem:[#allocation6 + $0xd28] sm:$0xff]
    %v815 = vld [vmem:[#allocation6 + $0xd30] sm:$0xff]
    %v816 = vld [vmem:[#allocation6 + $0xd38] sm:$0xff]
    %v817 = vld [vmem:[#allocation6 + $0xd40] sm:$0xff]
    %v818 = vld [vmem:[#allocation6 + $0xd48] sm:$0xff]
    %v819 = vld [vmem:[#allocation6 + $0xd50] sm:$0xff]
    %v820 = vld [vmem:[#allocation6 + $0xd58] sm:$0xff]
    %v821 = vld [vmem:[#allocation6 + $0xd60] sm:$0xff]
    %v822 = vld [vmem:[#allocation6 + $0xd68] sm:$0xff]
    %v823 = vld [vmem:[#allocation6 + $0xd70] sm:$0xff]
    %v824 = vld [vmem:[#allocation6 + $0xd78] sm:$0xff]
    %v825 = vld [vmem:[#allocation6 + $0xd80] sm:$0xff]
    %v826 = vld [vmem:[#allocation6 + $0xd88] sm:$0xff]
    %v827 = vld [vmem:[#allocation6 + $0xd90] sm:$0xff]
    %v828 = vld [vmem:[#allocation6 + $0xd98] sm:$0xff]
    %v829 = vld [vmem:[#allocation6 + $0xda0] sm:$0xff]
    %v830 = vld [vmem:[#allocation6 + $0xda8] sm:$0xff]
    %v831 = vld [vmem:[#allocation6 + $0xdb0] sm:$0xff]
    %v832 = vld [vmem:[#allocation6 + $0xdb8] sm:$0xff]
    %v833 = vld [vmem:[#allocation6 + $0xdc0] sm:$0xff]
    %v834 = vld [vmem:[#allocation6 + $0xdc8] sm:$0xff]
    %v835 = vld [vmem:[#allocation6 + $0xdd0] sm:$0xff]
    %v836 = vld [vmem:[#allocation6 + $0xdd8] sm:$0xff]
    %v837 = vld [vmem:[#allocation6 + $0xde0] sm:$0xff]
    %v838 = vld [vmem:[#allocation6 + $0xde8] sm:$0xff]
    %v839 = vld [vmem:[#allocation6 + $0xdf0] sm:$0xff]
    %v840 = vld [vmem:[#allocation6 + $0xdf8] sm:$0xff]
    %v841 = vld [vmem:[#allocation6 + $0xe00] sm:$0xff]
    %v842 = vld [vmem:[#allocation6 + $0xe08] sm:$0xff]
    %v843 = vld [vmem:[#allocation6 + $0xe10] sm:$0xff]
    %v844 = vld [vmem:[#allocation6 + $0xe18] sm:$0xff]
    %v845 = vld [vmem:[#allocation6 + $0xe20] sm:$0xff]
    %v846 = vld [vmem:[#allocation6 + $0xe28] sm:$0xff]
    %v847 = vld [vmem:[#allocation6 + $0xe30] sm:$0xff]
    %v848 = vld [vmem:[#allocation6 + $0xe38] sm:$0xff]
    %v849 = vld [vmem:[#allocation6 + $0xe40] sm:$0xff]
    %v850 = vld [vmem:[#allocation6 + $0xe48] sm:$0xff]
    %v851 = vld [vmem:[#allocation6 + $0xe50] sm:$0xff]
    %v852 = vld [vmem:[#allocation6 + $0xe58] sm:$0xff]
    %v853 = vld [vmem:[#allocation6 + $0xe60] sm:$0xff]
    %v854 = vld [vmem:[#allocation6 + $0xe68] sm:$0xff]
    %v855 = vld [vmem:[#allocation6 + $0xe70] sm:$0xff]
    %v856 = vld [vmem:[#allocation6 + $0xe78] sm:$0xff]
    %v857 = vld [vmem:[#allocation6 + $0xe80] sm:$0xff]
    %v858 = vld [vmem:[#allocation6 + $0xe88] sm:$0xff]
    %v859 = vld [vmem:[#allocation6 + $0xe90] sm:$0xff]
    %v860 = vld [vmem:[#allocation6 + $0xe98] sm:$0xff]
    %v861 = vld [vmem:[#allocation6 + $0xea0] sm:$0xff]
    %v862 = vld [vmem:[#allocation6 + $0xea8] sm:$0xff]
    %v863 = vld [vmem:[#allocation6 + $0xeb0] sm:$0xff]
    %v864 = vld [vmem:[#allocation6 + $0xeb8] sm:$0xff]
    %v865 = vld [vmem:[#allocation6 + $0xec0] sm:$0xff]
    %v866 = vld [vmem:[#allocation6 + $0xec8] sm:$0xff]
    %v867 = vld [vmem:[#allocation6 + $0xed0] sm:$0xff]
    %v868 = vld [vmem:[#allocation6 + $0xed8] sm:$0xff]
    %v869 = vld [vmem:[#allocation6 + $0xee0] sm:$0xff]
    %v870 = vld [vmem:[#allocation6 + $0xee8] sm:$0xff]
    %v871 = vld [vmem:[#allocation6 + $0xef0] sm:$0xff]
    %v872 = vld [vmem:[#allocation6 + $0xef8] sm:$0xff]
    %v873 = vld [vmem:[#allocation6 + $0xf00] sm:$0xff]
    %v874 = vld [vmem:[#allocation6 + $0xf08] sm:$0xff]
    %v875 = vld [vmem:[#allocation6 + $0xf10] sm:$0xff]
    %v876 = vld [vmem:[#allocation6 + $0xf18] sm:$0xff]
    %v877 = vld [vmem:[#allocation6 + $0xf20] sm:$0xff]
    %v878 = vld [vmem:[#allocation6 + $0xf28] sm:$0xff]
    %v879 = vld [vmem:[#allocation6 + $0xf30] sm:$0xff]
    %v880 = vld [vmem:[#allocation6 + $0xf38] sm:$0xff]
    %v881 = vld [vmem:[#allocation6 + $0xf40] sm:$0xff]
    %v882 = vld [vmem:[#allocation6 + $0xf48] sm:$0xff]
    %v883 = vld [vmem:[#allocation6 + $0xf50] sm:$0xff]
    %v884 = vld [vmem:[#allocation6 + $0xf58] sm:$0xff]
    %v885 = vld [vmem:[#allocation6 + $0xf60] sm:$0xff]
    %v886 = vld [vmem:[#allocation6 + $0xf68] sm:$0xff]
    %v887 = vld [vmem:[#allocation6 + $0xf70] sm:$0xff]
    %v888 = vld [vmem:[#allocation6 + $0xf78] sm:$0xff]
    %v889 = vld [vmem:[#allocation6 + $0xf80] sm:$0xff]
    %v890 = vld [vmem:[#allocation6 + $0xf88] sm:$0xff]
    %v891 = vld [vmem:[#allocation6 + $0xf90] sm:$0xff]
    %v892 = vld [vmem:[#allocation6 + $0xf98] sm:$0xff]
    %v893 = vld [vmem:[#allocation6 + $0xfa0] sm:$0xff]
    %v894 = vld [vmem:[#allocation6 + $0xfa8] sm:$0xff]
    %v895 = vld [vmem:[#allocation6 + $0xfb0] sm:$0xff]
    %v896 = vld [vmem:[#allocation6 + $0xfb8] sm:$0xff]
    %v897 = vld [vmem:[#allocation6 + $0xfc0] sm:$0xff]
    %v898 = vld [vmem:[#allocation6 + $0xfc8] sm:$0xff]
    %v899 = vld [vmem:[#allocation6 + $0xfd0] sm:$0xff]
    %v900 = vld [vmem:[#allocation6 + $0xfd8] sm:$0xff]
    %v901 = vld [vmem:[#allocation6 + $0xfe0] sm:$0xff]
    %v902 = vld [vmem:[#allocation6 + $0xfe8] sm:$0xff]
    %v903 = vld [vmem:[#allocation6 + $0xff0] sm:$0xff]
    %v904 = vld [vmem:[#allocation6 + $0xff8] sm:$0xff]
    %v905 = vld [vmem:[#allocation6 + $0x1000] sm:$0xff]
    %v906 = vld [vmem:[#allocation6 + $0x1008] sm:$0xff]
    %v907 = vld [vmem:[#allocation6 + $0x1010] sm:$0xff]
    %v908 = vld [vmem:[#allocation6 + $0x1018] sm:$0xff]
    %v909 = vld [vmem:[#allocation6 + $0x1020] sm:$0xff]
    %v910 = vld [vmem:[#allocation6 + $0x1028] sm:$0xff]
    %v911 = vld [vmem:[#allocation6 + $0x1030] sm:$0xff]
    %v912 = vld [vmem:[#allocation6 + $0x1038] sm:$0xff]
    %v913 = vld [vmem:[#allocation6 + $0x1040] sm:$0xff]
    %v914 = vld [vmem:[#allocation6 + $0x1048] sm:$0xff]
    %v915 = vld [vmem:[#allocation6 + $0x1050] sm:$0xff]
    %v916 = vld [vmem:[#allocation6 + $0x1058] sm:$0xff]
    %v917 = vld [vmem:[#allocation6 + $0x1060] sm:$0xff]
    %v918 = vld [vmem:[#allocation6 + $0x1068] sm:$0xff]
    %v919 = vld [vmem:[#allocation6 + $0x1070] sm:$0xff]
    %v920 = vld [vmem:[#allocation6 + $0x1078] sm:$0xff]
    %v921 = vld [vmem:[#allocation6 + $0x1080] sm:$0xff]
    %v922 = vld [vmem:[#allocation6 + $0x1088] sm:$0xff]
    %v923 = vld [vmem:[#allocation6 + $0x1090] sm:$0xff]
    %v924 = vld [vmem:[#allocation6 + $0x1098] sm:$0xff]
    %v925 = vld [vmem:[#allocation6 + $0x10a0] sm:$0xff]
    %v926 = vld [vmem:[#allocation6 + $0x10a8] sm:$0xff]
    %v927 = vld [vmem:[#allocation6 + $0x10b0] sm:$0xff]
    %v928 = vld [vmem:[#allocation6 + $0x10b8] sm:$0xff]
    %v929 = vld [vmem:[#allocation6 + $0x10c0] sm:$0xff]
    %v930 = vld [vmem:[#allocation6 + $0x10c8] sm:$0xff]
    %v931 = vld [vmem:[#allocation6 + $0x10d0] sm:$0xff]
    %v932 = vld [vmem:[#allocation6 + $0x10d8] sm:$0xff]
    %v933 = vld [vmem:[#allocation6 + $0x10e0] sm:$0xff]
    %v934 = vld [vmem:[#allocation6 + $0x10e8] sm:$0xff]
    %v935 = vld [vmem:[#allocation6 + $0x10f0] sm:$0xff]
    %v936 = vld [vmem:[#allocation6 + $0x10f8] sm:$0xff]
    %v937 = vld [vmem:[#allocation6 + $0x1100] sm:$0xff]
    %v938 = vld [vmem:[#allocation6 + $0x1108] sm:$0xff]
    %v939 = vld [vmem:[#allocation6 + $0x1110] sm:$0xff]
    %v940 = vld [vmem:[#allocation6 + $0x1118] sm:$0xff]
    %v941 = vld [vmem:[#allocation6 + $0x1120] sm:$0xff]
    %v942 = vld [vmem:[#allocation6 + $0x1128] sm:$0xff]
    %v943 = vld [vmem:[#allocation6 + $0x1130] sm:$0xff]
    %v944 = vld [vmem:[#allocation6 + $0x1138] sm:$0xff]
    %v945 = vld [vmem:[#allocation6 + $0x1140] sm:$0xff]
    %v946 = vld [vmem:[#allocation6 + $0x1148] sm:$0xff]
    %v947 = vld [vmem:[#allocation6 + $0x1150] sm:$0xff]
    %v948 = vld [vmem:[#allocation6 + $0x1158] sm:$0xff]
    %v949 = vld [vmem:[#allocation6 + $0x1160] sm:$0xff]
    %v950 = vld [vmem:[#allocation6 + $0x1168] sm:$0xff]
    %v951 = vld [vmem:[#allocation6 + $0x1170] sm:$0xff]
    %v952 = vld [vmem:[#allocation6 + $0x1178] sm:$0xff]
    %v953 = vld [vmem:[#allocation6 + $0x1180] sm:$0xff]
    %v954 = vld [vmem:[#allocation6 + $0x1188] sm:$0xff]
    %v955 = vld [vmem:[#allocation6 + $0x1190] sm:$0xff]
    %v956 = vld [vmem:[#allocation6 + $0x1198] sm:$0xff]
    %v957 = vld [vmem:[#allocation6 + $0x11a0] sm:$0xff]
    %v958 = vld [vmem:[#allocation6 + $0x11a8] sm:$0xff]
    %v959 = vld [vmem:[#allocation6 + $0x11b0] sm:$0xff]
    %v960 = vld [vmem:[#allocation6 + $0x11b8] sm:$0xff]
    %v961 = vld [vmem:[#allocation6 + $0x11c0] sm:$0xff]
    %v962 = vld [vmem:[#allocation6 + $0x11c8] sm:$0xff]
    %v963 = vld [vmem:[#allocation6 + $0x11d0] sm:$0xff]
    %v964 = vld [vmem:[#allocation6 + $0x11d8] sm:$0xff]
    %v965 = vld [vmem:[#allocation6 + $0x11e0] sm:$0xff]
    %v966 = vld [vmem:[#allocation6 + $0x11e8] sm:$0xff]
    %v967 = vld [vmem:[#allocation6 + $0x11f0] sm:$0xff]
    %v968 = vld [vmem:[#allocation6 + $0x11f8] sm:$0xff]
    %v969 = vld [vmem:[#allocation6 + $0x1200] sm:$0xff]
    %v970 = vld [vmem:[#allocation6 + $0x1208] sm:$0xff]
    %v971 = vld [vmem:[#allocation6 + $0x1210] sm:$0xff]
    %v972 = vld [vmem:[#allocation6 + $0x1218] sm:$0xff]
    %v973 = vld [vmem:[#allocation6 + $0x1220] sm:$0xff]
    %v974 = vld [vmem:[#allocation6 + $0x1228] sm:$0xff]
    %v975 = vld [vmem:[#allocation6 + $0x1230] sm:$0xff]
    %v976 = vld [vmem:[#allocation6 + $0x1238] sm:$0xff]
    %v977 = vld [vmem:[#allocation6 + $0x1240] sm:$0xff]
    %v978 = vld [vmem:[#allocation6 + $0x1248] sm:$0xff]
    %v979 = vld [vmem:[#allocation6 + $0x1250] sm:$0xff]
    %v980 = vld [vmem:[#allocation6 + $0x1258] sm:$0xff]
    %v981 = vld [vmem:[#allocation6 + $0x1260] sm:$0xff]
    %v982 = vld [vmem:[#allocation6 + $0x1268] sm:$0xff]
    %v983 = vld [vmem:[#allocation6 + $0x1270] sm:$0xff]
    %v984 = vld [vmem:[#allocation6 + $0x1278] sm:$0xff]
    %v985 = vld [vmem:[#allocation6 + $0x1280] sm:$0xff]
    %v986 = vld [vmem:[#allocation6 + $0x1288] sm:$0xff]
    %v987 = vld [vmem:[#allocation6 + $0x1290] sm:$0xff]
    %v988 = vld [vmem:[#allocation6 + $0x1298] sm:$0xff]
    %v989 = vld [vmem:[#allocation6 + $0x12a0] sm:$0xff]
    %v990 = vld [vmem:[#allocation6 + $0x12a8] sm:$0xff]
    %v991 = vld [vmem:[#allocation6 + $0x12b0] sm:$0xff]
    %v992 = vld [vmem:[#allocation6 + $0x12b8] sm:$0xff]
    %v993 = vld [vmem:[#allocation6 + $0x12c0] sm:$0xff]
    %v994 = vld [vmem:[#allocation6 + $0x12c8] sm:$0xff]
    %v995 = vld [vmem:[#allocation6 + $0x12d0] sm:$0xff]
    %v996 = vld [vmem:[#allocation6 + $0x12d8] sm:$0xff]
    %v997 = vld [vmem:[#allocation6 + $0x12e0] sm:$0xff]
    %v998 = vld [vmem:[#allocation6 + $0x12e8] sm:$0xff]
    %v999 = vld [vmem:[#allocation6 + $0x12f0] sm:$0xff]
    %v1000 = vld [vmem:[#allocation6 + $0x12f8] sm:$0xff]
    %v1001 = vld [vmem:[#allocation6 + $0x1300] sm:$0xff]
    %v1002 = vld [vmem:[#allocation6 + $0x1308] sm:$0xff]
    %v1003 = vld [vmem:[#allocation6 + $0x1310] sm:$0xff]
    %v1004 = vld [vmem:[#allocation6 + $0x1318] sm:$0xff]
    %v1005 = vld [vmem:[#allocation6 + $0x1320] sm:$0xff]
    %v1006 = vld [vmem:[#allocation6 + $0x1328] sm:$0xff]
    %v1007 = vld [vmem:[#allocation6 + $0x1330] sm:$0xff]
    %v1008 = vld [vmem:[#allocation6 + $0x1338] sm:$0xff]
    %v1009 = vld [vmem:[#allocation6 + $0x1340] sm:$0xff]
    %v1010 = vld [vmem:[#allocation6 + $0x1348] sm:$0xff]
    %v1011 = vld [vmem:[#allocation6 + $0x1350] sm:$0xff]
    %v1012 = vld [vmem:[#allocation6 + $0x1358] sm:$0xff]
    %v1013 = vld [vmem:[#allocation6 + $0x1360] sm:$0xff]
    %v1014 = vld [vmem:[#allocation6 + $0x1368] sm:$0xff]
    %v1015 = vld [vmem:[#allocation6 + $0x1370] sm:$0xff]
    %v1016 = vld [vmem:[#allocation6 + $0x1378] sm:$0xff]
    %v1017 = vld [vmem:[#allocation6 + $0x1380] sm:$0xff]
    %v1018 = vld [vmem:[#allocation6 + $0x1388] sm:$0xff]
    %v1019 = vld [vmem:[#allocation6 + $0x1390] sm:$0xff]
    %v1020 = vld [vmem:[#allocation6 + $0x1398] sm:$0xff]
    %v1021 = vld [vmem:[#allocation6 + $0x13a0] sm:$0xff]
    %v1022 = vld [vmem:[#allocation6 + $0x13a8] sm:$0xff]
    %v1023 = vld [vmem:[#allocation6 + $0x13b0] sm:$0xff]
    %v1024 = vld [vmem:[#allocation6 + $0x13b8] sm:$0xff]
    %v1025 = vld [vmem:[#allocation6 + $0x13c0] sm:$0xff]
    %v1026 = vld [vmem:[#allocation6 + $0x13c8] sm:$0xff]
    %v1027 = vld [vmem:[#allocation6 + $0x13d0] sm:$0xff]
    %v1028 = vld [vmem:[#allocation6 + $0x13d8] sm:$0xff]
    %v1029 = vld [vmem:[#allocation6 + $0x13e0] sm:$0xff]
    %v1030 = vld [vmem:[#allocation6 + $0x13e8] sm:$0xff]
    %v1031 = vld [vmem:[#allocation6 + $0x13f0] sm:$0xff]
    %v1032 = vld [vmem:[#allocation6 + $0x13f8] sm:$0xff]
    %v1033 = vld [vmem:[#allocation6 + $0x1400] sm:$0xff]
    %v1034 = vld [vmem:[#allocation6 + $0x1408] sm:$0xff]
    %v1035 = vld [vmem:[#allocation6 + $0x1410] sm:$0xff]
    %v1036 = vld [vmem:[#allocation6 + $0x1418] sm:$0xff]
    %v1037 = vld [vmem:[#allocation6 + $0x1420] sm:$0xff]
    %v1038 = vld [vmem:[#allocation6 + $0x1428] sm:$0xff]
    %v1039 = vld [vmem:[#allocation6 + $0x1430] sm:$0xff]
    %v1040 = vld [vmem:[#allocation6 + $0x1438] sm:$0xff]
    %v1041 = vld [vmem:[#allocation6 + $0x1440] sm:$0xff]
    %v1042 = vld [vmem:[#allocation6 + $0x1448] sm:$0xff]
    %v1043 = vld [vmem:[#allocation6 + $0x1450] sm:$0xff]
    %v1044 = vld [vmem:[#allocation6 + $0x1458] sm:$0xff]
    %v1045 = vld [vmem:[#allocation6 + $0x1460] sm:$0xff]
    %v1046 = vld [vmem:[#allocation6 + $0x1468] sm:$0xff]
    %v1047 = vld [vmem:[#allocation6 + $0x1470] sm:$0xff]
    %v1048 = vld [vmem:[#allocation6 + $0x1478] sm:$0xff]
    %v1049 = vld [vmem:[#allocation6 + $0x1480] sm:$0xff]
    %v1050 = vld [vmem:[#allocation6 + $0x1488] sm:$0xff]
    %v1051 = vld [vmem:[#allocation6 + $0x1490] sm:$0xff]
    %v1052 = vld [vmem:[#allocation6 + $0x1498] sm:$0xff]
    %v1053 = vld [vmem:[#allocation6 + $0x14a0] sm:$0xff]
    %v1054 = vld [vmem:[#allocation6 + $0x14a8] sm:$0xff]
    %v1055 = vld [vmem:[#allocation6 + $0x14b0] sm:$0xff]
    %v1056 = vld [vmem:[#allocation6 + $0x14b8] sm:$0xff]
    %v1057 = vld [vmem:[#allocation6 + $0x14c0] sm:$0xff]
    %v1058 = vld [vmem:[#allocation6 + $0x14c8] sm:$0xff]
    %v1059 = vld [vmem:[#allocation6 + $0x14d0] sm:$0xff]
    %v1060 = vld [vmem:[#allocation6 + $0x14d8] sm:$0xff]
    %v1061 = vld [vmem:[#allocation6 + $0x14e0] sm:$0xff]
    %v1062 = vld [vmem:[#allocation6 + $0x14e8] sm:$0xff]
    %v1063 = vld [vmem:[#allocation6 + $0x14f0] sm:$0xff]
    %v1064 = vld [vmem:[#allocation6 + $0x14f8] sm:$0xff]
    %v1065 = vld [vmem:[#allocation6 + $0x1500] sm:$0xff]
    %v1066 = vld [vmem:[#allocation6 + $0x1508] sm:$0xff]
    %v1067 = vld [vmem:[#allocation6 + $0x1510] sm:$0xff]
    %v1068 = vld [vmem:[#allocation6 + $0x1518] sm:$0xff]
    %v1069 = vld [vmem:[#allocation6 + $0x1520] sm:$0xff]
    %v1070 = vld [vmem:[#allocation6 + $0x1528] sm:$0xff]
    %v1071 = vld [vmem:[#allocation6 + $0x1530] sm:$0xff]
    %v1072 = vld [vmem:[#allocation6 + $0x1538] sm:$0xff]
    %v1073 = vld [vmem:[#allocation6 + $0x1540] sm:$0xff]
    %v1074 = vld [vmem:[#allocation6 + $0x1548] sm:$0xff]
    %v1075 = vld [vmem:[#allocation6 + $0x1550] sm:$0xff]
    %v1076 = vld [vmem:[#allocation6 + $0x1558] sm:$0xff]
    %v1077 = vld [vmem:[#allocation6 + $0x1560] sm:$0xff]
    %v1078 = vld [vmem:[#allocation6 + $0x1568] sm:$0xff]
    %v1079 = vld [vmem:[#allocation6 + $0x1570] sm:$0xff]
    %v1080 = vld [vmem:[#allocation6 + $0x1578] sm:$0xff]
    %v1081 = vld [vmem:[#allocation6 + $0x1580] sm:$0xff]
    %v1082 = vld [vmem:[#allocation6 + $0x1588] sm:$0xff]
    %v1083 = vld [vmem:[#allocation6 + $0x1590] sm:$0xff]
    %v1084 = vld [vmem:[#allocation6 + $0x1598] sm:$0xff]
    %v1085 = vld [vmem:[#allocation6 + $0x15a0] sm:$0xff]
    %v1086 = vld [vmem:[#allocation6 + $0x15a8] sm:$0xff]
    %v1087 = vld [vmem:[#allocation6 + $0x15b0] sm:$0xff]
    %v1088 = vld [vmem:[#allocation6 + $0x15b8] sm:$0xff]
    %v1089 = vld [vmem:[#allocation6 + $0x15c0] sm:$0xff]
    %v1090 = vld [vmem:[#allocation6 + $0x15c8] sm:$0xff]
    %v1091 = vld [vmem:[#allocation6 + $0x15d0] sm:$0xff]
    %v1092 = vld [vmem:[#allocation6 + $0x15d8] sm:$0xff]
    %v1093 = vld [vmem:[#allocation6 + $0x15e0] sm:$0xff]
    %v1094 = vld [vmem:[#allocation6 + $0x15e8] sm:$0xff]
    %v1095 = vld [vmem:[#allocation6 + $0x15f0] sm:$0xff]
    %v1096 = vld [vmem:[#allocation6 + $0x15f8] sm:$0xff]
    %v1097 = vld [vmem:[#allocation6 + $0x1600] sm:$0xff]
    %v1098 = vld [vmem:[#allocation6 + $0x1608] sm:$0xff]
    %v1099 = vld [vmem:[#allocation6 + $0x1610] sm:$0xff]
    %v1100 = vld [vmem:[#allocation6 + $0x1618] sm:$0xff]
    %v1101 = vld [vmem:[#allocation6 + $0x1620] sm:$0xff]
    %v1102 = vld [vmem:[#allocation6 + $0x1628] sm:$0xff]
    %v1103 = vld [vmem:[#allocation6 + $0x1630] sm:$0xff]
    %v1104 = vld [vmem:[#allocation6 + $0x1638] sm:$0xff]
    %v1105 = vld [vmem:[#allocation6 + $0x1640] sm:$0xff]
    %v1106 = vld [vmem:[#allocation6 + $0x1648] sm:$0xff]
    %v1107 = vld [vmem:[#allocation6 + $0x1650] sm:$0xff]
    %v1108 = vld [vmem:[#allocation6 + $0x1658] sm:$0xff]
    %v1109 = vld [vmem:[#allocation6 + $0x1660] sm:$0xff]
    %v1110 = vld [vmem:[#allocation6 + $0x1668] sm:$0xff]
    %v1111 = vld [vmem:[#allocation6 + $0x1670] sm:$0xff]
    %v1112 = vld [vmem:[#allocation6 + $0x1678] sm:$0xff]
    %v1113 = vld [vmem:[#allocation6 + $0x1680] sm:$0xff]
    %v1114 = vld [vmem:[#allocation6 + $0x1688] sm:$0xff]
    %v1115 = vld [vmem:[#allocation6 + $0x1690] sm:$0xff]
    %v1116 = vld [vmem:[#allocation6 + $0x1698] sm:$0xff]
    %v1117 = vld [vmem:[#allocation6 + $0x16a0] sm:$0xff]
    %v1118 = vld [vmem:[#allocation6 + $0x16a8] sm:$0xff]
    %v1119 = vld [vmem:[#allocation6 + $0x16b0] sm:$0xff]
    %v1120 = vld [vmem:[#allocation6 + $0x16b8] sm:$0xff]
    %v1121 = vld [vmem:[#allocation6 + $0x16c0] sm:$0xff]
    %v1122 = vld [vmem:[#allocation6 + $0x16c8] sm:$0xff]
    %v1123 = vld [vmem:[#allocation6 + $0x16d0] sm:$0xff]
    %v1124 = vld [vmem:[#allocation6 + $0x16d8] sm:$0xff]
    %v1125 = vld [vmem:[#allocation6 + $0x16e0] sm:$0xff]
    %v1126 = vld [vmem:[#allocation6 + $0x16e8] sm:$0xff]
    %v1127 = vld [vmem:[#allocation6 + $0x16f0] sm:$0xff]
    %v1128 = vld [vmem:[#allocation6 + $0x16f8] sm:$0xff]
    %v1129 = vld [vmem:[#allocation6 + $0x1700] sm:$0xff]
    %v1130 = vld [vmem:[#allocation6 + $0x1708] sm:$0xff]
    %v1131 = vld [vmem:[#allocation6 + $0x1710] sm:$0xff]
    %v1132 = vld [vmem:[#allocation6 + $0x1718] sm:$0xff]
    %v1133 = vld [vmem:[#allocation6 + $0x1720] sm:$0xff]
    %v1134 = vld [vmem:[#allocation6 + $0x1728] sm:$0xff]
    %v1135 = vld [vmem:[#allocation6 + $0x1730] sm:$0xff]
    %v1136 = vld [vmem:[#allocation6 + $0x1738] sm:$0xff]
    %v1137 = vld [vmem:[#allocation6 + $0x1740] sm:$0xff]
    %v1138 = vld [vmem:[#allocation6 + $0x1748] sm:$0xff]
    %v1139 = vld [vmem:[#allocation6 + $0x1750] sm:$0xff]
    %v1140 = vld [vmem:[#allocation6 + $0x1758] sm:$0xff]
    %v1141 = vld [vmem:[#allocation6 + $0x1760] sm:$0xff]
    %v1142 = vld [vmem:[#allocation6 + $0x1768] sm:$0xff]
    %v1143 = vld [vmem:[#allocation6 + $0x1770] sm:$0xff]
    %v1144 = vld [vmem:[#allocation6 + $0x1778] sm:$0xff]
    %v1145 = vld [vmem:[#allocation6 + $0x1780] sm:$0xff]
    %v1146 = vld [vmem:[#allocation6 + $0x1788] sm:$0xff]
    %v1147 = vld [vmem:[#allocation6 + $0x1790] sm:$0xff]
    %v1148 = vld [vmem:[#allocation6 + $0x1798] sm:$0xff]
    %v1149 = vld [vmem:[#allocation6 + $0x17a0] sm:$0xff]
    %v1150 = vld [vmem:[#allocation6 + $0x17a8] sm:$0xff]
    %v1151 = vld [vmem:[#allocation6 + $0x17b0] sm:$0xff]
    %v1152 = vld [vmem:[#allocation6 + $0x17b8] sm:$0xff]
    %v1153 = vld [vmem:[#allocation6 + $0x17c0] sm:$0xff]
    %v1154 = vld [vmem:[#allocation6 + $0x17c8] sm:$0xff]
    %v1155 = vld [vmem:[#allocation6 + $0x17d0] sm:$0xff]
    %v1156 = vld [vmem:[#allocation6 + $0x17d8] sm:$0xff]
    %v1157 = vld [vmem:[#allocation6 + $0x17e0] sm:$0xff]
    %v1158 = vld [vmem:[#allocation6 + $0x17e8] sm:$0xff]
    %v1159 = vld [vmem:[#allocation6 + $0x17f0] sm:$0xff]
    %v1160 = vld [vmem:[#allocation6 + $0x17f8] sm:$0xff]
    %v1161 = vld [vmem:[#allocation6 + $0x1800] sm:$0xff]
    %v1162 = vld [vmem:[#allocation6 + $0x1808] sm:$0xff]
    %v1163 = vld [vmem:[#allocation6 + $0x1810] sm:$0xff]
    %v1164 = vld [vmem:[#allocation6 + $0x1818] sm:$0xff]
    %v1165 = vld [vmem:[#allocation6 + $0x1820] sm:$0xff]
    %v1166 = vld [vmem:[#allocation6 + $0x1828] sm:$0xff]
    %v1167 = vld [vmem:[#allocation6 + $0x1830] sm:$0xff]
    %v1168 = vld [vmem:[#allocation6 + $0x1838] sm:$0xff]
    %v1169 = vld [vmem:[#allocation6 + $0x1840] sm:$0xff]
    %v1170 = vld [vmem:[#allocation6 + $0x1848] sm:$0xff]
    %v1171 = vld [vmem:[#allocation6 + $0x1850] sm:$0xff]
    %v1172 = vld [vmem:[#allocation6 + $0x1858] sm:$0xff]
    %v1173 = vld [vmem:[#allocation6 + $0x1860] sm:$0xff]
    %v1174 = vld [vmem:[#allocation6 + $0x1868] sm:$0xff]
    %v1175 = vld [vmem:[#allocation6 + $0x1870] sm:$0xff]
    %v1176 = vld [vmem:[#allocation6 + $0x1878] sm:$0xff]
    %v1177 = vld [vmem:[#allocation6 + $0x1880] sm:$0xff]
    %v1178 = vld [vmem:[#allocation6 + $0x1888] sm:$0xff]
    %v1179 = vld [vmem:[#allocation6 + $0x1890] sm:$0xff]
    %v1180 = vld [vmem:[#allocation6 + $0x1898] sm:$0xff]
    %v1181 = vld [vmem:[#allocation6 + $0x18a0] sm:$0xff]
    %v1182 = vld [vmem:[#allocation6 + $0x18a8] sm:$0xff]
    %v1183 = vld [vmem:[#allocation6 + $0x18b0] sm:$0xff]
    %v1184 = vld [vmem:[#allocation6 + $0x18b8] sm:$0xff]
    %v1185 = vld [vmem:[#allocation6 + $0x18c0] sm:$0xff]
    %v1186 = vld [vmem:[#allocation6 + $0x18c8] sm:$0xff]
    %v1187 = vld [vmem:[#allocation6 + $0x18d0] sm:$0xff]
    %v1188 = vld [vmem:[#allocation6 + $0x18d8] sm:$0xff]
    %v1189 = vld [vmem:[#allocation6 + $0x18e0] sm:$0xff]
    %v1190 = vld [vmem:[#allocation6 + $0x18e8] sm:$0xff]
    %v1191 = vld [vmem:[#allocation6 + $0x18f0] sm:$0xff]
    %v1192 = vld [vmem:[#allocation6 + $0x18f8] sm:$0xff]
    %v1193 = vld [vmem:[#allocation6 + $0x1900] sm:$0xff]
    %v1194 = vld [vmem:[#allocation6 + $0x1908] sm:$0xff]
    %v1195 = vld [vmem:[#allocation6 + $0x1910] sm:$0xff]
    %v1196 = vld [vmem:[#allocation6 + $0x1918] sm:$0xff]
    %v1197 = vld [vmem:[#allocation6 + $0x1920] sm:$0xff]
    %v1198 = vld [vmem:[#allocation6 + $0x1928] sm:$0xff]
    %v1199 = vld [vmem:[#allocation6 + $0x1930] sm:$0xff]
    %v1200 = vld [vmem:[#allocation6 + $0x1938] sm:$0xff]
    %v1201 = vld [vmem:[#allocation6 + $0x1940] sm:$0xff]
    %v1202 = vld [vmem:[#allocation6 + $0x1948] sm:$0xff]
    %v1203 = vld [vmem:[#allocation6 + $0x1950] sm:$0xff]
    %v1204 = vld [vmem:[#allocation6 + $0x1958] sm:$0xff]
    %v1205 = vld [vmem:[#allocation6 + $0x1960] sm:$0xff]
    %v1206 = vld [vmem:[#allocation6 + $0x1968] sm:$0xff]
    %v1207 = vld [vmem:[#allocation6 + $0x1970] sm:$0xff]
    %v1208 = vld [vmem:[#allocation6 + $0x1978] sm:$0xff]
    %v1209 = vld [vmem:[#allocation6 + $0x1980] sm:$0xff]
    %v1210 = vld [vmem:[#allocation6 + $0x1988] sm:$0xff]
    %v1211 = vld [vmem:[#allocation6 + $0x1990] sm:$0xff]
    %v1212 = vld [vmem:[#allocation6 + $0x1998] sm:$0xff]
    %v1213 = vld [vmem:[#allocation6 + $0x19a0] sm:$0xff]
    %v1214 = vld [vmem:[#allocation6 + $0x19a8] sm:$0xff]
    %v1215 = vld [vmem:[#allocation6 + $0x19b0] sm:$0xff]
    %v1216 = vld [vmem:[#allocation6 + $0x19b8] sm:$0xff]
    %v1217 = vld [vmem:[#allocation6 + $0x19c0] sm:$0xff]
    %v1218 = vld [vmem:[#allocation6 + $0x19c8] sm:$0xff]
    %v1219 = vld [vmem:[#allocation6 + $0x19d0] sm:$0xff]
    %v1220 = vld [vmem:[#allocation6 + $0x19d8] sm:$0xff]
    %v1221 = vld [vmem:[#allocation6 + $0x19e0] sm:$0xff]
    %v1222 = vld [vmem:[#allocation6 + $0x19e8] sm:$0xff]
    %v1223 = vld [vmem:[#allocation6 + $0x19f0] sm:$0xff]
    %v1224 = vld [vmem:[#allocation6 + $0x19f8] sm:$0xff]
    %v1225 = vld [vmem:[#allocation6 + $0x1a00] sm:$0xff]
    %v1226 = vld [vmem:[#allocation6 + $0x1a08] sm:$0xff]
    %v1227 = vld [vmem:[#allocation6 + $0x1a10] sm:$0xff]
    %v1228 = vld [vmem:[#allocation6 + $0x1a18] sm:$0xff]
    %v1229 = vld [vmem:[#allocation6 + $0x1a20] sm:$0xff]
    %v1230 = vld [vmem:[#allocation6 + $0x1a28] sm:$0xff]
    %v1231 = vld [vmem:[#allocation6 + $0x1a30] sm:$0xff]
    %v1232 = vld [vmem:[#allocation6 + $0x1a38] sm:$0xff]
    %v1233 = vld [vmem:[#allocation6 + $0x1a40] sm:$0xff]
    %v1234 = vld [vmem:[#allocation6 + $0x1a48] sm:$0xff]
    %v1235 = vld [vmem:[#allocation6 + $0x1a50] sm:$0xff]
    %v1236 = vld [vmem:[#allocation6 + $0x1a58] sm:$0xff]
    %v1237 = vld [vmem:[#allocation6 + $0x1a60] sm:$0xff]
    %v1238 = vld [vmem:[#allocation6 + $0x1a68] sm:$0xff]
    %v1239 = vld [vmem:[#allocation6 + $0x1a70] sm:$0xff]
    %v1240 = vld [vmem:[#allocation6 + $0x1a78] sm:$0xff]
    %v1241 = vld [vmem:[#allocation6 + $0x1a80] sm:$0xff]
    %v1242 = vld [vmem:[#allocation6 + $0x1a88] sm:$0xff]
    %v1243 = vld [vmem:[#allocation6 + $0x1a90] sm:$0xff]
    %v1244 = vld [vmem:[#allocation6 + $0x1a98] sm:$0xff]
    %v1245 = vld [vmem:[#allocation6 + $0x1aa0] sm:$0xff]
    %v1246 = vld [vmem:[#allocation6 + $0x1aa8] sm:$0xff]
    %v1247 = vld [vmem:[#allocation6 + $0x1ab0] sm:$0xff]
    %v1248 = vld [vmem:[#allocation6 + $0x1ab8] sm:$0xff]
    %v1249 = vld [vmem:[#allocation6 + $0x1ac0] sm:$0xff]
    %v1250 = vld [vmem:[#allocation6 + $0x1ac8] sm:$0xff]
    %v1251 = vld [vmem:[#allocation6 + $0x1ad0] sm:$0xff]
    %v1252 = vld [vmem:[#allocation6 + $0x1ad8] sm:$0xff]
    %v1253 = vld [vmem:[#allocation6 + $0x1ae0] sm:$0xff]
    %v1254 = vld [vmem:[#allocation6 + $0x1ae8] sm:$0xff]
    %v1255 = vld [vmem:[#allocation6 + $0x1af0] sm:$0xff]
    %v1256 = vld [vmem:[#allocation6 + $0x1af8] sm:$0xff]
    %v1257 = vld [vmem:[#allocation6 + $0x1b00] sm:$0xff]
    %v1258 = vld [vmem:[#allocation6 + $0x1b08] sm:$0xff]
    %v1259 = vld [vmem:[#allocation6 + $0x1b10] sm:$0xff]
    %v1260 = vld [vmem:[#allocation6 + $0x1b18] sm:$0xff]
    %v1261 = vld [vmem:[#allocation6 + $0x1b20] sm:$0xff]
    %v1262 = vld [vmem:[#allocation6 + $0x1b28] sm:$0xff]
    %v1263 = vld [vmem:[#allocation6 + $0x1b30] sm:$0xff]
    %v1264 = vld [vmem:[#allocation6 + $0x1b38] sm:$0xff]
    %v1265 = vld [vmem:[#allocation6 + $0x1b40] sm:$0xff]
    %v1266 = vld [vmem:[#allocation6 + $0x1b48] sm:$0xff]
    %v1267 = vld [vmem:[#allocation6 + $0x1b50] sm:$0xff]
    %v1268 = vld [vmem:[#allocation6 + $0x1b58] sm:$0xff]
    %v1269 = vld [vmem:[#allocation6 + $0x1b60] sm:$0xff]
    %v1270 = vld [vmem:[#allocation6 + $0x1b68] sm:$0xff]
    %v1271 = vld [vmem:[#allocation6 + $0x1b70] sm:$0xff]
    %v1272 = vld [vmem:[#allocation6 + $0x1b78] sm:$0xff]
    %v1273 = vld [vmem:[#allocation6 + $0x1b80] sm:$0xff]
    %v1274 = vld [vmem:[#allocation6 + $0x1b88] sm:$0xff]
    %v1275 = vld [vmem:[#allocation6 + $0x1b90] sm:$0xff]
    %v1276 = vld [vmem:[#allocation6 + $0x1b98] sm:$0xff]
    %v1277 = vld [vmem:[#allocation6 + $0x1ba0] sm:$0xff]
    %v1278 = vld [vmem:[#allocation6 + $0x1ba8] sm:$0xff]
    %v1279 = vld [vmem:[#allocation6 + $0x1bb0] sm:$0xff]
    %v1280 = vld [vmem:[#allocation6 + $0x1bb8] sm:$0xff]
    %v1281 = vld [vmem:[#allocation6 + $0x1bc0] sm:$0xff]
    %v1282 = vld [vmem:[#allocation6 + $0x1bc8] sm:$0xff]
    %v1283 = vld [vmem:[#allocation6 + $0x1bd0] sm:$0xff]
    %v1284 = vld [vmem:[#allocation6 + $0x1bd8] sm:$0xff]
    %v1285 = vld [vmem:[#allocation6 + $0x1be0] sm:$0xff]
    %v1286 = vld [vmem:[#allocation6 + $0x1be8] sm:$0xff]
    %v1287 = vld [vmem:[#allocation6 + $0x1bf0] sm:$0xff]
    %v1288 = vld [vmem:[#allocation6 + $0x1bf8] sm:$0xff]
    %v1289 = vld [vmem:[#allocation6 + $0x1c00] sm:$0xff]
    %v1290 = vld [vmem:[#allocation6 + $0x1c08] sm:$0xff]
    %v1291 = vld [vmem:[#allocation6 + $0x1c10] sm:$0xff]
    %v1292 = vld [vmem:[#allocation6 + $0x1c18] sm:$0xff]
    %v1293 = vld [vmem:[#allocation6 + $0x1c20] sm:$0xff]
    %v1294 = vld [vmem:[#allocation6 + $0x1c28] sm:$0xff]
    %v1295 = vld [vmem:[#allocation6 + $0x1c30] sm:$0xff]
    %v1296 = vld [vmem:[#allocation6 + $0x1c38] sm:$0xff]
    %v1297 = vld [vmem:[#allocation6 + $0x1c40] sm:$0xff]
    %v1298 = vld [vmem:[#allocation6 + $0x1c48] sm:$0xff]
    %v1299 = vld [vmem:[#allocation6 + $0x1c50] sm:$0xff]
    %v1300 = vld [vmem:[#allocation6 + $0x1c58] sm:$0xff]
    %v1301 = vld [vmem:[#allocation6 + $0x1c60] sm:$0xff]
    %v1302 = vld [vmem:[#allocation6 + $0x1c68] sm:$0xff]
    %v1303 = vld [vmem:[#allocation6 + $0x1c70] sm:$0xff]
    %v1304 = vld [vmem:[#allocation6 + $0x1c78] sm:$0xff]
    %v1305 = vld [vmem:[#allocation6 + $0x1c80] sm:$0xff]
    %v1306 = vld [vmem:[#allocation6 + $0x1c88] sm:$0xff]
    %v1307 = vld [vmem:[#allocation6 + $0x1c90] sm:$0xff]
    %v1308 = vld [vmem:[#allocation6 + $0x1c98] sm:$0xff]
    %v1309 = vld [vmem:[#allocation6 + $0x1ca0] sm:$0xff]
    %v1310 = vld [vmem:[#allocation6 + $0x1ca8] sm:$0xff]
    %v1311 = vld [vmem:[#allocation6 + $0x1cb0] sm:$0xff]
    %v1312 = vld [vmem:[#allocation6 + $0x1cb8] sm:$0xff]
    %v1313 = vld [vmem:[#allocation6 + $0x1cc0] sm:$0xff]
    %v1314 = vld [vmem:[#allocation6 + $0x1cc8] sm:$0xff]
    %v1315 = vld [vmem:[#allocation6 + $0x1cd0] sm:$0xff]
    %v1316 = vld [vmem:[#allocation6 + $0x1cd8] sm:$0xff]
    %v1317 = vld [vmem:[#allocation6 + $0x1ce0] sm:$0xff]
    %v1318 = vld [vmem:[#allocation6 + $0x1ce8] sm:$0xff]
    %v1319 = vld [vmem:[#allocation6 + $0x1cf0] sm:$0xff]
    %v1320 = vld [vmem:[#allocation6 + $0x1cf8] sm:$0xff]
    %v1321 = vld [vmem:[#allocation6 + $0x1d00] sm:$0xff]
    %v1322 = vld [vmem:[#allocation6 + $0x1d08] sm:$0xff]
    %v1323 = vld [vmem:[#allocation6 + $0x1d10] sm:$0xff]
    %v1324 = vld [vmem:[#allocation6 + $0x1d18] sm:$0xff]
    %v1325 = vld [vmem:[#allocation6 + $0x1d20] sm:$0xff]
    %v1326 = vld [vmem:[#allocation6 + $0x1d28] sm:$0xff]
    %v1327 = vld [vmem:[#allocation6 + $0x1d30] sm:$0xff]
    %v1328 = vld [vmem:[#allocation6 + $0x1d38] sm:$0xff]
    %v1329 = vld [vmem:[#allocation6 + $0x1d40] sm:$0xff]
    %v1330 = vld [vmem:[#allocation6 + $0x1d48] sm:$0xff]
    %v1331 = vld [vmem:[#allocation6 + $0x1d50] sm:$0xff]
    %v1332 = vld [vmem:[#allocation6 + $0x1d58] sm:$0xff]
    %v1333 = vld [vmem:[#allocation6 + $0x1d60] sm:$0xff]
    %v1334 = vld [vmem:[#allocation6 + $0x1d68] sm:$0xff]
    %v1335 = vld [vmem:[#allocation6 + $0x1d70] sm:$0xff]
    %v1336 = vld [vmem:[#allocation6 + $0x1d78] sm:$0xff]
    %v1337 = vld [vmem:[#allocation6 + $0x1d80] sm:$0xff]
    %v1338 = vld [vmem:[#allocation6 + $0x1d88] sm:$0xff]
    %v1339 = vld [vmem:[#allocation6 + $0x1d90] sm:$0xff]
    %v1340 = vld [vmem:[#allocation6 + $0x1d98] sm:$0xff]
    %v1341 = vld [vmem:[#allocation6 + $0x1da0] sm:$0xff]
    %v1342 = vld [vmem:[#allocation6 + $0x1da8] sm:$0xff]
    %v1343 = vld [vmem:[#allocation6 + $0x1db0] sm:$0xff]
    %v1344 = vld [vmem:[#allocation6 + $0x1db8] sm:$0xff]
    %v1345 = vld [vmem:[#allocation6 + $0x1dc0] sm:$0xff]
    %v1346 = vld [vmem:[#allocation6 + $0x1dc8] sm:$0xff]
    %v1347 = vld [vmem:[#allocation6 + $0x1dd0] sm:$0xff]
    %v1348 = vld [vmem:[#allocation6 + $0x1dd8] sm:$0xff]
    %v1349 = vld [vmem:[#allocation6 + $0x1de0] sm:$0xff]
    %v1350 = vld [vmem:[#allocation6 + $0x1de8] sm:$0xff]
    %v1351 = vld [vmem:[#allocation6 + $0x1df0] sm:$0xff]
    %v1352 = vld [vmem:[#allocation6 + $0x1df8] sm:$0xff]
    %v1353 = vld [vmem:[#allocation6 + $0x1e00] sm:$0xff]
    %v1354 = vld [vmem:[#allocation6 + $0x1e08] sm:$0xff]
    %v1355 = vld [vmem:[#allocation6 + $0x1e10] sm:$0xff]
    %v1356 = vld [vmem:[#allocation6 + $0x1e18] sm:$0xff]
    %v1357 = vld [vmem:[#allocation6 + $0x1e20] sm:$0xff]
    %v1358 = vld [vmem:[#allocation6 + $0x1e28] sm:$0xff]
    %v1359 = vld [vmem:[#allocation6 + $0x1e30] sm:$0xff]
    %v1360 = vld [vmem:[#allocation6 + $0x1e38] sm:$0xff]
    %v1361 = vld [vmem:[#allocation6 + $0x1e40] sm:$0xff]
    %v1362 = vld [vmem:[#allocation6 + $0x1e48] sm:$0xff]
    %v1363 = vld [vmem:[#allocation6 + $0x1e50] sm:$0xff]
    %v1364 = vld [vmem:[#allocation6 + $0x1e58] sm:$0xff]
    %v1365 = vld [vmem:[#allocation6 + $0x1e60] sm:$0xff]
    %v1366 = vld [vmem:[#allocation6 + $0x1e68] sm:$0xff]
    %v1367 = vld [vmem:[#allocation6 + $0x1e70] sm:$0xff]
    %v1368 = vld [vmem:[#allocation6 + $0x1e78] sm:$0xff]
    %v1369 = vld [vmem:[#allocation6 + $0x1e80] sm:$0xff]
    %v1370 = vld [vmem:[#allocation6 + $0x1e88] sm:$0xff]
    %v1371 = vld [vmem:[#allocation6 + $0x1e90] sm:$0xff]
    %v1372 = vld [vmem:[#allocation6 + $0x1e98] sm:$0xff]
    %v1373 = vld [vmem:[#allocation6 + $0x1ea0] sm:$0xff]
    %v1374 = vld [vmem:[#allocation6 + $0x1ea8] sm:$0xff]
    %v1375 = vld [vmem:[#allocation6 + $0x1eb0] sm:$0xff]
    %v1376 = vld [vmem:[#allocation6 + $0x1eb8] sm:$0xff]
    %v1377 = vld [vmem:[#allocation6 + $0x1ec0] sm:$0xff]
    %v1378 = vld [vmem:[#allocation6 + $0x1ec8] sm:$0xff]
    %v1379 = vld [vmem:[#allocation6 + $0x1ed0] sm:$0xff]
    %v1380 = vld [vmem:[#allocation6 + $0x1ed8] sm:$0xff]
    %v1381 = vld [vmem:[#allocation6 + $0x1ee0] sm:$0xff]
    %v1382 = vld [vmem:[#allocation6 + $0x1ee8] sm:$0xff]
    %v1383 = vld [vmem:[#allocation6 + $0x1ef0] sm:$0xff]
    %v1384 = vld [vmem:[#allocation6 + $0x1ef8] sm:$0xff]
    %v1385 = vld [vmem:[#allocation6 + $0x1f00] sm:$0xff]
    %v1386 = vld [vmem:[#allocation6 + $0x1f08] sm:$0xff]
    %v1387 = vld [vmem:[#allocation6 + $0x1f10] sm:$0xff]
    %v1388 = vld [vmem:[#allocation6 + $0x1f18] sm:$0xff]
    %v1389 = vld [vmem:[#allocation6 + $0x1f20] sm:$0xff]
    %v1390 = vld [vmem:[#allocation6 + $0x1f28] sm:$0xff]
    %v1391 = vld [vmem:[#allocation6 + $0x1f30] sm:$0xff]
    %v1392 = vld [vmem:[#allocation6 + $0x1f38] sm:$0xff]
    %v1393 = vld [vmem:[#allocation6 + $0x1f40] sm:$0xff]
    %v1394 = vld [vmem:[#allocation6 + $0x1f48] sm:$0xff]
    %v1395 = vld [vmem:[#allocation6 + $0x1f50] sm:$0xff]
    %v1396 = vld [vmem:[#allocation6 + $0x1f58] sm:$0xff]
    %v1397 = vld [vmem:[#allocation6 + $0x1f60] sm:$0xff]
    %v1398 = vld [vmem:[#allocation6 + $0x1f68] sm:$0xff]
    %v1399 = vld [vmem:[#allocation6 + $0x1f70] sm:$0xff]
    %v1400 = vld [vmem:[#allocation6 + $0x1f78] sm:$0xff]
    %v1401 = vld [vmem:[#allocation6 + $0x1f80] sm:$0xff]
    %v1402 = vld [vmem:[#allocation6 + $0x1f88] sm:$0xff]
    %v1403 = vld [vmem:[#allocation6 + $0x1f90] sm:$0xff]
    %v1404 = vld [vmem:[#allocation6 + $0x1f98] sm:$0xff]
    %v1405 = vld [vmem:[#allocation6 + $0x1fa0] sm:$0xff]
    %v1406 = vld [vmem:[#allocation6 + $0x1fa8] sm:$0xff]
    %v1407 = vld [vmem:[#allocation6 + $0x1fb0] sm:$0xff]
    %v1408 = vld [vmem:[#allocation6 + $0x1fb8] sm:$0xff]
    %v1409 = vld [vmem:[#allocation6 + $0x1fc0] sm:$0xff]
    %v1410 = vld [vmem:[#allocation6 + $0x1fc8] sm:$0xff]
    %v1411 = vld [vmem:[#allocation6 + $0x1fd0] sm:$0xff]
    %v1412 = vld [vmem:[#allocation6 + $0x1fd8] sm:$0xff]
    %v1413 = vld [vmem:[#allocation6 + $0x1fe0] sm:$0xff]
    %v1414 = vld [vmem:[#allocation6 + $0x1fe8] sm:$0xff]
    %v1415 = vld [vmem:[#allocation6 + $0x1ff0] sm:$0xff]
    %v1416 = vld [vmem:[#allocation6 + $0x1ff8] sm:$0xff]
    %v1417 = vld [vmem:[#allocation7] sm:$0xff]
    %v1418 = vld [vmem:[#allocation7 + $0x8] sm:$0xff]
    %v1421 = vlaneseq
    %v1422 = vshrl.u32 %v1421, 7
    %v1423 = vsub.s32 0, %v1422
    %v1424 = vrot.slane %v1417, %v1423
    %v1425 = vlaneseq
    %v1426 = vshrl.u32 %v1425, 7
    %v1427 = vsub.s32 1, %v1426
    %v1428 = vrot.slane %v1417, %v1427
    %v1429 = vlaneseq
    %v1430 = vshrl.u32 %v1429, 7
    %v1431 = vsub.s32 2, %v1430
    %v1432 = vrot.slane %v1417, %v1431
    %v1433 = vlaneseq
    %v1434 = vshrl.u32 %v1433, 7
    %v1435 = vsub.s32 3, %v1434
    %v1436 = vrot.slane %v1417, %v1435
    %v1437 = vlaneseq
    %v1438 = vshrl.u32 %v1437, 7
    %v1439 = vsub.s32 4, %v1438
    %v1440 = vrot.slane %v1417, %v1439
    %v1441 = vlaneseq
    %v1442 = vshrl.u32 %v1441, 7
    %v1443 = vsub.s32 5, %v1442
    %v1444 = vrot.slane %v1417, %v1443
    %v1445 = vlaneseq
    %v1446 = vshrl.u32 %v1445, 7
    %v1447 = vsub.s32 6, %v1446
    %v1448 = vrot.slane %v1417, %v1447
    %v1449 = vlaneseq
    %v1450 = vshrl.u32 %v1449, 7
    %v1451 = vsub.s32 7, %v1450
    %v1452 = vrot.slane %v1417, %v1451
    %v1453 = vlaneseq
    %v1454 = vshrl.u32 %v1453, 7
    %v1455 = vsub.s32 0, %v1454
    %v1456 = vrot.slane %v1418, %v1455
    %v1457 = vlaneseq
    %v1458 = vshrl.u32 %v1457, 7
    %v1459 = vsub.s32 1, %v1458
    %v1460 = vrot.slane %v1418, %v1459
    %v1461 = vlaneseq
    %v1462 = vshrl.u32 %v1461, 7
    %v1463 = vsub.s32 2, %v1462
    %v1464 = vrot.slane %v1418, %v1463
    %v1465 = vlaneseq
    %v1466 = vshrl.u32 %v1465, 7
    %v1467 = vsub.s32 3, %v1466
    %v1468 = vrot.slane %v1418, %v1467
    %v1469 = vlaneseq
    %v1470 = vshrl.u32 %v1469, 7
    %v1471 = vsub.s32 4, %v1470
    %v1472 = vrot.slane %v1418, %v1471
    %v1473 = vlaneseq
    %v1474 = vshrl.u32 %v1473, 7
    %v1475 = vsub.s32 5, %v1474
    %v1476 = vrot.slane %v1418, %v1475
    %v1477 = vlaneseq
    %v1478 = vshrl.u32 %v1477, 7
    %v1479 = vsub.s32 6, %v1478
    %v1480 = vrot.slane %v1418, %v1479
    %v1481 = vlaneseq
    %v1482 = vshrl.u32 %v1481, 7
    %v1483 = vsub.s32 7, %v1482
    %v1484 = vrot.slane %v1418, %v1483
    %v2525 = vunpack.c.l.b16 %v393
    %v2526 = vunpack.c.h.b16 %v393
    %v2527 = vunpack.c.l.b16 %v394
    %v2528 = vunpack.c.h.b16 %v394
    %v2529 = vunpack.c.l.b16 %v395
    %v2530 = vunpack.c.h.b16 %v395
    %v2531 = vunpack.c.l.b16 %v396
    %v2532 = vunpack.c.h.b16 %v396
    %v2533 = vunpack.c.l.b16 %v397
    %v2534 = vunpack.c.h.b16 %v397
    %v2535 = vunpack.c.l.b16 %v398
    %v2536 = vunpack.c.h.b16 %v398
    %v2537 = vunpack.c.l.b16 %v399
    %v2538 = vunpack.c.h.b16 %v399
    %v2539 = vunpack.c.l.b16 %v400
    %v2540 = vunpack.c.h.b16 %v400
    %v2541 = vunpack.c.l.b16 %v401
    %v2542 = vunpack.c.h.b16 %v401
    %v2543 = vunpack.c.l.b16 %v402
    %v2544 = vunpack.c.h.b16 %v402
    %v2545 = vunpack.c.l.b16 %v403
    %v2546 = vunpack.c.h.b16 %v403
    %v2547 = vunpack.c.l.b16 %v404
    %v2548 = vunpack.c.h.b16 %v404
    %v2549 = vunpack.c.l.b16 %v405
    %v2550 = vunpack.c.h.b16 %v405
    %v2551 = vunpack.c.l.b16 %v406
    %v2552 = vunpack.c.h.b16 %v406
    %v2553 = vunpack.c.l.b16 %v407
    %v2554 = vunpack.c.h.b16 %v407
    %v2555 = vunpack.c.l.b16 %v408
    %v2556 = vunpack.c.h.b16 %v408
    %v2557 = vunpack.c.l.b16 %v409
    %v2558 = vunpack.c.h.b16 %v409
    %v2559 = vunpack.c.l.b16 %v410
    %v2560 = vunpack.c.h.b16 %v410
    %v2561 = vunpack.c.l.b16 %v411
    %v2562 = vunpack.c.h.b16 %v411
    %v2563 = vunpack.c.l.b16 %v412
    %v2564 = vunpack.c.h.b16 %v412
    %v2565 = vunpack.c.l.b16 %v413
    %v2566 = vunpack.c.h.b16 %v413
    %v2567 = vunpack.c.l.b16 %v414
    %v2568 = vunpack.c.h.b16 %v414
    %v2569 = vunpack.c.l.b16 %v415
    %v2570 = vunpack.c.h.b16 %v415
    %v2571 = vunpack.c.l.b16 %v416
    %v2572 = vunpack.c.h.b16 %v416
    %v2573 = vunpack.c.l.b16 %v417
    %v2574 = vunpack.c.h.b16 %v417
    %v2575 = vunpack.c.l.b16 %v418
    %v2576 = vunpack.c.h.b16 %v418
    %v2577 = vunpack.c.l.b16 %v419
    %v2578 = vunpack.c.h.b16 %v419
    %v2579 = vunpack.c.l.b16 %v420
    %v2580 = vunpack.c.h.b16 %v420
    %v2581 = vunpack.c.l.b16 %v421
    %v2582 = vunpack.c.h.b16 %v421
    %v2583 = vunpack.c.l.b16 %v422
    %v2584 = vunpack.c.h.b16 %v422
    %v2585 = vunpack.c.l.b16 %v423
    %v2586 = vunpack.c.h.b16 %v423
    %v2587 = vunpack.c.l.b16 %v424
    %v2588 = vunpack.c.h.b16 %v424
    %v2589 = vunpack.c.l.b16 %v425
    %v2590 = vunpack.c.h.b16 %v425
    %v2591 = vunpack.c.l.b16 %v426
    %v2592 = vunpack.c.h.b16 %v426
    %v2593 = vunpack.c.l.b16 %v427
    %v2594 = vunpack.c.h.b16 %v427
    %v2595 = vunpack.c.l.b16 %v428
    %v2596 = vunpack.c.h.b16 %v428
    %v2597 = vunpack.c.l.b16 %v429
    %v2598 = vunpack.c.h.b16 %v429
    %v2599 = vunpack.c.l.b16 %v430
    %v2600 = vunpack.c.h.b16 %v430
    %v2601 = vunpack.c.l.b16 %v431
    %v2602 = vunpack.c.h.b16 %v431
    %v2603 = vunpack.c.l.b16 %v432
    %v2604 = vunpack.c.h.b16 %v432
    %v2605 = vunpack.c.l.b16 %v433
    %v2606 = vunpack.c.h.b16 %v433
    %v2607 = vunpack.c.l.b16 %v434
    %v2608 = vunpack.c.h.b16 %v434
    %v2609 = vunpack.c.l.b16 %v435
    %v2610 = vunpack.c.h.b16 %v435
    %v2611 = vunpack.c.l.b16 %v436
    %v2612 = vunpack.c.h.b16 %v436
    %v2613 = vunpack.c.l.b16 %v437
    %v2614 = vunpack.c.h.b16 %v437
    %v2615 = vunpack.c.l.b16 %v438
    %v2616 = vunpack.c.h.b16 %v438
    %v2617 = vunpack.c.l.b16 %v439
    %v2618 = vunpack.c.h.b16 %v439
    %v2619 = vunpack.c.l.b16 %v440
    %v2620 = vunpack.c.h.b16 %v440
    %v2621 = vunpack.c.l.b16 %v441
    %v2622 = vunpack.c.h.b16 %v441
    %v2623 = vunpack.c.l.b16 %v442
    %v2624 = vunpack.c.h.b16 %v442
    %v2625 = vunpack.c.l.b16 %v443
    %v2626 = vunpack.c.h.b16 %v443
    %v2627 = vunpack.c.l.b16 %v444
    %v2628 = vunpack.c.h.b16 %v444
    %v2629 = vunpack.c.l.b16 %v445
    %v2630 = vunpack.c.h.b16 %v445
    %v2631 = vunpack.c.l.b16 %v446
    %v2632 = vunpack.c.h.b16 %v446
    %v2633 = vunpack.c.l.b16 %v447
    %v2634 = vunpack.c.h.b16 %v447
    %v2635 = vunpack.c.l.b16 %v448
    %v2636 = vunpack.c.h.b16 %v448
    %v2637 = vunpack.c.l.b16 %v449
    %v2638 = vunpack.c.h.b16 %v449
    %v2639 = vunpack.c.l.b16 %v450
    %v2640 = vunpack.c.h.b16 %v450
    %v2641 = vunpack.c.l.b16 %v451
    %v2642 = vunpack.c.h.b16 %v451
    %v2643 = vunpack.c.l.b16 %v452
    %v2644 = vunpack.c.h.b16 %v452
    %v2645 = vunpack.c.l.b16 %v453
    %v2646 = vunpack.c.h.b16 %v453
    %v2647 = vunpack.c.l.b16 %v454
    %v2648 = vunpack.c.h.b16 %v454
    %v2649 = vunpack.c.l.b16 %v455
    %v2650 = vunpack.c.h.b16 %v455
    %v2651 = vunpack.c.l.b16 %v456
    %v2652 = vunpack.c.h.b16 %v456
    %v2653 = vunpack.c.l.b16 %v457
    %v2654 = vunpack.c.h.b16 %v457
    %v2655 = vunpack.c.l.b16 %v458
    %v2656 = vunpack.c.h.b16 %v458
    %v2657 = vunpack.c.l.b16 %v459
    %v2658 = vunpack.c.h.b16 %v459
    %v2659 = vunpack.c.l.b16 %v460
    %v2660 = vunpack.c.h.b16 %v460
    %v2661 = vunpack.c.l.b16 %v461
    %v2662 = vunpack.c.h.b16 %v461
    %v2663 = vunpack.c.l.b16 %v462
    %v2664 = vunpack.c.h.b16 %v462
    %v2665 = vunpack.c.l.b16 %v463
    %v2666 = vunpack.c.h.b16 %v463
    %v2667 = vunpack.c.l.b16 %v464
    %v2668 = vunpack.c.h.b16 %v464
    %v2669 = vunpack.c.l.b16 %v465
    %v2670 = vunpack.c.h.b16 %v465
    %v2671 = vunpack.c.l.b16 %v466
    %v2672 = vunpack.c.h.b16 %v466
    %v2673 = vunpack.c.l.b16 %v467
    %v2674 = vunpack.c.h.b16 %v467
    %v2675 = vunpack.c.l.b16 %v468
    %v2676 = vunpack.c.h.b16 %v468
    %v2677 = vunpack.c.l.b16 %v469
    %v2678 = vunpack.c.h.b16 %v469
    %v2679 = vunpack.c.l.b16 %v470
    %v2680 = vunpack.c.h.b16 %v470
    %v2681 = vunpack.c.l.b16 %v471
    %v2682 = vunpack.c.h.b16 %v471
    %v2683 = vunpack.c.l.b16 %v472
    %v2684 = vunpack.c.h.b16 %v472
    %v2685 = vunpack.c.l.b16 %v473
    %v2686 = vunpack.c.h.b16 %v473
    %v2687 = vunpack.c.l.b16 %v474
    %v2688 = vunpack.c.h.b16 %v474
    %v2689 = vunpack.c.l.b16 %v475
    %v2690 = vunpack.c.h.b16 %v475
    %v2691 = vunpack.c.l.b16 %v476
    %v2692 = vunpack.c.h.b16 %v476
    %v2693 = vunpack.c.l.b16 %v477
    %v2694 = vunpack.c.h.b16 %v477
    %v2695 = vunpack.c.l.b16 %v478
    %v2696 = vunpack.c.h.b16 %v478
    %v2697 = vunpack.c.l.b16 %v479
    %v2698 = vunpack.c.h.b16 %v479
    %v2699 = vunpack.c.l.b16 %v480
    %v2700 = vunpack.c.h.b16 %v480
    %v2701 = vunpack.c.l.b16 %v481
    %v2702 = vunpack.c.h.b16 %v481
    %v2703 = vunpack.c.l.b16 %v482
    %v2704 = vunpack.c.h.b16 %v482
    %v2705 = vunpack.c.l.b16 %v483
    %v2706 = vunpack.c.h.b16 %v483
    %v2707 = vunpack.c.l.b16 %v484
    %v2708 = vunpack.c.h.b16 %v484
    %v2709 = vunpack.c.l.b16 %v485
    %v2710 = vunpack.c.h.b16 %v485
    %v2711 = vunpack.c.l.b16 %v486
    %v2712 = vunpack.c.h.b16 %v486
    %v2713 = vunpack.c.l.b16 %v487
    %v2714 = vunpack.c.h.b16 %v487
    %v2715 = vunpack.c.l.b16 %v488
    %v2716 = vunpack.c.h.b16 %v488
    %v2717 = vunpack.c.l.b16 %v489
    %v2718 = vunpack.c.h.b16 %v489
    %v2719 = vunpack.c.l.b16 %v490
    %v2720 = vunpack.c.h.b16 %v490
    %v2721 = vunpack.c.l.b16 %v491
    %v2722 = vunpack.c.h.b16 %v491
    %v2723 = vunpack.c.l.b16 %v492
    %v2724 = vunpack.c.h.b16 %v492
    %v2725 = vunpack.c.l.b16 %v493
    %v2726 = vunpack.c.h.b16 %v493
    %v2727 = vunpack.c.l.b16 %v494
    %v2728 = vunpack.c.h.b16 %v494
    %v2729 = vunpack.c.l.b16 %v495
    %v2730 = vunpack.c.h.b16 %v495
    %v2731 = vunpack.c.l.b16 %v496
    %v2732 = vunpack.c.h.b16 %v496
    %v2733 = vunpack.c.l.b16 %v497
    %v2734 = vunpack.c.h.b16 %v497
    %v2735 = vunpack.c.l.b16 %v498
    %v2736 = vunpack.c.h.b16 %v498
    %v2737 = vunpack.c.l.b16 %v499
    %v2738 = vunpack.c.h.b16 %v499
    %v2739 = vunpack.c.l.b16 %v500
    %v2740 = vunpack.c.h.b16 %v500
    %v2741 = vunpack.c.l.b16 %v501
    %v2742 = vunpack.c.h.b16 %v501
    %v2743 = vunpack.c.l.b16 %v502
    %v2744 = vunpack.c.h.b16 %v502
    %v2745 = vunpack.c.l.b16 %v503
    %v2746 = vunpack.c.h.b16 %v503
    %v2747 = vunpack.c.l.b16 %v504
    %v2748 = vunpack.c.h.b16 %v504
    %v2749 = vunpack.c.l.b16 %v505
    %v2750 = vunpack.c.h.b16 %v505
    %v2751 = vunpack.c.l.b16 %v506
    %v2752 = vunpack.c.h.b16 %v506
    %v2753 = vunpack.c.l.b16 %v507
    %v2754 = vunpack.c.h.b16 %v507
    %v2755 = vunpack.c.l.b16 %v508
    %v2756 = vunpack.c.h.b16 %v508
    %v2757 = vunpack.c.l.b16 %v509
    %v2758 = vunpack.c.h.b16 %v509
    %v2759 = vunpack.c.l.b16 %v510
    %v2760 = vunpack.c.h.b16 %v510
    %v2761 = vunpack.c.l.b16 %v511
    %v2762 = vunpack.c.h.b16 %v511
    %v2763 = vunpack.c.l.b16 %v512
    %v2764 = vunpack.c.h.b16 %v512
    %v2765 = vunpack.c.l.b16 %v513
    %v2766 = vunpack.c.h.b16 %v513
    %v2767 = vunpack.c.l.b16 %v514
    %v2768 = vunpack.c.h.b16 %v514
    %v2769 = vunpack.c.l.b16 %v515
    %v2770 = vunpack.c.h.b16 %v515
    %v2771 = vunpack.c.l.b16 %v516
    %v2772 = vunpack.c.h.b16 %v516
    %v2773 = vunpack.c.l.b16 %v517
    %v2774 = vunpack.c.h.b16 %v517
    %v2775 = vunpack.c.l.b16 %v518
    %v2776 = vunpack.c.h.b16 %v518
    %v2777 = vunpack.c.l.b16 %v519
    %v2778 = vunpack.c.h.b16 %v519
    %v2779 = vunpack.c.l.b16 %v520
    %v2780 = vunpack.c.h.b16 %v520
    %v2781 = vunpack.c.l.b16 %v521
    %v2782 = vunpack.c.h.b16 %v521
    %v2783 = vunpack.c.l.b16 %v522
    %v2784 = vunpack.c.h.b16 %v522
    %v2785 = vunpack.c.l.b16 %v523
    %v2786 = vunpack.c.h.b16 %v523
    %v2787 = vunpack.c.l.b16 %v524
    %v2788 = vunpack.c.h.b16 %v524
    %v2789 = vunpack.c.l.b16 %v525
    %v2790 = vunpack.c.h.b16 %v525
    %v2791 = vunpack.c.l.b16 %v526
    %v2792 = vunpack.c.h.b16 %v526
    %v2793 = vunpack.c.l.b16 %v527
    %v2794 = vunpack.c.h.b16 %v527
    %v2795 = vunpack.c.l.b16 %v528
    %v2796 = vunpack.c.h.b16 %v528
    %v2797 = vunpack.c.l.b16 %v529
    %v2798 = vunpack.c.h.b16 %v529
    %v2799 = vunpack.c.l.b16 %v530
    %v2800 = vunpack.c.h.b16 %v530
    %v2801 = vunpack.c.l.b16 %v531
    %v2802 = vunpack.c.h.b16 %v531
    %v2803 = vunpack.c.l.b16 %v532
    %v2804 = vunpack.c.h.b16 %v532
    %v2805 = vunpack.c.l.b16 %v533
    %v2806 = vunpack.c.h.b16 %v533
    %v2807 = vunpack.c.l.b16 %v534
    %v2808 = vunpack.c.h.b16 %v534
    %v2809 = vunpack.c.l.b16 %v535
    %v2810 = vunpack.c.h.b16 %v535
    %v2811 = vunpack.c.l.b16 %v536
    %v2812 = vunpack.c.h.b16 %v536
    %v2813 = vunpack.c.l.b16 %v537
    %v2814 = vunpack.c.h.b16 %v537
    %v2815 = vunpack.c.l.b16 %v538
    %v2816 = vunpack.c.h.b16 %v538
    %v2817 = vunpack.c.l.b16 %v539
    %v2818 = vunpack.c.h.b16 %v539
    %v2819 = vunpack.c.l.b16 %v540
    %v2820 = vunpack.c.h.b16 %v540
    %v2821 = vunpack.c.l.b16 %v541
    %v2822 = vunpack.c.h.b16 %v541
    %v2823 = vunpack.c.l.b16 %v542
    %v2824 = vunpack.c.h.b16 %v542
    %v2825 = vunpack.c.l.b16 %v543
    %v2826 = vunpack.c.h.b16 %v543
    %v2827 = vunpack.c.l.b16 %v544
    %v2828 = vunpack.c.h.b16 %v544
    %v2829 = vunpack.c.l.b16 %v545
    %v2830 = vunpack.c.h.b16 %v545
    %v2831 = vunpack.c.l.b16 %v546
    %v2832 = vunpack.c.h.b16 %v546
    %v2833 = vunpack.c.l.b16 %v547
    %v2834 = vunpack.c.h.b16 %v547
    %v2835 = vunpack.c.l.b16 %v548
    %v2836 = vunpack.c.h.b16 %v548
    %v2837 = vunpack.c.l.b16 %v549
    %v2838 = vunpack.c.h.b16 %v549
    %v2839 = vunpack.c.l.b16 %v550
    %v2840 = vunpack.c.h.b16 %v550
    %v2841 = vunpack.c.l.b16 %v551
    %v2842 = vunpack.c.h.b16 %v551
    %v2843 = vunpack.c.l.b16 %v552
    %v2844 = vunpack.c.h.b16 %v552
    %v2845 = vunpack.c.l.b16 %v553
    %v2846 = vunpack.c.h.b16 %v553
    %v2847 = vunpack.c.l.b16 %v554
    %v2848 = vunpack.c.h.b16 %v554
    %v2849 = vunpack.c.l.b16 %v555
    %v2850 = vunpack.c.h.b16 %v555
    %v2851 = vunpack.c.l.b16 %v556
    %v2852 = vunpack.c.h.b16 %v556
    %v2853 = vunpack.c.l.b16 %v557
    %v2854 = vunpack.c.h.b16 %v557
    %v2855 = vunpack.c.l.b16 %v558
    %v2856 = vunpack.c.h.b16 %v558
    %v2857 = vunpack.c.l.b16 %v559
    %v2858 = vunpack.c.h.b16 %v559
    %v2859 = vunpack.c.l.b16 %v560
    %v2860 = vunpack.c.h.b16 %v560
    %v2861 = vunpack.c.l.b16 %v561
    %v2862 = vunpack.c.h.b16 %v561
    %v2863 = vunpack.c.l.b16 %v562
    %v2864 = vunpack.c.h.b16 %v562
    %v2865 = vunpack.c.l.b16 %v563
    %v2866 = vunpack.c.h.b16 %v563
    %v2867 = vunpack.c.l.b16 %v564
    %v2868 = vunpack.c.h.b16 %v564
    %v2869 = vunpack.c.l.b16 %v565
    %v2870 = vunpack.c.h.b16 %v565
    %v2871 = vunpack.c.l.b16 %v566
    %v2872 = vunpack.c.h.b16 %v566
    %v2873 = vunpack.c.l.b16 %v567
    %v2874 = vunpack.c.h.b16 %v567
    %v2875 = vunpack.c.l.b16 %v568
    %v2876 = vunpack.c.h.b16 %v568
    %v2877 = vunpack.c.l.b16 %v569
    %v2878 = vunpack.c.h.b16 %v569
    %v2879 = vunpack.c.l.b16 %v570
    %v2880 = vunpack.c.h.b16 %v570
    %v2881 = vunpack.c.l.b16 %v571
    %v2882 = vunpack.c.h.b16 %v571
    %v2883 = vunpack.c.l.b16 %v572
    %v2884 = vunpack.c.h.b16 %v572
    %v2885 = vunpack.c.l.b16 %v573
    %v2886 = vunpack.c.h.b16 %v573
    %v2887 = vunpack.c.l.b16 %v574
    %v2888 = vunpack.c.h.b16 %v574
    %v2889 = vunpack.c.l.b16 %v575
    %v2890 = vunpack.c.h.b16 %v575
    %v2891 = vunpack.c.l.b16 %v576
    %v2892 = vunpack.c.h.b16 %v576
    %v2893 = vunpack.c.l.b16 %v577
    %v2894 = vunpack.c.h.b16 %v577
    %v2895 = vunpack.c.l.b16 %v578
    %v2896 = vunpack.c.h.b16 %v578
    %v2897 = vunpack.c.l.b16 %v579
    %v2898 = vunpack.c.h.b16 %v579
    %v2899 = vunpack.c.l.b16 %v580
    %v2900 = vunpack.c.h.b16 %v580
    %v2901 = vunpack.c.l.b16 %v581
    %v2902 = vunpack.c.h.b16 %v581
    %v2903 = vunpack.c.l.b16 %v582
    %v2904 = vunpack.c.h.b16 %v582
    %v2905 = vunpack.c.l.b16 %v583
    %v2906 = vunpack.c.h.b16 %v583
    %v2907 = vunpack.c.l.b16 %v584
    %v2908 = vunpack.c.h.b16 %v584
    %v2909 = vunpack.c.l.b16 %v585
    %v2910 = vunpack.c.h.b16 %v585
    %v2911 = vunpack.c.l.b16 %v586
    %v2912 = vunpack.c.h.b16 %v586
    %v2913 = vunpack.c.l.b16 %v587
    %v2914 = vunpack.c.h.b16 %v587
    %v2915 = vunpack.c.l.b16 %v588
    %v2916 = vunpack.c.h.b16 %v588
    %v2917 = vunpack.c.l.b16 %v589
    %v2918 = vunpack.c.h.b16 %v589
    %v2919 = vunpack.c.l.b16 %v590
    %v2920 = vunpack.c.h.b16 %v590
    %v2921 = vunpack.c.l.b16 %v591
    %v2922 = vunpack.c.h.b16 %v591
    %v2923 = vunpack.c.l.b16 %v592
    %v2924 = vunpack.c.h.b16 %v592
    %v2925 = vunpack.c.l.b16 %v593
    %v2926 = vunpack.c.h.b16 %v593
    %v2927 = vunpack.c.l.b16 %v594
    %v2928 = vunpack.c.h.b16 %v594
    %v2929 = vunpack.c.l.b16 %v595
    %v2930 = vunpack.c.h.b16 %v595
    %v2931 = vunpack.c.l.b16 %v596
    %v2932 = vunpack.c.h.b16 %v596
    %v2933 = vunpack.c.l.b16 %v597
    %v2934 = vunpack.c.h.b16 %v597
    %v2935 = vunpack.c.l.b16 %v598
    %v2936 = vunpack.c.h.b16 %v598
    %v2937 = vunpack.c.l.b16 %v599
    %v2938 = vunpack.c.h.b16 %v599
    %v2939 = vunpack.c.l.b16 %v600
    %v2940 = vunpack.c.h.b16 %v600
    %v2941 = vunpack.c.l.b16 %v601
    %v2942 = vunpack.c.h.b16 %v601
    %v2943 = vunpack.c.l.b16 %v602
    %v2944 = vunpack.c.h.b16 %v602
    %v2945 = vunpack.c.l.b16 %v603
    %v2946 = vunpack.c.h.b16 %v603
    %v2947 = vunpack.c.l.b16 %v604
    %v2948 = vunpack.c.h.b16 %v604
    %v2949 = vunpack.c.l.b16 %v605
    %v2950 = vunpack.c.h.b16 %v605
    %v2951 = vunpack.c.l.b16 %v606
    %v2952 = vunpack.c.h.b16 %v606
    %v2953 = vunpack.c.l.b16 %v607
    %v2954 = vunpack.c.h.b16 %v607
    %v2955 = vunpack.c.l.b16 %v608
    %v2956 = vunpack.c.h.b16 %v608
    %v2957 = vunpack.c.l.b16 %v609
    %v2958 = vunpack.c.h.b16 %v609
    %v2959 = vunpack.c.l.b16 %v610
    %v2960 = vunpack.c.h.b16 %v610
    %v2961 = vunpack.c.l.b16 %v611
    %v2962 = vunpack.c.h.b16 %v611
    %v2963 = vunpack.c.l.b16 %v612
    %v2964 = vunpack.c.h.b16 %v612
    %v2965 = vunpack.c.l.b16 %v613
    %v2966 = vunpack.c.h.b16 %v613
    %v2967 = vunpack.c.l.b16 %v614
    %v2968 = vunpack.c.h.b16 %v614
    %v2969 = vunpack.c.l.b16 %v615
    %v2970 = vunpack.c.h.b16 %v615
    %v2971 = vunpack.c.l.b16 %v616
    %v2972 = vunpack.c.h.b16 %v616
    %v2973 = vunpack.c.l.b16 %v617
    %v2974 = vunpack.c.h.b16 %v617
    %v2975 = vunpack.c.l.b16 %v618
    %v2976 = vunpack.c.h.b16 %v618
    %v2977 = vunpack.c.l.b16 %v619
    %v2978 = vunpack.c.h.b16 %v619
    %v2979 = vunpack.c.l.b16 %v620
    %v2980 = vunpack.c.h.b16 %v620
    %v2981 = vunpack.c.l.b16 %v621
    %v2982 = vunpack.c.h.b16 %v621
    %v2983 = vunpack.c.l.b16 %v622
    %v2984 = vunpack.c.h.b16 %v622
    %v2985 = vunpack.c.l.b16 %v623
    %v2986 = vunpack.c.h.b16 %v623
    %v2987 = vunpack.c.l.b16 %v624
    %v2988 = vunpack.c.h.b16 %v624
    %v2989 = vunpack.c.l.b16 %v625
    %v2990 = vunpack.c.h.b16 %v625
    %v2991 = vunpack.c.l.b16 %v626
    %v2992 = vunpack.c.h.b16 %v626
    %v2993 = vunpack.c.l.b16 %v627
    %v2994 = vunpack.c.h.b16 %v627
    %v2995 = vunpack.c.l.b16 %v628
    %v2996 = vunpack.c.h.b16 %v628
    %v2997 = vunpack.c.l.b16 %v629
    %v2998 = vunpack.c.h.b16 %v629
    %v2999 = vunpack.c.l.b16 %v630
    %v3000 = vunpack.c.h.b16 %v630
    %v3001 = vunpack.c.l.b16 %v631
    %v3002 = vunpack.c.h.b16 %v631
    %v3003 = vunpack.c.l.b16 %v632
    %v3004 = vunpack.c.h.b16 %v632
    %v3005 = vunpack.c.l.b16 %v633
    %v3006 = vunpack.c.h.b16 %v633
    %v3007 = vunpack.c.l.b16 %v634
    %v3008 = vunpack.c.h.b16 %v634
    %v3009 = vunpack.c.l.b16 %v635
    %v3010 = vunpack.c.h.b16 %v635
    %v3011 = vunpack.c.l.b16 %v636
    %v3012 = vunpack.c.h.b16 %v636
    %v3013 = vunpack.c.l.b16 %v637
    %v3014 = vunpack.c.h.b16 %v637
    %v3015 = vunpack.c.l.b16 %v638
    %v3016 = vunpack.c.h.b16 %v638
    %v3017 = vunpack.c.l.b16 %v639
    %v3018 = vunpack.c.h.b16 %v639
    %v3019 = vunpack.c.l.b16 %v640
    %v3020 = vunpack.c.h.b16 %v640
    %v3021 = vunpack.c.l.b16 %v641
    %v3022 = vunpack.c.h.b16 %v641
    %v3023 = vunpack.c.l.b16 %v642
    %v3024 = vunpack.c.h.b16 %v642
    %v3025 = vunpack.c.l.b16 %v643
    %v3026 = vunpack.c.h.b16 %v643
    %v3027 = vunpack.c.l.b16 %v644
    %v3028 = vunpack.c.h.b16 %v644
    %v3029 = vunpack.c.l.b16 %v645
    %v3030 = vunpack.c.h.b16 %v645
    %v3031 = vunpack.c.l.b16 %v646
    %v3032 = vunpack.c.h.b16 %v646
    %v3033 = vunpack.c.l.b16 %v647
    %v3034 = vunpack.c.h.b16 %v647
    %v3035 = vunpack.c.l.b16 %v648
    %v3036 = vunpack.c.h.b16 %v648
    %v3037 = vunpack.c.l.b16 %v649
    %v3038 = vunpack.c.h.b16 %v649
    %v3039 = vunpack.c.l.b16 %v650
    %v3040 = vunpack.c.h.b16 %v650
    %v3041 = vunpack.c.l.b16 %v651
    %v3042 = vunpack.c.h.b16 %v651
    %v3043 = vunpack.c.l.b16 %v652
    %v3044 = vunpack.c.h.b16 %v652
    %v3045 = vunpack.c.l.b16 %v653
    %v3046 = vunpack.c.h.b16 %v653
    %v3047 = vunpack.c.l.b16 %v654
    %v3048 = vunpack.c.h.b16 %v654
    %v3049 = vunpack.c.l.b16 %v655
    %v3050 = vunpack.c.h.b16 %v655
    %v3051 = vunpack.c.l.b16 %v656
    %v3052 = vunpack.c.h.b16 %v656
    %v3053 = vunpack.c.l.b16 %v657
    %v3054 = vunpack.c.h.b16 %v657
    %v3055 = vunpack.c.l.b16 %v658
    %v3056 = vunpack.c.h.b16 %v658
    %v3057 = vunpack.c.l.b16 %v659
    %v3058 = vunpack.c.h.b16 %v659
    %v3059 = vunpack.c.l.b16 %v660
    %v3060 = vunpack.c.h.b16 %v660
    %v3061 = vunpack.c.l.b16 %v661
    %v3062 = vunpack.c.h.b16 %v661
    %v3063 = vunpack.c.l.b16 %v662
    %v3064 = vunpack.c.h.b16 %v662
    %v3065 = vunpack.c.l.b16 %v663
    %v3066 = vunpack.c.h.b16 %v663
    %v3067 = vunpack.c.l.b16 %v664
    %v3068 = vunpack.c.h.b16 %v664
    %v3069 = vunpack.c.l.b16 %v665
    %v3070 = vunpack.c.h.b16 %v665
    %v3071 = vunpack.c.l.b16 %v666
    %v3072 = vunpack.c.h.b16 %v666
    %v3073 = vunpack.c.l.b16 %v667
    %v3074 = vunpack.c.h.b16 %v667
    %v3075 = vunpack.c.l.b16 %v668
    %v3076 = vunpack.c.h.b16 %v668
    %v3077 = vunpack.c.l.b16 %v669
    %v3078 = vunpack.c.h.b16 %v669
    %v3079 = vunpack.c.l.b16 %v670
    %v3080 = vunpack.c.h.b16 %v670
    %v3081 = vunpack.c.l.b16 %v671
    %v3082 = vunpack.c.h.b16 %v671
    %v3083 = vunpack.c.l.b16 %v672
    %v3084 = vunpack.c.h.b16 %v672
    %v3085 = vunpack.c.l.b16 %v673
    %v3086 = vunpack.c.h.b16 %v673
    %v3087 = vunpack.c.l.b16 %v674
    %v3088 = vunpack.c.h.b16 %v674
    %v3089 = vunpack.c.l.b16 %v675
    %v3090 = vunpack.c.h.b16 %v675
    %v3091 = vunpack.c.l.b16 %v676
    %v3092 = vunpack.c.h.b16 %v676
    %v3093 = vunpack.c.l.b16 %v677
    %v3094 = vunpack.c.h.b16 %v677
    %v3095 = vunpack.c.l.b16 %v678
    %v3096 = vunpack.c.h.b16 %v678
    %v3097 = vunpack.c.l.b16 %v679
    %v3098 = vunpack.c.h.b16 %v679
    %v3099 = vunpack.c.l.b16 %v680
    %v3100 = vunpack.c.h.b16 %v680
    %v3101 = vunpack.c.l.b16 %v681
    %v3102 = vunpack.c.h.b16 %v681
    %v3103 = vunpack.c.l.b16 %v682
    %v3104 = vunpack.c.h.b16 %v682
    %v3105 = vunpack.c.l.b16 %v683
    %v3106 = vunpack.c.h.b16 %v683
    %v3107 = vunpack.c.l.b16 %v684
    %v3108 = vunpack.c.h.b16 %v684
    %v3109 = vunpack.c.l.b16 %v685
    %v3110 = vunpack.c.h.b16 %v685
    %v3111 = vunpack.c.l.b16 %v686
    %v3112 = vunpack.c.h.b16 %v686
    %v3113 = vunpack.c.l.b16 %v687
    %v3114 = vunpack.c.h.b16 %v687
    %v3115 = vunpack.c.l.b16 %v688
    %v3116 = vunpack.c.h.b16 %v688
    %v3117 = vunpack.c.l.b16 %v689
    %v3118 = vunpack.c.h.b16 %v689
    %v3119 = vunpack.c.l.b16 %v690
    %v3120 = vunpack.c.h.b16 %v690
    %v3121 = vunpack.c.l.b16 %v691
    %v3122 = vunpack.c.h.b16 %v691
    %v3123 = vunpack.c.l.b16 %v692
    %v3124 = vunpack.c.h.b16 %v692
    %v3125 = vunpack.c.l.b16 %v693
    %v3126 = vunpack.c.h.b16 %v693
    %v3127 = vunpack.c.l.b16 %v694
    %v3128 = vunpack.c.h.b16 %v694
    %v3129 = vunpack.c.l.b16 %v695
    %v3130 = vunpack.c.h.b16 %v695
    %v3131 = vunpack.c.l.b16 %v696
    %v3132 = vunpack.c.h.b16 %v696
    %v3133 = vunpack.c.l.b16 %v697
    %v3134 = vunpack.c.h.b16 %v697
    %v3135 = vunpack.c.l.b16 %v698
    %v3136 = vunpack.c.h.b16 %v698
    %v3137 = vunpack.c.l.b16 %v699
    %v3138 = vunpack.c.h.b16 %v699
    %v3139 = vunpack.c.l.b16 %v700
    %v3140 = vunpack.c.h.b16 %v700
    %v3141 = vunpack.c.l.b16 %v701
    %v3142 = vunpack.c.h.b16 %v701
    %v3143 = vunpack.c.l.b16 %v702
    %v3144 = vunpack.c.h.b16 %v702
    %v3145 = vunpack.c.l.b16 %v703
    %v3146 = vunpack.c.h.b16 %v703
    %v3147 = vunpack.c.l.b16 %v704
    %v3148 = vunpack.c.h.b16 %v704
    %v3149 = vunpack.c.l.b16 %v705
    %v3150 = vunpack.c.h.b16 %v705
    %v3151 = vunpack.c.l.b16 %v706
    %v3152 = vunpack.c.h.b16 %v706
    %v3153 = vunpack.c.l.b16 %v707
    %v3154 = vunpack.c.h.b16 %v707
    %v3155 = vunpack.c.l.b16 %v708
    %v3156 = vunpack.c.h.b16 %v708
    %v3157 = vunpack.c.l.b16 %v709
    %v3158 = vunpack.c.h.b16 %v709
    %v3159 = vunpack.c.l.b16 %v710
    %v3160 = vunpack.c.h.b16 %v710
    %v3161 = vunpack.c.l.b16 %v711
    %v3162 = vunpack.c.h.b16 %v711
    %v3163 = vunpack.c.l.b16 %v712
    %v3164 = vunpack.c.h.b16 %v712
    %v3165 = vunpack.c.l.b16 %v713
    %v3166 = vunpack.c.h.b16 %v713
    %v3167 = vunpack.c.l.b16 %v714
    %v3168 = vunpack.c.h.b16 %v714
    %v3169 = vunpack.c.l.b16 %v715
    %v3170 = vunpack.c.h.b16 %v715
    %v3171 = vunpack.c.l.b16 %v716
    %v3172 = vunpack.c.h.b16 %v716
    %v3173 = vunpack.c.l.b16 %v717
    %v3174 = vunpack.c.h.b16 %v717
    %v3175 = vunpack.c.l.b16 %v718
    %v3176 = vunpack.c.h.b16 %v718
    %v3177 = vunpack.c.l.b16 %v719
    %v3178 = vunpack.c.h.b16 %v719
    %v3179 = vunpack.c.l.b16 %v720
    %v3180 = vunpack.c.h.b16 %v720
    %v3181 = vunpack.c.l.b16 %v721
    %v3182 = vunpack.c.h.b16 %v721
    %v3183 = vunpack.c.l.b16 %v722
    %v3184 = vunpack.c.h.b16 %v722
    %v3185 = vunpack.c.l.b16 %v723
    %v3186 = vunpack.c.h.b16 %v723
    %v3187 = vunpack.c.l.b16 %v724
    %v3188 = vunpack.c.h.b16 %v724
    %v3189 = vunpack.c.l.b16 %v725
    %v3190 = vunpack.c.h.b16 %v725
    %v3191 = vunpack.c.l.b16 %v726
    %v3192 = vunpack.c.h.b16 %v726
    %v3193 = vunpack.c.l.b16 %v727
    %v3194 = vunpack.c.h.b16 %v727
    %v3195 = vunpack.c.l.b16 %v728
    %v3196 = vunpack.c.h.b16 %v728
    %v3197 = vunpack.c.l.b16 %v729
    %v3198 = vunpack.c.h.b16 %v729
    %v3199 = vunpack.c.l.b16 %v730
    %v3200 = vunpack.c.h.b16 %v730
    %v3201 = vunpack.c.l.b16 %v731
    %v3202 = vunpack.c.h.b16 %v731
    %v3203 = vunpack.c.l.b16 %v732
    %v3204 = vunpack.c.h.b16 %v732
    %v3205 = vunpack.c.l.b16 %v733
    %v3206 = vunpack.c.h.b16 %v733
    %v3207 = vunpack.c.l.b16 %v734
    %v3208 = vunpack.c.h.b16 %v734
    %v3209 = vunpack.c.l.b16 %v735
    %v3210 = vunpack.c.h.b16 %v735
    %v3211 = vunpack.c.l.b16 %v736
    %v3212 = vunpack.c.h.b16 %v736
    %v3213 = vunpack.c.l.b16 %v737
    %v3214 = vunpack.c.h.b16 %v737
    %v3215 = vunpack.c.l.b16 %v738
    %v3216 = vunpack.c.h.b16 %v738
    %v3217 = vunpack.c.l.b16 %v739
    %v3218 = vunpack.c.h.b16 %v739
    %v3219 = vunpack.c.l.b16 %v740
    %v3220 = vunpack.c.h.b16 %v740
    %v3221 = vunpack.c.l.b16 %v741
    %v3222 = vunpack.c.h.b16 %v741
    %v3223 = vunpack.c.l.b16 %v742
    %v3224 = vunpack.c.h.b16 %v742
    %v3225 = vunpack.c.l.b16 %v743
    %v3226 = vunpack.c.h.b16 %v743
    %v3227 = vunpack.c.l.b16 %v744
    %v3228 = vunpack.c.h.b16 %v744
    %v3229 = vunpack.c.l.b16 %v745
    %v3230 = vunpack.c.h.b16 %v745
    %v3231 = vunpack.c.l.b16 %v746
    %v3232 = vunpack.c.h.b16 %v746
    %v3233 = vunpack.c.l.b16 %v747
    %v3234 = vunpack.c.h.b16 %v747
    %v3235 = vunpack.c.l.b16 %v748
    %v3236 = vunpack.c.h.b16 %v748
    %v3237 = vunpack.c.l.b16 %v749
    %v3238 = vunpack.c.h.b16 %v749
    %v3239 = vunpack.c.l.b16 %v750
    %v3240 = vunpack.c.h.b16 %v750
    %v3241 = vunpack.c.l.b16 %v751
    %v3242 = vunpack.c.h.b16 %v751
    %v3243 = vunpack.c.l.b16 %v752
    %v3244 = vunpack.c.h.b16 %v752
    %v3245 = vunpack.c.l.b16 %v753
    %v3246 = vunpack.c.h.b16 %v753
    %v3247 = vunpack.c.l.b16 %v754
    %v3248 = vunpack.c.h.b16 %v754
    %v3249 = vunpack.c.l.b16 %v755
    %v3250 = vunpack.c.h.b16 %v755
    %v3251 = vunpack.c.l.b16 %v756
    %v3252 = vunpack.c.h.b16 %v756
    %v3253 = vunpack.c.l.b16 %v757
    %v3254 = vunpack.c.h.b16 %v757
    %v3255 = vunpack.c.l.b16 %v758
    %v3256 = vunpack.c.h.b16 %v758
    %v3257 = vunpack.c.l.b16 %v759
    %v3258 = vunpack.c.h.b16 %v759
    %v3259 = vunpack.c.l.b16 %v760
    %v3260 = vunpack.c.h.b16 %v760
    %v3261 = vunpack.c.l.b16 %v761
    %v3262 = vunpack.c.h.b16 %v761
    %v3263 = vunpack.c.l.b16 %v762
    %v3264 = vunpack.c.h.b16 %v762
    %v3265 = vunpack.c.l.b16 %v763
    %v3266 = vunpack.c.h.b16 %v763
    %v3267 = vunpack.c.l.b16 %v764
    %v3268 = vunpack.c.h.b16 %v764
    %v3269 = vunpack.c.l.b16 %v765
    %v3270 = vunpack.c.h.b16 %v765
    %v3271 = vunpack.c.l.b16 %v766
    %v3272 = vunpack.c.h.b16 %v766
    %v3273 = vunpack.c.l.b16 %v767
    %v3274 = vunpack.c.h.b16 %v767
    %v3275 = vunpack.c.l.b16 %v768
    %v3276 = vunpack.c.h.b16 %v768
    %v3277 = vunpack.c.l.b16 %v769
    %v3278 = vunpack.c.h.b16 %v769
    %v3279 = vunpack.c.l.b16 %v770
    %v3280 = vunpack.c.h.b16 %v770
    %v3281 = vunpack.c.l.b16 %v771
    %v3282 = vunpack.c.h.b16 %v771
    %v3283 = vunpack.c.l.b16 %v772
    %v3284 = vunpack.c.h.b16 %v772
    %v3285 = vunpack.c.l.b16 %v773
    %v3286 = vunpack.c.h.b16 %v773
    %v3287 = vunpack.c.l.b16 %v774
    %v3288 = vunpack.c.h.b16 %v774
    %v3289 = vunpack.c.l.b16 %v775
    %v3290 = vunpack.c.h.b16 %v775
    %v3291 = vunpack.c.l.b16 %v776
    %v3292 = vunpack.c.h.b16 %v776
    %v3293 = vunpack.c.l.b16 %v777
    %v3294 = vunpack.c.h.b16 %v777
    %v3295 = vunpack.c.l.b16 %v778
    %v3296 = vunpack.c.h.b16 %v778
    %v3297 = vunpack.c.l.b16 %v779
    %v3298 = vunpack.c.h.b16 %v779
    %v3299 = vunpack.c.l.b16 %v780
    %v3300 = vunpack.c.h.b16 %v780
    %v3301 = vunpack.c.l.b16 %v781
    %v3302 = vunpack.c.h.b16 %v781
    %v3303 = vunpack.c.l.b16 %v782
    %v3304 = vunpack.c.h.b16 %v782
    %v3305 = vunpack.c.l.b16 %v783
    %v3306 = vunpack.c.h.b16 %v783
    %v3307 = vunpack.c.l.b16 %v784
    %v3308 = vunpack.c.h.b16 %v784
    %v3309 = vunpack.c.l.b16 %v785
    %v3310 = vunpack.c.h.b16 %v785
    %v3311 = vunpack.c.l.b16 %v786
    %v3312 = vunpack.c.h.b16 %v786
    %v3313 = vunpack.c.l.b16 %v787
    %v3314 = vunpack.c.h.b16 %v787
    %v3315 = vunpack.c.l.b16 %v788
    %v3316 = vunpack.c.h.b16 %v788
    %v3317 = vunpack.c.l.b16 %v789
    %v3318 = vunpack.c.h.b16 %v789
    %v3319 = vunpack.c.l.b16 %v790
    %v3320 = vunpack.c.h.b16 %v790
    %v3321 = vunpack.c.l.b16 %v791
    %v3322 = vunpack.c.h.b16 %v791
    %v3323 = vunpack.c.l.b16 %v792
    %v3324 = vunpack.c.h.b16 %v792
    %v3325 = vunpack.c.l.b16 %v793
    %v3326 = vunpack.c.h.b16 %v793
    %v3327 = vunpack.c.l.b16 %v794
    %v3328 = vunpack.c.h.b16 %v794
    %v3329 = vunpack.c.l.b16 %v795
    %v3330 = vunpack.c.h.b16 %v795
    %v3331 = vunpack.c.l.b16 %v796
    %v3332 = vunpack.c.h.b16 %v796
    %v3333 = vunpack.c.l.b16 %v797
    %v3334 = vunpack.c.h.b16 %v797
    %v3335 = vunpack.c.l.b16 %v798
    %v3336 = vunpack.c.h.b16 %v798
    %v3337 = vunpack.c.l.b16 %v799
    %v3338 = vunpack.c.h.b16 %v799
    %v3339 = vunpack.c.l.b16 %v800
    %v3340 = vunpack.c.h.b16 %v800
    %v3341 = vunpack.c.l.b16 %v801
    %v3342 = vunpack.c.h.b16 %v801
    %v3343 = vunpack.c.l.b16 %v802
    %v3344 = vunpack.c.h.b16 %v802
    %v3345 = vunpack.c.l.b16 %v803
    %v3346 = vunpack.c.h.b16 %v803
    %v3347 = vunpack.c.l.b16 %v804
    %v3348 = vunpack.c.h.b16 %v804
    %v3349 = vunpack.c.l.b16 %v805
    %v3350 = vunpack.c.h.b16 %v805
    %v3351 = vunpack.c.l.b16 %v806
    %v3352 = vunpack.c.h.b16 %v806
    %v3353 = vunpack.c.l.b16 %v807
    %v3354 = vunpack.c.h.b16 %v807
    %v3355 = vunpack.c.l.b16 %v808
    %v3356 = vunpack.c.h.b16 %v808
    %v3357 = vunpack.c.l.b16 %v809
    %v3358 = vunpack.c.h.b16 %v809
    %v3359 = vunpack.c.l.b16 %v810
    %v3360 = vunpack.c.h.b16 %v810
    %v3361 = vunpack.c.l.b16 %v811
    %v3362 = vunpack.c.h.b16 %v811
    %v3363 = vunpack.c.l.b16 %v812
    %v3364 = vunpack.c.h.b16 %v812
    %v3365 = vunpack.c.l.b16 %v813
    %v3366 = vunpack.c.h.b16 %v813
    %v3367 = vunpack.c.l.b16 %v814
    %v3368 = vunpack.c.h.b16 %v814
    %v3369 = vunpack.c.l.b16 %v815
    %v3370 = vunpack.c.h.b16 %v815
    %v3371 = vunpack.c.l.b16 %v816
    %v3372 = vunpack.c.h.b16 %v816
    %v3373 = vunpack.c.l.b16 %v817
    %v3374 = vunpack.c.h.b16 %v817
    %v3375 = vunpack.c.l.b16 %v818
    %v3376 = vunpack.c.h.b16 %v818
    %v3377 = vunpack.c.l.b16 %v819
    %v3378 = vunpack.c.h.b16 %v819
    %v3379 = vunpack.c.l.b16 %v820
    %v3380 = vunpack.c.h.b16 %v820
    %v3381 = vunpack.c.l.b16 %v821
    %v3382 = vunpack.c.h.b16 %v821
    %v3383 = vunpack.c.l.b16 %v822
    %v3384 = vunpack.c.h.b16 %v822
    %v3385 = vunpack.c.l.b16 %v823
    %v3386 = vunpack.c.h.b16 %v823
    %v3387 = vunpack.c.l.b16 %v824
    %v3388 = vunpack.c.h.b16 %v824
    %v3389 = vunpack.c.l.b16 %v825
    %v3390 = vunpack.c.h.b16 %v825
    %v3391 = vunpack.c.l.b16 %v826
    %v3392 = vunpack.c.h.b16 %v826
    %v3393 = vunpack.c.l.b16 %v827
    %v3394 = vunpack.c.h.b16 %v827
    %v3395 = vunpack.c.l.b16 %v828
    %v3396 = vunpack.c.h.b16 %v828
    %v3397 = vunpack.c.l.b16 %v829
    %v3398 = vunpack.c.h.b16 %v829
    %v3399 = vunpack.c.l.b16 %v830
    %v3400 = vunpack.c.h.b16 %v830
    %v3401 = vunpack.c.l.b16 %v831
    %v3402 = vunpack.c.h.b16 %v831
    %v3403 = vunpack.c.l.b16 %v832
    %v3404 = vunpack.c.h.b16 %v832
    %v3405 = vunpack.c.l.b16 %v833
    %v3406 = vunpack.c.h.b16 %v833
    %v3407 = vunpack.c.l.b16 %v834
    %v3408 = vunpack.c.h.b16 %v834
    %v3409 = vunpack.c.l.b16 %v835
    %v3410 = vunpack.c.h.b16 %v835
    %v3411 = vunpack.c.l.b16 %v836
    %v3412 = vunpack.c.h.b16 %v836
    %v3413 = vunpack.c.l.b16 %v837
    %v3414 = vunpack.c.h.b16 %v837
    %v3415 = vunpack.c.l.b16 %v838
    %v3416 = vunpack.c.h.b16 %v838
    %v3417 = vunpack.c.l.b16 %v839
    %v3418 = vunpack.c.h.b16 %v839
    %v3419 = vunpack.c.l.b16 %v840
    %v3420 = vunpack.c.h.b16 %v840
    %v3421 = vunpack.c.l.b16 %v841
    %v3422 = vunpack.c.h.b16 %v841
    %v3423 = vunpack.c.l.b16 %v842
    %v3424 = vunpack.c.h.b16 %v842
    %v3425 = vunpack.c.l.b16 %v843
    %v3426 = vunpack.c.h.b16 %v843
    %v3427 = vunpack.c.l.b16 %v844
    %v3428 = vunpack.c.h.b16 %v844
    %v3429 = vunpack.c.l.b16 %v845
    %v3430 = vunpack.c.h.b16 %v845
    %v3431 = vunpack.c.l.b16 %v846
    %v3432 = vunpack.c.h.b16 %v846
    %v3433 = vunpack.c.l.b16 %v847
    %v3434 = vunpack.c.h.b16 %v847
    %v3435 = vunpack.c.l.b16 %v848
    %v3436 = vunpack.c.h.b16 %v848
    %v3437 = vunpack.c.l.b16 %v849
    %v3438 = vunpack.c.h.b16 %v849
    %v3439 = vunpack.c.l.b16 %v850
    %v3440 = vunpack.c.h.b16 %v850
    %v3441 = vunpack.c.l.b16 %v851
    %v3442 = vunpack.c.h.b16 %v851
    %v3443 = vunpack.c.l.b16 %v852
    %v3444 = vunpack.c.h.b16 %v852
    %v3445 = vunpack.c.l.b16 %v853
    %v3446 = vunpack.c.h.b16 %v853
    %v3447 = vunpack.c.l.b16 %v854
    %v3448 = vunpack.c.h.b16 %v854
    %v3449 = vunpack.c.l.b16 %v855
    %v3450 = vunpack.c.h.b16 %v855
    %v3451 = vunpack.c.l.b16 %v856
    %v3452 = vunpack.c.h.b16 %v856
    %v3453 = vunpack.c.l.b16 %v857
    %v3454 = vunpack.c.h.b16 %v857
    %v3455 = vunpack.c.l.b16 %v858
    %v3456 = vunpack.c.h.b16 %v858
    %v3457 = vunpack.c.l.b16 %v859
    %v3458 = vunpack.c.h.b16 %v859
    %v3459 = vunpack.c.l.b16 %v860
    %v3460 = vunpack.c.h.b16 %v860
    %v3461 = vunpack.c.l.b16 %v861
    %v3462 = vunpack.c.h.b16 %v861
    %v3463 = vunpack.c.l.b16 %v862
    %v3464 = vunpack.c.h.b16 %v862
    %v3465 = vunpack.c.l.b16 %v863
    %v3466 = vunpack.c.h.b16 %v863
    %v3467 = vunpack.c.l.b16 %v864
    %v3468 = vunpack.c.h.b16 %v864
    %v3469 = vunpack.c.l.b16 %v865
    %v3470 = vunpack.c.h.b16 %v865
    %v3471 = vunpack.c.l.b16 %v866
    %v3472 = vunpack.c.h.b16 %v866
    %v3473 = vunpack.c.l.b16 %v867
    %v3474 = vunpack.c.h.b16 %v867
    %v3475 = vunpack.c.l.b16 %v868
    %v3476 = vunpack.c.h.b16 %v868
    %v3477 = vunpack.c.l.b16 %v869
    %v3478 = vunpack.c.h.b16 %v869
    %v3479 = vunpack.c.l.b16 %v870
    %v3480 = vunpack.c.h.b16 %v870
    %v3481 = vunpack.c.l.b16 %v871
    %v3482 = vunpack.c.h.b16 %v871
    %v3483 = vunpack.c.l.b16 %v872
    %v3484 = vunpack.c.h.b16 %v872
    %v3485 = vunpack.c.l.b16 %v873
    %v3486 = vunpack.c.h.b16 %v873
    %v3487 = vunpack.c.l.b16 %v874
    %v3488 = vunpack.c.h.b16 %v874
    %v3489 = vunpack.c.l.b16 %v875
    %v3490 = vunpack.c.h.b16 %v875
    %v3491 = vunpack.c.l.b16 %v876
    %v3492 = vunpack.c.h.b16 %v876
    %v3493 = vunpack.c.l.b16 %v877
    %v3494 = vunpack.c.h.b16 %v877
    %v3495 = vunpack.c.l.b16 %v878
    %v3496 = vunpack.c.h.b16 %v878
    %v3497 = vunpack.c.l.b16 %v879
    %v3498 = vunpack.c.h.b16 %v879
    %v3499 = vunpack.c.l.b16 %v880
    %v3500 = vunpack.c.h.b16 %v880
    %v3501 = vunpack.c.l.b16 %v881
    %v3502 = vunpack.c.h.b16 %v881
    %v3503 = vunpack.c.l.b16 %v882
    %v3504 = vunpack.c.h.b16 %v882
    %v3505 = vunpack.c.l.b16 %v883
    %v3506 = vunpack.c.h.b16 %v883
    %v3507 = vunpack.c.l.b16 %v884
    %v3508 = vunpack.c.h.b16 %v884
    %v3509 = vunpack.c.l.b16 %v885
    %v3510 = vunpack.c.h.b16 %v885
    %v3511 = vunpack.c.l.b16 %v886
    %v3512 = vunpack.c.h.b16 %v886
    %v3513 = vunpack.c.l.b16 %v887
    %v3514 = vunpack.c.h.b16 %v887
    %v3515 = vunpack.c.l.b16 %v888
    %v3516 = vunpack.c.h.b16 %v888
    %v3517 = vunpack.c.l.b16 %v889
    %v3518 = vunpack.c.h.b16 %v889
    %v3519 = vunpack.c.l.b16 %v890
    %v3520 = vunpack.c.h.b16 %v890
    %v3521 = vunpack.c.l.b16 %v891
    %v3522 = vunpack.c.h.b16 %v891
    %v3523 = vunpack.c.l.b16 %v892
    %v3524 = vunpack.c.h.b16 %v892
    %v3525 = vunpack.c.l.b16 %v893
    %v3526 = vunpack.c.h.b16 %v893
    %v3527 = vunpack.c.l.b16 %v894
    %v3528 = vunpack.c.h.b16 %v894
    %v3529 = vunpack.c.l.b16 %v895
    %v3530 = vunpack.c.h.b16 %v895
    %v3531 = vunpack.c.l.b16 %v896
    %v3532 = vunpack.c.h.b16 %v896
    %v3533 = vunpack.c.l.b16 %v897
    %v3534 = vunpack.c.h.b16 %v897
    %v3535 = vunpack.c.l.b16 %v898
    %v3536 = vunpack.c.h.b16 %v898
    %v3537 = vunpack.c.l.b16 %v899
    %v3538 = vunpack.c.h.b16 %v899
    %v3539 = vunpack.c.l.b16 %v900
    %v3540 = vunpack.c.h.b16 %v900
    %v3541 = vunpack.c.l.b16 %v901
    %v3542 = vunpack.c.h.b16 %v901
    %v3543 = vunpack.c.l.b16 %v902
    %v3544 = vunpack.c.h.b16 %v902
    %v3545 = vunpack.c.l.b16 %v903
    %v3546 = vunpack.c.h.b16 %v903
    %v3547 = vunpack.c.l.b16 %v904
    %v3548 = vunpack.c.h.b16 %v904
    %v3549 = vunpack.c.l.b16 %v905
    %v3550 = vunpack.c.h.b16 %v905
    %v3551 = vunpack.c.l.b16 %v906
    %v3552 = vunpack.c.h.b16 %v906
    %v3553 = vunpack.c.l.b16 %v907
    %v3554 = vunpack.c.h.b16 %v907
    %v3555 = vunpack.c.l.b16 %v908
    %v3556 = vunpack.c.h.b16 %v908
    %v3557 = vunpack.c.l.b16 %v909
    %v3558 = vunpack.c.h.b16 %v909
    %v3559 = vunpack.c.l.b16 %v910
    %v3560 = vunpack.c.h.b16 %v910
    %v3561 = vunpack.c.l.b16 %v911
    %v3562 = vunpack.c.h.b16 %v911
    %v3563 = vunpack.c.l.b16 %v912
    %v3564 = vunpack.c.h.b16 %v912
    %v3565 = vunpack.c.l.b16 %v913
    %v3566 = vunpack.c.h.b16 %v913
    %v3567 = vunpack.c.l.b16 %v914
    %v3568 = vunpack.c.h.b16 %v914
    %v3569 = vunpack.c.l.b16 %v915
    %v3570 = vunpack.c.h.b16 %v915
    %v3571 = vunpack.c.l.b16 %v916
    %v3572 = vunpack.c.h.b16 %v916
    %v3573 = vunpack.c.l.b16 %v917
    %v3574 = vunpack.c.h.b16 %v917
    %v3575 = vunpack.c.l.b16 %v918
    %v3576 = vunpack.c.h.b16 %v918
    %v3577 = vunpack.c.l.b16 %v919
    %v3578 = vunpack.c.h.b16 %v919
    %v3579 = vunpack.c.l.b16 %v920
    %v3580 = vunpack.c.h.b16 %v920
    %v3581 = vunpack.c.l.b16 %v921
    %v3582 = vunpack.c.h.b16 %v921
    %v3583 = vunpack.c.l.b16 %v922
    %v3584 = vunpack.c.h.b16 %v922
    %v3585 = vunpack.c.l.b16 %v923
    %v3586 = vunpack.c.h.b16 %v923
    %v3587 = vunpack.c.l.b16 %v924
    %v3588 = vunpack.c.h.b16 %v924
    %v3589 = vunpack.c.l.b16 %v925
    %v3590 = vunpack.c.h.b16 %v925
    %v3591 = vunpack.c.l.b16 %v926
    %v3592 = vunpack.c.h.b16 %v926
    %v3593 = vunpack.c.l.b16 %v927
    %v3594 = vunpack.c.h.b16 %v927
    %v3595 = vunpack.c.l.b16 %v928
    %v3596 = vunpack.c.h.b16 %v928
    %v3597 = vunpack.c.l.b16 %v929
    %v3598 = vunpack.c.h.b16 %v929
    %v3599 = vunpack.c.l.b16 %v930
    %v3600 = vunpack.c.h.b16 %v930
    %v3601 = vunpack.c.l.b16 %v931
    %v3602 = vunpack.c.h.b16 %v931
    %v3603 = vunpack.c.l.b16 %v932
    %v3604 = vunpack.c.h.b16 %v932
    %v3605 = vunpack.c.l.b16 %v933
    %v3606 = vunpack.c.h.b16 %v933
    %v3607 = vunpack.c.l.b16 %v934
    %v3608 = vunpack.c.h.b16 %v934
    %v3609 = vunpack.c.l.b16 %v935
    %v3610 = vunpack.c.h.b16 %v935
    %v3611 = vunpack.c.l.b16 %v936
    %v3612 = vunpack.c.h.b16 %v936
    %v3613 = vunpack.c.l.b16 %v937
    %v3614 = vunpack.c.h.b16 %v937
    %v3615 = vunpack.c.l.b16 %v938
    %v3616 = vunpack.c.h.b16 %v938
    %v3617 = vunpack.c.l.b16 %v939
    %v3618 = vunpack.c.h.b16 %v939
    %v3619 = vunpack.c.l.b16 %v940
    %v3620 = vunpack.c.h.b16 %v940
    %v3621 = vunpack.c.l.b16 %v941
    %v3622 = vunpack.c.h.b16 %v941
    %v3623 = vunpack.c.l.b16 %v942
    %v3624 = vunpack.c.h.b16 %v942
    %v3625 = vunpack.c.l.b16 %v943
    %v3626 = vunpack.c.h.b16 %v943
    %v3627 = vunpack.c.l.b16 %v944
    %v3628 = vunpack.c.h.b16 %v944
    %v3629 = vunpack.c.l.b16 %v945
    %v3630 = vunpack.c.h.b16 %v945
    %v3631 = vunpack.c.l.b16 %v946
    %v3632 = vunpack.c.h.b16 %v946
    %v3633 = vunpack.c.l.b16 %v947
    %v3634 = vunpack.c.h.b16 %v947
    %v3635 = vunpack.c.l.b16 %v948
    %v3636 = vunpack.c.h.b16 %v948
    %v3637 = vunpack.c.l.b16 %v949
    %v3638 = vunpack.c.h.b16 %v949
    %v3639 = vunpack.c.l.b16 %v950
    %v3640 = vunpack.c.h.b16 %v950
    %v3641 = vunpack.c.l.b16 %v951
    %v3642 = vunpack.c.h.b16 %v951
    %v3643 = vunpack.c.l.b16 %v952
    %v3644 = vunpack.c.h.b16 %v952
    %v3645 = vunpack.c.l.b16 %v953
    %v3646 = vunpack.c.h.b16 %v953
    %v3647 = vunpack.c.l.b16 %v954
    %v3648 = vunpack.c.h.b16 %v954
    %v3649 = vunpack.c.l.b16 %v955
    %v3650 = vunpack.c.h.b16 %v955
    %v3651 = vunpack.c.l.b16 %v956
    %v3652 = vunpack.c.h.b16 %v956
    %v3653 = vunpack.c.l.b16 %v957
    %v3654 = vunpack.c.h.b16 %v957
    %v3655 = vunpack.c.l.b16 %v958
    %v3656 = vunpack.c.h.b16 %v958
    %v3657 = vunpack.c.l.b16 %v959
    %v3658 = vunpack.c.h.b16 %v959
    %v3659 = vunpack.c.l.b16 %v960
    %v3660 = vunpack.c.h.b16 %v960
    %v3661 = vunpack.c.l.b16 %v961
    %v3662 = vunpack.c.h.b16 %v961
    %v3663 = vunpack.c.l.b16 %v962
    %v3664 = vunpack.c.h.b16 %v962
    %v3665 = vunpack.c.l.b16 %v963
    %v3666 = vunpack.c.h.b16 %v963
    %v3667 = vunpack.c.l.b16 %v964
    %v3668 = vunpack.c.h.b16 %v964
    %v3669 = vunpack.c.l.b16 %v965
    %v3670 = vunpack.c.h.b16 %v965
    %v3671 = vunpack.c.l.b16 %v966
    %v3672 = vunpack.c.h.b16 %v966
    %v3673 = vunpack.c.l.b16 %v967
    %v3674 = vunpack.c.h.b16 %v967
    %v3675 = vunpack.c.l.b16 %v968
    %v3676 = vunpack.c.h.b16 %v968
    %v3677 = vunpack.c.l.b16 %v969
    %v3678 = vunpack.c.h.b16 %v969
    %v3679 = vunpack.c.l.b16 %v970
    %v3680 = vunpack.c.h.b16 %v970
    %v3681 = vunpack.c.l.b16 %v971
    %v3682 = vunpack.c.h.b16 %v971
    %v3683 = vunpack.c.l.b16 %v972
    %v3684 = vunpack.c.h.b16 %v972
    %v3685 = vunpack.c.l.b16 %v973
    %v3686 = vunpack.c.h.b16 %v973
    %v3687 = vunpack.c.l.b16 %v974
    %v3688 = vunpack.c.h.b16 %v974
    %v3689 = vunpack.c.l.b16 %v975
    %v3690 = vunpack.c.h.b16 %v975
    %v3691 = vunpack.c.l.b16 %v976
    %v3692 = vunpack.c.h.b16 %v976
    %v3693 = vunpack.c.l.b16 %v977
    %v3694 = vunpack.c.h.b16 %v977
    %v3695 = vunpack.c.l.b16 %v978
    %v3696 = vunpack.c.h.b16 %v978
    %v3697 = vunpack.c.l.b16 %v979
    %v3698 = vunpack.c.h.b16 %v979
    %v3699 = vunpack.c.l.b16 %v980
    %v3700 = vunpack.c.h.b16 %v980
    %v3701 = vunpack.c.l.b16 %v981
    %v3702 = vunpack.c.h.b16 %v981
    %v3703 = vunpack.c.l.b16 %v982
    %v3704 = vunpack.c.h.b16 %v982
    %v3705 = vunpack.c.l.b16 %v983
    %v3706 = vunpack.c.h.b16 %v983
    %v3707 = vunpack.c.l.b16 %v984
    %v3708 = vunpack.c.h.b16 %v984
    %v3709 = vunpack.c.l.b16 %v985
    %v3710 = vunpack.c.h.b16 %v985
    %v3711 = vunpack.c.l.b16 %v986
    %v3712 = vunpack.c.h.b16 %v986
    %v3713 = vunpack.c.l.b16 %v987
    %v3714 = vunpack.c.h.b16 %v987
    %v3715 = vunpack.c.l.b16 %v988
    %v3716 = vunpack.c.h.b16 %v988
    %v3717 = vunpack.c.l.b16 %v989
    %v3718 = vunpack.c.h.b16 %v989
    %v3719 = vunpack.c.l.b16 %v990
    %v3720 = vunpack.c.h.b16 %v990
    %v3721 = vunpack.c.l.b16 %v991
    %v3722 = vunpack.c.h.b16 %v991
    %v3723 = vunpack.c.l.b16 %v992
    %v3724 = vunpack.c.h.b16 %v992
    %v3725 = vunpack.c.l.b16 %v993
    %v3726 = vunpack.c.h.b16 %v993
    %v3727 = vunpack.c.l.b16 %v994
    %v3728 = vunpack.c.h.b16 %v994
    %v3729 = vunpack.c.l.b16 %v995
    %v3730 = vunpack.c.h.b16 %v995
    %v3731 = vunpack.c.l.b16 %v996
    %v3732 = vunpack.c.h.b16 %v996
    %v3733 = vunpack.c.l.b16 %v997
    %v3734 = vunpack.c.h.b16 %v997
    %v3735 = vunpack.c.l.b16 %v998
    %v3736 = vunpack.c.h.b16 %v998
    %v3737 = vunpack.c.l.b16 %v999
    %v3738 = vunpack.c.h.b16 %v999
    %v3739 = vunpack.c.l.b16 %v1000
    %v3740 = vunpack.c.h.b16 %v1000
    %v3741 = vunpack.c.l.b16 %v1001
    %v3742 = vunpack.c.h.b16 %v1001
    %v3743 = vunpack.c.l.b16 %v1002
    %v3744 = vunpack.c.h.b16 %v1002
    %v3745 = vunpack.c.l.b16 %v1003
    %v3746 = vunpack.c.h.b16 %v1003
    %v3747 = vunpack.c.l.b16 %v1004
    %v3748 = vunpack.c.h.b16 %v1004
    %v3749 = vunpack.c.l.b16 %v1005
    %v3750 = vunpack.c.h.b16 %v1005
    %v3751 = vunpack.c.l.b16 %v1006
    %v3752 = vunpack.c.h.b16 %v1006
    %v3753 = vunpack.c.l.b16 %v1007
    %v3754 = vunpack.c.h.b16 %v1007
    %v3755 = vunpack.c.l.b16 %v1008
    %v3756 = vunpack.c.h.b16 %v1008
    %v3757 = vunpack.c.l.b16 %v1009
    %v3758 = vunpack.c.h.b16 %v1009
    %v3759 = vunpack.c.l.b16 %v1010
    %v3760 = vunpack.c.h.b16 %v1010
    %v3761 = vunpack.c.l.b16 %v1011
    %v3762 = vunpack.c.h.b16 %v1011
    %v3763 = vunpack.c.l.b16 %v1012
    %v3764 = vunpack.c.h.b16 %v1012
    %v3765 = vunpack.c.l.b16 %v1013
    %v3766 = vunpack.c.h.b16 %v1013
    %v3767 = vunpack.c.l.b16 %v1014
    %v3768 = vunpack.c.h.b16 %v1014
    %v3769 = vunpack.c.l.b16 %v1015
    %v3770 = vunpack.c.h.b16 %v1015
    %v3771 = vunpack.c.l.b16 %v1016
    %v3772 = vunpack.c.h.b16 %v1016
    %v3773 = vunpack.c.l.b16 %v1017
    %v3774 = vunpack.c.h.b16 %v1017
    %v3775 = vunpack.c.l.b16 %v1018
    %v3776 = vunpack.c.h.b16 %v1018
    %v3777 = vunpack.c.l.b16 %v1019
    %v3778 = vunpack.c.h.b16 %v1019
    %v3779 = vunpack.c.l.b16 %v1020
    %v3780 = vunpack.c.h.b16 %v1020
    %v3781 = vunpack.c.l.b16 %v1021
    %v3782 = vunpack.c.h.b16 %v1021
    %v3783 = vunpack.c.l.b16 %v1022
    %v3784 = vunpack.c.h.b16 %v1022
    %v3785 = vunpack.c.l.b16 %v1023
    %v3786 = vunpack.c.h.b16 %v1023
    %v3787 = vunpack.c.l.b16 %v1024
    %v3788 = vunpack.c.h.b16 %v1024
    %v3789 = vunpack.c.l.b16 %v1025
    %v3790 = vunpack.c.h.b16 %v1025
    %v3791 = vunpack.c.l.b16 %v1026
    %v3792 = vunpack.c.h.b16 %v1026
    %v3793 = vunpack.c.l.b16 %v1027
    %v3794 = vunpack.c.h.b16 %v1027
    %v3795 = vunpack.c.l.b16 %v1028
    %v3796 = vunpack.c.h.b16 %v1028
    %v3797 = vunpack.c.l.b16 %v1029
    %v3798 = vunpack.c.h.b16 %v1029
    %v3799 = vunpack.c.l.b16 %v1030
    %v3800 = vunpack.c.h.b16 %v1030
    %v3801 = vunpack.c.l.b16 %v1031
    %v3802 = vunpack.c.h.b16 %v1031
    %v3803 = vunpack.c.l.b16 %v1032
    %v3804 = vunpack.c.h.b16 %v1032
    %v3805 = vunpack.c.l.b16 %v1033
    %v3806 = vunpack.c.h.b16 %v1033
    %v3807 = vunpack.c.l.b16 %v1034
    %v3808 = vunpack.c.h.b16 %v1034
    %v3809 = vunpack.c.l.b16 %v1035
    %v3810 = vunpack.c.h.b16 %v1035
    %v3811 = vunpack.c.l.b16 %v1036
    %v3812 = vunpack.c.h.b16 %v1036
    %v3813 = vunpack.c.l.b16 %v1037
    %v3814 = vunpack.c.h.b16 %v1037
    %v3815 = vunpack.c.l.b16 %v1038
    %v3816 = vunpack.c.h.b16 %v1038
    %v3817 = vunpack.c.l.b16 %v1039
    %v3818 = vunpack.c.h.b16 %v1039
    %v3819 = vunpack.c.l.b16 %v1040
    %v3820 = vunpack.c.h.b16 %v1040
    %v3821 = vunpack.c.l.b16 %v1041
    %v3822 = vunpack.c.h.b16 %v1041
    %v3823 = vunpack.c.l.b16 %v1042
    %v3824 = vunpack.c.h.b16 %v1042
    %v3825 = vunpack.c.l.b16 %v1043
    %v3826 = vunpack.c.h.b16 %v1043
    %v3827 = vunpack.c.l.b16 %v1044
    %v3828 = vunpack.c.h.b16 %v1044
    %v3829 = vunpack.c.l.b16 %v1045
    %v3830 = vunpack.c.h.b16 %v1045
    %v3831 = vunpack.c.l.b16 %v1046
    %v3832 = vunpack.c.h.b16 %v1046
    %v3833 = vunpack.c.l.b16 %v1047
    %v3834 = vunpack.c.h.b16 %v1047
    %v3835 = vunpack.c.l.b16 %v1048
    %v3836 = vunpack.c.h.b16 %v1048
    %v3837 = vunpack.c.l.b16 %v1049
    %v3838 = vunpack.c.h.b16 %v1049
    %v3839 = vunpack.c.l.b16 %v1050
    %v3840 = vunpack.c.h.b16 %v1050
    %v3841 = vunpack.c.l.b16 %v1051
    %v3842 = vunpack.c.h.b16 %v1051
    %v3843 = vunpack.c.l.b16 %v1052
    %v3844 = vunpack.c.h.b16 %v1052
    %v3845 = vunpack.c.l.b16 %v1053
    %v3846 = vunpack.c.h.b16 %v1053
    %v3847 = vunpack.c.l.b16 %v1054
    %v3848 = vunpack.c.h.b16 %v1054
    %v3849 = vunpack.c.l.b16 %v1055
    %v3850 = vunpack.c.h.b16 %v1055
    %v3851 = vunpack.c.l.b16 %v1056
    %v3852 = vunpack.c.h.b16 %v1056
    %v3853 = vunpack.c.l.b16 %v1057
    %v3854 = vunpack.c.h.b16 %v1057
    %v3855 = vunpack.c.l.b16 %v1058
    %v3856 = vunpack.c.h.b16 %v1058
    %v3857 = vunpack.c.l.b16 %v1059
    %v3858 = vunpack.c.h.b16 %v1059
    %v3859 = vunpack.c.l.b16 %v1060
    %v3860 = vunpack.c.h.b16 %v1060
    %v3861 = vunpack.c.l.b16 %v1061
    %v3862 = vunpack.c.h.b16 %v1061
    %v3863 = vunpack.c.l.b16 %v1062
    %v3864 = vunpack.c.h.b16 %v1062
    %v3865 = vunpack.c.l.b16 %v1063
    %v3866 = vunpack.c.h.b16 %v1063
    %v3867 = vunpack.c.l.b16 %v1064
    %v3868 = vunpack.c.h.b16 %v1064
    %v3869 = vunpack.c.l.b16 %v1065
    %v3870 = vunpack.c.h.b16 %v1065
    %v3871 = vunpack.c.l.b16 %v1066
    %v3872 = vunpack.c.h.b16 %v1066
    %v3873 = vunpack.c.l.b16 %v1067
    %v3874 = vunpack.c.h.b16 %v1067
    %v3875 = vunpack.c.l.b16 %v1068
    %v3876 = vunpack.c.h.b16 %v1068
    %v3877 = vunpack.c.l.b16 %v1069
    %v3878 = vunpack.c.h.b16 %v1069
    %v3879 = vunpack.c.l.b16 %v1070
    %v3880 = vunpack.c.h.b16 %v1070
    %v3881 = vunpack.c.l.b16 %v1071
    %v3882 = vunpack.c.h.b16 %v1071
    %v3883 = vunpack.c.l.b16 %v1072
    %v3884 = vunpack.c.h.b16 %v1072
    %v3885 = vunpack.c.l.b16 %v1073
    %v3886 = vunpack.c.h.b16 %v1073
    %v3887 = vunpack.c.l.b16 %v1074
    %v3888 = vunpack.c.h.b16 %v1074
    %v3889 = vunpack.c.l.b16 %v1075
    %v3890 = vunpack.c.h.b16 %v1075
    %v3891 = vunpack.c.l.b16 %v1076
    %v3892 = vunpack.c.h.b16 %v1076
    %v3893 = vunpack.c.l.b16 %v1077
    %v3894 = vunpack.c.h.b16 %v1077
    %v3895 = vunpack.c.l.b16 %v1078
    %v3896 = vunpack.c.h.b16 %v1078
    %v3897 = vunpack.c.l.b16 %v1079
    %v3898 = vunpack.c.h.b16 %v1079
    %v3899 = vunpack.c.l.b16 %v1080
    %v3900 = vunpack.c.h.b16 %v1080
    %v3901 = vunpack.c.l.b16 %v1081
    %v3902 = vunpack.c.h.b16 %v1081
    %v3903 = vunpack.c.l.b16 %v1082
    %v3904 = vunpack.c.h.b16 %v1082
    %v3905 = vunpack.c.l.b16 %v1083
    %v3906 = vunpack.c.h.b16 %v1083
    %v3907 = vunpack.c.l.b16 %v1084
    %v3908 = vunpack.c.h.b16 %v1084
    %v3909 = vunpack.c.l.b16 %v1085
    %v3910 = vunpack.c.h.b16 %v1085
    %v3911 = vunpack.c.l.b16 %v1086
    %v3912 = vunpack.c.h.b16 %v1086
    %v3913 = vunpack.c.l.b16 %v1087
    %v3914 = vunpack.c.h.b16 %v1087
    %v3915 = vunpack.c.l.b16 %v1088
    %v3916 = vunpack.c.h.b16 %v1088
    %v3917 = vunpack.c.l.b16 %v1089
    %v3918 = vunpack.c.h.b16 %v1089
    %v3919 = vunpack.c.l.b16 %v1090
    %v3920 = vunpack.c.h.b16 %v1090
    %v3921 = vunpack.c.l.b16 %v1091
    %v3922 = vunpack.c.h.b16 %v1091
    %v3923 = vunpack.c.l.b16 %v1092
    %v3924 = vunpack.c.h.b16 %v1092
    %v3925 = vunpack.c.l.b16 %v1093
    %v3926 = vunpack.c.h.b16 %v1093
    %v3927 = vunpack.c.l.b16 %v1094
    %v3928 = vunpack.c.h.b16 %v1094
    %v3929 = vunpack.c.l.b16 %v1095
    %v3930 = vunpack.c.h.b16 %v1095
    %v3931 = vunpack.c.l.b16 %v1096
    %v3932 = vunpack.c.h.b16 %v1096
    %v3933 = vunpack.c.l.b16 %v1097
    %v3934 = vunpack.c.h.b16 %v1097
    %v3935 = vunpack.c.l.b16 %v1098
    %v3936 = vunpack.c.h.b16 %v1098
    %v3937 = vunpack.c.l.b16 %v1099
    %v3938 = vunpack.c.h.b16 %v1099
    %v3939 = vunpack.c.l.b16 %v1100
    %v3940 = vunpack.c.h.b16 %v1100
    %v3941 = vunpack.c.l.b16 %v1101
    %v3942 = vunpack.c.h.b16 %v1101
    %v3943 = vunpack.c.l.b16 %v1102
    %v3944 = vunpack.c.h.b16 %v1102
    %v3945 = vunpack.c.l.b16 %v1103
    %v3946 = vunpack.c.h.b16 %v1103
    %v3947 = vunpack.c.l.b16 %v1104
    %v3948 = vunpack.c.h.b16 %v1104
    %v3949 = vunpack.c.l.b16 %v1105
    %v3950 = vunpack.c.h.b16 %v1105
    %v3951 = vunpack.c.l.b16 %v1106
    %v3952 = vunpack.c.h.b16 %v1106
    %v3953 = vunpack.c.l.b16 %v1107
    %v3954 = vunpack.c.h.b16 %v1107
    %v3955 = vunpack.c.l.b16 %v1108
    %v3956 = vunpack.c.h.b16 %v1108
    %v3957 = vunpack.c.l.b16 %v1109
    %v3958 = vunpack.c.h.b16 %v1109
    %v3959 = vunpack.c.l.b16 %v1110
    %v3960 = vunpack.c.h.b16 %v1110
    %v3961 = vunpack.c.l.b16 %v1111
    %v3962 = vunpack.c.h.b16 %v1111
    %v3963 = vunpack.c.l.b16 %v1112
    %v3964 = vunpack.c.h.b16 %v1112
    %v3965 = vunpack.c.l.b16 %v1113
    %v3966 = vunpack.c.h.b16 %v1113
    %v3967 = vunpack.c.l.b16 %v1114
    %v3968 = vunpack.c.h.b16 %v1114
    %v3969 = vunpack.c.l.b16 %v1115
    %v3970 = vunpack.c.h.b16 %v1115
    %v3971 = vunpack.c.l.b16 %v1116
    %v3972 = vunpack.c.h.b16 %v1116
    %v3973 = vunpack.c.l.b16 %v1117
    %v3974 = vunpack.c.h.b16 %v1117
    %v3975 = vunpack.c.l.b16 %v1118
    %v3976 = vunpack.c.h.b16 %v1118
    %v3977 = vunpack.c.l.b16 %v1119
    %v3978 = vunpack.c.h.b16 %v1119
    %v3979 = vunpack.c.l.b16 %v1120
    %v3980 = vunpack.c.h.b16 %v1120
    %v3981 = vunpack.c.l.b16 %v1121
    %v3982 = vunpack.c.h.b16 %v1121
    %v3983 = vunpack.c.l.b16 %v1122
    %v3984 = vunpack.c.h.b16 %v1122
    %v3985 = vunpack.c.l.b16 %v1123
    %v3986 = vunpack.c.h.b16 %v1123
    %v3987 = vunpack.c.l.b16 %v1124
    %v3988 = vunpack.c.h.b16 %v1124
    %v3989 = vunpack.c.l.b16 %v1125
    %v3990 = vunpack.c.h.b16 %v1125
    %v3991 = vunpack.c.l.b16 %v1126
    %v3992 = vunpack.c.h.b16 %v1126
    %v3993 = vunpack.c.l.b16 %v1127
    %v3994 = vunpack.c.h.b16 %v1127
    %v3995 = vunpack.c.l.b16 %v1128
    %v3996 = vunpack.c.h.b16 %v1128
    %v3997 = vunpack.c.l.b16 %v1129
    %v3998 = vunpack.c.h.b16 %v1129
    %v3999 = vunpack.c.l.b16 %v1130
    %v4000 = vunpack.c.h.b16 %v1130
    %v4001 = vunpack.c.l.b16 %v1131
    %v4002 = vunpack.c.h.b16 %v1131
    %v4003 = vunpack.c.l.b16 %v1132
    %v4004 = vunpack.c.h.b16 %v1132
    %v4005 = vunpack.c.l.b16 %v1133
    %v4006 = vunpack.c.h.b16 %v1133
    %v4007 = vunpack.c.l.b16 %v1134
    %v4008 = vunpack.c.h.b16 %v1134
    %v4009 = vunpack.c.l.b16 %v1135
    %v4010 = vunpack.c.h.b16 %v1135
    %v4011 = vunpack.c.l.b16 %v1136
    %v4012 = vunpack.c.h.b16 %v1136
    %v4013 = vunpack.c.l.b16 %v1137
    %v4014 = vunpack.c.h.b16 %v1137
    %v4015 = vunpack.c.l.b16 %v1138
    %v4016 = vunpack.c.h.b16 %v1138
    %v4017 = vunpack.c.l.b16 %v1139
    %v4018 = vunpack.c.h.b16 %v1139
    %v4019 = vunpack.c.l.b16 %v1140
    %v4020 = vunpack.c.h.b16 %v1140
    %v4021 = vunpack.c.l.b16 %v1141
    %v4022 = vunpack.c.h.b16 %v1141
    %v4023 = vunpack.c.l.b16 %v1142
    %v4024 = vunpack.c.h.b16 %v1142
    %v4025 = vunpack.c.l.b16 %v1143
    %v4026 = vunpack.c.h.b16 %v1143
    %v4027 = vunpack.c.l.b16 %v1144
    %v4028 = vunpack.c.h.b16 %v1144
    %v4029 = vunpack.c.l.b16 %v1145
    %v4030 = vunpack.c.h.b16 %v1145
    %v4031 = vunpack.c.l.b16 %v1146
    %v4032 = vunpack.c.h.b16 %v1146
    %v4033 = vunpack.c.l.b16 %v1147
    %v4034 = vunpack.c.h.b16 %v1147
    %v4035 = vunpack.c.l.b16 %v1148
    %v4036 = vunpack.c.h.b16 %v1148
    %v4037 = vunpack.c.l.b16 %v1149
    %v4038 = vunpack.c.h.b16 %v1149
    %v4039 = vunpack.c.l.b16 %v1150
    %v4040 = vunpack.c.h.b16 %v1150
    %v4041 = vunpack.c.l.b16 %v1151
    %v4042 = vunpack.c.h.b16 %v1151
    %v4043 = vunpack.c.l.b16 %v1152
    %v4044 = vunpack.c.h.b16 %v1152
    %v4045 = vunpack.c.l.b16 %v1153
    %v4046 = vunpack.c.h.b16 %v1153
    %v4047 = vunpack.c.l.b16 %v1154
    %v4048 = vunpack.c.h.b16 %v1154
    %v4049 = vunpack.c.l.b16 %v1155
    %v4050 = vunpack.c.h.b16 %v1155
    %v4051 = vunpack.c.l.b16 %v1156
    %v4052 = vunpack.c.h.b16 %v1156
    %v4053 = vunpack.c.l.b16 %v1157
    %v4054 = vunpack.c.h.b16 %v1157
    %v4055 = vunpack.c.l.b16 %v1158
    %v4056 = vunpack.c.h.b16 %v1158
    %v4057 = vunpack.c.l.b16 %v1159
    %v4058 = vunpack.c.h.b16 %v1159
    %v4059 = vunpack.c.l.b16 %v1160
    %v4060 = vunpack.c.h.b16 %v1160
    %v4061 = vunpack.c.l.b16 %v1161
    %v4062 = vunpack.c.h.b16 %v1161
    %v4063 = vunpack.c.l.b16 %v1162
    %v4064 = vunpack.c.h.b16 %v1162
    %v4065 = vunpack.c.l.b16 %v1163
    %v4066 = vunpack.c.h.b16 %v1163
    %v4067 = vunpack.c.l.b16 %v1164
    %v4068 = vunpack.c.h.b16 %v1164
    %v4069 = vunpack.c.l.b16 %v1165
    %v4070 = vunpack.c.h.b16 %v1165
    %v4071 = vunpack.c.l.b16 %v1166
    %v4072 = vunpack.c.h.b16 %v1166
    %v4073 = vunpack.c.l.b16 %v1167
    %v4074 = vunpack.c.h.b16 %v1167
    %v4075 = vunpack.c.l.b16 %v1168
    %v4076 = vunpack.c.h.b16 %v1168
    %v4077 = vunpack.c.l.b16 %v1169
    %v4078 = vunpack.c.h.b16 %v1169
    %v4079 = vunpack.c.l.b16 %v1170
    %v4080 = vunpack.c.h.b16 %v1170
    %v4081 = vunpack.c.l.b16 %v1171
    %v4082 = vunpack.c.h.b16 %v1171
    %v4083 = vunpack.c.l.b16 %v1172
    %v4084 = vunpack.c.h.b16 %v1172
    %v4085 = vunpack.c.l.b16 %v1173
    %v4086 = vunpack.c.h.b16 %v1173
    %v4087 = vunpack.c.l.b16 %v1174
    %v4088 = vunpack.c.h.b16 %v1174
    %v4089 = vunpack.c.l.b16 %v1175
    %v4090 = vunpack.c.h.b16 %v1175
    %v4091 = vunpack.c.l.b16 %v1176
    %v4092 = vunpack.c.h.b16 %v1176
    %v4093 = vunpack.c.l.b16 %v1177
    %v4094 = vunpack.c.h.b16 %v1177
    %v4095 = vunpack.c.l.b16 %v1178
    %v4096 = vunpack.c.h.b16 %v1178
    %v4097 = vunpack.c.l.b16 %v1179
    %v4098 = vunpack.c.h.b16 %v1179
    %v4099 = vunpack.c.l.b16 %v1180
    %v4100 = vunpack.c.h.b16 %v1180
    %v4101 = vunpack.c.l.b16 %v1181
    %v4102 = vunpack.c.h.b16 %v1181
    %v4103 = vunpack.c.l.b16 %v1182
    %v4104 = vunpack.c.h.b16 %v1182
    %v4105 = vunpack.c.l.b16 %v1183
    %v4106 = vunpack.c.h.b16 %v1183
    %v4107 = vunpack.c.l.b16 %v1184
    %v4108 = vunpack.c.h.b16 %v1184
    %v4109 = vunpack.c.l.b16 %v1185
    %v4110 = vunpack.c.h.b16 %v1185
    %v4111 = vunpack.c.l.b16 %v1186
    %v4112 = vunpack.c.h.b16 %v1186
    %v4113 = vunpack.c.l.b16 %v1187
    %v4114 = vunpack.c.h.b16 %v1187
    %v4115 = vunpack.c.l.b16 %v1188
    %v4116 = vunpack.c.h.b16 %v1188
    %v4117 = vunpack.c.l.b16 %v1189
    %v4118 = vunpack.c.h.b16 %v1189
    %v4119 = vunpack.c.l.b16 %v1190
    %v4120 = vunpack.c.h.b16 %v1190
    %v4121 = vunpack.c.l.b16 %v1191
    %v4122 = vunpack.c.h.b16 %v1191
    %v4123 = vunpack.c.l.b16 %v1192
    %v4124 = vunpack.c.h.b16 %v1192
    %v4125 = vunpack.c.l.b16 %v1193
    %v4126 = vunpack.c.h.b16 %v1193
    %v4127 = vunpack.c.l.b16 %v1194
    %v4128 = vunpack.c.h.b16 %v1194
    %v4129 = vunpack.c.l.b16 %v1195
    %v4130 = vunpack.c.h.b16 %v1195
    %v4131 = vunpack.c.l.b16 %v1196
    %v4132 = vunpack.c.h.b16 %v1196
    %v4133 = vunpack.c.l.b16 %v1197
    %v4134 = vunpack.c.h.b16 %v1197
    %v4135 = vunpack.c.l.b16 %v1198
    %v4136 = vunpack.c.h.b16 %v1198
    %v4137 = vunpack.c.l.b16 %v1199
    %v4138 = vunpack.c.h.b16 %v1199
    %v4139 = vunpack.c.l.b16 %v1200
    %v4140 = vunpack.c.h.b16 %v1200
    %v4141 = vunpack.c.l.b16 %v1201
    %v4142 = vunpack.c.h.b16 %v1201
    %v4143 = vunpack.c.l.b16 %v1202
    %v4144 = vunpack.c.h.b16 %v1202
    %v4145 = vunpack.c.l.b16 %v1203
    %v4146 = vunpack.c.h.b16 %v1203
    %v4147 = vunpack.c.l.b16 %v1204
    %v4148 = vunpack.c.h.b16 %v1204
    %v4149 = vunpack.c.l.b16 %v1205
    %v4150 = vunpack.c.h.b16 %v1205
    %v4151 = vunpack.c.l.b16 %v1206
    %v4152 = vunpack.c.h.b16 %v1206
    %v4153 = vunpack.c.l.b16 %v1207
    %v4154 = vunpack.c.h.b16 %v1207
    %v4155 = vunpack.c.l.b16 %v1208
    %v4156 = vunpack.c.h.b16 %v1208
    %v4157 = vunpack.c.l.b16 %v1209
    %v4158 = vunpack.c.h.b16 %v1209
    %v4159 = vunpack.c.l.b16 %v1210
    %v4160 = vunpack.c.h.b16 %v1210
    %v4161 = vunpack.c.l.b16 %v1211
    %v4162 = vunpack.c.h.b16 %v1211
    %v4163 = vunpack.c.l.b16 %v1212
    %v4164 = vunpack.c.h.b16 %v1212
    %v4165 = vunpack.c.l.b16 %v1213
    %v4166 = vunpack.c.h.b16 %v1213
    %v4167 = vunpack.c.l.b16 %v1214
    %v4168 = vunpack.c.h.b16 %v1214
    %v4169 = vunpack.c.l.b16 %v1215
    %v4170 = vunpack.c.h.b16 %v1215
    %v4171 = vunpack.c.l.b16 %v1216
    %v4172 = vunpack.c.h.b16 %v1216
    %v4173 = vunpack.c.l.b16 %v1217
    %v4174 = vunpack.c.h.b16 %v1217
    %v4175 = vunpack.c.l.b16 %v1218
    %v4176 = vunpack.c.h.b16 %v1218
    %v4177 = vunpack.c.l.b16 %v1219
    %v4178 = vunpack.c.h.b16 %v1219
    %v4179 = vunpack.c.l.b16 %v1220
    %v4180 = vunpack.c.h.b16 %v1220
    %v4181 = vunpack.c.l.b16 %v1221
    %v4182 = vunpack.c.h.b16 %v1221
    %v4183 = vunpack.c.l.b16 %v1222
    %v4184 = vunpack.c.h.b16 %v1222
    %v4185 = vunpack.c.l.b16 %v1223
    %v4186 = vunpack.c.h.b16 %v1223
    %v4187 = vunpack.c.l.b16 %v1224
    %v4188 = vunpack.c.h.b16 %v1224
    %v4189 = vunpack.c.l.b16 %v1225
    %v4190 = vunpack.c.h.b16 %v1225
    %v4191 = vunpack.c.l.b16 %v1226
    %v4192 = vunpack.c.h.b16 %v1226
    %v4193 = vunpack.c.l.b16 %v1227
    %v4194 = vunpack.c.h.b16 %v1227
    %v4195 = vunpack.c.l.b16 %v1228
    %v4196 = vunpack.c.h.b16 %v1228
    %v4197 = vunpack.c.l.b16 %v1229
    %v4198 = vunpack.c.h.b16 %v1229
    %v4199 = vunpack.c.l.b16 %v1230
    %v4200 = vunpack.c.h.b16 %v1230
    %v4201 = vunpack.c.l.b16 %v1231
    %v4202 = vunpack.c.h.b16 %v1231
    %v4203 = vunpack.c.l.b16 %v1232
    %v4204 = vunpack.c.h.b16 %v1232
    %v4205 = vunpack.c.l.b16 %v1233
    %v4206 = vunpack.c.h.b16 %v1233
    %v4207 = vunpack.c.l.b16 %v1234
    %v4208 = vunpack.c.h.b16 %v1234
    %v4209 = vunpack.c.l.b16 %v1235
    %v4210 = vunpack.c.h.b16 %v1235
    %v4211 = vunpack.c.l.b16 %v1236
    %v4212 = vunpack.c.h.b16 %v1236
    %v4213 = vunpack.c.l.b16 %v1237
    %v4214 = vunpack.c.h.b16 %v1237
    %v4215 = vunpack.c.l.b16 %v1238
    %v4216 = vunpack.c.h.b16 %v1238
    %v4217 = vunpack.c.l.b16 %v1239
    %v4218 = vunpack.c.h.b16 %v1239
    %v4219 = vunpack.c.l.b16 %v1240
    %v4220 = vunpack.c.h.b16 %v1240
    %v4221 = vunpack.c.l.b16 %v1241
    %v4222 = vunpack.c.h.b16 %v1241
    %v4223 = vunpack.c.l.b16 %v1242
    %v4224 = vunpack.c.h.b16 %v1242
    %v4225 = vunpack.c.l.b16 %v1243
    %v4226 = vunpack.c.h.b16 %v1243
    %v4227 = vunpack.c.l.b16 %v1244
    %v4228 = vunpack.c.h.b16 %v1244
    %v4229 = vunpack.c.l.b16 %v1245
    %v4230 = vunpack.c.h.b16 %v1245
    %v4231 = vunpack.c.l.b16 %v1246
    %v4232 = vunpack.c.h.b16 %v1246
    %v4233 = vunpack.c.l.b16 %v1247
    %v4234 = vunpack.c.h.b16 %v1247
    %v4235 = vunpack.c.l.b16 %v1248
    %v4236 = vunpack.c.h.b16 %v1248
    %v4237 = vunpack.c.l.b16 %v1249
    %v4238 = vunpack.c.h.b16 %v1249
    %v4239 = vunpack.c.l.b16 %v1250
    %v4240 = vunpack.c.h.b16 %v1250
    %v4241 = vunpack.c.l.b16 %v1251
    %v4242 = vunpack.c.h.b16 %v1251
    %v4243 = vunpack.c.l.b16 %v1252
    %v4244 = vunpack.c.h.b16 %v1252
    %v4245 = vunpack.c.l.b16 %v1253
    %v4246 = vunpack.c.h.b16 %v1253
    %v4247 = vunpack.c.l.b16 %v1254
    %v4248 = vunpack.c.h.b16 %v1254
    %v4249 = vunpack.c.l.b16 %v1255
    %v4250 = vunpack.c.h.b16 %v1255
    %v4251 = vunpack.c.l.b16 %v1256
    %v4252 = vunpack.c.h.b16 %v1256
    %v4253 = vunpack.c.l.b16 %v1257
    %v4254 = vunpack.c.h.b16 %v1257
    %v4255 = vunpack.c.l.b16 %v1258
    %v4256 = vunpack.c.h.b16 %v1258
    %v4257 = vunpack.c.l.b16 %v1259
    %v4258 = vunpack.c.h.b16 %v1259
    %v4259 = vunpack.c.l.b16 %v1260
    %v4260 = vunpack.c.h.b16 %v1260
    %v4261 = vunpack.c.l.b16 %v1261
    %v4262 = vunpack.c.h.b16 %v1261
    %v4263 = vunpack.c.l.b16 %v1262
    %v4264 = vunpack.c.h.b16 %v1262
    %v4265 = vunpack.c.l.b16 %v1263
    %v4266 = vunpack.c.h.b16 %v1263
    %v4267 = vunpack.c.l.b16 %v1264
    %v4268 = vunpack.c.h.b16 %v1264
    %v4269 = vunpack.c.l.b16 %v1265
    %v4270 = vunpack.c.h.b16 %v1265
    %v4271 = vunpack.c.l.b16 %v1266
    %v4272 = vunpack.c.h.b16 %v1266
    %v4273 = vunpack.c.l.b16 %v1267
    %v4274 = vunpack.c.h.b16 %v1267
    %v4275 = vunpack.c.l.b16 %v1268
    %v4276 = vunpack.c.h.b16 %v1268
    %v4277 = vunpack.c.l.b16 %v1269
    %v4278 = vunpack.c.h.b16 %v1269
    %v4279 = vunpack.c.l.b16 %v1270
    %v4280 = vunpack.c.h.b16 %v1270
    %v4281 = vunpack.c.l.b16 %v1271
    %v4282 = vunpack.c.h.b16 %v1271
    %v4283 = vunpack.c.l.b16 %v1272
    %v4284 = vunpack.c.h.b16 %v1272
    %v4285 = vunpack.c.l.b16 %v1273
    %v4286 = vunpack.c.h.b16 %v1273
    %v4287 = vunpack.c.l.b16 %v1274
    %v4288 = vunpack.c.h.b16 %v1274
    %v4289 = vunpack.c.l.b16 %v1275
    %v4290 = vunpack.c.h.b16 %v1275
    %v4291 = vunpack.c.l.b16 %v1276
    %v4292 = vunpack.c.h.b16 %v1276
    %v4293 = vunpack.c.l.b16 %v1277
    %v4294 = vunpack.c.h.b16 %v1277
    %v4295 = vunpack.c.l.b16 %v1278
    %v4296 = vunpack.c.h.b16 %v1278
    %v4297 = vunpack.c.l.b16 %v1279
    %v4298 = vunpack.c.h.b16 %v1279
    %v4299 = vunpack.c.l.b16 %v1280
    %v4300 = vunpack.c.h.b16 %v1280
    %v4301 = vunpack.c.l.b16 %v1281
    %v4302 = vunpack.c.h.b16 %v1281
    %v4303 = vunpack.c.l.b16 %v1282
    %v4304 = vunpack.c.h.b16 %v1282
    %v4305 = vunpack.c.l.b16 %v1283
    %v4306 = vunpack.c.h.b16 %v1283
    %v4307 = vunpack.c.l.b16 %v1284
    %v4308 = vunpack.c.h.b16 %v1284
    %v4309 = vunpack.c.l.b16 %v1285
    %v4310 = vunpack.c.h.b16 %v1285
    %v4311 = vunpack.c.l.b16 %v1286
    %v4312 = vunpack.c.h.b16 %v1286
    %v4313 = vunpack.c.l.b16 %v1287
    %v4314 = vunpack.c.h.b16 %v1287
    %v4315 = vunpack.c.l.b16 %v1288
    %v4316 = vunpack.c.h.b16 %v1288
    %v4317 = vunpack.c.l.b16 %v1289
    %v4318 = vunpack.c.h.b16 %v1289
    %v4319 = vunpack.c.l.b16 %v1290
    %v4320 = vunpack.c.h.b16 %v1290
    %v4321 = vunpack.c.l.b16 %v1291
    %v4322 = vunpack.c.h.b16 %v1291
    %v4323 = vunpack.c.l.b16 %v1292
    %v4324 = vunpack.c.h.b16 %v1292
    %v4325 = vunpack.c.l.b16 %v1293
    %v4326 = vunpack.c.h.b16 %v1293
    %v4327 = vunpack.c.l.b16 %v1294
    %v4328 = vunpack.c.h.b16 %v1294
    %v4329 = vunpack.c.l.b16 %v1295
    %v4330 = vunpack.c.h.b16 %v1295
    %v4331 = vunpack.c.l.b16 %v1296
    %v4332 = vunpack.c.h.b16 %v1296
    %v4333 = vunpack.c.l.b16 %v1297
    %v4334 = vunpack.c.h.b16 %v1297
    %v4335 = vunpack.c.l.b16 %v1298
    %v4336 = vunpack.c.h.b16 %v1298
    %v4337 = vunpack.c.l.b16 %v1299
    %v4338 = vunpack.c.h.b16 %v1299
    %v4339 = vunpack.c.l.b16 %v1300
    %v4340 = vunpack.c.h.b16 %v1300
    %v4341 = vunpack.c.l.b16 %v1301
    %v4342 = vunpack.c.h.b16 %v1301
    %v4343 = vunpack.c.l.b16 %v1302
    %v4344 = vunpack.c.h.b16 %v1302
    %v4345 = vunpack.c.l.b16 %v1303
    %v4346 = vunpack.c.h.b16 %v1303
    %v4347 = vunpack.c.l.b16 %v1304
    %v4348 = vunpack.c.h.b16 %v1304
    %v4349 = vunpack.c.l.b16 %v1305
    %v4350 = vunpack.c.h.b16 %v1305
    %v4351 = vunpack.c.l.b16 %v1306
    %v4352 = vunpack.c.h.b16 %v1306
    %v4353 = vunpack.c.l.b16 %v1307
    %v4354 = vunpack.c.h.b16 %v1307
    %v4355 = vunpack.c.l.b16 %v1308
    %v4356 = vunpack.c.h.b16 %v1308
    %v4357 = vunpack.c.l.b16 %v1309
    %v4358 = vunpack.c.h.b16 %v1309
    %v4359 = vunpack.c.l.b16 %v1310
    %v4360 = vunpack.c.h.b16 %v1310
    %v4361 = vunpack.c.l.b16 %v1311
    %v4362 = vunpack.c.h.b16 %v1311
    %v4363 = vunpack.c.l.b16 %v1312
    %v4364 = vunpack.c.h.b16 %v1312
    %v4365 = vunpack.c.l.b16 %v1313
    %v4366 = vunpack.c.h.b16 %v1313
    %v4367 = vunpack.c.l.b16 %v1314
    %v4368 = vunpack.c.h.b16 %v1314
    %v4369 = vunpack.c.l.b16 %v1315
    %v4370 = vunpack.c.h.b16 %v1315
    %v4371 = vunpack.c.l.b16 %v1316
    %v4372 = vunpack.c.h.b16 %v1316
    %v4373 = vunpack.c.l.b16 %v1317
    %v4374 = vunpack.c.h.b16 %v1317
    %v4375 = vunpack.c.l.b16 %v1318
    %v4376 = vunpack.c.h.b16 %v1318
    %v4377 = vunpack.c.l.b16 %v1319
    %v4378 = vunpack.c.h.b16 %v1319
    %v4379 = vunpack.c.l.b16 %v1320
    %v4380 = vunpack.c.h.b16 %v1320
    %v4381 = vunpack.c.l.b16 %v1321
    %v4382 = vunpack.c.h.b16 %v1321
    %v4383 = vunpack.c.l.b16 %v1322
    %v4384 = vunpack.c.h.b16 %v1322
    %v4385 = vunpack.c.l.b16 %v1323
    %v4386 = vunpack.c.h.b16 %v1323
    %v4387 = vunpack.c.l.b16 %v1324
    %v4388 = vunpack.c.h.b16 %v1324
    %v4389 = vunpack.c.l.b16 %v1325
    %v4390 = vunpack.c.h.b16 %v1325
    %v4391 = vunpack.c.l.b16 %v1326
    %v4392 = vunpack.c.h.b16 %v1326
    %v4393 = vunpack.c.l.b16 %v1327
    %v4394 = vunpack.c.h.b16 %v1327
    %v4395 = vunpack.c.l.b16 %v1328
    %v4396 = vunpack.c.h.b16 %v1328
    %v4397 = vunpack.c.l.b16 %v1329
    %v4398 = vunpack.c.h.b16 %v1329
    %v4399 = vunpack.c.l.b16 %v1330
    %v4400 = vunpack.c.h.b16 %v1330
    %v4401 = vunpack.c.l.b16 %v1331
    %v4402 = vunpack.c.h.b16 %v1331
    %v4403 = vunpack.c.l.b16 %v1332
    %v4404 = vunpack.c.h.b16 %v1332
    %v4405 = vunpack.c.l.b16 %v1333
    %v4406 = vunpack.c.h.b16 %v1333
    %v4407 = vunpack.c.l.b16 %v1334
    %v4408 = vunpack.c.h.b16 %v1334
    %v4409 = vunpack.c.l.b16 %v1335
    %v4410 = vunpack.c.h.b16 %v1335
    %v4411 = vunpack.c.l.b16 %v1336
    %v4412 = vunpack.c.h.b16 %v1336
    %v4413 = vunpack.c.l.b16 %v1337
    %v4414 = vunpack.c.h.b16 %v1337
    %v4415 = vunpack.c.l.b16 %v1338
    %v4416 = vunpack.c.h.b16 %v1338
    %v4417 = vunpack.c.l.b16 %v1339
    %v4418 = vunpack.c.h.b16 %v1339
    %v4419 = vunpack.c.l.b16 %v1340
    %v4420 = vunpack.c.h.b16 %v1340
    %v4421 = vunpack.c.l.b16 %v1341
    %v4422 = vunpack.c.h.b16 %v1341
    %v4423 = vunpack.c.l.b16 %v1342
    %v4424 = vunpack.c.h.b16 %v1342
    %v4425 = vunpack.c.l.b16 %v1343
    %v4426 = vunpack.c.h.b16 %v1343
    %v4427 = vunpack.c.l.b16 %v1344
    %v4428 = vunpack.c.h.b16 %v1344
    %v4429 = vunpack.c.l.b16 %v1345
    %v4430 = vunpack.c.h.b16 %v1345
    %v4431 = vunpack.c.l.b16 %v1346
    %v4432 = vunpack.c.h.b16 %v1346
    %v4433 = vunpack.c.l.b16 %v1347
    %v4434 = vunpack.c.h.b16 %v1347
    %v4435 = vunpack.c.l.b16 %v1348
    %v4436 = vunpack.c.h.b16 %v1348
    %v4437 = vunpack.c.l.b16 %v1349
    %v4438 = vunpack.c.h.b16 %v1349
    %v4439 = vunpack.c.l.b16 %v1350
    %v4440 = vunpack.c.h.b16 %v1350
    %v4441 = vunpack.c.l.b16 %v1351
    %v4442 = vunpack.c.h.b16 %v1351
    %v4443 = vunpack.c.l.b16 %v1352
    %v4444 = vunpack.c.h.b16 %v1352
    %v4445 = vunpack.c.l.b16 %v1353
    %v4446 = vunpack.c.h.b16 %v1353
    %v4447 = vunpack.c.l.b16 %v1354
    %v4448 = vunpack.c.h.b16 %v1354
    %v4449 = vunpack.c.l.b16 %v1355
    %v4450 = vunpack.c.h.b16 %v1355
    %v4451 = vunpack.c.l.b16 %v1356
    %v4452 = vunpack.c.h.b16 %v1356
    %v4453 = vunpack.c.l.b16 %v1357
    %v4454 = vunpack.c.h.b16 %v1357
    %v4455 = vunpack.c.l.b16 %v1358
    %v4456 = vunpack.c.h.b16 %v1358
    %v4457 = vunpack.c.l.b16 %v1359
    %v4458 = vunpack.c.h.b16 %v1359
    %v4459 = vunpack.c.l.b16 %v1360
    %v4460 = vunpack.c.h.b16 %v1360
    %v4461 = vunpack.c.l.b16 %v1361
    %v4462 = vunpack.c.h.b16 %v1361
    %v4463 = vunpack.c.l.b16 %v1362
    %v4464 = vunpack.c.h.b16 %v1362
    %v4465 = vunpack.c.l.b16 %v1363
    %v4466 = vunpack.c.h.b16 %v1363
    %v4467 = vunpack.c.l.b16 %v1364
    %v4468 = vunpack.c.h.b16 %v1364
    %v4469 = vunpack.c.l.b16 %v1365
    %v4470 = vunpack.c.h.b16 %v1365
    %v4471 = vunpack.c.l.b16 %v1366
    %v4472 = vunpack.c.h.b16 %v1366
    %v4473 = vunpack.c.l.b16 %v1367
    %v4474 = vunpack.c.h.b16 %v1367
    %v4475 = vunpack.c.l.b16 %v1368
    %v4476 = vunpack.c.h.b16 %v1368
    %v4477 = vunpack.c.l.b16 %v1369
    %v4478 = vunpack.c.h.b16 %v1369
    %v4479 = vunpack.c.l.b16 %v1370
    %v4480 = vunpack.c.h.b16 %v1370
    %v4481 = vunpack.c.l.b16 %v1371
    %v4482 = vunpack.c.h.b16 %v1371
    %v4483 = vunpack.c.l.b16 %v1372
    %v4484 = vunpack.c.h.b16 %v1372
    %v4485 = vunpack.c.l.b16 %v1373
    %v4486 = vunpack.c.h.b16 %v1373
    %v4487 = vunpack.c.l.b16 %v1374
    %v4488 = vunpack.c.h.b16 %v1374
    %v4489 = vunpack.c.l.b16 %v1375
    %v4490 = vunpack.c.h.b16 %v1375
    %v4491 = vunpack.c.l.b16 %v1376
    %v4492 = vunpack.c.h.b16 %v1376
    %v4493 = vunpack.c.l.b16 %v1377
    %v4494 = vunpack.c.h.b16 %v1377
    %v4495 = vunpack.c.l.b16 %v1378
    %v4496 = vunpack.c.h.b16 %v1378
    %v4497 = vunpack.c.l.b16 %v1379
    %v4498 = vunpack.c.h.b16 %v1379
    %v4499 = vunpack.c.l.b16 %v1380
    %v4500 = vunpack.c.h.b16 %v1380
    %v4501 = vunpack.c.l.b16 %v1381
    %v4502 = vunpack.c.h.b16 %v1381
    %v4503 = vunpack.c.l.b16 %v1382
    %v4504 = vunpack.c.h.b16 %v1382
    %v4505 = vunpack.c.l.b16 %v1383
    %v4506 = vunpack.c.h.b16 %v1383
    %v4507 = vunpack.c.l.b16 %v1384
    %v4508 = vunpack.c.h.b16 %v1384
    %v4509 = vunpack.c.l.b16 %v1385
    %v4510 = vunpack.c.h.b16 %v1385
    %v4511 = vunpack.c.l.b16 %v1386
    %v4512 = vunpack.c.h.b16 %v1386
    %v4513 = vunpack.c.l.b16 %v1387
    %v4514 = vunpack.c.h.b16 %v1387
    %v4515 = vunpack.c.l.b16 %v1388
    %v4516 = vunpack.c.h.b16 %v1388
    %v4517 = vunpack.c.l.b16 %v1389
    %v4518 = vunpack.c.h.b16 %v1389
    %v4519 = vunpack.c.l.b16 %v1390
    %v4520 = vunpack.c.h.b16 %v1390
    %v4521 = vunpack.c.l.b16 %v1391
    %v4522 = vunpack.c.h.b16 %v1391
    %v4523 = vunpack.c.l.b16 %v1392
    %v4524 = vunpack.c.h.b16 %v1392
    %v4525 = vunpack.c.l.b16 %v1393
    %v4526 = vunpack.c.h.b16 %v1393
    %v4527 = vunpack.c.l.b16 %v1394
    %v4528 = vunpack.c.h.b16 %v1394
    %v4529 = vunpack.c.l.b16 %v1395
    %v4530 = vunpack.c.h.b16 %v1395
    %v4531 = vunpack.c.l.b16 %v1396
    %v4532 = vunpack.c.h.b16 %v1396
    %v4533 = vunpack.c.l.b16 %v1397
    %v4534 = vunpack.c.h.b16 %v1397
    %v4535 = vunpack.c.l.b16 %v1398
    %v4536 = vunpack.c.h.b16 %v1398
    %v4537 = vunpack.c.l.b16 %v1399
    %v4538 = vunpack.c.h.b16 %v1399
    %v4539 = vunpack.c.l.b16 %v1400
    %v4540 = vunpack.c.h.b16 %v1400
    %v4541 = vunpack.c.l.b16 %v1401
    %v4542 = vunpack.c.h.b16 %v1401
    %v4543 = vunpack.c.l.b16 %v1402
    %v4544 = vunpack.c.h.b16 %v1402
    %v4545 = vunpack.c.l.b16 %v1403
    %v4546 = vunpack.c.h.b16 %v1403
    %v4547 = vunpack.c.l.b16 %v1404
    %v4548 = vunpack.c.h.b16 %v1404
    %v4549 = vunpack.c.l.b16 %v1405
    %v4550 = vunpack.c.h.b16 %v1405
    %v4551 = vunpack.c.l.b16 %v1406
    %v4552 = vunpack.c.h.b16 %v1406
    %v4553 = vunpack.c.l.b16 %v1407
    %v4554 = vunpack.c.h.b16 %v1407
    %v4555 = vunpack.c.l.b16 %v1408
    %v4556 = vunpack.c.h.b16 %v1408
    %v4557 = vunpack.c.l.b16 %v1409
    %v4558 = vunpack.c.h.b16 %v1409
    %v4559 = vunpack.c.l.b16 %v1410
    %v4560 = vunpack.c.h.b16 %v1410
    %v4561 = vunpack.c.l.b16 %v1411
    %v4562 = vunpack.c.h.b16 %v1411
    %v4563 = vunpack.c.l.b16 %v1412
    %v4564 = vunpack.c.h.b16 %v1412
    %v4565 = vunpack.c.l.b16 %v1413
    %v4566 = vunpack.c.h.b16 %v1413
    %v4567 = vunpack.c.l.b16 %v1414
    %v4568 = vunpack.c.h.b16 %v1414
    %v4569 = vunpack.c.l.b16 %v1415
    %v4570 = vunpack.c.h.b16 %v1415
    %v4571 = vunpack.c.l.b16 %v1416
    %v4572 = vunpack.c.h.b16 %v1416
    %v4573 = vpack.c.b16 %v2541, %v2525
    %v4574 = vpack.c.b16 %v2542, %v2526
    %v4575 = vpack.c.b16 %v2543, %v2527
    %v4576 = vpack.c.b16 %v2544, %v2528
    %v4577 = vpack.c.b16 %v2545, %v2529
    %v4578 = vpack.c.b16 %v2546, %v2530
    %v4579 = vpack.c.b16 %v2547, %v2531
    %v4580 = vpack.c.b16 %v2548, %v2532
    %v4581 = vpack.c.b16 %v2549, %v2533
    %v4582 = vpack.c.b16 %v2550, %v2534
    %v4583 = vpack.c.b16 %v2551, %v2535
    %v4584 = vpack.c.b16 %v2552, %v2536
    %v4585 = vpack.c.b16 %v2553, %v2537
    %v4586 = vpack.c.b16 %v2554, %v2538
    %v4587 = vpack.c.b16 %v2555, %v2539
    %v4588 = vpack.c.b16 %v2556, %v2540
    %v4589 = vpack.c.b16 %v2573, %v2557
    %v4590 = vpack.c.b16 %v2574, %v2558
    %v4591 = vpack.c.b16 %v2575, %v2559
    %v4592 = vpack.c.b16 %v2576, %v2560
    %v4593 = vpack.c.b16 %v2577, %v2561
    %v4594 = vpack.c.b16 %v2578, %v2562
    %v4595 = vpack.c.b16 %v2579, %v2563
    %v4596 = vpack.c.b16 %v2580, %v2564
    %v4597 = vpack.c.b16 %v2581, %v2565
    %v4598 = vpack.c.b16 %v2582, %v2566
    %v4599 = vpack.c.b16 %v2583, %v2567
    %v4600 = vpack.c.b16 %v2584, %v2568
    %v4601 = vpack.c.b16 %v2585, %v2569
    %v4602 = vpack.c.b16 %v2586, %v2570
    %v4603 = vpack.c.b16 %v2587, %v2571
    %v4604 = vpack.c.b16 %v2588, %v2572
    %v4605 = vpack.c.b16 %v2605, %v2589
    %v4606 = vpack.c.b16 %v2606, %v2590
    %v4607 = vpack.c.b16 %v2607, %v2591
    %v4608 = vpack.c.b16 %v2608, %v2592
    %v4609 = vpack.c.b16 %v2609, %v2593
    %v4610 = vpack.c.b16 %v2610, %v2594
    %v4611 = vpack.c.b16 %v2611, %v2595
    %v4612 = vpack.c.b16 %v2612, %v2596
    %v4613 = vpack.c.b16 %v2613, %v2597
    %v4614 = vpack.c.b16 %v2614, %v2598
    %v4615 = vpack.c.b16 %v2615, %v2599
    %v4616 = vpack.c.b16 %v2616, %v2600
    %v4617 = vpack.c.b16 %v2617, %v2601
    %v4618 = vpack.c.b16 %v2618, %v2602
    %v4619 = vpack.c.b16 %v2619, %v2603
    %v4620 = vpack.c.b16 %v2620, %v2604
    %v4621 = vpack.c.b16 %v2637, %v2621
    %v4622 = vpack.c.b16 %v2638, %v2622
    %v4623 = vpack.c.b16 %v2639, %v2623
    %v4624 = vpack.c.b16 %v2640, %v2624
    %v4625 = vpack.c.b16 %v2641, %v2625
    %v4626 = vpack.c.b16 %v2642, %v2626
    %v4627 = vpack.c.b16 %v2643, %v2627
    %v4628 = vpack.c.b16 %v2644, %v2628
    %v4629 = vpack.c.b16 %v2645, %v2629
    %v4630 = vpack.c.b16 %v2646, %v2630
    %v4631 = vpack.c.b16 %v2647, %v2631
    %v4632 = vpack.c.b16 %v2648, %v2632
    %v4633 = vpack.c.b16 %v2649, %v2633
    %v4634 = vpack.c.b16 %v2650, %v2634
    %v4635 = vpack.c.b16 %v2651, %v2635
    %v4636 = vpack.c.b16 %v2652, %v2636
    %v4637 = vpack.c.b16 %v2669, %v2653
    %v4638 = vpack.c.b16 %v2670, %v2654
    %v4639 = vpack.c.b16 %v2671, %v2655
    %v4640 = vpack.c.b16 %v2672, %v2656
    %v4641 = vpack.c.b16 %v2673, %v2657
    %v4642 = vpack.c.b16 %v2674, %v2658
    %v4643 = vpack.c.b16 %v2675, %v2659
    %v4644 = vpack.c.b16 %v2676, %v2660
    %v4645 = vpack.c.b16 %v2677, %v2661
    %v4646 = vpack.c.b16 %v2678, %v2662
    %v4647 = vpack.c.b16 %v2679, %v2663
    %v4648 = vpack.c.b16 %v2680, %v2664
    %v4649 = vpack.c.b16 %v2681, %v2665
    %v4650 = vpack.c.b16 %v2682, %v2666
    %v4651 = vpack.c.b16 %v2683, %v2667
    %v4652 = vpack.c.b16 %v2684, %v2668
    %v4653 = vpack.c.b16 %v2701, %v2685
    %v4654 = vpack.c.b16 %v2702, %v2686
    %v4655 = vpack.c.b16 %v2703, %v2687
    %v4656 = vpack.c.b16 %v2704, %v2688
    %v4657 = vpack.c.b16 %v2705, %v2689
    %v4658 = vpack.c.b16 %v2706, %v2690
    %v4659 = vpack.c.b16 %v2707, %v2691
    %v4660 = vpack.c.b16 %v2708, %v2692
    %v4661 = vpack.c.b16 %v2709, %v2693
    %v4662 = vpack.c.b16 %v2710, %v2694
    %v4663 = vpack.c.b16 %v2711, %v2695
    %v4664 = vpack.c.b16 %v2712, %v2696
    %v4665 = vpack.c.b16 %v2713, %v2697
    %v4666 = vpack.c.b16 %v2714, %v2698
    %v4667 = vpack.c.b16 %v2715, %v2699
    %v4668 = vpack.c.b16 %v2716, %v2700
    %v4669 = vpack.c.b16 %v2733, %v2717
    %v4670 = vpack.c.b16 %v2734, %v2718
    %v4671 = vpack.c.b16 %v2735, %v2719
    %v4672 = vpack.c.b16 %v2736, %v2720
    %v4673 = vpack.c.b16 %v2737, %v2721
    %v4674 = vpack.c.b16 %v2738, %v2722
    %v4675 = vpack.c.b16 %v2739, %v2723
    %v4676 = vpack.c.b16 %v2740, %v2724
    %v4677 = vpack.c.b16 %v2741, %v2725
    %v4678 = vpack.c.b16 %v2742, %v2726
    %v4679 = vpack.c.b16 %v2743, %v2727
    %v4680 = vpack.c.b16 %v2744, %v2728
    %v4681 = vpack.c.b16 %v2745, %v2729
    %v4682 = vpack.c.b16 %v2746, %v2730
    %v4683 = vpack.c.b16 %v2747, %v2731
    %v4684 = vpack.c.b16 %v2748, %v2732
    %v4685 = vpack.c.b16 %v2765, %v2749
    %v4686 = vpack.c.b16 %v2766, %v2750
    %v4687 = vpack.c.b16 %v2767, %v2751
    %v4688 = vpack.c.b16 %v2768, %v2752
    %v4689 = vpack.c.b16 %v2769, %v2753
    %v4690 = vpack.c.b16 %v2770, %v2754
    %v4691 = vpack.c.b16 %v2771, %v2755
    %v4692 = vpack.c.b16 %v2772, %v2756
    %v4693 = vpack.c.b16 %v2773, %v2757
    %v4694 = vpack.c.b16 %v2774, %v2758
    %v4695 = vpack.c.b16 %v2775, %v2759
    %v4696 = vpack.c.b16 %v2776, %v2760
    %v4697 = vpack.c.b16 %v2777, %v2761
    %v4698 = vpack.c.b16 %v2778, %v2762
    %v4699 = vpack.c.b16 %v2779, %v2763
    %v4700 = vpack.c.b16 %v2780, %v2764
    %v4701 = vpack.c.b16 %v2797, %v2781
    %v4702 = vpack.c.b16 %v2798, %v2782
    %v4703 = vpack.c.b16 %v2799, %v2783
    %v4704 = vpack.c.b16 %v2800, %v2784
    %v4705 = vpack.c.b16 %v2801, %v2785
    %v4706 = vpack.c.b16 %v2802, %v2786
    %v4707 = vpack.c.b16 %v2803, %v2787
    %v4708 = vpack.c.b16 %v2804, %v2788
    %v4709 = vpack.c.b16 %v2805, %v2789
    %v4710 = vpack.c.b16 %v2806, %v2790
    %v4711 = vpack.c.b16 %v2807, %v2791
    %v4712 = vpack.c.b16 %v2808, %v2792
    %v4713 = vpack.c.b16 %v2809, %v2793
    %v4714 = vpack.c.b16 %v2810, %v2794
    %v4715 = vpack.c.b16 %v2811, %v2795
    %v4716 = vpack.c.b16 %v2812, %v2796
    %v4717 = vpack.c.b16 %v2829, %v2813
    %v4718 = vpack.c.b16 %v2830, %v2814
    %v4719 = vpack.c.b16 %v2831, %v2815
    %v4720 = vpack.c.b16 %v2832, %v2816
    %v4721 = vpack.c.b16 %v2833, %v2817
    %v4722 = vpack.c.b16 %v2834, %v2818
    %v4723 = vpack.c.b16 %v2835, %v2819
    %v4724 = vpack.c.b16 %v2836, %v2820
    %v4725 = vpack.c.b16 %v2837, %v2821
    %v4726 = vpack.c.b16 %v2838, %v2822
    %v4727 = vpack.c.b16 %v2839, %v2823
    %v4728 = vpack.c.b16 %v2840, %v2824
    %v4729 = vpack.c.b16 %v2841, %v2825
    %v4730 = vpack.c.b16 %v2842, %v2826
    %v4731 = vpack.c.b16 %v2843, %v2827
    %v4732 = vpack.c.b16 %v2844, %v2828
    %v4733 = vpack.c.b16 %v2861, %v2845
    %v4734 = vpack.c.b16 %v2862, %v2846
    %v4735 = vpack.c.b16 %v2863, %v2847
    %v4736 = vpack.c.b16 %v2864, %v2848
    %v4737 = vpack.c.b16 %v2865, %v2849
    %v4738 = vpack.c.b16 %v2866, %v2850
    %v4739 = vpack.c.b16 %v2867, %v2851
    %v4740 = vpack.c.b16 %v2868, %v2852
    %v4741 = vpack.c.b16 %v2869, %v2853
    %v4742 = vpack.c.b16 %v2870, %v2854
    %v4743 = vpack.c.b16 %v2871, %v2855
    %v4744 = vpack.c.b16 %v2872, %v2856
    %v4745 = vpack.c.b16 %v2873, %v2857
    %v4746 = vpack.c.b16 %v2874, %v2858
    %v4747 = vpack.c.b16 %v2875, %v2859
    %v4748 = vpack.c.b16 %v2876, %v2860
    %v4749 = vpack.c.b16 %v2893, %v2877
    %v4750 = vpack.c.b16 %v2894, %v2878
    %v4751 = vpack.c.b16 %v2895, %v2879
    %v4752 = vpack.c.b16 %v2896, %v2880
    %v4753 = vpack.c.b16 %v2897, %v2881
    %v4754 = vpack.c.b16 %v2898, %v2882
    %v4755 = vpack.c.b16 %v2899, %v2883
    %v4756 = vpack.c.b16 %v2900, %v2884
    %v4757 = vpack.c.b16 %v2901, %v2885
    %v4758 = vpack.c.b16 %v2902, %v2886
    %v4759 = vpack.c.b16 %v2903, %v2887
    %v4760 = vpack.c.b16 %v2904, %v2888
    %v4761 = vpack.c.b16 %v2905, %v2889
    %v4762 = vpack.c.b16 %v2906, %v2890
    %v4763 = vpack.c.b16 %v2907, %v2891
    %v4764 = vpack.c.b16 %v2908, %v2892
    %v4765 = vpack.c.b16 %v2925, %v2909
    %v4766 = vpack.c.b16 %v2926, %v2910
    %v4767 = vpack.c.b16 %v2927, %v2911
    %v4768 = vpack.c.b16 %v2928, %v2912
    %v4769 = vpack.c.b16 %v2929, %v2913
    %v4770 = vpack.c.b16 %v2930, %v2914
    %v4771 = vpack.c.b16 %v2931, %v2915
    %v4772 = vpack.c.b16 %v2932, %v2916
    %v4773 = vpack.c.b16 %v2933, %v2917
    %v4774 = vpack.c.b16 %v2934, %v2918
    %v4775 = vpack.c.b16 %v2935, %v2919
    %v4776 = vpack.c.b16 %v2936, %v2920
    %v4777 = vpack.c.b16 %v2937, %v2921
    %v4778 = vpack.c.b16 %v2938, %v2922
    %v4779 = vpack.c.b16 %v2939, %v2923
    %v4780 = vpack.c.b16 %v2940, %v2924
    %v4781 = vpack.c.b16 %v2957, %v2941
    %v4782 = vpack.c.b16 %v2958, %v2942
    %v4783 = vpack.c.b16 %v2959, %v2943
    %v4784 = vpack.c.b16 %v2960, %v2944
    %v4785 = vpack.c.b16 %v2961, %v2945
    %v4786 = vpack.c.b16 %v2962, %v2946
    %v4787 = vpack.c.b16 %v2963, %v2947
    %v4788 = vpack.c.b16 %v2964, %v2948
    %v4789 = vpack.c.b16 %v2965, %v2949
    %v4790 = vpack.c.b16 %v2966, %v2950
    %v4791 = vpack.c.b16 %v2967, %v2951
    %v4792 = vpack.c.b16 %v2968, %v2952
    %v4793 = vpack.c.b16 %v2969, %v2953
    %v4794 = vpack.c.b16 %v2970, %v2954
    %v4795 = vpack.c.b16 %v2971, %v2955
    %v4796 = vpack.c.b16 %v2972, %v2956
    %v4797 = vpack.c.b16 %v2989, %v2973
    %v4798 = vpack.c.b16 %v2990, %v2974
    %v4799 = vpack.c.b16 %v2991, %v2975
    %v4800 = vpack.c.b16 %v2992, %v2976
    %v4801 = vpack.c.b16 %v2993, %v2977
    %v4802 = vpack.c.b16 %v2994, %v2978
    %v4803 = vpack.c.b16 %v2995, %v2979
    %v4804 = vpack.c.b16 %v2996, %v2980
    %v4805 = vpack.c.b16 %v2997, %v2981
    %v4806 = vpack.c.b16 %v2998, %v2982
    %v4807 = vpack.c.b16 %v2999, %v2983
    %v4808 = vpack.c.b16 %v3000, %v2984
    %v4809 = vpack.c.b16 %v3001, %v2985
    %v4810 = vpack.c.b16 %v3002, %v2986
    %v4811 = vpack.c.b16 %v3003, %v2987
    %v4812 = vpack.c.b16 %v3004, %v2988
    %v4813 = vpack.c.b16 %v3021, %v3005
    %v4814 = vpack.c.b16 %v3022, %v3006
    %v4815 = vpack.c.b16 %v3023, %v3007
    %v4816 = vpack.c.b16 %v3024, %v3008
    %v4817 = vpack.c.b16 %v3025, %v3009
    %v4818 = vpack.c.b16 %v3026, %v3010
    %v4819 = vpack.c.b16 %v3027, %v3011
    %v4820 = vpack.c.b16 %v3028, %v3012
    %v4821 = vpack.c.b16 %v3029, %v3013
    %v4822 = vpack.c.b16 %v3030, %v3014
    %v4823 = vpack.c.b16 %v3031, %v3015
    %v4824 = vpack.c.b16 %v3032, %v3016
    %v4825 = vpack.c.b16 %v3033, %v3017
    %v4826 = vpack.c.b16 %v3034, %v3018
    %v4827 = vpack.c.b16 %v3035, %v3019
    %v4828 = vpack.c.b16 %v3036, %v3020
    %v4829 = vpack.c.b16 %v3053, %v3037
    %v4830 = vpack.c.b16 %v3054, %v3038
    %v4831 = vpack.c.b16 %v3055, %v3039
    %v4832 = vpack.c.b16 %v3056, %v3040
    %v4833 = vpack.c.b16 %v3057, %v3041
    %v4834 = vpack.c.b16 %v3058, %v3042
    %v4835 = vpack.c.b16 %v3059, %v3043
    %v4836 = vpack.c.b16 %v3060, %v3044
    %v4837 = vpack.c.b16 %v3061, %v3045
    %v4838 = vpack.c.b16 %v3062, %v3046
    %v4839 = vpack.c.b16 %v3063, %v3047
    %v4840 = vpack.c.b16 %v3064, %v3048
    %v4841 = vpack.c.b16 %v3065, %v3049
    %v4842 = vpack.c.b16 %v3066, %v3050
    %v4843 = vpack.c.b16 %v3067, %v3051
    %v4844 = vpack.c.b16 %v3068, %v3052
    %v4845 = vpack.c.b16 %v3085, %v3069
    %v4846 = vpack.c.b16 %v3086, %v3070
    %v4847 = vpack.c.b16 %v3087, %v3071
    %v4848 = vpack.c.b16 %v3088, %v3072
    %v4849 = vpack.c.b16 %v3089, %v3073
    %v4850 = vpack.c.b16 %v3090, %v3074
    %v4851 = vpack.c.b16 %v3091, %v3075
    %v4852 = vpack.c.b16 %v3092, %v3076
    %v4853 = vpack.c.b16 %v3093, %v3077
    %v4854 = vpack.c.b16 %v3094, %v3078
    %v4855 = vpack.c.b16 %v3095, %v3079
    %v4856 = vpack.c.b16 %v3096, %v3080
    %v4857 = vpack.c.b16 %v3097, %v3081
    %v4858 = vpack.c.b16 %v3098, %v3082
    %v4859 = vpack.c.b16 %v3099, %v3083
    %v4860 = vpack.c.b16 %v3100, %v3084
    %v4861 = vpack.c.b16 %v3117, %v3101
    %v4862 = vpack.c.b16 %v3118, %v3102
    %v4863 = vpack.c.b16 %v3119, %v3103
    %v4864 = vpack.c.b16 %v3120, %v3104
    %v4865 = vpack.c.b16 %v3121, %v3105
    %v4866 = vpack.c.b16 %v3122, %v3106
    %v4867 = vpack.c.b16 %v3123, %v3107
    %v4868 = vpack.c.b16 %v3124, %v3108
    %v4869 = vpack.c.b16 %v3125, %v3109
    %v4870 = vpack.c.b16 %v3126, %v3110
    %v4871 = vpack.c.b16 %v3127, %v3111
    %v4872 = vpack.c.b16 %v3128, %v3112
    %v4873 = vpack.c.b16 %v3129, %v3113
    %v4874 = vpack.c.b16 %v3130, %v3114
    %v4875 = vpack.c.b16 %v3131, %v3115
    %v4876 = vpack.c.b16 %v3132, %v3116
    %v4877 = vpack.c.b16 %v3149, %v3133
    %v4878 = vpack.c.b16 %v3150, %v3134
    %v4879 = vpack.c.b16 %v3151, %v3135
    %v4880 = vpack.c.b16 %v3152, %v3136
    %v4881 = vpack.c.b16 %v3153, %v3137
    %v4882 = vpack.c.b16 %v3154, %v3138
    %v4883 = vpack.c.b16 %v3155, %v3139
    %v4884 = vpack.c.b16 %v3156, %v3140
    %v4885 = vpack.c.b16 %v3157, %v3141
    %v4886 = vpack.c.b16 %v3158, %v3142
    %v4887 = vpack.c.b16 %v3159, %v3143
    %v4888 = vpack.c.b16 %v3160, %v3144
    %v4889 = vpack.c.b16 %v3161, %v3145
    %v4890 = vpack.c.b16 %v3162, %v3146
    %v4891 = vpack.c.b16 %v3163, %v3147
    %v4892 = vpack.c.b16 %v3164, %v3148
    %v4893 = vpack.c.b16 %v3181, %v3165
    %v4894 = vpack.c.b16 %v3182, %v3166
    %v4895 = vpack.c.b16 %v3183, %v3167
    %v4896 = vpack.c.b16 %v3184, %v3168
    %v4897 = vpack.c.b16 %v3185, %v3169
    %v4898 = vpack.c.b16 %v3186, %v3170
    %v4899 = vpack.c.b16 %v3187, %v3171
    %v4900 = vpack.c.b16 %v3188, %v3172
    %v4901 = vpack.c.b16 %v3189, %v3173
    %v4902 = vpack.c.b16 %v3190, %v3174
    %v4903 = vpack.c.b16 %v3191, %v3175
    %v4904 = vpack.c.b16 %v3192, %v3176
    %v4905 = vpack.c.b16 %v3193, %v3177
    %v4906 = vpack.c.b16 %v3194, %v3178
    %v4907 = vpack.c.b16 %v3195, %v3179
    %v4908 = vpack.c.b16 %v3196, %v3180
    %v4909 = vpack.c.b16 %v3213, %v3197
    %v4910 = vpack.c.b16 %v3214, %v3198
    %v4911 = vpack.c.b16 %v3215, %v3199
    %v4912 = vpack.c.b16 %v3216, %v3200
    %v4913 = vpack.c.b16 %v3217, %v3201
    %v4914 = vpack.c.b16 %v3218, %v3202
    %v4915 = vpack.c.b16 %v3219, %v3203
    %v4916 = vpack.c.b16 %v3220, %v3204
    %v4917 = vpack.c.b16 %v3221, %v3205
    %v4918 = vpack.c.b16 %v3222, %v3206
    %v4919 = vpack.c.b16 %v3223, %v3207
    %v4920 = vpack.c.b16 %v3224, %v3208
    %v4921 = vpack.c.b16 %v3225, %v3209
    %v4922 = vpack.c.b16 %v3226, %v3210
    %v4923 = vpack.c.b16 %v3227, %v3211
    %v4924 = vpack.c.b16 %v3228, %v3212
    %v4925 = vpack.c.b16 %v3245, %v3229
    %v4926 = vpack.c.b16 %v3246, %v3230
    %v4927 = vpack.c.b16 %v3247, %v3231
    %v4928 = vpack.c.b16 %v3248, %v3232
    %v4929 = vpack.c.b16 %v3249, %v3233
    %v4930 = vpack.c.b16 %v3250, %v3234
    %v4931 = vpack.c.b16 %v3251, %v3235
    %v4932 = vpack.c.b16 %v3252, %v3236
    %v4933 = vpack.c.b16 %v3253, %v3237
    %v4934 = vpack.c.b16 %v3254, %v3238
    %v4935 = vpack.c.b16 %v3255, %v3239
    %v4936 = vpack.c.b16 %v3256, %v3240
    %v4937 = vpack.c.b16 %v3257, %v3241
    %v4938 = vpack.c.b16 %v3258, %v3242
    %v4939 = vpack.c.b16 %v3259, %v3243
    %v4940 = vpack.c.b16 %v3260, %v3244
    %v4941 = vpack.c.b16 %v3277, %v3261
    %v4942 = vpack.c.b16 %v3278, %v3262
    %v4943 = vpack.c.b16 %v3279, %v3263
    %v4944 = vpack.c.b16 %v3280, %v3264
    %v4945 = vpack.c.b16 %v3281, %v3265
    %v4946 = vpack.c.b16 %v3282, %v3266
    %v4947 = vpack.c.b16 %v3283, %v3267
    %v4948 = vpack.c.b16 %v3284, %v3268
    %v4949 = vpack.c.b16 %v3285, %v3269
    %v4950 = vpack.c.b16 %v3286, %v3270
    %v4951 = vpack.c.b16 %v3287, %v3271
    %v4952 = vpack.c.b16 %v3288, %v3272
    %v4953 = vpack.c.b16 %v3289, %v3273
    %v4954 = vpack.c.b16 %v3290, %v3274
    %v4955 = vpack.c.b16 %v3291, %v3275
    %v4956 = vpack.c.b16 %v3292, %v3276
    %v4957 = vpack.c.b16 %v3309, %v3293
    %v4958 = vpack.c.b16 %v3310, %v3294
    %v4959 = vpack.c.b16 %v3311, %v3295
    %v4960 = vpack.c.b16 %v3312, %v3296
    %v4961 = vpack.c.b16 %v3313, %v3297
    %v4962 = vpack.c.b16 %v3314, %v3298
    %v4963 = vpack.c.b16 %v3315, %v3299
    %v4964 = vpack.c.b16 %v3316, %v3300
    %v4965 = vpack.c.b16 %v3317, %v3301
    %v4966 = vpack.c.b16 %v3318, %v3302
    %v4967 = vpack.c.b16 %v3319, %v3303
    %v4968 = vpack.c.b16 %v3320, %v3304
    %v4969 = vpack.c.b16 %v3321, %v3305
    %v4970 = vpack.c.b16 %v3322, %v3306
    %v4971 = vpack.c.b16 %v3323, %v3307
    %v4972 = vpack.c.b16 %v3324, %v3308
    %v4973 = vpack.c.b16 %v3341, %v3325
    %v4974 = vpack.c.b16 %v3342, %v3326
    %v4975 = vpack.c.b16 %v3343, %v3327
    %v4976 = vpack.c.b16 %v3344, %v3328
    %v4977 = vpack.c.b16 %v3345, %v3329
    %v4978 = vpack.c.b16 %v3346, %v3330
    %v4979 = vpack.c.b16 %v3347, %v3331
    %v4980 = vpack.c.b16 %v3348, %v3332
    %v4981 = vpack.c.b16 %v3349, %v3333
    %v4982 = vpack.c.b16 %v3350, %v3334
    %v4983 = vpack.c.b16 %v3351, %v3335
    %v4984 = vpack.c.b16 %v3352, %v3336
    %v4985 = vpack.c.b16 %v3353, %v3337
    %v4986 = vpack.c.b16 %v3354, %v3338
    %v4987 = vpack.c.b16 %v3355, %v3339
    %v4988 = vpack.c.b16 %v3356, %v3340
    %v4989 = vpack.c.b16 %v3373, %v3357
    %v4990 = vpack.c.b16 %v3374, %v3358
    %v4991 = vpack.c.b16 %v3375, %v3359
    %v4992 = vpack.c.b16 %v3376, %v3360
    %v4993 = vpack.c.b16 %v3377, %v3361
    %v4994 = vpack.c.b16 %v3378, %v3362
    %v4995 = vpack.c.b16 %v3379, %v3363
    %v4996 = vpack.c.b16 %v3380, %v3364
    %v4997 = vpack.c.b16 %v3381, %v3365
    %v4998 = vpack.c.b16 %v3382, %v3366
    %v4999 = vpack.c.b16 %v3383, %v3367
    %v5000 = vpack.c.b16 %v3384, %v3368
    %v5001 = vpack.c.b16 %v3385, %v3369
    %v5002 = vpack.c.b16 %v3386, %v3370
    %v5003 = vpack.c.b16 %v3387, %v3371
    %v5004 = vpack.c.b16 %v3388, %v3372
    %v5005 = vpack.c.b16 %v3405, %v3389
    %v5006 = vpack.c.b16 %v3406, %v3390
    %v5007 = vpack.c.b16 %v3407, %v3391
    %v5008 = vpack.c.b16 %v3408, %v3392
    %v5009 = vpack.c.b16 %v3409, %v3393
    %v5010 = vpack.c.b16 %v3410, %v3394
    %v5011 = vpack.c.b16 %v3411, %v3395
    %v5012 = vpack.c.b16 %v3412, %v3396
    %v5013 = vpack.c.b16 %v3413, %v3397
    %v5014 = vpack.c.b16 %v3414, %v3398
    %v5015 = vpack.c.b16 %v3415, %v3399
    %v5016 = vpack.c.b16 %v3416, %v3400
    %v5017 = vpack.c.b16 %v3417, %v3401
    %v5018 = vpack.c.b16 %v3418, %v3402
    %v5019 = vpack.c.b16 %v3419, %v3403
    %v5020 = vpack.c.b16 %v3420, %v3404
    %v5021 = vpack.c.b16 %v3437, %v3421
    %v5022 = vpack.c.b16 %v3438, %v3422
    %v5023 = vpack.c.b16 %v3439, %v3423
    %v5024 = vpack.c.b16 %v3440, %v3424
    %v5025 = vpack.c.b16 %v3441, %v3425
    %v5026 = vpack.c.b16 %v3442, %v3426
    %v5027 = vpack.c.b16 %v3443, %v3427
    %v5028 = vpack.c.b16 %v3444, %v3428
    %v5029 = vpack.c.b16 %v3445, %v3429
    %v5030 = vpack.c.b16 %v3446, %v3430
    %v5031 = vpack.c.b16 %v3447, %v3431
    %v5032 = vpack.c.b16 %v3448, %v3432
    %v5033 = vpack.c.b16 %v3449, %v3433
    %v5034 = vpack.c.b16 %v3450, %v3434
    %v5035 = vpack.c.b16 %v3451, %v3435
    %v5036 = vpack.c.b16 %v3452, %v3436
    %v5037 = vpack.c.b16 %v3469, %v3453
    %v5038 = vpack.c.b16 %v3470, %v3454
    %v5039 = vpack.c.b16 %v3471, %v3455
    %v5040 = vpack.c.b16 %v3472, %v3456
    %v5041 = vpack.c.b16 %v3473, %v3457
    %v5042 = vpack.c.b16 %v3474, %v3458
    %v5043 = vpack.c.b16 %v3475, %v3459
    %v5044 = vpack.c.b16 %v3476, %v3460
    %v5045 = vpack.c.b16 %v3477, %v3461
    %v5046 = vpack.c.b16 %v3478, %v3462
    %v5047 = vpack.c.b16 %v3479, %v3463
    %v5048 = vpack.c.b16 %v3480, %v3464
    %v5049 = vpack.c.b16 %v3481, %v3465
    %v5050 = vpack.c.b16 %v3482, %v3466
    %v5051 = vpack.c.b16 %v3483, %v3467
    %v5052 = vpack.c.b16 %v3484, %v3468
    %v5053 = vpack.c.b16 %v3501, %v3485
    %v5054 = vpack.c.b16 %v3502, %v3486
    %v5055 = vpack.c.b16 %v3503, %v3487
    %v5056 = vpack.c.b16 %v3504, %v3488
    %v5057 = vpack.c.b16 %v3505, %v3489
    %v5058 = vpack.c.b16 %v3506, %v3490
    %v5059 = vpack.c.b16 %v3507, %v3491
    %v5060 = vpack.c.b16 %v3508, %v3492
    %v5061 = vpack.c.b16 %v3509, %v3493
    %v5062 = vpack.c.b16 %v3510, %v3494
    %v5063 = vpack.c.b16 %v3511, %v3495
    %v5064 = vpack.c.b16 %v3512, %v3496
    %v5065 = vpack.c.b16 %v3513, %v3497
    %v5066 = vpack.c.b16 %v3514, %v3498
    %v5067 = vpack.c.b16 %v3515, %v3499
    %v5068 = vpack.c.b16 %v3516, %v3500
    %v5069 = vpack.c.b16 %v3533, %v3517
    %v5070 = vpack.c.b16 %v3534, %v3518
    %v5071 = vpack.c.b16 %v3535, %v3519
    %v5072 = vpack.c.b16 %v3536, %v3520
    %v5073 = vpack.c.b16 %v3537, %v3521
    %v5074 = vpack.c.b16 %v3538, %v3522
    %v5075 = vpack.c.b16 %v3539, %v3523
    %v5076 = vpack.c.b16 %v3540, %v3524
    %v5077 = vpack.c.b16 %v3541, %v3525
    %v5078 = vpack.c.b16 %v3542, %v3526
    %v5079 = vpack.c.b16 %v3543, %v3527
    %v5080 = vpack.c.b16 %v3544, %v3528
    %v5081 = vpack.c.b16 %v3545, %v3529
    %v5082 = vpack.c.b16 %v3546, %v3530
    %v5083 = vpack.c.b16 %v3547, %v3531
    %v5084 = vpack.c.b16 %v3548, %v3532
    %v5085 = vpack.c.b16 %v3565, %v3549
    %v5086 = vpack.c.b16 %v3566, %v3550
    %v5087 = vpack.c.b16 %v3567, %v3551
    %v5088 = vpack.c.b16 %v3568, %v3552
    %v5089 = vpack.c.b16 %v3569, %v3553
    %v5090 = vpack.c.b16 %v3570, %v3554
    %v5091 = vpack.c.b16 %v3571, %v3555
    %v5092 = vpack.c.b16 %v3572, %v3556
    %v5093 = vpack.c.b16 %v3573, %v3557
    %v5094 = vpack.c.b16 %v3574, %v3558
    %v5095 = vpack.c.b16 %v3575, %v3559
    %v5096 = vpack.c.b16 %v3576, %v3560
    %v5097 = vpack.c.b16 %v3577, %v3561
    %v5098 = vpack.c.b16 %v3578, %v3562
    %v5099 = vpack.c.b16 %v3579, %v3563
    %v5100 = vpack.c.b16 %v3580, %v3564
    %v5101 = vpack.c.b16 %v3597, %v3581
    %v5102 = vpack.c.b16 %v3598, %v3582
    %v5103 = vpack.c.b16 %v3599, %v3583
    %v5104 = vpack.c.b16 %v3600, %v3584
    %v5105 = vpack.c.b16 %v3601, %v3585
    %v5106 = vpack.c.b16 %v3602, %v3586
    %v5107 = vpack.c.b16 %v3603, %v3587
    %v5108 = vpack.c.b16 %v3604, %v3588
    %v5109 = vpack.c.b16 %v3605, %v3589
    %v5110 = vpack.c.b16 %v3606, %v3590
    %v5111 = vpack.c.b16 %v3607, %v3591
    %v5112 = vpack.c.b16 %v3608, %v3592
    %v5113 = vpack.c.b16 %v3609, %v3593
    %v5114 = vpack.c.b16 %v3610, %v3594
    %v5115 = vpack.c.b16 %v3611, %v3595
    %v5116 = vpack.c.b16 %v3612, %v3596
    %v5117 = vpack.c.b16 %v3629, %v3613
    %v5118 = vpack.c.b16 %v3630, %v3614
    %v5119 = vpack.c.b16 %v3631, %v3615
    %v5120 = vpack.c.b16 %v3632, %v3616
    %v5121 = vpack.c.b16 %v3633, %v3617
    %v5122 = vpack.c.b16 %v3634, %v3618
    %v5123 = vpack.c.b16 %v3635, %v3619
    %v5124 = vpack.c.b16 %v3636, %v3620
    %v5125 = vpack.c.b16 %v3637, %v3621
    %v5126 = vpack.c.b16 %v3638, %v3622
    %v5127 = vpack.c.b16 %v3639, %v3623
    %v5128 = vpack.c.b16 %v3640, %v3624
    %v5129 = vpack.c.b16 %v3641, %v3625
    %v5130 = vpack.c.b16 %v3642, %v3626
    %v5131 = vpack.c.b16 %v3643, %v3627
    %v5132 = vpack.c.b16 %v3644, %v3628
    %v5133 = vpack.c.b16 %v3661, %v3645
    %v5134 = vpack.c.b16 %v3662, %v3646
    %v5135 = vpack.c.b16 %v3663, %v3647
    %v5136 = vpack.c.b16 %v3664, %v3648
    %v5137 = vpack.c.b16 %v3665, %v3649
    %v5138 = vpack.c.b16 %v3666, %v3650
    %v5139 = vpack.c.b16 %v3667, %v3651
    %v5140 = vpack.c.b16 %v3668, %v3652
    %v5141 = vpack.c.b16 %v3669, %v3653
    %v5142 = vpack.c.b16 %v3670, %v3654
    %v5143 = vpack.c.b16 %v3671, %v3655
    %v5144 = vpack.c.b16 %v3672, %v3656
    %v5145 = vpack.c.b16 %v3673, %v3657
    %v5146 = vpack.c.b16 %v3674, %v3658
    %v5147 = vpack.c.b16 %v3675, %v3659
    %v5148 = vpack.c.b16 %v3676, %v3660
    %v5149 = vpack.c.b16 %v3693, %v3677
    %v5150 = vpack.c.b16 %v3694, %v3678
    %v5151 = vpack.c.b16 %v3695, %v3679
    %v5152 = vpack.c.b16 %v3696, %v3680
    %v5153 = vpack.c.b16 %v3697, %v3681
    %v5154 = vpack.c.b16 %v3698, %v3682
    %v5155 = vpack.c.b16 %v3699, %v3683
    %v5156 = vpack.c.b16 %v3700, %v3684
    %v5157 = vpack.c.b16 %v3701, %v3685
    %v5158 = vpack.c.b16 %v3702, %v3686
    %v5159 = vpack.c.b16 %v3703, %v3687
    %v5160 = vpack.c.b16 %v3704, %v3688
    %v5161 = vpack.c.b16 %v3705, %v3689
    %v5162 = vpack.c.b16 %v3706, %v3690
    %v5163 = vpack.c.b16 %v3707, %v3691
    %v5164 = vpack.c.b16 %v3708, %v3692
    %v5165 = vpack.c.b16 %v3725, %v3709
    %v5166 = vpack.c.b16 %v3726, %v3710
    %v5167 = vpack.c.b16 %v3727, %v3711
    %v5168 = vpack.c.b16 %v3728, %v3712
    %v5169 = vpack.c.b16 %v3729, %v3713
    %v5170 = vpack.c.b16 %v3730, %v3714
    %v5171 = vpack.c.b16 %v3731, %v3715
    %v5172 = vpack.c.b16 %v3732, %v3716
    %v5173 = vpack.c.b16 %v3733, %v3717
    %v5174 = vpack.c.b16 %v3734, %v3718
    %v5175 = vpack.c.b16 %v3735, %v3719
    %v5176 = vpack.c.b16 %v3736, %v3720
    %v5177 = vpack.c.b16 %v3737, %v3721
    %v5178 = vpack.c.b16 %v3738, %v3722
    %v5179 = vpack.c.b16 %v3739, %v3723
    %v5180 = vpack.c.b16 %v3740, %v3724
    %v5181 = vpack.c.b16 %v3757, %v3741
    %v5182 = vpack.c.b16 %v3758, %v3742
    %v5183 = vpack.c.b16 %v3759, %v3743
    %v5184 = vpack.c.b16 %v3760, %v3744
    %v5185 = vpack.c.b16 %v3761, %v3745
    %v5186 = vpack.c.b16 %v3762, %v3746
    %v5187 = vpack.c.b16 %v3763, %v3747
    %v5188 = vpack.c.b16 %v3764, %v3748
    %v5189 = vpack.c.b16 %v3765, %v3749
    %v5190 = vpack.c.b16 %v3766, %v3750
    %v5191 = vpack.c.b16 %v3767, %v3751
    %v5192 = vpack.c.b16 %v3768, %v3752
    %v5193 = vpack.c.b16 %v3769, %v3753
    %v5194 = vpack.c.b16 %v3770, %v3754
    %v5195 = vpack.c.b16 %v3771, %v3755
    %v5196 = vpack.c.b16 %v3772, %v3756
    %v5197 = vpack.c.b16 %v3789, %v3773
    %v5198 = vpack.c.b16 %v3790, %v3774
    %v5199 = vpack.c.b16 %v3791, %v3775
    %v5200 = vpack.c.b16 %v3792, %v3776
    %v5201 = vpack.c.b16 %v3793, %v3777
    %v5202 = vpack.c.b16 %v3794, %v3778
    %v5203 = vpack.c.b16 %v3795, %v3779
    %v5204 = vpack.c.b16 %v3796, %v3780
    %v5205 = vpack.c.b16 %v3797, %v3781
    %v5206 = vpack.c.b16 %v3798, %v3782
    %v5207 = vpack.c.b16 %v3799, %v3783
    %v5208 = vpack.c.b16 %v3800, %v3784
    %v5209 = vpack.c.b16 %v3801, %v3785
    %v5210 = vpack.c.b16 %v3802, %v3786
    %v5211 = vpack.c.b16 %v3803, %v3787
    %v5212 = vpack.c.b16 %v3804, %v3788
    %v5213 = vpack.c.b16 %v3821, %v3805
    %v5214 = vpack.c.b16 %v3822, %v3806
    %v5215 = vpack.c.b16 %v3823, %v3807
    %v5216 = vpack.c.b16 %v3824, %v3808
    %v5217 = vpack.c.b16 %v3825, %v3809
    %v5218 = vpack.c.b16 %v3826, %v3810
    %v5219 = vpack.c.b16 %v3827, %v3811
    %v5220 = vpack.c.b16 %v3828, %v3812
    %v5221 = vpack.c.b16 %v3829, %v3813
    %v5222 = vpack.c.b16 %v3830, %v3814
    %v5223 = vpack.c.b16 %v3831, %v3815
    %v5224 = vpack.c.b16 %v3832, %v3816
    %v5225 = vpack.c.b16 %v3833, %v3817
    %v5226 = vpack.c.b16 %v3834, %v3818
    %v5227 = vpack.c.b16 %v3835, %v3819
    %v5228 = vpack.c.b16 %v3836, %v3820
    %v5229 = vpack.c.b16 %v3853, %v3837
    %v5230 = vpack.c.b16 %v3854, %v3838
    %v5231 = vpack.c.b16 %v3855, %v3839
    %v5232 = vpack.c.b16 %v3856, %v3840
    %v5233 = vpack.c.b16 %v3857, %v3841
    %v5234 = vpack.c.b16 %v3858, %v3842
    %v5235 = vpack.c.b16 %v3859, %v3843
    %v5236 = vpack.c.b16 %v3860, %v3844
    %v5237 = vpack.c.b16 %v3861, %v3845
    %v5238 = vpack.c.b16 %v3862, %v3846
    %v5239 = vpack.c.b16 %v3863, %v3847
    %v5240 = vpack.c.b16 %v3864, %v3848
    %v5241 = vpack.c.b16 %v3865, %v3849
    %v5242 = vpack.c.b16 %v3866, %v3850
    %v5243 = vpack.c.b16 %v3867, %v3851
    %v5244 = vpack.c.b16 %v3868, %v3852
    %v5245 = vpack.c.b16 %v3885, %v3869
    %v5246 = vpack.c.b16 %v3886, %v3870
    %v5247 = vpack.c.b16 %v3887, %v3871
    %v5248 = vpack.c.b16 %v3888, %v3872
    %v5249 = vpack.c.b16 %v3889, %v3873
    %v5250 = vpack.c.b16 %v3890, %v3874
    %v5251 = vpack.c.b16 %v3891, %v3875
    %v5252 = vpack.c.b16 %v3892, %v3876
    %v5253 = vpack.c.b16 %v3893, %v3877
    %v5254 = vpack.c.b16 %v3894, %v3878
    %v5255 = vpack.c.b16 %v3895, %v3879
    %v5256 = vpack.c.b16 %v3896, %v3880
    %v5257 = vpack.c.b16 %v3897, %v3881
    %v5258 = vpack.c.b16 %v3898, %v3882
    %v5259 = vpack.c.b16 %v3899, %v3883
    %v5260 = vpack.c.b16 %v3900, %v3884
    %v5261 = vpack.c.b16 %v3917, %v3901
    %v5262 = vpack.c.b16 %v3918, %v3902
    %v5263 = vpack.c.b16 %v3919, %v3903
    %v5264 = vpack.c.b16 %v3920, %v3904
    %v5265 = vpack.c.b16 %v3921, %v3905
    %v5266 = vpack.c.b16 %v3922, %v3906
    %v5267 = vpack.c.b16 %v3923, %v3907
    %v5268 = vpack.c.b16 %v3924, %v3908
    %v5269 = vpack.c.b16 %v3925, %v3909
    %v5270 = vpack.c.b16 %v3926, %v3910
    %v5271 = vpack.c.b16 %v3927, %v3911
    %v5272 = vpack.c.b16 %v3928, %v3912
    %v5273 = vpack.c.b16 %v3929, %v3913
    %v5274 = vpack.c.b16 %v3930, %v3914
    %v5275 = vpack.c.b16 %v3931, %v3915
    %v5276 = vpack.c.b16 %v3932, %v3916
    %v5277 = vpack.c.b16 %v3949, %v3933
    %v5278 = vpack.c.b16 %v3950, %v3934
    %v5279 = vpack.c.b16 %v3951, %v3935
    %v5280 = vpack.c.b16 %v3952, %v3936
    %v5281 = vpack.c.b16 %v3953, %v3937
    %v5282 = vpack.c.b16 %v3954, %v3938
    %v5283 = vpack.c.b16 %v3955, %v3939
    %v5284 = vpack.c.b16 %v3956, %v3940
    %v5285 = vpack.c.b16 %v3957, %v3941
    %v5286 = vpack.c.b16 %v3958, %v3942
    %v5287 = vpack.c.b16 %v3959, %v3943
    %v5288 = vpack.c.b16 %v3960, %v3944
    %v5289 = vpack.c.b16 %v3961, %v3945
    %v5290 = vpack.c.b16 %v3962, %v3946
    %v5291 = vpack.c.b16 %v3963, %v3947
    %v5292 = vpack.c.b16 %v3964, %v3948
    %v5293 = vpack.c.b16 %v3981, %v3965
    %v5294 = vpack.c.b16 %v3982, %v3966
    %v5295 = vpack.c.b16 %v3983, %v3967
    %v5296 = vpack.c.b16 %v3984, %v3968
    %v5297 = vpack.c.b16 %v3985, %v3969
    %v5298 = vpack.c.b16 %v3986, %v3970
    %v5299 = vpack.c.b16 %v3987, %v3971
    %v5300 = vpack.c.b16 %v3988, %v3972
    %v5301 = vpack.c.b16 %v3989, %v3973
    %v5302 = vpack.c.b16 %v3990, %v3974
    %v5303 = vpack.c.b16 %v3991, %v3975
    %v5304 = vpack.c.b16 %v3992, %v3976
    %v5305 = vpack.c.b16 %v3993, %v3977
    %v5306 = vpack.c.b16 %v3994, %v3978
    %v5307 = vpack.c.b16 %v3995, %v3979
    %v5308 = vpack.c.b16 %v3996, %v3980
    %v5309 = vpack.c.b16 %v4013, %v3997
    %v5310 = vpack.c.b16 %v4014, %v3998
    %v5311 = vpack.c.b16 %v4015, %v3999
    %v5312 = vpack.c.b16 %v4016, %v4000
    %v5313 = vpack.c.b16 %v4017, %v4001
    %v5314 = vpack.c.b16 %v4018, %v4002
    %v5315 = vpack.c.b16 %v4019, %v4003
    %v5316 = vpack.c.b16 %v4020, %v4004
    %v5317 = vpack.c.b16 %v4021, %v4005
    %v5318 = vpack.c.b16 %v4022, %v4006
    %v5319 = vpack.c.b16 %v4023, %v4007
    %v5320 = vpack.c.b16 %v4024, %v4008
    %v5321 = vpack.c.b16 %v4025, %v4009
    %v5322 = vpack.c.b16 %v4026, %v4010
    %v5323 = vpack.c.b16 %v4027, %v4011
    %v5324 = vpack.c.b16 %v4028, %v4012
    %v5325 = vpack.c.b16 %v4045, %v4029
    %v5326 = vpack.c.b16 %v4046, %v4030
    %v5327 = vpack.c.b16 %v4047, %v4031
    %v5328 = vpack.c.b16 %v4048, %v4032
    %v5329 = vpack.c.b16 %v4049, %v4033
    %v5330 = vpack.c.b16 %v4050, %v4034
    %v5331 = vpack.c.b16 %v4051, %v4035
    %v5332 = vpack.c.b16 %v4052, %v4036
    %v5333 = vpack.c.b16 %v4053, %v4037
    %v5334 = vpack.c.b16 %v4054, %v4038
    %v5335 = vpack.c.b16 %v4055, %v4039
    %v5336 = vpack.c.b16 %v4056, %v4040
    %v5337 = vpack.c.b16 %v4057, %v4041
    %v5338 = vpack.c.b16 %v4058, %v4042
    %v5339 = vpack.c.b16 %v4059, %v4043
    %v5340 = vpack.c.b16 %v4060, %v4044
    %v5341 = vpack.c.b16 %v4077, %v4061
    %v5342 = vpack.c.b16 %v4078, %v4062
    %v5343 = vpack.c.b16 %v4079, %v4063
    %v5344 = vpack.c.b16 %v4080, %v4064
    %v5345 = vpack.c.b16 %v4081, %v4065
    %v5346 = vpack.c.b16 %v4082, %v4066
    %v5347 = vpack.c.b16 %v4083, %v4067
    %v5348 = vpack.c.b16 %v4084, %v4068
    %v5349 = vpack.c.b16 %v4085, %v4069
    %v5350 = vpack.c.b16 %v4086, %v4070
    %v5351 = vpack.c.b16 %v4087, %v4071
    %v5352 = vpack.c.b16 %v4088, %v4072
    %v5353 = vpack.c.b16 %v4089, %v4073
    %v5354 = vpack.c.b16 %v4090, %v4074
    %v5355 = vpack.c.b16 %v4091, %v4075
    %v5356 = vpack.c.b16 %v4092, %v4076
    %v5357 = vpack.c.b16 %v4109, %v4093
    %v5358 = vpack.c.b16 %v4110, %v4094
    %v5359 = vpack.c.b16 %v4111, %v4095
    %v5360 = vpack.c.b16 %v4112, %v4096
    %v5361 = vpack.c.b16 %v4113, %v4097
    %v5362 = vpack.c.b16 %v4114, %v4098
    %v5363 = vpack.c.b16 %v4115, %v4099
    %v5364 = vpack.c.b16 %v4116, %v4100
    %v5365 = vpack.c.b16 %v4117, %v4101
    %v5366 = vpack.c.b16 %v4118, %v4102
    %v5367 = vpack.c.b16 %v4119, %v4103
    %v5368 = vpack.c.b16 %v4120, %v4104
    %v5369 = vpack.c.b16 %v4121, %v4105
    %v5370 = vpack.c.b16 %v4122, %v4106
    %v5371 = vpack.c.b16 %v4123, %v4107
    %v5372 = vpack.c.b16 %v4124, %v4108
    %v5373 = vpack.c.b16 %v4141, %v4125
    %v5374 = vpack.c.b16 %v4142, %v4126
    %v5375 = vpack.c.b16 %v4143, %v4127
    %v5376 = vpack.c.b16 %v4144, %v4128
    %v5377 = vpack.c.b16 %v4145, %v4129
    %v5378 = vpack.c.b16 %v4146, %v4130
    %v5379 = vpack.c.b16 %v4147, %v4131
    %v5380 = vpack.c.b16 %v4148, %v4132
    %v5381 = vpack.c.b16 %v4149, %v4133
    %v5382 = vpack.c.b16 %v4150, %v4134
    %v5383 = vpack.c.b16 %v4151, %v4135
    %v5384 = vpack.c.b16 %v4152, %v4136
    %v5385 = vpack.c.b16 %v4153, %v4137
    %v5386 = vpack.c.b16 %v4154, %v4138
    %v5387 = vpack.c.b16 %v4155, %v4139
    %v5388 = vpack.c.b16 %v4156, %v4140
    %v5389 = vpack.c.b16 %v4173, %v4157
    %v5390 = vpack.c.b16 %v4174, %v4158
    %v5391 = vpack.c.b16 %v4175, %v4159
    %v5392 = vpack.c.b16 %v4176, %v4160
    %v5393 = vpack.c.b16 %v4177, %v4161
    %v5394 = vpack.c.b16 %v4178, %v4162
    %v5395 = vpack.c.b16 %v4179, %v4163
    %v5396 = vpack.c.b16 %v4180, %v4164
    %v5397 = vpack.c.b16 %v4181, %v4165
    %v5398 = vpack.c.b16 %v4182, %v4166
    %v5399 = vpack.c.b16 %v4183, %v4167
    %v5400 = vpack.c.b16 %v4184, %v4168
    %v5401 = vpack.c.b16 %v4185, %v4169
    %v5402 = vpack.c.b16 %v4186, %v4170
    %v5403 = vpack.c.b16 %v4187, %v4171
    %v5404 = vpack.c.b16 %v4188, %v4172
    %v5405 = vpack.c.b16 %v4205, %v4189
    %v5406 = vpack.c.b16 %v4206, %v4190
    %v5407 = vpack.c.b16 %v4207, %v4191
    %v5408 = vpack.c.b16 %v4208, %v4192
    %v5409 = vpack.c.b16 %v4209, %v4193
    %v5410 = vpack.c.b16 %v4210, %v4194
    %v5411 = vpack.c.b16 %v4211, %v4195
    %v5412 = vpack.c.b16 %v4212, %v4196
    %v5413 = vpack.c.b16 %v4213, %v4197
    %v5414 = vpack.c.b16 %v4214, %v4198
    %v5415 = vpack.c.b16 %v4215, %v4199
    %v5416 = vpack.c.b16 %v4216, %v4200
    %v5417 = vpack.c.b16 %v4217, %v4201
    %v5418 = vpack.c.b16 %v4218, %v4202
    %v5419 = vpack.c.b16 %v4219, %v4203
    %v5420 = vpack.c.b16 %v4220, %v4204
    %v5421 = vpack.c.b16 %v4237, %v4221
    %v5422 = vpack.c.b16 %v4238, %v4222
    %v5423 = vpack.c.b16 %v4239, %v4223
    %v5424 = vpack.c.b16 %v4240, %v4224
    %v5425 = vpack.c.b16 %v4241, %v4225
    %v5426 = vpack.c.b16 %v4242, %v4226
    %v5427 = vpack.c.b16 %v4243, %v4227
    %v5428 = vpack.c.b16 %v4244, %v4228
    %v5429 = vpack.c.b16 %v4245, %v4229
    %v5430 = vpack.c.b16 %v4246, %v4230
    %v5431 = vpack.c.b16 %v4247, %v4231
    %v5432 = vpack.c.b16 %v4248, %v4232
    %v5433 = vpack.c.b16 %v4249, %v4233
    %v5434 = vpack.c.b16 %v4250, %v4234
    %v5435 = vpack.c.b16 %v4251, %v4235
    %v5436 = vpack.c.b16 %v4252, %v4236
    %v5437 = vpack.c.b16 %v4269, %v4253
    %v5438 = vpack.c.b16 %v4270, %v4254
    %v5439 = vpack.c.b16 %v4271, %v4255
    %v5440 = vpack.c.b16 %v4272, %v4256
    %v5441 = vpack.c.b16 %v4273, %v4257
    %v5442 = vpack.c.b16 %v4274, %v4258
    %v5443 = vpack.c.b16 %v4275, %v4259
    %v5444 = vpack.c.b16 %v4276, %v4260
    %v5445 = vpack.c.b16 %v4277, %v4261
    %v5446 = vpack.c.b16 %v4278, %v4262
    %v5447 = vpack.c.b16 %v4279, %v4263
    %v5448 = vpack.c.b16 %v4280, %v4264
    %v5449 = vpack.c.b16 %v4281, %v4265
    %v5450 = vpack.c.b16 %v4282, %v4266
    %v5451 = vpack.c.b16 %v4283, %v4267
    %v5452 = vpack.c.b16 %v4284, %v4268
    %v5453 = vpack.c.b16 %v4301, %v4285
    %v5454 = vpack.c.b16 %v4302, %v4286
    %v5455 = vpack.c.b16 %v4303, %v4287
    %v5456 = vpack.c.b16 %v4304, %v4288
    %v5457 = vpack.c.b16 %v4305, %v4289
    %v5458 = vpack.c.b16 %v4306, %v4290
    %v5459 = vpack.c.b16 %v4307, %v4291
    %v5460 = vpack.c.b16 %v4308, %v4292
    %v5461 = vpack.c.b16 %v4309, %v4293
    %v5462 = vpack.c.b16 %v4310, %v4294
    %v5463 = vpack.c.b16 %v4311, %v4295
    %v5464 = vpack.c.b16 %v4312, %v4296
    %v5465 = vpack.c.b16 %v4313, %v4297
    %v5466 = vpack.c.b16 %v4314, %v4298
    %v5467 = vpack.c.b16 %v4315, %v4299
    %v5468 = vpack.c.b16 %v4316, %v4300
    %v5469 = vpack.c.b16 %v4333, %v4317
    %v5470 = vpack.c.b16 %v4334, %v4318
    %v5471 = vpack.c.b16 %v4335, %v4319
    %v5472 = vpack.c.b16 %v4336, %v4320
    %v5473 = vpack.c.b16 %v4337, %v4321
    %v5474 = vpack.c.b16 %v4338, %v4322
    %v5475 = vpack.c.b16 %v4339, %v4323
    %v5476 = vpack.c.b16 %v4340, %v4324
    %v5477 = vpack.c.b16 %v4341, %v4325
    %v5478 = vpack.c.b16 %v4342, %v4326
    %v5479 = vpack.c.b16 %v4343, %v4327
    %v5480 = vpack.c.b16 %v4344, %v4328
    %v5481 = vpack.c.b16 %v4345, %v4329
    %v5482 = vpack.c.b16 %v4346, %v4330
    %v5483 = vpack.c.b16 %v4347, %v4331
    %v5484 = vpack.c.b16 %v4348, %v4332
    %v5485 = vpack.c.b16 %v4365, %v4349
    %v5486 = vpack.c.b16 %v4366, %v4350
    %v5487 = vpack.c.b16 %v4367, %v4351
    %v5488 = vpack.c.b16 %v4368, %v4352
    %v5489 = vpack.c.b16 %v4369, %v4353
    %v5490 = vpack.c.b16 %v4370, %v4354
    %v5491 = vpack.c.b16 %v4371, %v4355
    %v5492 = vpack.c.b16 %v4372, %v4356
    %v5493 = vpack.c.b16 %v4373, %v4357
    %v5494 = vpack.c.b16 %v4374, %v4358
    %v5495 = vpack.c.b16 %v4375, %v4359
    %v5496 = vpack.c.b16 %v4376, %v4360
    %v5497 = vpack.c.b16 %v4377, %v4361
    %v5498 = vpack.c.b16 %v4378, %v4362
    %v5499 = vpack.c.b16 %v4379, %v4363
    %v5500 = vpack.c.b16 %v4380, %v4364
    %v5501 = vpack.c.b16 %v4397, %v4381
    %v5502 = vpack.c.b16 %v4398, %v4382
    %v5503 = vpack.c.b16 %v4399, %v4383
    %v5504 = vpack.c.b16 %v4400, %v4384
    %v5505 = vpack.c.b16 %v4401, %v4385
    %v5506 = vpack.c.b16 %v4402, %v4386
    %v5507 = vpack.c.b16 %v4403, %v4387
    %v5508 = vpack.c.b16 %v4404, %v4388
    %v5509 = vpack.c.b16 %v4405, %v4389
    %v5510 = vpack.c.b16 %v4406, %v4390
    %v5511 = vpack.c.b16 %v4407, %v4391
    %v5512 = vpack.c.b16 %v4408, %v4392
    %v5513 = vpack.c.b16 %v4409, %v4393
    %v5514 = vpack.c.b16 %v4410, %v4394
    %v5515 = vpack.c.b16 %v4411, %v4395
    %v5516 = vpack.c.b16 %v4412, %v4396
    %v5517 = vpack.c.b16 %v4429, %v4413
    %v5518 = vpack.c.b16 %v4430, %v4414
    %v5519 = vpack.c.b16 %v4431, %v4415
    %v5520 = vpack.c.b16 %v4432, %v4416
    %v5521 = vpack.c.b16 %v4433, %v4417
    %v5522 = vpack.c.b16 %v4434, %v4418
    %v5523 = vpack.c.b16 %v4435, %v4419
    %v5524 = vpack.c.b16 %v4436, %v4420
    %v5525 = vpack.c.b16 %v4437, %v4421
    %v5526 = vpack.c.b16 %v4438, %v4422
    %v5527 = vpack.c.b16 %v4439, %v4423
    %v5528 = vpack.c.b16 %v4440, %v4424
    %v5529 = vpack.c.b16 %v4441, %v4425
    %v5530 = vpack.c.b16 %v4442, %v4426
    %v5531 = vpack.c.b16 %v4443, %v4427
    %v5532 = vpack.c.b16 %v4444, %v4428
    %v5533 = vpack.c.b16 %v4461, %v4445
    %v5534 = vpack.c.b16 %v4462, %v4446
    %v5535 = vpack.c.b16 %v4463, %v4447
    %v5536 = vpack.c.b16 %v4464, %v4448
    %v5537 = vpack.c.b16 %v4465, %v4449
    %v5538 = vpack.c.b16 %v4466, %v4450
    %v5539 = vpack.c.b16 %v4467, %v4451
    %v5540 = vpack.c.b16 %v4468, %v4452
    %v5541 = vpack.c.b16 %v4469, %v4453
    %v5542 = vpack.c.b16 %v4470, %v4454
    %v5543 = vpack.c.b16 %v4471, %v4455
    %v5544 = vpack.c.b16 %v4472, %v4456
    %v5545 = vpack.c.b16 %v4473, %v4457
    %v5546 = vpack.c.b16 %v4474, %v4458
    %v5547 = vpack.c.b16 %v4475, %v4459
    %v5548 = vpack.c.b16 %v4476, %v4460
    %v5549 = vpack.c.b16 %v4493, %v4477
    %v5550 = vpack.c.b16 %v4494, %v4478
    %v5551 = vpack.c.b16 %v4495, %v4479
    %v5552 = vpack.c.b16 %v4496, %v4480
    %v5553 = vpack.c.b16 %v4497, %v4481
    %v5554 = vpack.c.b16 %v4498, %v4482
    %v5555 = vpack.c.b16 %v4499, %v4483
    %v5556 = vpack.c.b16 %v4500, %v4484
    %v5557 = vpack.c.b16 %v4501, %v4485
    %v5558 = vpack.c.b16 %v4502, %v4486
    %v5559 = vpack.c.b16 %v4503, %v4487
    %v5560 = vpack.c.b16 %v4504, %v4488
    %v5561 = vpack.c.b16 %v4505, %v4489
    %v5562 = vpack.c.b16 %v4506, %v4490
    %v5563 = vpack.c.b16 %v4507, %v4491
    %v5564 = vpack.c.b16 %v4508, %v4492
    %v5565 = vpack.c.b16 %v4525, %v4509
    %v5566 = vpack.c.b16 %v4526, %v4510
    %v5567 = vpack.c.b16 %v4527, %v4511
    %v5568 = vpack.c.b16 %v4528, %v4512
    %v5569 = vpack.c.b16 %v4529, %v4513
    %v5570 = vpack.c.b16 %v4530, %v4514
    %v5571 = vpack.c.b16 %v4531, %v4515
    %v5572 = vpack.c.b16 %v4532, %v4516
    %v5573 = vpack.c.b16 %v4533, %v4517
    %v5574 = vpack.c.b16 %v4534, %v4518
    %v5575 = vpack.c.b16 %v4535, %v4519
    %v5576 = vpack.c.b16 %v4536, %v4520
    %v5577 = vpack.c.b16 %v4537, %v4521
    %v5578 = vpack.c.b16 %v4538, %v4522
    %v5579 = vpack.c.b16 %v4539, %v4523
    %v5580 = vpack.c.b16 %v4540, %v4524
    %v5581 = vpack.c.b16 %v4557, %v4541
    %v5582 = vpack.c.b16 %v4558, %v4542
    %v5583 = vpack.c.b16 %v4559, %v4543
    %v5584 = vpack.c.b16 %v4560, %v4544
    %v5585 = vpack.c.b16 %v4561, %v4545
    %v5586 = vpack.c.b16 %v4562, %v4546
    %v5587 = vpack.c.b16 %v4563, %v4547
    %v5588 = vpack.c.b16 %v4564, %v4548
    %v5589 = vpack.c.b16 %v4565, %v4549
    %v5590 = vpack.c.b16 %v4566, %v4550
    %v5591 = vpack.c.b16 %v4567, %v4551
    %v5592 = vpack.c.b16 %v4568, %v4552
    %v5593 = vpack.c.b16 %v4569, %v4553
    %v5594 = vpack.c.b16 %v4570, %v4554
    %v5595 = vpack.c.b16 %v4571, %v4555
    %v5596 = vpack.c.b16 %v4572, %v4556
    %6621 = vmatprep.subr.bf16.mxu0 %v4574
    %6622 = vmatpush1.bf16.msra.mxu0 %v4573
    %6623 = vmatprep.subr.bf16.mxu0 %v4590
    %6624 = vmatpush1.bf16.msra.mxu0 %v4589
    %6625 = vmatprep.subr.bf16.mxu0 %v4606
    %6626 = vmatpush1.bf16.msra.mxu0 %v4605
    %6627 = vmatprep.subr.bf16.mxu0 %v4622
    %6628 = vmatpush1.bf16.msra.mxu0 %v4621
    %6629 = vmatprep.subr.bf16.mxu0 %v4638
    %6630 = vmatpush1.bf16.msra.mxu0 %v4637
    %6631 = vmatprep.subr.bf16.mxu0 %v4654
    %6632 = vmatpush1.bf16.msra.mxu0 %v4653
    %6633 = vmatprep.subr.bf16.mxu0 %v4670
    %6634 = vmatpush1.bf16.msra.mxu0 %v4669
    %6635 = vmatprep.subr.bf16.mxu0 %v4686
    %6636 = vmatpush1.bf16.msra.mxu0 %v4685
    %6637 = vmatprep.subr.bf16.mxu0 %v4702
    %6638 = vmatpush1.bf16.msra.mxu0 %v4701
    %6639 = vmatprep.subr.bf16.mxu0 %v4718
    %6640 = vmatpush1.bf16.msra.mxu0 %v4717
    %6641 = vmatprep.subr.bf16.mxu0 %v4734
    %6642 = vmatpush1.bf16.msra.mxu0 %v4733
    %6643 = vmatprep.subr.bf16.mxu0 %v4750
    %6644 = vmatpush1.bf16.msra.mxu0 %v4749
    %6645 = vmatprep.subr.bf16.mxu0 %v4766
    %6646 = vmatpush1.bf16.msra.mxu0 %v4765
    %6647 = vmatprep.subr.bf16.mxu0 %v4782
    %6648 = vmatpush1.bf16.msra.mxu0 %v4781
    %6649 = vmatprep.subr.bf16.mxu0 %v4798
    %6650 = vmatpush1.bf16.msra.mxu0 %v4797
    %6651 = vmatprep.subr.bf16.mxu0 %v4814
    %6652 = vmatpush1.bf16.msra.mxu0 %v4813
    %6653 = vmatprep.mubr.bf16.mxu0 %v386
    %6654 = vmatmul.mubr.bf16.gmra.mrb[0].mxu0 %v385
    %v6655 = vpop.f32.mrb[0].mxu0
    %v6656 = vadd.f32 %v1424, %v6655
    %v6657 = vpop.f32.mrb[0].mxu0
    %v6658 = vadd.f32 %v1428, %v6657
    %v6659 = vpop.f32.mrb[0].mxu0
    %v6660 = vpop.f32.mrb[0].mxu0
    %6661 = vdwg.mxu0
    %6662 = vmatprep.subr.bf16.mxu0 %v4830
    %6663 = vmatpush1.bf16.msra.mxu0 %v4829
    %6664 = vmatprep.subr.bf16.mxu0 %v4846
    %6665 = vmatpush1.bf16.msra.mxu0 %v4845
    %6666 = vmatprep.subr.bf16.mxu0 %v4862
    %6667 = vmatpush1.bf16.msra.mxu0 %v4861
    %6668 = vmatprep.subr.bf16.mxu0 %v4878
    %6669 = vmatpush1.bf16.msra.mxu0 %v4877
    %6670 = vmatprep.subr.bf16.mxu0 %v4894
    %6671 = vmatpush1.bf16.msra.mxu0 %v4893
    %6672 = vmatprep.subr.bf16.mxu0 %v4910
    %6673 = vmatpush1.bf16.msra.mxu0 %v4909
    %6674 = vmatprep.subr.bf16.mxu0 %v4926
    %6675 = vmatpush1.bf16.msra.mxu0 %v4925
    %6676 = vmatprep.subr.bf16.mxu0 %v4942
    %6677 = vmatpush1.bf16.msra.mxu0 %v4941
    %6678 = vmatprep.subr.bf16.mxu0 %v4958
    %6679 = vmatpush1.bf16.msra.mxu0 %v4957
    %6680 = vmatprep.subr.bf16.mxu0 %v4974
    %6681 = vmatpush1.bf16.msra.mxu0 %v4973
    %6682 = vmatprep.subr.bf16.mxu0 %v4990
    %6683 = vmatpush1.bf16.msra.mxu0 %v4989
    %6684 = vmatprep.subr.bf16.mxu0 %v5006
    %6685 = vmatpush1.bf16.msra.mxu0 %v5005
    %6686 = vmatprep.subr.bf16.mxu0 %v5022
    %6687 = vmatpush1.bf16.msra.mxu0 %v5021
    %6688 = vmatprep.subr.bf16.mxu0 %v5038
    %6689 = vmatpush1.bf16.msra.mxu0 %v5037
    %6690 = vmatprep.subr.bf16.mxu0 %v5054
    %6691 = vmatpush1.bf16.msra.mxu0 %v5053
    %6692 = vmatprep.subr.bf16.mxu0 %v5070
    %6693 = vmatpush1.bf16.msra.mxu0 %v5069
    %6694 = vmatprep.mubr.bf16.mxu0 %v388
    %6695 = vmatmul.mubr.bf16.gmra.mrb[0].mxu0 %v387
    %v6696 = vpop.f32.mrb[0].mxu0
    %v6697 = vadd.f32 %v6656, %v6696
    %v6698 = vpop.f32.mrb[0].mxu0
    %v6699 = vadd.f32 %v6658, %v6698
    %v6700 = vpop.f32.mrb[0].mxu0
    %v6701 = vpop.f32.mrb[0].mxu0
    %6702 = vdwg.mxu0
    %6703 = vmatprep.subr.bf16.mxu0 %v5086
    %6704 = vmatpush1.bf16.msra.mxu0 %v5085
    %6705 = vmatprep.subr.bf16.mxu0 %v5102
    %6706 = vmatpush1.bf16.msra.mxu0 %v5101
    %6707 = vmatprep.subr.bf16.mxu0 %v5118
    %6708 = vmatpush1.bf16.msra.mxu0 %v5117
    %6709 = vmatprep.subr.bf16.mxu0 %v5134
    %6710 = vmatpush1.bf16.msra.mxu0 %v5133
    %6711 = vmatprep.subr.bf16.mxu0 %v5150
    %6712 = vmatpush1.bf16.msra.mxu0 %v5149
    %6713 = vmatprep.subr.bf16.mxu0 %v5166
    %6714 = vmatpush1.bf16.msra.mxu0 %v5165
    %6715 = vmatprep.subr.bf16.mxu0 %v5182
    %6716 = vmatpush1.bf16.msra.mxu0 %v5181
    %6717 = vmatprep.subr.bf16.mxu0 %v5198
    %6718 = vmatpush1.bf16.msra.mxu0 %v5197
    %6719 = vmatprep.subr.bf16.mxu0 %v5214
    %6720 = vmatpush1.bf16.msra.mxu0 %v5213
    %6721 = vmatprep.subr.bf16.mxu0 %v5230
    %6722 = vmatpush1.bf16.msra.mxu0 %v5229
    %6723 = vmatprep.subr.bf16.mxu0 %v5246
    %6724 = vmatpush1.bf16.msra.mxu0 %v5245
    %6725 = vmatprep.subr.bf16.mxu0 %v5262
    %6726 = vmatpush1.bf16.msra.mxu0 %v5261
    %6727 = vmatprep.subr.bf16.mxu0 %v5278
    %6728 = vmatpush1.bf16.msra.mxu0 %v5277
    %6729 = vmatprep.subr.bf16.mxu0 %v5294
    %6730 = vmatpush1.bf16.msra.mxu0 %v5293
    %6731 = vmatprep.subr.bf16.mxu0 %v5310
    %6732 = vmatpush1.bf16.msra.mxu0 %v5309
    %6733 = vmatprep.subr.bf16.mxu0 %v5326
    %6734 = vmatpush1.bf16.msra.mxu0 %v5325
    %6735 = vmatprep.mubr.bf16.mxu0 %v390
    %6736 = vmatmul.mubr.bf16.gmra.mrb[0].mxu0 %v389
    %v6737 = vpop.f32.mrb[0].mxu0
    %v6738 = vadd.f32 %v6697, %v6737
    %v6739 = vpop.f32.mrb[0].mxu0
    %v6740 = vadd.f32 %v6699, %v6739
    %v6741 = vpop.f32.mrb[0].mxu0
    %v6742 = vpop.f32.mrb[0].mxu0
    %6743 = vdwg.mxu0
    %6744 = vmatprep.subr.bf16.mxu0 %v5342
    %6745 = vmatpush1.bf16.msra.mxu0 %v5341
    %6746 = vmatprep.subr.bf16.mxu0 %v5358
    %6747 = vmatpush1.bf16.msra.mxu0 %v5357
    %6748 = vmatprep.subr.bf16.mxu0 %v5374
    %6749 = vmatpush1.bf16.msra.mxu0 %v5373
    %6750 = vmatprep.subr.bf16.mxu0 %v5390
    %6751 = vmatpush1.bf16.msra.mxu0 %v5389
    %6752 = vmatprep.subr.bf16.mxu0 %v5406
    %6753 = vmatpush1.bf16.msra.mxu0 %v5405
    %6754 = vmatprep.subr.bf16.mxu0 %v5422
    %6755 = vmatpush1.bf16.msra.mxu0 %v5421
    %6756 = vmatprep.subr.bf16.mxu0 %v5438
    %6757 = vmatpush1.bf16.msra.mxu0 %v5437
    %6758 = vmatprep.subr.bf16.mxu0 %v5454
    %6759 = vmatpush1.bf16.msra.mxu0 %v5453
    %6760 = vmatprep.subr.bf16.mxu0 %v5470
    %6761 = vmatpush1.bf16.msra.mxu0 %v5469
    %6762 = vmatprep.subr.bf16.mxu0 %v5486
    %6763 = vmatpush1.bf16.msra.mxu0 %v5485
    %6764 = vmatprep.subr.bf16.mxu0 %v5502
    %6765 = vmatpush1.bf16.msra.mxu0 %v5501
    %6766 = vmatprep.subr.bf16.mxu0 %v5518
    %6767 = vmatpush1.bf16.msra.mxu0 %v5517
    %6768 = vmatprep.subr.bf16.mxu0 %v5534
    %6769 = vmatpush1.bf16.msra.mxu0 %v5533
    %6770 = vmatprep.subr.bf16.mxu0 %v5550
    %6771 = vmatpush1.bf16.msra.mxu0 %v5549
    %6772 = vmatprep.subr.bf16.mxu0 %v5566
    %6773 = vmatpush1.bf16.msra.mxu0 %v5565
    %6774 = vmatprep.subr.bf16.mxu0 %v5582
    %6775 = vmatpush1.bf16.msra.mxu0 %v5581
    %6776 = vmatprep.mubr.bf16.mxu0 %v392
    %6777 = vmatmul.mubr.bf16.gmra.mrb[0].mxu0 %v391
    %v6778 = vpop.f32.mrb[0].mxu0
    %v6779 = vadd.f32 %v6738, %v6778
    %v6780 = vpop.f32.mrb[0].mxu0
    %v6781 = vadd.f32 %v6740, %v6780
    %v6782 = vpop.f32.mrb[0].mxu0
    %v6783 = vpop.f32.mrb[0].mxu0
    %6784 = vdwg.mxu0
    %6785 = vmatprep.subr.bf16.mxu0 %v4576
    %6786 = vmatpush1.bf16.msra.mxu0 %v4575
    %6787 = vmatprep.subr.bf16.mxu0 %v4592
    %6788 = vmatpush1.bf16.msra.mxu0 %v4591
    %6789 = vmatprep.subr.bf16.mxu0 %v4608
    %6790 = vmatpush1.bf16.msra.mxu0 %v4607
    %6791 = vmatprep.subr.bf16.mxu0 %v4624
    %6792 = vmatpush1.bf16.msra.mxu0 %v4623
    %6793 = vmatprep.subr.bf16.mxu0 %v4640
    %6794 = vmatpush1.bf16.msra.mxu0 %v4639
    %6795 = vmatprep.subr.bf16.mxu0 %v4656
    %6796 = vmatpush1.bf16.msra.mxu0 %v4655
    %6797 = vmatprep.subr.bf16.mxu0 %v4672
    %6798 = vmatpush1.bf16.msra.mxu0 %v4671
    %6799 = vmatprep.subr.bf16.mxu0 %v4688
    %6800 = vmatpush1.bf16.msra.mxu0 %v4687
    %6801 = vmatprep.subr.bf16.mxu0 %v4704
    %6802 = vmatpush1.bf16.msra.mxu0 %v4703
    %6803 = vmatprep.subr.bf16.mxu0 %v4720
    %6804 = vmatpush1.bf16.msra.mxu0 %v4719
    %6805 = vmatprep.subr.bf16.mxu0 %v4736
    %6806 = vmatpush1.bf16.msra.mxu0 %v4735
    %6807 = vmatprep.subr.bf16.mxu0 %v4752
    %6808 = vmatpush1.bf16.msra.mxu0 %v4751
    %6809 = vmatprep.subr.bf16.mxu0 %v4768
    %6810 = vmatpush1.bf16.msra.mxu0 %v4767
    %6811 = vmatprep.subr.bf16.mxu0 %v4784
    %6812 = vmatpush1.bf16.msra.mxu0 %v4783
    %6813 = vmatprep.subr.bf16.mxu0 %v4800
    %6814 = vmatpush1.bf16.msra.mxu0 %v4799
    %6815 = vmatprep.subr.bf16.mxu0 %v4816
    %6816 = vmatpush1.bf16.msra.mxu0 %v4815
    %6817 = vmatprep.mubr.bf16.mxu0 %v386
    %6818 = vmatmul.mubr.bf16.gmra.mrb[0].mxu0 %v385
    %v6819 = vpop.f32.mrb[0].mxu0
    %v6820 = vadd.f32 %v1432, %v6819
    %v6821 = vpop.f32.mrb[0].mxu0
    %v6822 = vadd.f32 %v1436, %v6821
    %v6823 = vpop.f32.mrb[0].mxu0
    %v6824 = vpop.f32.mrb[0].mxu0
    %6825 = vdwg.mxu0
    %6826 = vmatprep.subr.bf16.mxu0 %v4832
    %6827 = vmatpush1.bf16.msra.mxu0 %v4831
    %6828 = vmatprep.subr.bf16.mxu0 %v4848
    %6829 = vmatpush1.bf16.msra.mxu0 %v4847
    %6830 = vmatprep.subr.bf16.mxu0 %v4864
    %6831 = vmatpush1.bf16.msra.mxu0 %v4863
    %6832 = vmatprep.subr.bf16.mxu0 %v4880
    %6833 = vmatpush1.bf16.msra.mxu0 %v4879
    %6834 = vmatprep.subr.bf16.mxu0 %v4896
    %6835 = vmatpush1.bf16.msra.mxu0 %v4895
    %6836 = vmatprep.subr.bf16.mxu0 %v4912
    %6837 = vmatpush1.bf16.msra.mxu0 %v4911
    %6838 = vmatprep.subr.bf16.mxu0 %v4928
    %6839 = vmatpush1.bf16.msra.mxu0 %v4927
    %6840 = vmatprep.subr.bf16.mxu0 %v4944
    %6841 = vmatpush1.bf16.msra.mxu0 %v4943
    %6842 = vmatprep.subr.bf16.mxu0 %v4960
    %6843 = vmatpush1.bf16.msra.mxu0 %v4959
    %6844 = vmatprep.subr.bf16.mxu0 %v4976
    %6845 = vmatpush1.bf16.msra.mxu0 %v4975
    %6846 = vmatprep.subr.bf16.mxu0 %v4992
    %6847 = vmatpush1.bf16.msra.mxu0 %v4991
    %6848 = vmatprep.subr.bf16.mxu0 %v5008
    %6849 = vmatpush1.bf16.msra.mxu0 %v5007
    %6850 = vmatprep.subr.bf16.mxu0 %v5024
    %6851 = vmatpush1.bf16.msra.mxu0 %v5023
    %6852 = vmatprep.subr.bf16.mxu0 %v5040
    %6853 = vmatpush1.bf16.msra.mxu0 %v5039
    %6854 = vmatprep.subr.bf16.mxu0 %v5056
    %6855 = vmatpush1.bf16.msra.mxu0 %v5055
    %6856 = vmatprep.subr.bf16.mxu0 %v5072
    %6857 = vmatpush1.bf16.msra.mxu0 %v5071
    %6858 = vmatprep.mubr.bf16.mxu0 %v388
    %6859 = vmatmul.mubr.bf16.gmra.mrb[0].mxu0 %v387
    %v6860 = vpop.f32.mrb[0].mxu0
    %v6861 = vadd.f32 %v6820, %v6860
    %v6862 = vpop.f32.mrb[0].mxu0
    %v6863 = vadd.f32 %v6822, %v6862
    %v6864 = vpop.f32.mrb[0].mxu0
    %v6865 = vpop.f32.mrb[0].mxu0
    %6866 = vdwg.mxu0
    %6867 = vmatprep.subr.bf16.mxu0 %v5088
    %6868 = vmatpush1.bf16.msra.mxu0 %v5087
    %6869 = vmatprep.subr.bf16.mxu0 %v5104
    %6870 = vmatpush1.bf16.msra.mxu0 %v5103
    %6871 = vmatprep.subr.bf16.mxu0 %v5120
    %6872 = vmatpush1.bf16.msra.mxu0 %v5119
    %6873 = vmatprep.subr.bf16.mxu0 %v5136
    %6874 = vmatpush1.bf16.msra.mxu0 %v5135
    %6875 = vmatprep.subr.bf16.mxu0 %v5152
    %6876 = vmatpush1.bf16.msra.mxu0 %v5151
    %6877 = vmatprep.subr.bf16.mxu0 %v5168
    %6878 = vmatpush1.bf16.msra.mxu0 %v5167
    %6879 = vmatprep.subr.bf16.mxu0 %v5184
    %6880 = vmatpush1.bf16.msra.mxu0 %v5183
    %6881 = vmatprep.subr.bf16.mxu0 %v5200
    %6882 = vmatpush1.bf16.msra.mxu0 %v5199
    %6883 = vmatprep.subr.bf16.mxu0 %v5216
    %6884 = vmatpush1.bf16.msra.mxu0 %v5215
    %6885 = vmatprep.subr.bf16.mxu0 %v5232
    %6886 = vmatpush1.bf16.msra.mxu0 %v5231
    %6887 = vmatprep.subr.bf16.mxu0 %v5248
    %6888 = vmatpush1.bf16.msra.mxu0 %v5247
    %6889 = vmatprep.subr.bf16.mxu0 %v5264
    %6890 = vmatpush1.bf16.msra.mxu0 %v5263
    %6891 = vmatprep.subr.bf16.mxu0 %v5280
    %6892 = vmatpush1.bf16.msra.mxu0 %v5279
    %6893 = vmatprep.subr.bf16.mxu0 %v5296
    %6894 = vmatpush1.bf16.msra.mxu0 %v5295
    %6895 = vmatprep.subr.bf16.mxu0 %v5312
    %6896 = vmatpush1.bf16.msra.mxu0 %v5311
    %6897 = vmatprep.subr.bf16.mxu0 %v5328
    %6898 = vmatpush1.bf16.msra.mxu0 %v5327
    %6899 = vmatprep.mubr.bf16.mxu0 %v390
    %6900 = vmatmul.mubr.bf16.gmra.mrb[0].mxu0 %v389
    %v6901 = vpop.f32.mrb[0].mxu0
    %v6902 = vadd.f32 %v6861, %v6901
    %v6903 = vpop.f32.mrb[0].mxu0
    %v6904 = vadd.f32 %v6863, %v6903
    %v6905 = vpop.f32.mrb[0].mxu0
    %v6906 = vpop.f32.mrb[0].mxu0
    %6907 = vdwg.mxu0
    %6908 = vmatprep.subr.bf16.mxu0 %v5344
    %6909 = vmatpush1.bf16.msra.mxu0 %v5343
    %6910 = vmatprep.subr.bf16.mxu0 %v5360
    %6911 = vmatpush1.bf16.msra.mxu0 %v5359
    %6912 = vmatprep.subr.bf16.mxu0 %v5376
    %6913 = vmatpush1.bf16.msra.mxu0 %v5375
    %6914 = vmatprep.subr.bf16.mxu0 %v5392
    %6915 = vmatpush1.bf16.msra.mxu0 %v5391
    %6916 = vmatprep.subr.bf16.mxu0 %v5408
    %6917 = vmatpush1.bf16.msra.mxu0 %v5407
    %6918 = vmatprep.subr.bf16.mxu0 %v5424
    %6919 = vmatpush1.bf16.msra.mxu0 %v5423
    %6920 = vmatprep.subr.bf16.mxu0 %v5440
    %6921 = vmatpush1.bf16.msra.mxu0 %v5439
    %6922 = vmatprep.subr.bf16.mxu0 %v5456
    %6923 = vmatpush1.bf16.msra.mxu0 %v5455
    %6924 = vmatprep.subr.bf16.mxu0 %v5472
    %6925 = vmatpush1.bf16.msra.mxu0 %v5471
    %6926 = vmatprep.subr.bf16.mxu0 %v5488
    %6927 = vmatpush1.bf16.msra.mxu0 %v5487
    %6928 = vmatprep.subr.bf16.mxu0 %v5504
    %6929 = vmatpush1.bf16.msra.mxu0 %v5503
    %6930 = vmatprep.subr.bf16.mxu0 %v5520
    %6931 = vmatpush1.bf16.msra.mxu0 %v5519
    %6932 = vmatprep.subr.bf16.mxu0 %v5536
    %6933 = vmatpush1.bf16.msra.mxu0 %v5535
    %6934 = vmatprep.subr.bf16.mxu0 %v5552
    %6935 = vmatpush1.bf16.msra.mxu0 %v5551
    %6936 = vmatprep.subr.bf16.mxu0 %v5568
    %6937 = vmatpush1.bf16.msra.mxu0 %v5567
    %6938 = vmatprep.subr.bf16.mxu0 %v5584
    %6939 = vmatpush1.bf16.msra.mxu0 %v5583
    %6940 = vmatprep.mubr.bf16.mxu0 %v392
    %6941 = vmatmul.mubr.bf16.gmra.mrb[0].mxu0 %v391
    %v6942 = vpop.f32.mrb[0].mxu0
    %v6943 = vadd.f32 %v6902, %v6942
    %v6944 = vpop.f32.mrb[0].mxu0
    %v6945 = vadd.f32 %v6904, %v6944
    %v6946 = vpop.f32.mrb[0].mxu0
    %v6947 = vpop.f32.mrb[0].mxu0
    %6948 = vdwg.mxu0
    %6949 = vmatprep.subr.bf16.mxu0 %v4578
    %6950 = vmatpush1.bf16.msra.mxu0 %v4577
    %6951 = vmatprep.subr.bf16.mxu0 %v4594
    %6952 = vmatpush1.bf16.msra.mxu0 %v4593
    %6953 = vmatprep.subr.bf16.mxu0 %v4610
    %6954 = vmatpush1.bf16.msra.mxu0 %v4609
    %6955 = vmatprep.subr.bf16.mxu0 %v4626
    %6956 = vmatpush1.bf16.msra.mxu0 %v4625
    %6957 = vmatprep.subr.bf16.mxu0 %v4642
    %6958 = vmatpush1.bf16.msra.mxu0 %v4641
    %6959 = vmatprep.subr.bf16.mxu0 %v4658
    %6960 = vmatpush1.bf16.msra.mxu0 %v4657
    %6961 = vmatprep.subr.bf16.mxu0 %v4674
    %6962 = vmatpush1.bf16.msra.mxu0 %v4673
    %6963 = vmatprep.subr.bf16.mxu0 %v4690
    %6964 = vmatpush1.bf16.msra.mxu0 %v4689
    %6965 = vmatprep.subr.bf16.mxu0 %v4706
    %6966 = vmatpush1.bf16.msra.mxu0 %v4705
    %6967 = vmatprep.subr.bf16.mxu0 %v4722
    %6968 = vmatpush1.bf16.msra.mxu0 %v4721
    %6969 = vmatprep.subr.bf16.mxu0 %v4738
    %6970 = vmatpush1.bf16.msra.mxu0 %v4737
    %6971 = vmatprep.subr.bf16.mxu0 %v4754
    %6972 = vmatpush1.bf16.msra.mxu0 %v4753
    %6973 = vmatprep.subr.bf16.mxu0 %v4770
    %6974 = vmatpush1.bf16.msra.mxu0 %v4769
    %6975 = vmatprep.subr.bf16.mxu0 %v4786
    %6976 = vmatpush1.bf16.msra.mxu0 %v4785
    %6977 = vmatprep.subr.bf16.mxu0 %v4802
    %6978 = vmatpush1.bf16.msra.mxu0 %v4801
    %6979 = vmatprep.subr.bf16.mxu0 %v4818
    %6980 = vmatpush1.bf16.msra.mxu0 %v4817
    %6981 = vmatprep.mubr.bf16.mxu0 %v386
    %6982 = vmatmul.mubr.bf16.gmra.mrb[0].mxu0 %v385
    %v6983 = vpop.f32.mrb[0].mxu0
    %v6984 = vadd.f32 %v1440, %v6983
    %v6985 = vpop.f32.mrb[0].mxu0
    %v6986 = vadd.f32 %v1444, %v6985
    %v6987 = vpop.f32.mrb[0].mxu0
    %v6988 = vpop.f32.mrb[0].mxu0
    %6989 = vdwg.mxu0
    %6990 = vmatprep.subr.bf16.mxu0 %v4834
    %6991 = vmatpush1.bf16.msra.mxu0 %v4833
    %6992 = vmatprep.subr.bf16.mxu0 %v4850
    %6993 = vmatpush1.bf16.msra.mxu0 %v4849
    %6994 = vmatprep.subr.bf16.mxu0 %v4866
    %6995 = vmatpush1.bf16.msra.mxu0 %v4865
    %6996 = vmatprep.subr.bf16.mxu0 %v4882
    %6997 = vmatpush1.bf16.msra.mxu0 %v4881
    %6998 = vmatprep.subr.bf16.mxu0 %v4898
    %6999 = vmatpush1.bf16.msra.mxu0 %v4897
    %7000 = vmatprep.subr.bf16.mxu0 %v4914
    %7001 = vmatpush1.bf16.msra.mxu0 %v4913
    %7002 = vmatprep.subr.bf16.mxu0 %v4930
    %7003 = vmatpush1.bf16.msra.mxu0 %v4929
    %7004 = vmatprep.subr.bf16.mxu0 %v4946
    %7005 = vmatpush1.bf16.msra.mxu0 %v4945
    %7006 = vmatprep.subr.bf16.mxu0 %v4962
    %7007 = vmatpush1.bf16.msra.mxu0 %v4961
    %7008 = vmatprep.subr.bf16.mxu0 %v4978
    %7009 = vmatpush1.bf16.msra.mxu0 %v4977
    %7010 = vmatprep.subr.bf16.mxu0 %v4994
    %7011 = vmatpush1.bf16.msra.mxu0 %v4993
    %7012 = vmatprep.subr.bf16.mxu0 %v5010
    %7013 = vmatpush1.bf16.msra.mxu0 %v5009
    %7014 = vmatprep.subr.bf16.mxu0 %v5026
    %7015 = vmatpush1.bf16.msra.mxu0 %v5025
    %7016 = vmatprep.subr.bf16.mxu0 %v5042
    %7017 = vmatpush1.bf16.msra.mxu0 %v5041
    %7018 = vmatprep.subr.bf16.mxu0 %v5058
    %7019 = vmatpush1.bf16.msra.mxu0 %v5057
    %7020 = vmatprep.subr.bf16.mxu0 %v5074
    %7021 = vmatpush1.bf16.msra.mxu0 %v5073
    %7022 = vmatprep.mubr.bf16.mxu0 %v388
    %7023 = vmatmul.mubr.bf16.gmra.mrb[0].mxu0 %v387
    %v7024 = vpop.f32.mrb[0].mxu0
    %v7025 = vadd.f32 %v6984, %v7024
    %v7026 = vpop.f32.mrb[0].mxu0
    %v7027 = vadd.f32 %v6986, %v7026
    %v7028 = vpop.f32.mrb[0].mxu0
    %v7029 = vpop.f32.mrb[0].mxu0
    %7030 = vdwg.mxu0
    %7031 = vmatprep.subr.bf16.mxu0 %v5090
    %7032 = vmatpush1.bf16.msra.mxu0 %v5089
    %7033 = vmatprep.subr.bf16.mxu0 %v5106
    %7034 = vmatpush1.bf16.msra.mxu0 %v5105
    %7035 = vmatprep.subr.bf16.mxu0 %v5122
    %7036 = vmatpush1.bf16.msra.mxu0 %v5121
    %7037 = vmatprep.subr.bf16.mxu0 %v5138
    %7038 = vmatpush1.bf16.msra.mxu0 %v5137
    %7039 = vmatprep.subr.bf16.mxu0 %v5154
    %7040 = vmatpush1.bf16.msra.mxu0 %v5153
    %7041 = vmatprep.subr.bf16.mxu0 %v5170
    %7042 = vmatpush1.bf16.msra.mxu0 %v5169
    %7043 = vmatprep.subr.bf16.mxu0 %v5186
    %7044 = vmatpush1.bf16.msra.mxu0 %v5185
    %7045 = vmatprep.subr.bf16.mxu0 %v5202
    %7046 = vmatpush1.bf16.msra.mxu0 %v5201
    %7047 = vmatprep.subr.bf16.mxu0 %v5218
    %7048 = vmatpush1.bf16.msra.mxu0 %v5217
    %7049 = vmatprep.subr.bf16.mxu0 %v5234
    %7050 = vmatpush1.bf16.msra.mxu0 %v5233
    %7051 = vmatprep.subr.bf16.mxu0 %v5250
    %7052 = vmatpush1.bf16.msra.mxu0 %v5249
    %7053 = vmatprep.subr.bf16.mxu0 %v5266
    %7054 = vmatpush1.bf16.msra.mxu0 %v5265
    %7055 = vmatprep.subr.bf16.mxu0 %v5282
    %7056 = vmatpush1.bf16.msra.mxu0 %v5281
    %7057 = vmatprep.subr.bf16.mxu0 %v5298
    %7058 = vmatpush1.bf16.msra.mxu0 %v5297
    %7059 = vmatprep.subr.bf16.mxu0 %v5314
    %7060 = vmatpush1.bf16.msra.mxu0 %v5313
    %7061 = vmatprep.subr.bf16.mxu0 %v5330
    %7062 = vmatpush1.bf16.msra.mxu0 %v5329
    %7063 = vmatprep.mubr.bf16.mxu0 %v390
    %7064 = vmatmul.mubr.bf16.gmra.mrb[0].mxu0 %v389
    %v7065 = vpop.f32.mrb[0].mxu0
    %v7066 = vadd.f32 %v7025, %v7065
    %v7067 = vpop.f32.mrb[0].mxu0
    %v7068 = vadd.f32 %v7027, %v7067
    %v7069 = vpop.f32.mrb[0].mxu0
    %v7070 = vpop.f32.mrb[0].mxu0
    %7071 = vdwg.mxu0
    %7072 = vmatprep.subr.bf16.mxu0 %v5346
    %7073 = vmatpush1.bf16.msra.mxu0 %v5345
    %7074 = vmatprep.subr.bf16.mxu0 %v5362
    %7075 = vmatpush1.bf16.msra.mxu0 %v5361
    %7076 = vmatprep.subr.bf16.mxu0 %v5378
    %7077 = vmatpush1.bf16.msra.mxu0 %v5377
    %7078 = vmatprep.subr.bf16.mxu0 %v5394
    %7079 = vmatpush1.bf16.msra.mxu0 %v5393
    %7080 = vmatprep.subr.bf16.mxu0 %v5410
    %7081 = vmatpush1.bf16.msra.mxu0 %v5409
    %7082 = vmatprep.subr.bf16.mxu0 %v5426
    %7083 = vmatpush1.bf16.msra.mxu0 %v5425
    %7084 = vmatprep.subr.bf16.mxu0 %v5442
    %7085 = vmatpush1.bf16.msra.mxu0 %v5441
    %7086 = vmatprep.subr.bf16.mxu0 %v5458
    %7087 = vmatpush1.bf16.msra.mxu0 %v5457
    %7088 = vmatprep.subr.bf16.mxu0 %v5474
    %7089 = vmatpush1.bf16.msra.mxu0 %v5473
    %7090 = vmatprep.subr.bf16.mxu0 %v5490
    %7091 = vmatpush1.bf16.msra.mxu0 %v5489
    %7092 = vmatprep.subr.bf16.mxu0 %v5506
    %7093 = vmatpush1.bf16.msra.mxu0 %v5505
    %7094 = vmatprep.subr.bf16.mxu0 %v5522
    %7095 = vmatpush1.bf16.msra.mxu0 %v5521
    %7096 = vmatprep.subr.bf16.mxu0 %v5538
    %7097 = vmatpush1.bf16.msra.mxu0 %v5537
    %7098 = vmatprep.subr.bf16.mxu0 %v5554
    %7099 = vmatpush1.bf16.msra.mxu0 %v5553
    %7100 = vmatprep.subr.bf16.mxu0 %v5570
    %7101 = vmatpush1.bf16.msra.mxu0 %v5569
    %7102 = vmatprep.subr.bf16.mxu0 %v5586
    %7103 = vmatpush1.bf16.msra.mxu0 %v5585
    %7104 = vmatprep.mubr.bf16.mxu0 %v392
    %7105 = vmatmul.mubr.bf16.gmra.mrb[0].mxu0 %v391
    %v7106 = vpop.f32.mrb[0].mxu0
    %v7107 = vadd.f32 %v7066, %v7106
    %v7108 = vpop.f32.mrb[0].mxu0
    %v7109 = vadd.f32 %v7068, %v7108
    %v7110 = vpop.f32.mrb[0].mxu0
    %v7111 = vpop.f32.mrb[0].mxu0
    %7112 = vdwg.mxu0
    %7113 = vmatprep.subr.bf16.mxu0 %v4580
    %7114 = vmatpush1.bf16.msra.mxu0 %v4579
    %7115 = vmatprep.subr.bf16.mxu0 %v4596
    %7116 = vmatpush1.bf16.msra.mxu0 %v4595
    %7117 = vmatprep.subr.bf16.mxu0 %v4612
    %7118 = vmatpush1.bf16.msra.mxu0 %v4611
    %7119 = vmatprep.subr.bf16.mxu0 %v4628
    %7120 = vmatpush1.bf16.msra.mxu0 %v4627
    %7121 = vmatprep.subr.bf16.mxu0 %v4644
    %7122 = vmatpush1.bf16.msra.mxu0 %v4643
    %7123 = vmatprep.subr.bf16.mxu0 %v4660
    %7124 = vmatpush1.bf16.msra.mxu0 %v4659
    %7125 = vmatprep.subr.bf16.mxu0 %v4676
    %7126 = vmatpush1.bf16.msra.mxu0 %v4675
    %7127 = vmatprep.subr.bf16.mxu0 %v4692
    %7128 = vmatpush1.bf16.msra.mxu0 %v4691
    %7129 = vmatprep.subr.bf16.mxu0 %v4708
    %7130 = vmatpush1.bf16.msra.mxu0 %v4707
    %7131 = vmatprep.subr.bf16.mxu0 %v4724
    %7132 = vmatpush1.bf16.msra.mxu0 %v4723
    %7133 = vmatprep.subr.bf16.mxu0 %v4740
    %7134 = vmatpush1.bf16.msra.mxu0 %v4739
    %7135 = vmatprep.subr.bf16.mxu0 %v4756
    %7136 = vmatpush1.bf16.msra.mxu0 %v4755
    %7137 = vmatprep.subr.bf16.mxu0 %v4772
    %7138 = vmatpush1.bf16.msra.mxu0 %v4771
    %7139 = vmatprep.subr.bf16.mxu0 %v4788
    %7140 = vmatpush1.bf16.msra.mxu0 %v4787
    %7141 = vmatprep.subr.bf16.mxu0 %v4804
    %7142 = vmatpush1.bf16.msra.mxu0 %v4803
    %7143 = vmatprep.subr.bf16.mxu0 %v4820
    %7144 = vmatpush1.bf16.msra.mxu0 %v4819
    %7145 = vmatprep.mubr.bf16.mxu0 %v386
    %7146 = vmatmul.mubr.bf16.gmra.mrb[0].mxu0 %v385
    %v7147 = vpop.f32.mrb[0].mxu0
    %v7148 = vadd.f32 %v1448, %v7147
    %v7149 = vpop.f32.mrb[0].mxu0
    %v7150 = vadd.f32 %v1452, %v7149
    %v7151 = vpop.f32.mrb[0].mxu0
    %v7152 = vpop.f32.mrb[0].mxu0
    %7153 = vdwg.mxu0
    %7154 = vmatprep.subr.bf16.mxu0 %v4836
    %7155 = vmatpush1.bf16.msra.mxu0 %v4835
    %7156 = vmatprep.subr.bf16.mxu0 %v4852
    %7157 = vmatpush1.bf16.msra.mxu0 %v4851
    %7158 = vmatprep.subr.bf16.mxu0 %v4868
    %7159 = vmatpush1.bf16.msra.mxu0 %v4867
    %7160 = vmatprep.subr.bf16.mxu0 %v4884
    %7161 = vmatpush1.bf16.msra.mxu0 %v4883
    %7162 = vmatprep.subr.bf16.mxu0 %v4900
    %7163 = vmatpush1.bf16.msra.mxu0 %v4899
    %7164 = vmatprep.subr.bf16.mxu0 %v4916
    %7165 = vmatpush1.bf16.msra.mxu0 %v4915
    %7166 = vmatprep.subr.bf16.mxu0 %v4932
    %7167 = vmatpush1.bf16.msra.mxu0 %v4931
    %7168 = vmatprep.subr.bf16.mxu0 %v4948
    %7169 = vmatpush1.bf16.msra.mxu0 %v4947
    %7170 = vmatprep.subr.bf16.mxu0 %v4964
    %7171 = vmatpush1.bf16.msra.mxu0 %v4963
    %7172 = vmatprep.subr.bf16.mxu0 %v4980
    %7173 = vmatpush1.bf16.msra.mxu0 %v4979
    %7174 = vmatprep.subr.bf16.mxu0 %v4996
    %7175 = vmatpush1.bf16.msra.mxu0 %v4995
    %7176 = vmatprep.subr.bf16.mxu0 %v5012
    %7177 = vmatpush1.bf16.msra.mxu0 %v5011
    %7178 = vmatprep.subr.bf16.mxu0 %v5028
    %7179 = vmatpush1.bf16.msra.mxu0 %v5027
    %7180 = vmatprep.subr.bf16.mxu0 %v5044
    %7181 = vmatpush1.bf16.msra.mxu0 %v5043
    %7182 = vmatprep.subr.bf16.mxu0 %v5060
    %7183 = vmatpush1.bf16.msra.mxu0 %v5059
    %7184 = vmatprep.subr.bf16.mxu0 %v5076
    %7185 = vmatpush1.bf16.msra.mxu0 %v5075
    %7186 = vmatprep.mubr.bf16.mxu0 %v388
    %7187 = vmatmul.mubr.bf16.gmra.mrb[0].mxu0 %v387
    %v7188 = vpop.f32.mrb[0].mxu0
    %v7189 = vadd.f32 %v7148, %v7188
    %v7190 = vpop.f32.mrb[0].mxu0
    %v7191 = vadd.f32 %v7150, %v7190
    %v7192 = vpop.f32.mrb[0].mxu0
    %v7193 = vpop.f32.mrb[0].mxu0
    %7194 = vdwg.mxu0
    %7195 = vmatprep.subr.bf16.mxu0 %v5092
    %7196 = vmatpush1.bf16.msra.mxu0 %v5091
    %7197 = vmatprep.subr.bf16.mxu0 %v5108
    %7198 = vmatpush1.bf16.msra.mxu0 %v5107
    %7199 = vmatprep.subr.bf16.mxu0 %v5124
    %7200 = vmatpush1.bf16.msra.mxu0 %v5123
    %7201 = vmatprep.subr.bf16.mxu0 %v5140
    %7202 = vmatpush1.bf16.msra.mxu0 %v5139
    %7203 = vmatprep.subr.bf16.mxu0 %v5156
    %7204 = vmatpush1.bf16.msra.mxu0 %v5155
    %7205 = vmatprep.subr.bf16.mxu0 %v5172
    %7206 = vmatpush1.bf16.msra.mxu0 %v5171
    %7207 = vmatprep.subr.bf16.mxu0 %v5188
    %7208 = vmatpush1.bf16.msra.mxu0 %v5187
    %7209 = vmatprep.subr.bf16.mxu0 %v5204
    %7210 = vmatpush1.bf16.msra.mxu0 %v5203
    %7211 = vmatprep.subr.bf16.mxu0 %v5220
    %7212 = vmatpush1.bf16.msra.mxu0 %v5219
    %7213 = vmatprep.subr.bf16.mxu0 %v5236
    %7214 = vmatpush1.bf16.msra.mxu0 %v5235
    %7215 = vmatprep.subr.bf16.mxu0 %v5252
    %7216 = vmatpush1.bf16.msra.mxu0 %v5251
    %7217 = vmatprep.subr.bf16.mxu0 %v5268
    %7218 = vmatpush1.bf16.msra.mxu0 %v5267
    %7219 = vmatprep.subr.bf16.mxu0 %v5284
    %7220 = vmatpush1.bf16.msra.mxu0 %v5283
    %7221 = vmatprep.subr.bf16.mxu0 %v5300
    %7222 = vmatpush1.bf16.msra.mxu0 %v5299
    %7223 = vmatprep.subr.bf16.mxu0 %v5316
    %7224 = vmatpush1.bf16.msra.mxu0 %v5315
    %7225 = vmatprep.subr.bf16.mxu0 %v5332
    %7226 = vmatpush1.bf16.msra.mxu0 %v5331
    %7227 = vmatprep.mubr.bf16.mxu0 %v390
    %7228 = vmatmul.mubr.bf16.gmra.mrb[0].mxu0 %v389
    %v7229 = vpop.f32.mrb[0].mxu0
    %v7230 = vadd.f32 %v7189, %v7229
    %v7231 = vpop.f32.mrb[0].mxu0
    %v7232 = vadd.f32 %v7191, %v7231
    %v7233 = vpop.f32.mrb[0].mxu0
    %v7234 = vpop.f32.mrb[0].mxu0
    %7235 = vdwg.mxu0
    %7236 = vmatprep.subr.bf16.mxu0 %v5348
    %7237 = vmatpush1.bf16.msra.mxu0 %v5347
    %7238 = vmatprep.subr.bf16.mxu0 %v5364
    %7239 = vmatpush1.bf16.msra.mxu0 %v5363
    %7240 = vmatprep.subr.bf16.mxu0 %v5380
    %7241 = vmatpush1.bf16.msra.mxu0 %v5379
    %7242 = vmatprep.subr.bf16.mxu0 %v5396
    %7243 = vmatpush1.bf16.msra.mxu0 %v5395
    %7244 = vmatprep.subr.bf16.mxu0 %v5412
    %7245 = vmatpush1.bf16.msra.mxu0 %v5411
    %7246 = vmatprep.subr.bf16.mxu0 %v5428
    %7247 = vmatpush1.bf16.msra.mxu0 %v5427
    %7248 = vmatprep.subr.bf16.mxu0 %v5444
    %7249 = vmatpush1.bf16.msra.mxu0 %v5443
    %7250 = vmatprep.subr.bf16.mxu0 %v5460
    %7251 = vmatpush1.bf16.msra.mxu0 %v5459
    %7252 = vmatprep.subr.bf16.mxu0 %v5476
    %7253 = vmatpush1.bf16.msra.mxu0 %v5475
    %7254 = vmatprep.subr.bf16.mxu0 %v5492
    %7255 = vmatpush1.bf16.msra.mxu0 %v5491
    %7256 = vmatprep.subr.bf16.mxu0 %v5508
    %7257 = vmatpush1.bf16.msra.mxu0 %v5507
    %7258 = vmatprep.subr.bf16.mxu0 %v5524
    %7259 = vmatpush1.bf16.msra.mxu0 %v5523
    %7260 = vmatprep.subr.bf16.mxu0 %v5540
    %7261 = vmatpush1.bf16.msra.mxu0 %v5539
    %7262 = vmatprep.subr.bf16.mxu0 %v5556
    %7263 = vmatpush1.bf16.msra.mxu0 %v5555
    %7264 = vmatprep.subr.bf16.mxu0 %v5572
    %7265 = vmatpush1.bf16.msra.mxu0 %v5571
    %7266 = vmatprep.subr.bf16.mxu0 %v5588
    %7267 = vmatpush1.bf16.msra.mxu0 %v5587
    %7268 = vmatprep.mubr.bf16.mxu0 %v392
    %7269 = vmatmul.mubr.bf16.gmra.mrb[0].mxu0 %v391
    %v7270 = vpop.f32.mrb[0].mxu0
    %v7271 = vadd.f32 %v7230, %v7270
    %v7272 = vpop.f32.mrb[0].mxu0
    %v7273 = vadd.f32 %v7232, %v7272
    %v7274 = vpop.f32.mrb[0].mxu0
    %v7275 = vpop.f32.mrb[0].mxu0
    %7276 = vdwg.mxu0
    %7277 = vmatprep.subr.bf16.mxu0 %v4582
    %7278 = vmatpush1.bf16.msra.mxu0 %v4581
    %7279 = vmatprep.subr.bf16.mxu0 %v4598
    %7280 = vmatpush1.bf16.msra.mxu0 %v4597
    %7281 = vmatprep.subr.bf16.mxu0 %v4614
    %7282 = vmatpush1.bf16.msra.mxu0 %v4613
    %7283 = vmatprep.subr.bf16.mxu0 %v4630
    %7284 = vmatpush1.bf16.msra.mxu0 %v4629
    %7285 = vmatprep.subr.bf16.mxu0 %v4646
    %7286 = vmatpush1.bf16.msra.mxu0 %v4645
    %7287 = vmatprep.subr.bf16.mxu0 %v4662
    %7288 = vmatpush1.bf16.msra.mxu0 %v4661
    %7289 = vmatprep.subr.bf16.mxu0 %v4678
    %7290 = vmatpush1.bf16.msra.mxu0 %v4677
    %7291 = vmatprep.subr.bf16.mxu0 %v4694
    %7292 = vmatpush1.bf16.msra.mxu0 %v4693
    %7293 = vmatprep.subr.bf16.mxu0 %v4710
    %7294 = vmatpush1.bf16.msra.mxu0 %v4709
    %7295 = vmatprep.subr.bf16.mxu0 %v4726
    %7296 = vmatpush1.bf16.msra.mxu0 %v4725
    %7297 = vmatprep.subr.bf16.mxu0 %v4742
    %7298 = vmatpush1.bf16.msra.mxu0 %v4741
    %7299 = vmatprep.subr.bf16.mxu0 %v4758
    %7300 = vmatpush1.bf16.msra.mxu0 %v4757
    %7301 = vmatprep.subr.bf16.mxu0 %v4774
    %7302 = vmatpush1.bf16.msra.mxu0 %v4773
    %7303 = vmatprep.subr.bf16.mxu0 %v4790
    %7304 = vmatpush1.bf16.msra.mxu0 %v4789
    %7305 = vmatprep.subr.bf16.mxu0 %v4806
    %7306 = vmatpush1.bf16.msra.mxu0 %v4805
    %7307 = vmatprep.subr.bf16.mxu0 %v4822
    %7308 = vmatpush1.bf16.msra.mxu0 %v4821
    %7309 = vmatprep.mubr.bf16.mxu0 %v386
    %7310 = vmatmul.mubr.bf16.gmra.mrb[0].mxu0 %v385
    %v7311 = vpop.f32.mrb[0].mxu0
    %v7312 = vadd.f32 %v1456, %v7311
    %v7313 = vpop.f32.mrb[0].mxu0
    %v7314 = vadd.f32 %v1460, %v7313
    %v7315 = vpop.f32.mrb[0].mxu0
    %v7316 = vpop.f32.mrb[0].mxu0
    %7317 = vdwg.mxu0
    %7318 = vmatprep.subr.bf16.mxu0 %v4838
    %7319 = vmatpush1.bf16.msra.mxu0 %v4837
    %7320 = vmatprep.subr.bf16.mxu0 %v4854
    %7321 = vmatpush1.bf16.msra.mxu0 %v4853
    %7322 = vmatprep.subr.bf16.mxu0 %v4870
    %7323 = vmatpush1.bf16.msra.mxu0 %v4869
    %7324 = vmatprep.subr.bf16.mxu0 %v4886
    %7325 = vmatpush1.bf16.msra.mxu0 %v4885
    %7326 = vmatprep.subr.bf16.mxu0 %v4902
    %7327 = vmatpush1.bf16.msra.mxu0 %v4901
    %7328 = vmatprep.subr.bf16.mxu0 %v4918
    %7329 = vmatpush1.bf16.msra.mxu0 %v4917
    %7330 = vmatprep.subr.bf16.mxu0 %v4934
    %7331 = vmatpush1.bf16.msra.mxu0 %v4933
    %7332 = vmatprep.subr.bf16.mxu0 %v4950
    %7333 = vmatpush1.bf16.msra.mxu0 %v4949
    %7334 = vmatprep.subr.bf16.mxu0 %v4966
    %7335 = vmatpush1.bf16.msra.mxu0 %v4965
    %7336 = vmatprep.subr.bf16.mxu0 %v4982
    %7337 = vmatpush1.bf16.msra.mxu0 %v4981
    %7338 = vmatprep.subr.bf16.mxu0 %v4998
    %7339 = vmatpush1.bf16.msra.mxu0 %v4997
    %7340 = vmatprep.subr.bf16.mxu0 %v5014
    %7341 = vmatpush1.bf16.msra.mxu0 %v5013
    %7342 = vmatprep.subr.bf16.mxu0 %v5030
    %7343 = vmatpush1.bf16.msra.mxu0 %v5029
    %7344 = vmatprep.subr.bf16.mxu0 %v5046
    %7345 = vmatpush1.bf16.msra.mxu0 %v5045
    %7346 = vmatprep.subr.bf16.mxu0 %v5062
    %7347 = vmatpush1.bf16.msra.mxu0 %v5061
    %7348 = vmatprep.subr.bf16.mxu0 %v5078
    %7349 = vmatpush1.bf16.msra.mxu0 %v5077
    %7350 = vmatprep.mubr.bf16.mxu0 %v388
    %7351 = vmatmul.mubr.bf16.gmra.mrb[0].mxu0 %v387
    %v7352 = vpop.f32.mrb[0].mxu0
    %v7353 = vadd.f32 %v7312, %v7352
    %v7354 = vpop.f32.mrb[0].mxu0
    %v7355 = vadd.f32 %v7314, %v7354
    %v7356 = vpop.f32.mrb[0].mxu0
    %v7357 = vpop.f32.mrb[0].mxu0
    %7358 = vdwg.mxu0
    %7359 = vmatprep.subr.bf16.mxu0 %v5094
    %7360 = vmatpush1.bf16.msra.mxu0 %v5093
    %7361 = vmatprep.subr.bf16.mxu0 %v5110
    %7362 = vmatpush1.bf16.msra.mxu0 %v5109
    %7363 = vmatprep.subr.bf16.mxu0 %v5126
    %7364 = vmatpush1.bf16.msra.mxu0 %v5125
    %7365 = vmatprep.subr.bf16.mxu0 %v5142
    %7366 = vmatpush1.bf16.msra.mxu0 %v5141
    %7367 = vmatprep.subr.bf16.mxu0 %v5158
    %7368 = vmatpush1.bf16.msra.mxu0 %v5157
    %7369 = vmatprep.subr.bf16.mxu0 %v5174
    %7370 = vmatpush1.bf16.msra.mxu0 %v5173
    %7371 = vmatprep.subr.bf16.mxu0 %v5190
    %7372 = vmatpush1.bf16.msra.mxu0 %v5189
    %7373 = vmatprep.subr.bf16.mxu0 %v5206
    %7374 = vmatpush1.bf16.msra.mxu0 %v5205
    %7375 = vmatprep.subr.bf16.mxu0 %v5222
    %7376 = vmatpush1.bf16.msra.mxu0 %v5221
    %7377 = vmatprep.subr.bf16.mxu0 %v5238
    %7378 = vmatpush1.bf16.msra.mxu0 %v5237
    %7379 = vmatprep.subr.bf16.mxu0 %v5254
    %7380 = vmatpush1.bf16.msra.mxu0 %v5253
    %7381 = vmatprep.subr.bf16.mxu0 %v5270
    %7382 = vmatpush1.bf16.msra.mxu0 %v5269
    %7383 = vmatprep.subr.bf16.mxu0 %v5286
    %7384 = vmatpush1.bf16.msra.mxu0 %v5285
    %7385 = vmatprep.subr.bf16.mxu0 %v5302
    %7386 = vmatpush1.bf16.msra.mxu0 %v5301
    %7387 = vmatprep.subr.bf16.mxu0 %v5318
    %7388 = vmatpush1.bf16.msra.mxu0 %v5317
    %7389 = vmatprep.subr.bf16.mxu0 %v5334
    %7390 = vmatpush1.bf16.msra.mxu0 %v5333
    %7391 = vmatprep.mubr.bf16.mxu0 %v390
    %7392 = vmatmul.mubr.bf16.gmra.mrb[0].mxu0 %v389
    %v7393 = vpop.f32.mrb[0].mxu0
    %v7394 = vadd.f32 %v7353, %v7393
    %v7395 = vpop.f32.mrb[0].mxu0
    %v7396 = vadd.f32 %v7355, %v7395
    %v7397 = vpop.f32.mrb[0].mxu0
    %v7398 = vpop.f32.mrb[0].mxu0
    %7399 = vdwg.mxu0
    %7400 = vmatprep.subr.bf16.mxu0 %v5350
    %7401 = vmatpush1.bf16.msra.mxu0 %v5349
    %7402 = vmatprep.subr.bf16.mxu0 %v5366
    %7403 = vmatpush1.bf16.msra.mxu0 %v5365
    %7404 = vmatprep.subr.bf16.mxu0 %v5382
    %7405 = vmatpush1.bf16.msra.mxu0 %v5381
    %7406 = vmatprep.subr.bf16.mxu0 %v5398
    %7407 = vmatpush1.bf16.msra.mxu0 %v5397
    %7408 = vmatprep.subr.bf16.mxu0 %v5414
    %7409 = vmatpush1.bf16.msra.mxu0 %v5413
    %7410 = vmatprep.subr.bf16.mxu0 %v5430
    %7411 = vmatpush1.bf16.msra.mxu0 %v5429
    %7412 = vmatprep.subr.bf16.mxu0 %v5446
    %7413 = vmatpush1.bf16.msra.mxu0 %v5445
    %7414 = vmatprep.subr.bf16.mxu0 %v5462
    %7415 = vmatpush1.bf16.msra.mxu0 %v5461
    %7416 = vmatprep.subr.bf16.mxu0 %v5478
    %7417 = vmatpush1.bf16.msra.mxu0 %v5477
    %7418 = vmatprep.subr.bf16.mxu0 %v5494
    %7419 = vmatpush1.bf16.msra.mxu0 %v5493
    %7420 = vmatprep.subr.bf16.mxu0 %v5510
    %7421 = vmatpush1.bf16.msra.mxu0 %v5509
    %7422 = vmatprep.subr.bf16.mxu0 %v5526
    %7423 = vmatpush1.bf16.msra.mxu0 %v5525
    %7424 = vmatprep.subr.bf16.mxu0 %v5542
    %7425 = vmatpush1.bf16.msra.mxu0 %v5541
    %7426 = vmatprep.subr.bf16.mxu0 %v5558
    %7427 = vmatpush1.bf16.msra.mxu0 %v5557
    %7428 = vmatprep.subr.bf16.mxu0 %v5574
    %7429 = vmatpush1.bf16.msra.mxu0 %v5573
    %7430 = vmatprep.subr.bf16.mxu0 %v5590
    %7431 = vmatpush1.bf16.msra.mxu0 %v5589
    %7432 = vmatprep.mubr.bf16.mxu0 %v392
    %7433 = vmatmul.mubr.bf16.gmra.mrb[0].mxu0 %v391
    %v7434 = vpop.f32.mrb[0].mxu0
    %v7435 = vadd.f32 %v7394, %v7434
    %v7436 = vpop.f32.mrb[0].mxu0
    %v7437 = vadd.f32 %v7396, %v7436
    %v7438 = vpop.f32.mrb[0].mxu0
    %v7439 = vpop.f32.mrb[0].mxu0
    %7440 = vdwg.mxu0
    %7441 = vmatprep.subr.bf16.mxu0 %v4584
    %7442 = vmatpush1.bf16.msra.mxu0 %v4583
    %7443 = vmatprep.subr.bf16.mxu0 %v4600
    %7444 = vmatpush1.bf16.msra.mxu0 %v4599
    %7445 = vmatprep.subr.bf16.mxu0 %v4616
    %7446 = vmatpush1.bf16.msra.mxu0 %v4615
    %7447 = vmatprep.subr.bf16.mxu0 %v4632
    %7448 = vmatpush1.bf16.msra.mxu0 %v4631
    %7449 = vmatprep.subr.bf16.mxu0 %v4648
    %7450 = vmatpush1.bf16.msra.mxu0 %v4647
    %7451 = vmatprep.subr.bf16.mxu0 %v4664
    %7452 = vmatpush1.bf16.msra.mxu0 %v4663
    %7453 = vmatprep.subr.bf16.mxu0 %v4680
    %7454 = vmatpush1.bf16.msra.mxu0 %v4679
    %7455 = vmatprep.subr.bf16.mxu0 %v4696
    %7456 = vmatpush1.bf16.msra.mxu0 %v4695
    %7457 = vmatprep.subr.bf16.mxu0 %v4712
    %7458 = vmatpush1.bf16.msra.mxu0 %v4711
    %7459 = vmatprep.subr.bf16.mxu0 %v4728
    %7460 = vmatpush1.bf16.msra.mxu0 %v4727
    %7461 = vmatprep.subr.bf16.mxu0 %v4744
    %7462 = vmatpush1.bf16.msra.mxu0 %v4743
    %7463 = vmatprep.subr.bf16.mxu0 %v4760
    %7464 = vmatpush1.bf16.msra.mxu0 %v4759
    %7465 = vmatprep.subr.bf16.mxu0 %v4776
    %7466 = vmatpush1.bf16.msra.mxu0 %v4775
    %7467 = vmatprep.subr.bf16.mxu0 %v4792
    %7468 = vmatpush1.bf16.msra.mxu0 %v4791
    %7469 = vmatprep.subr.bf16.mxu0 %v4808
    %7470 = vmatpush1.bf16.msra.mxu0 %v4807
    %7471 = vmatprep.subr.bf16.mxu0 %v4824
    %7472 = vmatpush1.bf16.msra.mxu0 %v4823
    %7473 = vmatprep.mubr.bf16.mxu0 %v386
    %7474 = vmatmul.mubr.bf16.gmra.mrb[0].mxu0 %v385
    %v7475 = vpop.f32.mrb[0].mxu0
    %v7476 = vadd.f32 %v1464, %v7475
    %v7477 = vpop.f32.mrb[0].mxu0
    %v7478 = vadd.f32 %v1468, %v7477
    %v7479 = vpop.f32.mrb[0].mxu0
    %v7480 = vpop.f32.mrb[0].mxu0
    %7481 = vdwg.mxu0
    %7482 = vmatprep.subr.bf16.mxu0 %v4840
    %7483 = vmatpush1.bf16.msra.mxu0 %v4839
    %7484 = vmatprep.subr.bf16.mxu0 %v4856
    %7485 = vmatpush1.bf16.msra.mxu0 %v4855
    %7486 = vmatprep.subr.bf16.mxu0 %v4872
    %7487 = vmatpush1.bf16.msra.mxu0 %v4871
    %7488 = vmatprep.subr.bf16.mxu0 %v4888
    %7489 = vmatpush1.bf16.msra.mxu0 %v4887
    %7490 = vmatprep.subr.bf16.mxu0 %v4904
    %7491 = vmatpush1.bf16.msra.mxu0 %v4903
    %7492 = vmatprep.subr.bf16.mxu0 %v4920
    %7493 = vmatpush1.bf16.msra.mxu0 %v4919
    %7494 = vmatprep.subr.bf16.mxu0 %v4936
    %7495 = vmatpush1.bf16.msra.mxu0 %v4935
    %7496 = vmatprep.subr.bf16.mxu0 %v4952
    %7497 = vmatpush1.bf16.msra.mxu0 %v4951
    %7498 = vmatprep.subr.bf16.mxu0 %v4968
    %7499 = vmatpush1.bf16.msra.mxu0 %v4967
    %7500 = vmatprep.subr.bf16.mxu0 %v4984
    %7501 = vmatpush1.bf16.msra.mxu0 %v4983
    %7502 = vmatprep.subr.bf16.mxu0 %v5000
    %7503 = vmatpush1.bf16.msra.mxu0 %v4999
    %7504 = vmatprep.subr.bf16.mxu0 %v5016
    %7505 = vmatpush1.bf16.msra.mxu0 %v5015
    %7506 = vmatprep.subr.bf16.mxu0 %v5032
    %7507 = vmatpush1.bf16.msra.mxu0 %v5031
    %7508 = vmatprep.subr.bf16.mxu0 %v5048
    %7509 = vmatpush1.bf16.msra.mxu0 %v5047
    %7510 = vmatprep.subr.bf16.mxu0 %v5064
    %7511 = vmatpush1.bf16.msra.mxu0 %v5063
    %7512 = vmatprep.subr.bf16.mxu0 %v5080
    %7513 = vmatpush1.bf16.msra.mxu0 %v5079
    %7514 = vmatprep.mubr.bf16.mxu0 %v388
    %7515 = vmatmul.mubr.bf16.gmra.mrb[0].mxu0 %v387
    %v7516 = vpop.f32.mrb[0].mxu0
    %v7517 = vadd.f32 %v7476, %v7516
    %v7518 = vpop.f32.mrb[0].mxu0
    %v7519 = vadd.f32 %v7478, %v7518
    %v7520 = vpop.f32.mrb[0].mxu0
    %v7521 = vpop.f32.mrb[0].mxu0
    %7522 = vdwg.mxu0
    %7523 = vmatprep.subr.bf16.mxu0 %v5096
    %7524 = vmatpush1.bf16.msra.mxu0 %v5095
    %7525 = vmatprep.subr.bf16.mxu0 %v5112
    %7526 = vmatpush1.bf16.msra.mxu0 %v5111
    %7527 = vmatprep.subr.bf16.mxu0 %v5128
    %7528 = vmatpush1.bf16.msra.mxu0 %v5127
    %7529 = vmatprep.subr.bf16.mxu0 %v5144
    %7530 = vmatpush1.bf16.msra.mxu0 %v5143
    %7531 = vmatprep.subr.bf16.mxu0 %v5160
    %7532 = vmatpush1.bf16.msra.mxu0 %v5159
    %7533 = vmatprep.subr.bf16.mxu0 %v5176
    %7534 = vmatpush1.bf16.msra.mxu0 %v5175
    %7535 = vmatprep.subr.bf16.mxu0 %v5192
    %7536 = vmatpush1.bf16.msra.mxu0 %v5191
    %7537 = vmatprep.subr.bf16.mxu0 %v5208
    %7538 = vmatpush1.bf16.msra.mxu0 %v5207
    %7539 = vmatprep.subr.bf16.mxu0 %v5224
    %7540 = vmatpush1.bf16.msra.mxu0 %v5223
    %7541 = vmatprep.subr.bf16.mxu0 %v5240
    %7542 = vmatpush1.bf16.msra.mxu0 %v5239
    %7543 = vmatprep.subr.bf16.mxu0 %v5256
    %7544 = vmatpush1.bf16.msra.mxu0 %v5255
    %7545 = vmatprep.subr.bf16.mxu0 %v5272
    %7546 = vmatpush1.bf16.msra.mxu0 %v5271
    %7547 = vmatprep.subr.bf16.mxu0 %v5288
    %7548 = vmatpush1.bf16.msra.mxu0 %v5287
    %7549 = vmatprep.subr.bf16.mxu0 %v5304
    %7550 = vmatpush1.bf16.msra.mxu0 %v5303
    %7551 = vmatprep.subr.bf16.mxu0 %v5320
    %7552 = vmatpush1.bf16.msra.mxu0 %v5319
    %7553 = vmatprep.subr.bf16.mxu0 %v5336
    %7554 = vmatpush1.bf16.msra.mxu0 %v5335
    %7555 = vmatprep.mubr.bf16.mxu0 %v390
    %7556 = vmatmul.mubr.bf16.gmra.mrb[0].mxu0 %v389
    %v7557 = vpop.f32.mrb[0].mxu0
    %v7558 = vadd.f32 %v7517, %v7557
    %v7559 = vpop.f32.mrb[0].mxu0
    %v7560 = vadd.f32 %v7519, %v7559
    %v7561 = vpop.f32.mrb[0].mxu0
    %v7562 = vpop.f32.mrb[0].mxu0
    %7563 = vdwg.mxu0
    %7564 = vmatprep.subr.bf16.mxu0 %v5352
    %7565 = vmatpush1.bf16.msra.mxu0 %v5351
    %7566 = vmatprep.subr.bf16.mxu0 %v5368
    %7567 = vmatpush1.bf16.msra.mxu0 %v5367
    %7568 = vmatprep.subr.bf16.mxu0 %v5384
    %7569 = vmatpush1.bf16.msra.mxu0 %v5383
    %7570 = vmatprep.subr.bf16.mxu0 %v5400
    %7571 = vmatpush1.bf16.msra.mxu0 %v5399
    %7572 = vmatprep.subr.bf16.mxu0 %v5416
    %7573 = vmatpush1.bf16.msra.mxu0 %v5415
    %7574 = vmatprep.subr.bf16.mxu0 %v5432
    %7575 = vmatpush1.bf16.msra.mxu0 %v5431
    %7576 = vmatprep.subr.bf16.mxu0 %v5448
    %7577 = vmatpush1.bf16.msra.mxu0 %v5447
    %7578 = vmatprep.subr.bf16.mxu0 %v5464
    %7579 = vmatpush1.bf16.msra.mxu0 %v5463
    %7580 = vmatprep.subr.bf16.mxu0 %v5480
    %7581 = vmatpush1.bf16.msra.mxu0 %v5479
    %7582 = vmatprep.subr.bf16.mxu0 %v5496
    %7583 = vmatpush1.bf16.msra.mxu0 %v5495
    %7584 = vmatprep.subr.bf16.mxu0 %v5512
    %7585 = vmatpush1.bf16.msra.mxu0 %v5511
    %7586 = vmatprep.subr.bf16.mxu0 %v5528
    %7587 = vmatpush1.bf16.msra.mxu0 %v5527
    %7588 = vmatprep.subr.bf16.mxu0 %v5544
    %7589 = vmatpush1.bf16.msra.mxu0 %v5543
    %7590 = vmatprep.subr.bf16.mxu0 %v5560
    %7591 = vmatpush1.bf16.msra.mxu0 %v5559
    %7592 = vmatprep.subr.bf16.mxu0 %v5576
    %7593 = vmatpush1.bf16.msra.mxu0 %v5575
    %7594 = vmatprep.subr.bf16.mxu0 %v5592
    %7595 = vmatpush1.bf16.msra.mxu0 %v5591
    %7596 = vmatprep.mubr.bf16.mxu0 %v392
    %7597 = vmatmul.mubr.bf16.gmra.mrb[0].mxu0 %v391
    %v7598 = vpop.f32.mrb[0].mxu0
    %v7599 = vadd.f32 %v7558, %v7598
    %v7600 = vpop.f32.mrb[0].mxu0
    %v7601 = vadd.f32 %v7560, %v7600
    %v7602 = vpop.f32.mrb[0].mxu0
    %v7603 = vpop.f32.mrb[0].mxu0
    %7604 = vdwg.mxu0
    %7605 = vmatprep.subr.bf16.mxu0 %v4586
    %7606 = vmatpush1.bf16.msra.mxu0 %v4585
    %7607 = vmatprep.subr.bf16.mxu0 %v4602
    %7608 = vmatpush1.bf16.msra.mxu0 %v4601
    %7609 = vmatprep.subr.bf16.mxu0 %v4618
    %7610 = vmatpush1.bf16.msra.mxu0 %v4617
    %7611 = vmatprep.subr.bf16.mxu0 %v4634
    %7612 = vmatpush1.bf16.msra.mxu0 %v4633
    %7613 = vmatprep.subr.bf16.mxu0 %v4650
    %7614 = vmatpush1.bf16.msra.mxu0 %v4649
    %7615 = vmatprep.subr.bf16.mxu0 %v4666
    %7616 = vmatpush1.bf16.msra.mxu0 %v4665
    %7617 = vmatprep.subr.bf16.mxu0 %v4682
    %7618 = vmatpush1.bf16.msra.mxu0 %v4681
    %7619 = vmatprep.subr.bf16.mxu0 %v4698
    %7620 = vmatpush1.bf16.msra.mxu0 %v4697
    %7621 = vmatprep.subr.bf16.mxu0 %v4714
    %7622 = vmatpush1.bf16.msra.mxu0 %v4713
    %7623 = vmatprep.subr.bf16.mxu0 %v4730
    %7624 = vmatpush1.bf16.msra.mxu0 %v4729
    %7625 = vmatprep.subr.bf16.mxu0 %v4746
    %7626 = vmatpush1.bf16.msra.mxu0 %v4745
    %7627 = vmatprep.subr.bf16.mxu0 %v4762
    %7628 = vmatpush1.bf16.msra.mxu0 %v4761
    %7629 = vmatprep.subr.bf16.mxu0 %v4778
    %7630 = vmatpush1.bf16.msra.mxu0 %v4777
    %7631 = vmatprep.subr.bf16.mxu0 %v4794
    %7632 = vmatpush1.bf16.msra.mxu0 %v4793
    %7633 = vmatprep.subr.bf16.mxu0 %v4810
    %7634 = vmatpush1.bf16.msra.mxu0 %v4809
    %7635 = vmatprep.subr.bf16.mxu0 %v4826
    %7636 = vmatpush1.bf16.msra.mxu0 %v4825
    %7637 = vmatprep.mubr.bf16.mxu0 %v386
    %7638 = vmatmul.mubr.bf16.gmra.mrb[0].mxu0 %v385
    %v7639 = vpop.f32.mrb[0].mxu0
    %v7640 = vadd.f32 %v1472, %v7639
    %v7641 = vpop.f32.mrb[0].mxu0
    %v7642 = vadd.f32 %v1476, %v7641
    %v7643 = vpop.f32.mrb[0].mxu0
    %v7644 = vpop.f32.mrb[0].mxu0
    %7645 = vdwg.mxu0
    %7646 = vmatprep.subr.bf16.mxu0 %v4842
    %7647 = vmatpush1.bf16.msra.mxu0 %v4841
    %7648 = vmatprep.subr.bf16.mxu0 %v4858
    %7649 = vmatpush1.bf16.msra.mxu0 %v4857
    %7650 = vmatprep.subr.bf16.mxu0 %v4874
    %7651 = vmatpush1.bf16.msra.mxu0 %v4873
    %7652 = vmatprep.subr.bf16.mxu0 %v4890
    %7653 = vmatpush1.bf16.msra.mxu0 %v4889
    %7654 = vmatprep.subr.bf16.mxu0 %v4906
    %7655 = vmatpush1.bf16.msra.mxu0 %v4905
    %7656 = vmatprep.subr.bf16.mxu0 %v4922
    %7657 = vmatpush1.bf16.msra.mxu0 %v4921
    %7658 = vmatprep.subr.bf16.mxu0 %v4938
    %7659 = vmatpush1.bf16.msra.mxu0 %v4937
    %7660 = vmatprep.subr.bf16.mxu0 %v4954
    %7661 = vmatpush1.bf16.msra.mxu0 %v4953
    %7662 = vmatprep.subr.bf16.mxu0 %v4970
    %7663 = vmatpush1.bf16.msra.mxu0 %v4969
    %7664 = vmatprep.subr.bf16.mxu0 %v4986
    %7665 = vmatpush1.bf16.msra.mxu0 %v4985
    %7666 = vmatprep.subr.bf16.mxu0 %v5002
    %7667 = vmatpush1.bf16.msra.mxu0 %v5001
    %7668 = vmatprep.subr.bf16.mxu0 %v5018
    %7669 = vmatpush1.bf16.msra.mxu0 %v5017
    %7670 = vmatprep.subr.bf16.mxu0 %v5034
    %7671 = vmatpush1.bf16.msra.mxu0 %v5033
    %7672 = vmatprep.subr.bf16.mxu0 %v5050
    %7673 = vmatpush1.bf16.msra.mxu0 %v5049
    %7674 = vmatprep.subr.bf16.mxu0 %v5066
    %7675 = vmatpush1.bf16.msra.mxu0 %v5065
    %7676 = vmatprep.subr.bf16.mxu0 %v5082
    %7677 = vmatpush1.bf16.msra.mxu0 %v5081
    %7678 = vmatprep.mubr.bf16.mxu0 %v388
    %7679 = vmatmul.mubr.bf16.gmra.mrb[0].mxu0 %v387
    %v7680 = vpop.f32.mrb[0].mxu0
    %v7681 = vadd.f32 %v7640, %v7680
    %v7682 = vpop.f32.mrb[0].mxu0
    %v7683 = vadd.f32 %v7642, %v7682
    %v7684 = vpop.f32.mrb[0].mxu0
    %v7685 = vpop.f32.mrb[0].mxu0
    %7686 = vdwg.mxu0
    %7687 = vmatprep.subr.bf16.mxu0 %v5098
    %7688 = vmatpush1.bf16.msra.mxu0 %v5097
    %7689 = vmatprep.subr.bf16.mxu0 %v5114
    %7690 = vmatpush1.bf16.msra.mxu0 %v5113
    %7691 = vmatprep.subr.bf16.mxu0 %v5130
    %7692 = vmatpush1.bf16.msra.mxu0 %v5129
    %7693 = vmatprep.subr.bf16.mxu0 %v5146
    %7694 = vmatpush1.bf16.msra.mxu0 %v5145
    %7695 = vmatprep.subr.bf16.mxu0 %v5162
    %7696 = vmatpush1.bf16.msra.mxu0 %v5161
    %7697 = vmatprep.subr.bf16.mxu0 %v5178
    %7698 = vmatpush1.bf16.msra.mxu0 %v5177
    %7699 = vmatprep.subr.bf16.mxu0 %v5194
    %7700 = vmatpush1.bf16.msra.mxu0 %v5193
    %7701 = vmatprep.subr.bf16.mxu0 %v5210
    %7702 = vmatpush1.bf16.msra.mxu0 %v5209
    %7703 = vmatprep.subr.bf16.mxu0 %v5226
    %7704 = vmatpush1.bf16.msra.mxu0 %v5225
    %7705 = vmatprep.subr.bf16.mxu0 %v5242
    %7706 = vmatpush1.bf16.msra.mxu0 %v5241
    %7707 = vmatprep.subr.bf16.mxu0 %v5258
    %7708 = vmatpush1.bf16.msra.mxu0 %v5257
    %7709 = vmatprep.subr.bf16.mxu0 %v5274
    %7710 = vmatpush1.bf16.msra.mxu0 %v5273
    %7711 = vmatprep.subr.bf16.mxu0 %v5290
    %7712 = vmatpush1.bf16.msra.mxu0 %v5289
    %7713 = vmatprep.subr.bf16.mxu0 %v5306
    %7714 = vmatpush1.bf16.msra.mxu0 %v5305
    %7715 = vmatprep.subr.bf16.mxu0 %v5322
    %7716 = vmatpush1.bf16.msra.mxu0 %v5321
    %7717 = vmatprep.subr.bf16.mxu0 %v5338
    %7718 = vmatpush1.bf16.msra.mxu0 %v5337
    %7719 = vmatprep.mubr.bf16.mxu0 %v390
    %7720 = vmatmul.mubr.bf16.gmra.mrb[0].mxu0 %v389
    %v7721 = vpop.f32.mrb[0].mxu0
    %v7722 = vadd.f32 %v7681, %v7721
    %v7723 = vpop.f32.mrb[0].mxu0
    %v7724 = vadd.f32 %v7683, %v7723
    %v7725 = vpop.f32.mrb[0].mxu0
    %v7726 = vpop.f32.mrb[0].mxu0
    %7727 = vdwg.mxu0
    %7728 = vmatprep.subr.bf16.mxu0 %v5354
    %7729 = vmatpush1.bf16.msra.mxu0 %v5353
    %7730 = vmatprep.subr.bf16.mxu0 %v5370
    %7731 = vmatpush1.bf16.msra.mxu0 %v5369
    %7732 = vmatprep.subr.bf16.mxu0 %v5386
    %7733 = vmatpush1.bf16.msra.mxu0 %v5385
    %7734 = vmatprep.subr.bf16.mxu0 %v5402
    %7735 = vmatpush1.bf16.msra.mxu0 %v5401
    %7736 = vmatprep.subr.bf16.mxu0 %v5418
    %7737 = vmatpush1.bf16.msra.mxu0 %v5417
    %7738 = vmatprep.subr.bf16.mxu0 %v5434
    %7739 = vmatpush1.bf16.msra.mxu0 %v5433
    %7740 = vmatprep.subr.bf16.mxu0 %v5450
    %7741 = vmatpush1.bf16.msra.mxu0 %v5449
    %7742 = vmatprep.subr.bf16.mxu0 %v5466
    %7743 = vmatpush1.bf16.msra.mxu0 %v5465
    %7744 = vmatprep.subr.bf16.mxu0 %v5482
    %7745 = vmatpush1.bf16.msra.mxu0 %v5481
    %7746 = vmatprep.subr.bf16.mxu0 %v5498
    %7747 = vmatpush1.bf16.msra.mxu0 %v5497
    %7748 = vmatprep.subr.bf16.mxu0 %v5514
    %7749 = vmatpush1.bf16.msra.mxu0 %v5513
    %7750 = vmatprep.subr.bf16.mxu0 %v5530
    %7751 = vmatpush1.bf16.msra.mxu0 %v5529
    %7752 = vmatprep.subr.bf16.mxu0 %v5546
    %7753 = vmatpush1.bf16.msra.mxu0 %v5545
    %7754 = vmatprep.subr.bf16.mxu0 %v5562
    %7755 = vmatpush1.bf16.msra.mxu0 %v5561
    %7756 = vmatprep.subr.bf16.mxu0 %v5578
    %7757 = vmatpush1.bf16.msra.mxu0 %v5577
    %7758 = vmatprep.subr.bf16.mxu0 %v5594
    %7759 = vmatpush1.bf16.msra.mxu0 %v5593
    %7760 = vmatprep.mubr.bf16.mxu0 %v392
    %7761 = vmatmul.mubr.bf16.gmra.mrb[0].mxu0 %v391
    %v7762 = vpop.f32.mrb[0].mxu0
    %v7763 = vadd.f32 %v7722, %v7762
    %v7764 = vpop.f32.mrb[0].mxu0
    %v7765 = vadd.f32 %v7724, %v7764
    %v7766 = vpop.f32.mrb[0].mxu0
    %v7767 = vpop.f32.mrb[0].mxu0
    %7768 = vdwg.mxu0
    %7769 = vmatprep.subr.bf16.mxu0 %v4588
    %7770 = vmatpush1.bf16.msra.mxu0 %v4587
    %7771 = vmatprep.subr.bf16.mxu0 %v4604
    %7772 = vmatpush1.bf16.msra.mxu0 %v4603
    %7773 = vmatprep.subr.bf16.mxu0 %v4620
    %7774 = vmatpush1.bf16.msra.mxu0 %v4619
    %7775 = vmatprep.subr.bf16.mxu0 %v4636
    %7776 = vmatpush1.bf16.msra.mxu0 %v4635
    %7777 = vmatprep.subr.bf16.mxu0 %v4652
    %7778 = vmatpush1.bf16.msra.mxu0 %v4651
    %7779 = vmatprep.subr.bf16.mxu0 %v4668
    %7780 = vmatpush1.bf16.msra.mxu0 %v4667
    %7781 = vmatprep.subr.bf16.mxu0 %v4684
    %7782 = vmatpush1.bf16.msra.mxu0 %v4683
    %7783 = vmatprep.subr.bf16.mxu0 %v4700
    %7784 = vmatpush1.bf16.msra.mxu0 %v4699
    %7785 = vmatprep.subr.bf16.mxu0 %v4716
    %7786 = vmatpush1.bf16.msra.mxu0 %v4715
    %7787 = vmatprep.subr.bf16.mxu0 %v4732
    %7788 = vmatpush1.bf16.msra.mxu0 %v4731
    %7789 = vmatprep.subr.bf16.mxu0 %v4748
    %7790 = vmatpush1.bf16.msra.mxu0 %v4747
    %7791 = vmatprep.subr.bf16.mxu0 %v4764
    %7792 = vmatpush1.bf16.msra.mxu0 %v4763
    %7793 = vmatprep.subr.bf16.mxu0 %v4780
    %7794 = vmatpush1.bf16.msra.mxu0 %v4779
    %7795 = vmatprep.subr.bf16.mxu0 %v4796
    %7796 = vmatpush1.bf16.msra.mxu0 %v4795
    %7797 = vmatprep.subr.bf16.mxu0 %v4812
    %7798 = vmatpush1.bf16.msra.mxu0 %v4811
    %7799 = vmatprep.subr.bf16.mxu0 %v4828
    %7800 = vmatpush1.bf16.msra.mxu0 %v4827
    %7801 = vmatprep.mubr.bf16.mxu0 %v386
    %7802 = vmatmul.mubr.bf16.gmra.mrb[0].mxu0 %v385
    %v7803 = vpop.f32.mrb[0].mxu0
    %v7804 = vadd.f32 %v1480, %v7803
    %v7805 = vpop.f32.mrb[0].mxu0
    %v7806 = vadd.f32 %v1484, %v7805
    %v7807 = vpop.f32.mrb[0].mxu0
    %v7808 = vpop.f32.mrb[0].mxu0
    %7809 = vdwg.mxu0
    %7810 = vmatprep.subr.bf16.mxu0 %v4844
    %7811 = vmatpush1.bf16.msra.mxu0 %v4843
    %7812 = vmatprep.subr.bf16.mxu0 %v4860
    %7813 = vmatpush1.bf16.msra.mxu0 %v4859
    %7814 = vmatprep.subr.bf16.mxu0 %v4876
    %7815 = vmatpush1.bf16.msra.mxu0 %v4875
    %7816 = vmatprep.subr.bf16.mxu0 %v4892
    %7817 = vmatpush1.bf16.msra.mxu0 %v4891
    %7818 = vmatprep.subr.bf16.mxu0 %v4908
    %7819 = vmatpush1.bf16.msra.mxu0 %v4907
    %7820 = vmatprep.subr.bf16.mxu0 %v4924
    %7821 = vmatpush1.bf16.msra.mxu0 %v4923
    %7822 = vmatprep.subr.bf16.mxu0 %v4940
    %7823 = vmatpush1.bf16.msra.mxu0 %v4939
    %7824 = vmatprep.subr.bf16.mxu0 %v4956
    %7825 = vmatpush1.bf16.msra.mxu0 %v4955
    %7826 = vmatprep.subr.bf16.mxu0 %v4972
    %7827 = vmatpush1.bf16.msra.mxu0 %v4971
    %7828 = vmatprep.subr.bf16.mxu0 %v4988
    %7829 = vmatpush1.bf16.msra.mxu0 %v4987
    %7830 = vmatprep.subr.bf16.mxu0 %v5004
    %7831 = vmatpush1.bf16.msra.mxu0 %v5003
    %7832 = vmatprep.subr.bf16.mxu0 %v5020
    %7833 = vmatpush1.bf16.msra.mxu0 %v5019
    %7834 = vmatprep.subr.bf16.mxu0 %v5036
    %7835 = vmatpush1.bf16.msra.mxu0 %v5035
    %7836 = vmatprep.subr.bf16.mxu0 %v5052
    %7837 = vmatpush1.bf16.msra.mxu0 %v5051
    %7838 = vmatprep.subr.bf16.mxu0 %v5068
    %7839 = vmatpush1.bf16.msra.mxu0 %v5067
    %7840 = vmatprep.subr.bf16.mxu0 %v5084
    %7841 = vmatpush1.bf16.msra.mxu0 %v5083
    %7842 = vmatprep.mubr.bf16.mxu0 %v388
    %7843 = vmatmul.mubr.bf16.gmra.mrb[0].mxu0 %v387
    %v7844 = vpop.f32.mrb[0].mxu0
    %v7845 = vadd.f32 %v7804, %v7844
    %v7846 = vpop.f32.mrb[0].mxu0
    %v7847 = vadd.f32 %v7806, %v7846
    %v7848 = vpop.f32.mrb[0].mxu0
    %v7849 = vpop.f32.mrb[0].mxu0
    %7850 = vdwg.mxu0
    %7851 = vmatprep.subr.bf16.mxu0 %v5100
    %7852 = vmatpush1.bf16.msra.mxu0 %v5099
    %7853 = vmatprep.subr.bf16.mxu0 %v5116
    %7854 = vmatpush1.bf16.msra.mxu0 %v5115
    %7855 = vmatprep.subr.bf16.mxu0 %v5132
    %7856 = vmatpush1.bf16.msra.mxu0 %v5131
    %7857 = vmatprep.subr.bf16.mxu0 %v5148
    %7858 = vmatpush1.bf16.msra.mxu0 %v5147
    %7859 = vmatprep.subr.bf16.mxu0 %v5164
    %7860 = vmatpush1.bf16.msra.mxu0 %v5163
    %7861 = vmatprep.subr.bf16.mxu0 %v5180
    %7862 = vmatpush1.bf16.msra.mxu0 %v5179
    %7863 = vmatprep.subr.bf16.mxu0 %v5196
    %7864 = vmatpush1.bf16.msra.mxu0 %v5195
    %7865 = vmatprep.subr.bf16.mxu0 %v5212
    %7866 = vmatpush1.bf16.msra.mxu0 %v5211
    %7867 = vmatprep.subr.bf16.mxu0 %v5228
    %7868 = vmatpush1.bf16.msra.mxu0 %v5227
    %7869 = vmatprep.subr.bf16.mxu0 %v5244
    %7870 = vmatpush1.bf16.msra.mxu0 %v5243
    %7871 = vmatprep.subr.bf16.mxu0 %v5260
    %7872 = vmatpush1.bf16.msra.mxu0 %v5259
    %7873 = vmatprep.subr.bf16.mxu0 %v5276
    %7874 = vmatpush1.bf16.msra.mxu0 %v5275
    %7875 = vmatprep.subr.bf16.mxu0 %v5292
    %7876 = vmatpush1.bf16.msra.mxu0 %v5291
    %7877 = vmatprep.subr.bf16.mxu0 %v5308
    %7878 = vmatpush1.bf16.msra.mxu0 %v5307
    %7879 = vmatprep.subr.bf16.mxu0 %v5324
    %7880 = vmatpush1.bf16.msra.mxu0 %v5323
    %7881 = vmatprep.subr.bf16.mxu0 %v5340
    %7882 = vmatpush1.bf16.msra.mxu0 %v5339
    %7883 = vmatprep.mubr.bf16.mxu0 %v390
    %7884 = vmatmul.mubr.bf16.gmra.mrb[0].mxu0 %v389
    %v7885 = vpop.f32.mrb[0].mxu0
    %v7886 = vadd.f32 %v7845, %v7885
    %v7887 = vpop.f32.mrb[0].mxu0
    %v7888 = vadd.f32 %v7847, %v7887
    %v7889 = vpop.f32.mrb[0].mxu0
    %v7890 = vpop.f32.mrb[0].mxu0
    %7891 = vdwg.mxu0
    %7892 = vmatprep.subr.bf16.mxu0 %v5356
    %7893 = vmatpush1.bf16.msra.mxu0 %v5355
    %7894 = vmatprep.subr.bf16.mxu0 %v5372
    %7895 = vmatpush1.bf16.msra.mxu0 %v5371
    %7896 = vmatprep.subr.bf16.mxu0 %v5388
    %7897 = vmatpush1.bf16.msra.mxu0 %v5387
    %7898 = vmatprep.subr.bf16.mxu0 %v5404
    %7899 = vmatpush1.bf16.msra.mxu0 %v5403
    %7900 = vmatprep.subr.bf16.mxu0 %v5420
    %7901 = vmatpush1.bf16.msra.mxu0 %v5419
    %7902 = vmatprep.subr.bf16.mxu0 %v5436
    %7903 = vmatpush1.bf16.msra.mxu0 %v5435
    %7904 = vmatprep.subr.bf16.mxu0 %v5452
    %7905 = vmatpush1.bf16.msra.mxu0 %v5451
    %7906 = vmatprep.subr.bf16.mxu0 %v5468
    %7907 = vmatpush1.bf16.msra.mxu0 %v5467
    %7908 = vmatprep.subr.bf16.mxu0 %v5484
    %7909 = vmatpush1.bf16.msra.mxu0 %v5483
    %7910 = vmatprep.subr.bf16.mxu0 %v5500
    %7911 = vmatpush1.bf16.msra.mxu0 %v5499
    %7912 = vmatprep.subr.bf16.mxu0 %v5516
    %7913 = vmatpush1.bf16.msra.mxu0 %v5515
    %7914 = vmatprep.subr.bf16.mxu0 %v5532
    %7915 = vmatpush1.bf16.msra.mxu0 %v5531
    %7916 = vmatprep.subr.bf16.mxu0 %v5548
    %7917 = vmatpush1.bf16.msra.mxu0 %v5547
    %7918 = vmatprep.subr.bf16.mxu0 %v5564
    %7919 = vmatpush1.bf16.msra.mxu0 %v5563
    %7920 = vmatprep.subr.bf16.mxu0 %v5580
    %7921 = vmatpush1.bf16.msra.mxu0 %v5579
    %7922 = vmatprep.subr.bf16.mxu0 %v5596
    %7923 = vmatpush1.bf16.msra.mxu0 %v5595
    %7924 = vmatprep.mubr.bf16.mxu0 %v392
    %7925 = vmatmul.mubr.bf16.gmra.mrb[0].mxu0 %v391
    %v7926 = vpop.f32.mrb[0].mxu0
    %v7927 = vadd.f32 %v7886, %v7926
    %v7928 = vpop.f32.mrb[0].mxu0
    %v7929 = vadd.f32 %v7888, %v7928
    %v7930 = vpop.f32.mrb[0].mxu0
    %v7931 = vpop.f32.mrb[0].mxu0
    %7932 = vdwg.mxu0
    %v7933 = vmax.f32 %v6779, 0.0
    %v7934 = vmax.f32 %v6781, 0.0
    %v7935 = vmax.f32 %v6943, 0.0
    %v7936 = vmax.f32 %v6945, 0.0
    %v7937 = vmax.f32 %v7107, 0.0
    %v7938 = vmax.f32 %v7109, 0.0
    %v7939 = vmax.f32 %v7271, 0.0
    %v7940 = vmax.f32 %v7273, 0.0
    %v7941 = vmax.f32 %v7435, 0.0
    %v7942 = vmax.f32 %v7437, 0.0
    %v7943 = vmax.f32 %v7599, 0.0
    %v7944 = vmax.f32 %v7601, 0.0
    %v7945 = vmax.f32 %v7763, 0.0
    %v7946 = vmax.f32 %v7765, 0.0
    %v7947 = vmax.f32 %v7927, 0.0
    %v7948 = vmax.f32 %v7929, 0.0
    %v7949 = vpack.c.bf16 %v7933, %v7933
    %v7950 = vpack.c.bf16 %v7934, %v7934
    %v7951 = vpack.c.bf16 %v7935, %v7935
    %v7952 = vpack.c.bf16 %v7936, %v7936
    %v7953 = vpack.c.bf16 %v7937, %v7937
    %v7954 = vpack.c.bf16 %v7938, %v7938
    %v7955 = vpack.c.bf16 %v7939, %v7939
    %v7956 = vpack.c.bf16 %v7940, %v7940
    %v7957 = vpack.c.bf16 %v7941, %v7941
    %v7958 = vpack.c.bf16 %v7942, %v7942
    %v7959 = vpack.c.bf16 %v7943, %v7943
    %v7960 = vpack.c.bf16 %v7944, %v7944
    %v7961 = vpack.c.bf16 %v7945, %v7945
    %v7962 = vpack.c.bf16 %v7946, %v7946
    %v7963 = vpack.c.bf16 %v7947, %v7947
    %v7964 = vpack.c.bf16 %v7948, %v7948
    %v7965 = vld [vmem:[#allocation9] sm:$0xff]
    %v7966 = vld [vmem:[#allocation9 + $0x8] sm:$0xff]
    %v7967 = vld [vmem:[#allocation9 + $0x10] sm:$0xff]
    %v7968 = vld [vmem:[#allocation9 + $0x18] sm:$0xff]
    %v7969 = vld [vmem:[#allocation10] sm:$0x1]
    %v7971 = vlaneseq
    %v7972 = vshrl.u32 %v7971, 7
    %v7973 = vsub.s32 0, %v7972
    %v7974 = vrot.slane %v7969, %v7973
    %v7980 = vcombine.high %v7965, %v7965
    %v7982 = vunpack.c.l.s4 1983009808
    %v7983 = vunpack.c.0.s8 %v7982
    %v7984 = vlaneseq
    %v7985 = vshrl.u32 %v7984, 7
    %v7986 = vsub.s32 %v7983, %v7985
    %v7987 = vrot.slane %v7965, %v7986
    %v7989 = vunpack.c.l.s4 1983009808
    %v7990 = vunpack.c.0.s8 %v7989
    %v7991 = vlaneseq
    %v7992 = vshrl.u32 %v7991, 7
    %v7993 = vsub.s32 %v7990, %v7992
    %v7994 = vrot.slane %v7980, %v7993
    %v7995 = vcombine.high %v7987, %v7987
    %v7996 = vcombine.high %v7994, %v7994
    %v7997 = vcombine.high %v7966, %v7966
    %v7999 = vunpack.c.l.s4 1983009808
    %v8000 = vunpack.c.0.s8 %v7999
    %v8001 = vlaneseq
    %v8002 = vshrl.u32 %v8001, 7
    %v8003 = vsub.s32 %v8000, %v8002
    %v8004 = vrot.slane %v7966, %v8003
    %v8006 = vunpack.c.l.s4 1983009808
    %v8007 = vunpack.c.0.s8 %v8006
    %v8008 = vlaneseq
    %v8009 = vshrl.u32 %v8008, 7
    %v8010 = vsub.s32 %v8007, %v8009
    %v8011 = vrot.slane %v7997, %v8010
    %v8012 = vcombine.high %v8004, %v8004
    %v8013 = vcombine.high %v8011, %v8011
    %v8014 = vcombine.high %v7967, %v7967
    %v8016 = vunpack.c.l.s4 1983009808
    %v8017 = vunpack.c.0.s8 %v8016
    %v8018 = vlaneseq
    %v8019 = vshrl.u32 %v8018, 7
    %v8020 = vsub.s32 %v8017, %v8019
    %v8021 = vrot.slane %v7967, %v8020
    %v8023 = vunpack.c.l.s4 1983009808
    %v8024 = vunpack.c.0.s8 %v8023
    %v8025 = vlaneseq
    %v8026 = vshrl.u32 %v8025, 7
    %v8027 = vsub.s32 %v8024, %v8026
    %v8028 = vrot.slane %v8014, %v8027
    %v8029 = vcombine.high %v8021, %v8021
    %v8030 = vcombine.high %v8028, %v8028
    %v8031 = vcombine.high %v7968, %v7968
    %v8033 = vunpack.c.l.s4 1983009808
    %v8034 = vunpack.c.0.s8 %v8033
    %v8035 = vlaneseq
    %v8036 = vshrl.u32 %v8035, 7
    %v8037 = vsub.s32 %v8034, %v8036
    %v8038 = vrot.slane %v7968, %v8037
    %v8040 = vunpack.c.l.s4 1983009808
    %v8041 = vunpack.c.0.s8 %v8040
    %v8042 = vlaneseq
    %v8043 = vshrl.u32 %v8042, 7
    %v8044 = vsub.s32 %v8041, %v8043
    %v8045 = vrot.slane %v8031, %v8044
    %v8046 = vcombine.high %v8038, %v8038
    %v8047 = vcombine.high %v8045, %v8045
    %8064 = vmatprep.subr.bf16.mxu0 %v7995
    %8065 = vmatpush1.bf16.xpose.msra.mxu0 %v7987
    %8066 = vmatprep.subr.bf16.mxu0 0
    %8067 = vmatpush1.bf16.xpose.msra.mxu0 0
    %8068 = vmatprep.subr.bf16.mxu0 0
    %8069 = vmatpush1.bf16.xpose.msra.mxu0 0
    %8070 = vmatprep.subr.bf16.mxu0 0
    %8071 = vmatpush1.bf16.xpose.msra.mxu0 0
    %8072 = vmatprep.subr.bf16.mxu0 0
    %8073 = vmatpush1.bf16.xpose.msra.mxu0 0
    %8074 = vmatprep.subr.bf16.mxu0 0
    %8075 = vmatpush1.bf16.xpose.msra.mxu0 0
    %8076 = vmatprep.subr.bf16.mxu0 0
    %8077 = vmatpush1.bf16.xpose.msra.mxu0 0
    %8078 = vmatprep.subr.bf16.mxu0 0
    %8079 = vmatpush1.bf16.xpose.msra.mxu0 0
    %8080 = vmatprep.subr.bf16.mxu0 0
    %8081 = vmatpush1.bf16.xpose.msra.mxu0 0
    %8082 = vmatprep.subr.bf16.mxu0 0
    %8083 = vmatpush1.bf16.xpose.msra.mxu0 0
    %8084 = vmatprep.subr.bf16.mxu0 0
    %8085 = vmatpush1.bf16.xpose.msra.mxu0 0
    %8086 = vmatprep.subr.bf16.mxu0 0
    %8087 = vmatpush1.bf16.xpose.msra.mxu0 0
    %8088 = vmatprep.subr.bf16.mxu0 0
    %8089 = vmatpush1.bf16.xpose.msra.mxu0 0
    %8090 = vmatprep.subr.bf16.mxu0 0
    %8091 = vmatpush1.bf16.xpose.msra.mxu0 0
    %8092 = vmatprep.subr.bf16.mxu0 0
    %8093 = vmatpush1.bf16.xpose.msra.mxu0 0
    %8094 = vmatprep.subr.bf16.mxu0 0
    %8095 = vmatpush1.bf16.xpose.msra.mxu0 0
    %8096 = vmatprep.mubr.bf16.mxu0 %v7950
    %8097 = vmatmul.mubr.bf16.gmra.mrb[0].mxu0 %v7949
    %v8098 = vpop.f32.mrb[0].mxu0
    %v8099 = vadd.f32 %v7974, %v8098
    %v8100 = vpop.f32.mrb[0].mxu0
    %v8101 = vpop.f32.mrb[0].mxu0
    %v8102 = vpop.f32.mrb[0].mxu0
    %8103 = vdwg.mxu0
    %8104 = vmatprep.subr.bf16.mxu0 %v7996
    %8105 = vmatpush1.bf16.xpose.msra.mxu0 %v7994
    %8106 = vmatprep.subr.bf16.mxu0 0
    %8107 = vmatpush1.bf16.xpose.msra.mxu0 0
    %8108 = vmatprep.subr.bf16.mxu0 0
    %8109 = vmatpush1.bf16.xpose.msra.mxu0 0
    %8110 = vmatprep.subr.bf16.mxu0 0
    %8111 = vmatpush1.bf16.xpose.msra.mxu0 0
    %8112 = vmatprep.subr.bf16.mxu0 0
    %8113 = vmatpush1.bf16.xpose.msra.mxu0 0
    %8114 = vmatprep.subr.bf16.mxu0 0
    %8115 = vmatpush1.bf16.xpose.msra.mxu0 0
    %8116 = vmatprep.subr.bf16.mxu0 0
    %8117 = vmatpush1.bf16.xpose.msra.mxu0 0
    %8118 = vmatprep.subr.bf16.mxu0 0
    %8119 = vmatpush1.bf16.xpose.msra.mxu0 0
    %8120 = vmatprep.subr.bf16.mxu0 0
    %8121 = vmatpush1.bf16.xpose.msra.mxu0 0
    %8122 = vmatprep.subr.bf16.mxu0 0
    %8123 = vmatpush1.bf16.xpose.msra.mxu0 0
    %8124 = vmatprep.subr.bf16.mxu0 0
    %8125 = vmatpush1.bf16.xpose.msra.mxu0 0
    %8126 = vmatprep.subr.bf16.mxu0 0
    %8127 = vmatpush1.bf16.xpose.msra.mxu0 0
    %8128 = vmatprep.subr.bf16.mxu0 0
    %8129 = vmatpush1.bf16.xpose.msra.mxu0 0
    %8130 = vmatprep.subr.bf16.mxu0 0
    %8131 = vmatpush1.bf16.xpose.msra.mxu0 0
    %8132 = vmatprep.subr.bf16.mxu0 0
    %8133 = vmatpush1.bf16.xpose.msra.mxu0 0
    %8134 = vmatprep.subr.bf16.mxu0 0
    %8135 = vmatpush1.bf16.xpose.msra.mxu0 0
    %8136 = vmatprep.mubr.bf16.mxu0 %v7952
    %8137 = vmatmul.mubr.bf16.gmra.mrb[0].mxu0 %v7951
    %v8138 = vpop.f32.mrb[0].mxu0
    %v8139 = vadd.f32 %v8099, %v8138
    %v8140 = vpop.f32.mrb[0].mxu0
    %v8141 = vpop.f32.mrb[0].mxu0
    %v8142 = vpop.f32.mrb[0].mxu0
    %8143 = vdwg.mxu0
    %8144 = vmatprep.subr.bf16.mxu0 %v8012
    %8145 = vmatpush1.bf16.xpose.msra.mxu0 %v8004
    %8146 = vmatprep.subr.bf16.mxu0 0
    %8147 = vmatpush1.bf16.xpose.msra.mxu0 0
    %8148 = vmatprep.subr.bf16.mxu0 0
    %8149 = vmatpush1.bf16.xpose.msra.mxu0 0
    %8150 = vmatprep.subr.bf16.mxu0 0
    %8151 = vmatpush1.bf16.xpose.msra.mxu0 0
    %8152 = vmatprep.subr.bf16.mxu0 0
    %8153 = vmatpush1.bf16.xpose.msra.mxu0 0
    %8154 = vmatprep.subr.bf16.mxu0 0
    %8155 = vmatpush1.bf16.xpose.msra.mxu0 0
    %8156 = vmatprep.subr.bf16.mxu0 0
    %8157 = vmatpush1.bf16.xpose.msra.mxu0 0
    %8158 = vmatprep.subr.bf16.mxu0 0
    %8159 = vmatpush1.bf16.xpose.msra.mxu0 0
    %8160 = vmatprep.subr.bf16.mxu0 0
    %8161 = vmatpush1.bf16.xpose.msra.mxu0 0
    %8162 = vmatprep.subr.bf16.mxu0 0
    %8163 = vmatpush1.bf16.xpose.msra.mxu0 0
    %8164 = vmatprep.subr.bf16.mxu0 0
    %8165 = vmatpush1.bf16.xpose.msra.mxu0 0
    %8166 = vmatprep.subr.bf16.mxu0 0
    %8167 = vmatpush1.bf16.xpose.msra.mxu0 0
    %8168 = vmatprep.subr.bf16.mxu0 0
    %8169 = vmatpush1.bf16.xpose.msra.mxu0 0
    %8170 = vmatprep.subr.bf16.mxu0 0
    %8171 = vmatpush1.bf16.xpose.msra.mxu0 0
    %8172 = vmatprep.subr.bf16.mxu0 0
    %8173 = vmatpush1.bf16.xpose.msra.mxu0 0
    %8174 = vmatprep.subr.bf16.mxu0 0
    %8175 = vmatpush1.bf16.xpose.msra.mxu0 0
    %8176 = vmatprep.mubr.bf16.mxu0 %v7954
    %8177 = vmatmul.mubr.bf16.gmra.mrb[0].mxu0 %v7953
    %v8178 = vpop.f32.mrb[0].mxu0
    %v8179 = vadd.f32 %v8139, %v8178
    %v8180 = vpop.f32.mrb[0].mxu0
    %v8181 = vpop.f32.mrb[0].mxu0
    %v8182 = vpop.f32.mrb[0].mxu0
    %8183 = vdwg.mxu0
    %8184 = vmatprep.subr.bf16.mxu0 %v8013
    %8185 = vmatpush1.bf16.xpose.msra.mxu0 %v8011
    %8186 = vmatprep.subr.bf16.mxu0 0
    %8187 = vmatpush1.bf16.xpose.msra.mxu0 0
    %8188 = vmatprep.subr.bf16.mxu0 0
    %8189 = vmatpush1.bf16.xpose.msra.mxu0 0
    %8190 = vmatprep.subr.bf16.mxu0 0
    %8191 = vmatpush1.bf16.xpose.msra.mxu0 0
    %8192 = vmatprep.subr.bf16.mxu0 0
    %8193 = vmatpush1.bf16.xpose.msra.mxu0 0
    %8194 = vmatprep.subr.bf16.mxu0 0
    %8195 = vmatpush1.bf16.xpose.msra.mxu0 0
    %8196 = vmatprep.subr.bf16.mxu0 0
    %8197 = vmatpush1.bf16.xpose.msra.mxu0 0
    %8198 = vmatprep.subr.bf16.mxu0 0
    %8199 = vmatpush1.bf16.xpose.msra.mxu0 0
    %8200 = vmatprep.subr.bf16.mxu0 0
    %8201 = vmatpush1.bf16.xpose.msra.mxu0 0
    %8202 = vmatprep.subr.bf16.mxu0 0
    %8203 = vmatpush1.bf16.xpose.msra.mxu0 0
    %8204 = vmatprep.subr.bf16.mxu0 0
    %8205 = vmatpush1.bf16.xpose.msra.mxu0 0
    %8206 = vmatprep.subr.bf16.mxu0 0
    %8207 = vmatpush1.bf16.xpose.msra.mxu0 0
    %8208 = vmatprep.subr.bf16.mxu0 0
    %8209 = vmatpush1.bf16.xpose.msra.mxu0 0
    %8210 = vmatprep.subr.bf16.mxu0 0
    %8211 = vmatpush1.bf16.xpose.msra.mxu0 0
    %8212 = vmatprep.subr.bf16.mxu0 0
    %8213 = vmatpush1.bf16.xpose.msra.mxu0 0
    %8214 = vmatprep.subr.bf16.mxu0 0
    %8215 = vmatpush1.bf16.xpose.msra.mxu0 0
    %8216 = vmatprep.mubr.bf16.mxu0 %v7956
    %8217 = vmatmul.mubr.bf16.gmra.mrb[0].mxu0 %v7955
    %v8218 = vpop.f32.mrb[0].mxu0
    %v8219 = vadd.f32 %v8179, %v8218
    %v8220 = vpop.f32.mrb[0].mxu0
    %v8221 = vpop.f32.mrb[0].mxu0
    %v8222 = vpop.f32.mrb[0].mxu0
    %8223 = vdwg.mxu0
    %8224 = vmatprep.subr.bf16.mxu0 %v8029
    %8225 = vmatpush1.bf16.xpose.msra.mxu0 %v8021
    %8226 = vmatprep.subr.bf16.mxu0 0
    %8227 = vmatpush1.bf16.xpose.msra.mxu0 0
    %8228 = vmatprep.subr.bf16.mxu0 0
    %8229 = vmatpush1.bf16.xpose.msra.mxu0 0
    %8230 = vmatprep.subr.bf16.mxu0 0
    %8231 = vmatpush1.bf16.xpose.msra.mxu0 0
    %8232 = vmatprep.subr.bf16.mxu0 0
    %8233 = vmatpush1.bf16.xpose.msra.mxu0 0
    %8234 = vmatprep.subr.bf16.mxu0 0
    %8235 = vmatpush1.bf16.xpose.msra.mxu0 0
    %8236 = vmatprep.subr.bf16.mxu0 0
    %8237 = vmatpush1.bf16.xpose.msra.mxu0 0
    %8238 = vmatprep.subr.bf16.mxu0 0
    %8239 = vmatpush1.bf16.xpose.msra.mxu0 0
    %8240 = vmatprep.subr.bf16.mxu0 0
    %8241 = vmatpush1.bf16.xpose.msra.mxu0 0
    %8242 = vmatprep.subr.bf16.mxu0 0
    %8243 = vmatpush1.bf16.xpose.msra.mxu0 0
    %8244 = vmatprep.subr.bf16.mxu0 0
    %8245 = vmatpush1.bf16.xpose.msra.mxu0 0
    %8246 = vmatprep.subr.bf16.mxu0 0
    %8247 = vmatpush1.bf16.xpose.msra.mxu0 0
    %8248 = vmatprep.subr.bf16.mxu0 0
    %8249 = vmatpush1.bf16.xpose.msra.mxu0 0
    %8250 = vmatprep.subr.bf16.mxu0 0
    %8251 = vmatpush1.bf16.xpose.msra.mxu0 0
    %8252 = vmatprep.subr.bf16.mxu0 0
    %8253 = vmatpush1.bf16.xpose.msra.mxu0 0
    %8254 = vmatprep.subr.bf16.mxu0 0
    %8255 = vmatpush1.bf16.xpose.msra.mxu0 0
    %8256 = vmatprep.mubr.bf16.mxu0 %v7958
    %8257 = vmatmul.mubr.bf16.gmra.mrb[0].mxu0 %v7957
    %v8258 = vpop.f32.mrb[0].mxu0
    %v8259 = vadd.f32 %v8219, %v8258
    %v8260 = vpop.f32.mrb[0].mxu0
    %v8261 = vpop.f32.mrb[0].mxu0
    %v8262 = vpop.f32.mrb[0].mxu0
    %8263 = vdwg.mxu0
    %8264 = vmatprep.subr.bf16.mxu0 %v8030
    %8265 = vmatpush1.bf16.xpose.msra.mxu0 %v8028
    %8266 = vmatprep.subr.bf16.mxu0 0
    %8267 = vmatpush1.bf16.xpose.msra.mxu0 0
    %8268 = vmatprep.subr.bf16.mxu0 0
    %8269 = vmatpush1.bf16.xpose.msra.mxu0 0
    %8270 = vmatprep.subr.bf16.mxu0 0
    %8271 = vmatpush1.bf16.xpose.msra.mxu0 0
    %8272 = vmatprep.subr.bf16.mxu0 0
    %8273 = vmatpush1.bf16.xpose.msra.mxu0 0
    %8274 = vmatprep.subr.bf16.mxu0 0
    %8275 = vmatpush1.bf16.xpose.msra.mxu0 0
    %8276 = vmatprep.subr.bf16.mxu0 0
    %8277 = vmatpush1.bf16.xpose.msra.mxu0 0
    %8278 = vmatprep.subr.bf16.mxu0 0
    %8279 = vmatpush1.bf16.xpose.msra.mxu0 0
    %8280 = vmatprep.subr.bf16.mxu0 0
    %8281 = vmatpush1.bf16.xpose.msra.mxu0 0
    %8282 = vmatprep.subr.bf16.mxu0 0
    %8283 = vmatpush1.bf16.xpose.msra.mxu0 0
    %8284 = vmatprep.subr.bf16.mxu0 0
    %8285 = vmatpush1.bf16.xpose.msra.mxu0 0
    %8286 = vmatprep.subr.bf16.mxu0 0
    %8287 = vmatpush1.bf16.xpose.msra.mxu0 0
    %8288 = vmatprep.subr.bf16.mxu0 0
    %8289 = vmatpush1.bf16.xpose.msra.mxu0 0
    %8290 = vmatprep.subr.bf16.mxu0 0
    %8291 = vmatpush1.bf16.xpose.msra.mxu0 0
    %8292 = vmatprep.subr.bf16.mxu0 0
    %8293 = vmatpush1.bf16.xpose.msra.mxu0 0
    %8294 = vmatprep.subr.bf16.mxu0 0
    %8295 = vmatpush1.bf16.xpose.msra.mxu0 0
    %8296 = vmatprep.mubr.bf16.mxu0 %v7960
    %8297 = vmatmul.mubr.bf16.gmra.mrb[0].mxu0 %v7959
    %v8298 = vpop.f32.mrb[0].mxu0
    %v8299 = vadd.f32 %v8259, %v8298
    %v8300 = vpop.f32.mrb[0].mxu0
    %v8301 = vpop.f32.mrb[0].mxu0
    %v8302 = vpop.f32.mrb[0].mxu0
    %8303 = vdwg.mxu0
    %8304 = vmatprep.subr.bf16.mxu0 %v8046
    %8305 = vmatpush1.bf16.xpose.msra.mxu0 %v8038
    %8306 = vmatprep.subr.bf16.mxu0 0
    %8307 = vmatpush1.bf16.xpose.msra.mxu0 0
    %8308 = vmatprep.subr.bf16.mxu0 0
    %8309 = vmatpush1.bf16.xpose.msra.mxu0 0
    %8310 = vmatprep.subr.bf16.mxu0 0
    %8311 = vmatpush1.bf16.xpose.msra.mxu0 0
    %8312 = vmatprep.subr.bf16.mxu0 0
    %8313 = vmatpush1.bf16.xpose.msra.mxu0 0
    %8314 = vmatprep.subr.bf16.mxu0 0
    %8315 = vmatpush1.bf16.xpose.msra.mxu0 0
    %8316 = vmatprep.subr.bf16.mxu0 0
    %8317 = vmatpush1.bf16.xpose.msra.mxu0 0
    %8318 = vmatprep.subr.bf16.mxu0 0
    %8319 = vmatpush1.bf16.xpose.msra.mxu0 0
    %8320 = vmatprep.subr.bf16.mxu0 0
    %8321 = vmatpush1.bf16.xpose.msra.mxu0 0
    %8322 = vmatprep.subr.bf16.mxu0 0
    %8323 = vmatpush1.bf16.xpose.msra.mxu0 0
    %8324 = vmatprep.subr.bf16.mxu0 0
    %8325 = vmatpush1.bf16.xpose.msra.mxu0 0
    %8326 = vmatprep.subr.bf16.mxu0 0
    %8327 = vmatpush1.bf16.xpose.msra.mxu0 0
    %8328 = vmatprep.subr.bf16.mxu0 0
    %8329 = vmatpush1.bf16.xpose.msra.mxu0 0
    %8330 = vmatprep.subr.bf16.mxu0 0
    %8331 = vmatpush1.bf16.xpose.msra.mxu0 0
    %8332 = vmatprep.subr.bf16.mxu0 0
    %8333 = vmatpush1.bf16.xpose.msra.mxu0 0
    %8334 = vmatprep.subr.bf16.mxu0 0
    %8335 = vmatpush1.bf16.xpose.msra.mxu0 0
    %8336 = vmatprep.mubr.bf16.mxu0 %v7962
    %8337 = vmatmul.mubr.bf16.gmra.mrb[0].mxu0 %v7961
    %v8338 = vpop.f32.mrb[0].mxu0
    %v8339 = vadd.f32 %v8299, %v8338
    %v8340 = vpop.f32.mrb[0].mxu0
    %v8341 = vpop.f32.mrb[0].mxu0
    %v8342 = vpop.f32.mrb[0].mxu0
    %8343 = vdwg.mxu0
    %8344 = vmatprep.subr.bf16.mxu0 %v8047
    %8345 = vmatpush1.bf16.xpose.msra.mxu0 %v8045
    %8346 = vmatprep.subr.bf16.mxu0 0
    %8347 = vmatpush1.bf16.xpose.msra.mxu0 0
    %8348 = vmatprep.subr.bf16.mxu0 0
    %8349 = vmatpush1.bf16.xpose.msra.mxu0 0
    %8350 = vmatprep.subr.bf16.mxu0 0
    %8351 = vmatpush1.bf16.xpose.msra.mxu0 0
    %8352 = vmatprep.subr.bf16.mxu0 0
    %8353 = vmatpush1.bf16.xpose.msra.mxu0 0
    %8354 = vmatprep.subr.bf16.mxu0 0
    %8355 = vmatpush1.bf16.xpose.msra.mxu0 0
    %8356 = vmatprep.subr.bf16.mxu0 0
    %8357 = vmatpush1.bf16.xpose.msra.mxu0 0
    %8358 = vmatprep.subr.bf16.mxu0 0
    %8359 = vmatpush1.bf16.xpose.msra.mxu0 0
    %8360 = vmatprep.subr.bf16.mxu0 0
    %8361 = vmatpush1.bf16.xpose.msra.mxu0 0
    %8362 = vmatprep.subr.bf16.mxu0 0
    %8363 = vmatpush1.bf16.xpose.msra.mxu0 0
    %8364 = vmatprep.subr.bf16.mxu0 0
    %8365 = vmatpush1.bf16.xpose.msra.mxu0 0
    %8366 = vmatprep.subr.bf16.mxu0 0
    %8367 = vmatpush1.bf16.xpose.msra.mxu0 0
    %8368 = vmatprep.subr.bf16.mxu0 0
    %8369 = vmatpush1.bf16.xpose.msra.mxu0 0
    %8370 = vmatprep.subr.bf16.mxu0 0
    %8371 = vmatpush1.bf16.xpose.msra.mxu0 0
    %8372 = vmatprep.subr.bf16.mxu0 0
    %8373 = vmatpush1.bf16.xpose.msra.mxu0 0
    %8374 = vmatprep.subr.bf16.mxu0 0
    %8375 = vmatpush1.bf16.xpose.msra.mxu0 0
    %8376 = vmatprep.mubr.bf16.mxu0 %v7964
    %8377 = vmatmul.mubr.bf16.gmra.mrb[0].mxu0 %v7963
    %v8378 = vpop.f32.mrb[0].mxu0
    %v8379 = vadd.f32 %v8339, %v8378
    %v8380 = vpop.f32.mrb[0].mxu0
    %v8381 = vpop.f32.mrb[0].mxu0
    %v8382 = vpop.f32.mrb[0].mxu0
    %8383 = vdwg.mxu0
    %vm8384 = vcmask 23552
    %8385 = vst.msk [vmem:[%s7] sm:$0xff] %vm8384, %v8379
    // Predicated region
    $region54: #{custom_cache_options_forward.1} parent=1 // pred_check
      _
    $region55: #{custom_cache_options_forward.1} parent=1 // pred_check_branch
      %8387 = sbr.rel (0) target = $region57
    $region56: #{custom_cache_options_forward.1} parent=1 // pred_region
      _
    $region57: #{custom_cache_options_forward.1} parent=1 // pred_fallthru
      _
    // Predicated region
    $region58: #{custom_cache_options_forward.1} parent=1 // pred_check
      _
    $region59: #{custom_cache_options_forward.1} parent=1 // pred_check_branch
      %8389 = sbr.rel (0) target = $region61
    $region60: #{custom_cache_options_forward.1} parent=1 // pred_region
      _
    $region61: #{custom_cache_options_forward.1} parent=1 // pred_fallthru
      _
    %8390 = vsyncpa [#allocation3], 1
    %8391 = vsyncpa [#allocation5], 1
    %8392 = vsyncpa [#allocation8], 1
    %8393 = vsyncpa [#allocation11], 1

</llo_original>
